<compile_context>
chip_gen: v7x
topology: tpu7x:2x2x1
jax: 0.10.0
libtpu: 0.0.40
codegen_flags: <defaults>
</compile_context>

<pallas_src>
import functools

import jax
import jax.numpy as jnp
from jax.experimental import pallas as pl
from jax.experimental.pallas import tpu as pltpu


LANE = 128


def _vmem_limit_bytes():
    cap = 64 * 1024 * 1024                       # conservative fallback (v7x physical VMEM)
    try:
        info = pltpu.get_tpu_info()
        cap = int(getattr(info, "vmem_capacity_bytes", cap))
    except Exception:
        pass
    return (cap * 3) // 4                        # ~96 MiB on v5e/v6e (128 MiB), ~48 MiB on v7x


VMEM_LIMIT = _vmem_limit_bytes()


def _round_up(x, m):
    return (x + m - 1) // m * m


def _conv_step_vmem_bytes(th, wdt, cin, cout, ncls):
    """Conservative per-grid-step VMEM estimate for the fused conv kernel."""
    win = 2 * (th + 2) * (wdt + 2) * _round_up(cin, LANE) * 2      # bf16 window, 2x buffered
    patches = th * wdt * _round_up(9 * cin, LANE) * 2              # bf16 im2col operand
    acc = 2 * th * wdt * _round_up(cout, LANE) * 4                 # f32 accumulator + epilogue tmp
    oc = ncls if ncls else cout
    out = 2 * th * wdt * _round_up(oc, LANE) * 4                   # output block, 2x buffered
    return win + patches + acc + out + (1 << 20)


def _pick_row_tile(n, h, wdt, cin, cout, *, need_even, ncls=0):
    """Largest row-tile (divisor of H) whose per-step VMEM fits the budget."""
    budget = VMEM_LIMIT // 2                     # leave headroom for compiler scratch
    cands = [d for d in range(h, 0, -1)
             if h % d == 0 and (not need_even or d % 2 == 0)]
    if not cands:
        cands = [h]
    feasible = [d for d in cands if _conv_step_vmem_bytes(d, wdt, cin, cout, ncls) <= budget]
    if not feasible:
        feasible = [cands[-1]]                   # smallest candidate; best effort
    if n == 1:
        # keep >= 2 grid steps so both v7x TensorCores get work under "parallel"
        multi = [d for d in feasible if h // d >= 2]
        if multi:
            return multi[0]
    return feasible[0]


# ----------------------------------------------------------------------------
# Pallas kernel: fused 3x3 conv (single K=9*Cin MXU dot via in-kernel im2col)
#   epilogue: BN/bias scale+shift, ReLU, optional 2x2 max-pool OR fused 1x1 conv
# ----------------------------------------------------------------------------
def _conv3x3_fused_kernel(x_ref, w_ref, scale_ref, shift_ref, *rest,
                          apply_relu, fuse_pool, fuse_final):
    # x_ref      : (1, th+2, W+2, Cin)  bf16   spatially pre-padded row window
    # w_ref      : (9*Cin, Cout)        bf16   HWIO weights flattened (kh,kw,cin)
    # scale/shift: (1, Cout)            f32    folded eval-mode BN * conv-bias
    # [fw_ref (Cout, n_cls) f32, fb_ref (1, n_cls) f32]      when fuse_final
    # o_ref      : (1,th,W,Cout) | (1,th/2,W/2,Cout) | (1,th,W,n_cls)
    if fuse_final:
        fw_ref, fb_ref, o_ref = rest
    else:
        (o_ref,) = rest

    x = x_ref[0]                                  # (th+2, W+2, Cin)
    hp2, wp2, cin = x.shape
    th, wdt = hp2 - 2, wp2 - 2
    cout = w_ref.shape[1]

    # im2col: 9 shifted (th, W, Cin) views concatenated along channels -> ONE MXU dot
    taps = [x[kh:kh + th, kw:kw + wdt, :] for kh in range(3) for kw in range(3)]
    patches = jnp.concatenate(taps, axis=2).reshape(th * wdt, 9 * cin)   # (th*W, 9*Cin)

    acc = jnp.dot(patches, w_ref[...], preferred_element_type=jnp.float32)
    acc = acc * scale_ref[...] + shift_ref[...]
    if apply_relu:
        acc = jnp.maximum(acc, 0.0)

    if fuse_final:                                # fused final 1x1 conv (+bias, no ReLU)
        out = jnp.dot(acc, fw_ref[...], preferred_element_type=jnp.float32) + fb_ref[...]
        o_ref[...] = out.reshape(1, th, wdt, out.shape[-1]).astype(o_ref.dtype)
    elif fuse_pool:                               # fused 2x2 max-pool (th, W even)
        r = acc.reshape(th, wdt // 2, 2, cout)
        r = jnp.maximum(r[:, :, 0, :], r[:, :, 1, :])        # horizontal pairs
        r = r.reshape(th // 2, 2, wdt // 2, cout)
        r = jnp.maximum(r[:, 0], r[:, 1])                    # vertical pairs
        o_ref[...] = r.reshape(1, th // 2, wdt // 2, cout).astype(o_ref.dtype)
    else:
        o_ref[...] = acc.reshape(1, th, wdt, cout).astype(o_ref.dtype)


def conv3x3_bn_act(x, p, *, apply_relu=True, fuse_pool=False, final=None,
                   out_dtype=jnp.bfloat16):
    """Fused 3x3 conv + folded BN/bias (+ReLU) Pallas kernel on real (unpadded) channels.

    x: (N, H, W, Cin) NHWC.
    fuse_pool: fuse a 2x2 max-pool into the epilogue (requires even H, W).
    final:     params of a 1x1 conv fused after the ReLU (FCNN2.final).
    """
    n, h, wdt, cin = x.shape
    cout = p["w"].shape[-1]
    assert not (fuse_pool and final is not None)

    w2d = p["w"].reshape(9 * cin, cout).astype(jnp.bfloat16)
    scale = p["scale"].reshape(1, cout).astype(jnp.float32)
    shift = p["shift"].reshape(1, cout).astype(jnp.float32)

    fuse_pool = bool(fuse_pool and h % 2 == 0 and wdt % 2 == 0)
    ncls = int(final["w"].shape[-1]) if final is not None else 0

    th = _pick_row_tile(n, h, wdt, cin, cout, need_even=fuse_pool, ncls=ncls)
    nrt = h // th
    xp = jnp.pad(x.astype(jnp.bfloat16), ((0, 0), (1, 1), (1, 1), (0, 0)))
    if nrt == 1:
        win = xp
    else:
        # TODO(synk): for tall images replace this overlapping-row-window copy with an
        # in-kernel halo DMA (memory_space=pl.ANY + pltpu.make_async_copy) so each input
        # row is read from HBM exactly once.
        win = jnp.stack([xp[:, r * th:r * th + th + 2] for r in range(nrt)], axis=1)
        win = win.reshape(n * nrt, th + 2, wdt + 2, cin)
    nb = n * nrt

    inputs = [win, w2d, scale, shift]
    in_specs = [
        pl.BlockSpec((1, th + 2, wdt + 2, cin), lambda b: (b, 0, 0, 0)),
        pl.BlockSpec((9 * cin, cout), lambda b: (0, 0)),
        pl.BlockSpec((1, cout), lambda b: (0, 0)),
        pl.BlockSpec((1, cout), lambda b: (0, 0)),
    ]
    if final is not None:
        fw = (final["w"].reshape(cout, ncls) * final["scale"][None, :]).astype(jnp.float32)
        fb = final["shift"].reshape(1, ncls).astype(jnp.float32)
        inputs += [fw, fb]
        in_specs += [pl.BlockSpec((cout, ncls), lambda b: (0, 0)),
                     pl.BlockSpec((1, ncls), lambda b: (0, 0))]
        out_h, out_w, oc = th, wdt, ncls
    elif fuse_pool:
        out_h, out_w, oc = th // 2, wdt // 2, cout
    else:
        out_h, out_w, oc = th, wdt, cout

    flops = 2 * nb * th * wdt * (9 * cin) * cout
    if final is not None:
        flops += 2 * nb * th * wdt * cout * ncls
    bytes_accessed = int(win.size * 2 + nb * w2d.size * 2
                         + nb * out_h * out_w * oc * jnp.dtype(out_dtype).itemsize)

    out = pl.pallas_call(
        functools.partial(_conv3x3_fused_kernel, apply_relu=apply_relu,
                          fuse_pool=fuse_pool, fuse_final=final is not None),
        out_shape=jax.ShapeDtypeStruct((nb, out_h, out_w, oc), out_dtype),
        grid=(nb,),
        in_specs=in_specs,
        out_specs=pl.BlockSpec((1, out_h, out_w, oc), lambda b: (b, 0, 0, 0)),
        compiler_params=pltpu.CompilerParams(
            dimension_semantics=("parallel",),
            vmem_limit_bytes=VMEM_LIMIT,
        ),
        cost_estimate=pl.CostEstimate(flops=int(flops), transcendentals=0,
                                      bytes_accessed=bytes_accessed),
    )(*inputs)

    return out.reshape(n, nrt * out_h, out_w, oc)


# ----------------------------------------------------------------------------
# Plain-JAX glue (fallback pool / bilinear upsample / spatial pad)
# ----------------------------------------------------------------------------
def maxpool2x2(x):
    """Fallback (only used when H or W is odd); normally fused into the conv epilogue."""
    n, h, w, c = x.shape
    h2, w2 = (h // 2) * 2, (w // 2) * 2          # PyTorch MaxPool2d(2,2) floor behavior
    x = x[:, :h2, :w2, :]
    return x.reshape(n, h2 // 2, 2, w2 // 2, 2, c).max(axis=(2, 4))


def upsample_bilinear_x2(x):
    """nn.Upsample(scale_factor=2, mode='bilinear', align_corners=True) on C=32 data."""
    n, h, w, c = x.shape
    oh, ow = 2 * h, 2 * w
    dtype = x.dtype
    xf = x.astype(jnp.float32)

    def coords(in_size, out_size):
        if in_size == 1:
            z = jnp.zeros((out_size,), jnp.float32)
            zi = jnp.zeros((out_size,), jnp.int32)
            return z, zi, zi
        pos = jnp.arange(out_size, dtype=jnp.float32) * (in_size - 1) / (out_size - 1)
        lo = jnp.floor(pos).astype(jnp.int32)
        hi = jnp.minimum(lo + 1, in_size - 1)
        return pos - lo.astype(jnp.float32), lo, hi

    fy, y0, y1 = coords(h, oh)
    fx, x0, x1 = coords(w, ow)
    rows = xf[:, y0] * (1.0 - fy)[None, :, None, None] + xf[:, y1] * fy[None, :, None, None]
    out = (rows[:, :, x0] * (1.0 - fx)[None, None, :, None]
           + rows[:, :, x1] * fx[None, None, :, None])
    return out.astype(dtype)


def match_spatial(x2, target_h, target_w):
    """Zero-pad x2 (NHWC) to (target_h, target_w) -- mirrors FCNN2.ajust_padding."""
    dy = target_h - x2.shape[1]
    dx = target_w - x2.shape[2]
    return jnp.pad(x2, ((0, 0), (dy // 2, dy - dy // 2),
                        (dx // 2, dx - dx // 2), (0, 0)))


# ----------------------------------------------------------------------------
# Parameter init (deterministic, in-script).  BN in eval mode, folded to scale/shift.
# ----------------------------------------------------------------------------
def _init_conv3x3_bn(key, cin, cout, eps=1e-5):
    kw_, kb = jax.random.split(key)
    w = jax.random.normal(kw_, (3, 3, cin, cout), jnp.float32) * (2.0 / (9 * cin)) ** 0.5
    b = jax.random.normal(kb, (cout,), jnp.float32) * 0.01
    gamma = jnp.ones((cout,), jnp.float32)       # PyTorch BatchNorm2d fresh defaults
    beta = jnp.zeros((cout,), jnp.float32)
    mean = jnp.zeros((cout,), jnp.float32)
    var = jnp.ones((cout,), jnp.float32)
    bn_scale = gamma / jnp.sqrt(var + eps)
    bn_shift = beta - mean * bn_scale
    # fused epilogue:  y = conv * bn_scale + (b * bn_scale + bn_shift)
    return {"w": w, "scale": bn_scale, "shift": b * bn_scale + bn_shift}


def _init_conv1x1(key, cin, cout):
    kw_, kb = jax.random.split(key)
    w = jax.random.normal(kw_, (1, 1, cin, cout), jnp.float32) * (2.0 / cin) ** 0.5
    b = jax.random.normal(kb, (cout,), jnp.float32) * 0.01
    return {"w": w, "scale": jnp.ones((cout,), jnp.float32), "shift": b}


def init_fcnn2(key, input_channels, num_classes):
    nb = 32
    ks = jax.random.split(key, 5)
    return {
        "conv0_0": {"c1": _init_conv3x3_bn(ks[0], input_channels, nb),
                    "c2": _init_conv3x3_bn(ks[1], nb, nb)},
        "conv0_1": {"c1": _init_conv3x3_bn(ks[2], nb, nb),
                    "c2": _init_conv3x3_bn(ks[3], nb, nb)},
        "final": _init_conv1x1(ks[4], nb, num_classes),
    }


# ----------------------------------------------------------------------------
# FCNN2 forward (NCHW in / NCHW out, matching the PyTorch module)
# ----------------------------------------------------------------------------
def fcnn2_forward(params, x_nchw, *, num_classes):
    x = jnp.transpose(x_nchw, (0, 2, 3, 1))                  # NCHW -> NHWC
    n, h, w, _ = x.shape
    xk = x.astype(jnp.bfloat16)

    # x0_0 = pool(conv0_0(input)); the 2x2 max-pool is fused into the 2nd conv epilogue
    can_fuse_pool = (h % 2 == 0) and (w % 2 == 0)
    hh = conv3x3_bn_act(xk, params["conv0_0"]["c1"])
    hh = conv3x3_bn_act(hh, params["conv0_0"]["c2"], fuse_pool=can_fuse_pool)
    x0_0 = hh if can_fuse_pool else maxpool2x2(hh)

    # x0_1 path: bilinear x2 upsample (align_corners=True) + ajust_padding to input size
    up = match_spatial(upsample_bilinear_x2(x0_0), h, w).astype(jnp.bfloat16)

    # conv0_1 with the final 1x1 conv (+bias, no ReLU) fused into the 2nd conv epilogue
    hh = conv3x3_bn_act(up, params["conv0_1"]["c1"])
    out = conv3x3_bn_act(hh, params["conv0_1"]["c2"], final=params["final"],
                         out_dtype=jnp.float32)
    assert out.shape[-1] == num_classes
    return jnp.transpose(out, (0, 3, 1, 2))                  # -> NCHW (N, classes, H, W)


# ----------------------------------------------------------------------------
# Plain-JAX f32 reference (for a loose-tolerance self check)
# ----------------------------------------------------------------------------
def _ref_forward(params, x_nchw):
    x = jnp.transpose(x_nchw, (0, 2, 3, 1)).astype(jnp.float32)

    def conv(hh, cp, relu):
        y = jax.lax.conv_general_dilated(
            hh, cp["w"], (1, 1), "SAME",
            dimension_numbers=("NHWC", "HWIO", "NHWC"),
            precision=jax.lax.Precision.HIGHEST)
        y = y * cp["scale"] + cp["shift"]
        return jnp.maximum(y, 0.0) if relu else y

    hh = conv(conv(x, params["conv0_0"]["c1"], True), params["conv0_0"]["c2"], True)
    up = match_spatial(upsample_bilinear_x2(maxpool2x2(hh)), x.shape[1], x.shape[2])
    hh = conv(conv(up, params["conv0_1"]["c1"], True), params["conv0_1"]["c2"], True)
    y = conv(hh, params["final"], relu=False)
    return jnp.transpose(y, (0, 3, 1, 2))


# ----------------------------------------------------------------------------
if __name__ == "__main__":
    INPUT_CHANNELS = 4
    NUM_CLASSES = 3
    BATCH, H, W = 2, 16, 16

    key = jax.random.PRNGKey(0)
    pkey, xkey = jax.random.split(key)
    params = init_fcnn2(pkey, INPUT_CHANNELS, NUM_CLASSES)
    x = jax.random.normal(xkey, (BATCH, INPUT_CHANNELS, H, W), jnp.float32)

    fwd = jax.jit(functools.partial(fcnn2_forward, num_classes=NUM_CLASSES))
    out = fwd(params, x)
    jax.block_until_ready(out)

    assert out.shape == (BATCH, NUM_CLASSES, H, W), out.shape
    assert out.dtype == jnp.float32
    assert bool(jnp.all(jnp.isfinite(out)))

    # Loose-tolerance check vs f32 reference (kernel path uses bf16 MXU inputs).
    ref = jax.jit(_ref_forward)(params, x)
    err = float(jnp.max(jnp.abs(out - ref)))
    assert err < 0.25, f"max abs error vs reference: {err}"

    print("KERNEL_OK")
</pallas_src>

<mosaic_0001>
module attributes {stable_mosaic.version = 11 : i64} {
  func.func @_conv3x3_fused_kernel(%arg0: i32, %arg1: memref<1x18x18x4xbf16, #tpu.memory_space<vmem>>, %arg2: memref<36x32xbf16, #tpu.memory_space<vmem>>, %arg3: memref<1x32xf32, #tpu.memory_space<vmem>>, %arg4: memref<1x32xf32, #tpu.memory_space<vmem>>, %arg5: memref<1x16x16x32xbf16, #tpu.memory_space<vmem>>) attributes {dimension_semantics = [#tpu.dimension_semantics<parallel>], iteration_bounds = array<i64: 2>, scalar_prefetch = 0 : i64, scratch_operands = 0 : i64, tpu.core_type = #tpu.core_type<tc>, window_params = [{transform_indices = @transform_0, window_bounds = array<i64: 1, 18, 18, 4>}, {pipeline_mode = #tpu.pipeline_mode<synchronous>, transform_indices = @transform_1, window_bounds = array<i64: 36, 32>}, {pipeline_mode = #tpu.pipeline_mode<synchronous>, transform_indices = @transform_2, window_bounds = array<i64: 1, 32>}, {pipeline_mode = #tpu.pipeline_mode<synchronous>, transform_indices = @transform_3, window_bounds = array<i64: 1, 32>}, {transform_indices = @transform_4, window_bounds = array<i64: 1, 16, 16, 32>}]} {
    %c0 = arith.constant 0 : index
    %c0_0 = arith.constant 0 : index
    %c0_1 = arith.constant 0 : index
    %c0_2 = arith.constant 0 : index
    %0 = vector.load %arg1[%c0, %c0_0, %c0_1, %c0_2] : memref<1x18x18x4xbf16, #tpu.memory_space<vmem>>, vector<1x18x18x4xbf16>
    %1 = vector.shape_cast %0 : vector<1x18x18x4xbf16> to vector<18x18x4xbf16>
    %2 = vector.extract_strided_slice %1 {offsets = [0, 0, 0], sizes = [16, 16, 4], strides = [1, 1, 1]} : vector<18x18x4xbf16> to vector<16x16x4xbf16>
    %3 = vector.extract_strided_slice %1 {offsets = [0, 1, 0], sizes = [16, 16, 4], strides = [1, 1, 1]} : vector<18x18x4xbf16> to vector<16x16x4xbf16>
    %4 = vector.extract_strided_slice %1 {offsets = [0, 2, 0], sizes = [16, 16, 4], strides = [1, 1, 1]} : vector<18x18x4xbf16> to vector<16x16x4xbf16>
    %5 = vector.extract_strided_slice %1 {offsets = [1, 0, 0], sizes = [16, 16, 4], strides = [1, 1, 1]} : vector<18x18x4xbf16> to vector<16x16x4xbf16>
    %6 = vector.extract_strided_slice %1 {offsets = [1, 1, 0], sizes = [16, 16, 4], strides = [1, 1, 1]} : vector<18x18x4xbf16> to vector<16x16x4xbf16>
    %7 = vector.extract_strided_slice %1 {offsets = [1, 2, 0], sizes = [16, 16, 4], strides = [1, 1, 1]} : vector<18x18x4xbf16> to vector<16x16x4xbf16>
    %8 = vector.extract_strided_slice %1 {offsets = [2, 0, 0], sizes = [16, 16, 4], strides = [1, 1, 1]} : vector<18x18x4xbf16> to vector<16x16x4xbf16>
    %9 = vector.extract_strided_slice %1 {offsets = [2, 1, 0], sizes = [16, 16, 4], strides = [1, 1, 1]} : vector<18x18x4xbf16> to vector<16x16x4xbf16>
    %10 = vector.extract_strided_slice %1 {offsets = [2, 2, 0], sizes = [16, 16, 4], strides = [1, 1, 1]} : vector<18x18x4xbf16> to vector<16x16x4xbf16>
    %11 = tpu.concatenate %2, %3, %4, %5, %6, %7, %8, %9, %10 in 2 : vector<16x16x4xbf16>, vector<16x16x4xbf16>, vector<16x16x4xbf16>, vector<16x16x4xbf16>, vector<16x16x4xbf16>, vector<16x16x4xbf16>, vector<16x16x4xbf16>, vector<16x16x4xbf16>, vector<16x16x4xbf16> -> vector<16x16x36xbf16>
    %12 = vector.shape_cast %11 : vector<16x16x36xbf16> to vector<256x36xbf16>
    %c0_3 = arith.constant 0 : index
    %c0_4 = arith.constant 0 : index
    %13 = vector.load %arg2[%c0_3, %c0_4] : memref<36x32xbf16, #tpu.memory_space<vmem>>, vector<36x32xbf16>
    %cst = arith.constant dense<0.000000e+00> : vector<256x32xf32>
    %14 = tpu.matmul %12, %13, %cst {dimension_numbers = #tpu.dot_dimension_numbers<[1], [0], [0], [1], [0, 0, 1, 1], [], []>} : vector<256x36xbf16>, vector<36x32xbf16>, vector<256x32xf32> -> vector<256x32xf32>
    %c0_5 = arith.constant 0 : index
    %c0_6 = arith.constant 0 : index
    %15 = vector.load %arg3[%c0_5, %c0_6] : memref<1x32xf32, #tpu.memory_space<vmem>>, vector<1x32xf32>
    %16 = vector.broadcast %15 : vector<1x32xf32> to vector<256x32xf32>
    %17 = arith.mulf %14, %16 : vector<256x32xf32>
    %c0_7 = arith.constant 0 : index
    %c0_8 = arith.constant 0 : index
    %18 = vector.load %arg4[%c0_7, %c0_8] : memref<1x32xf32, #tpu.memory_space<vmem>>, vector<1x32xf32>
    %19 = vector.broadcast %18 : vector<1x32xf32> to vector<256x32xf32>
    %20 = arith.addf %17, %19 : vector<256x32xf32>
    %cst_9 = arith.constant 0.000000e+00 : f32
    %21 = vector.broadcast %cst_9 : f32 to vector<256x32xf32>
    %22 = arith.maximumf %20, %21 : vector<256x32xf32>
    %23 = vector.shape_cast %22 : vector<256x32xf32> to vector<1x16x16x32xf32>
    %24 = arith.truncf %23 : vector<1x16x16x32xf32> to vector<1x16x16x32xbf16>
    %c0_10 = arith.constant 0 : index
    %c0_11 = arith.constant 0 : index
    %c0_12 = arith.constant 0 : index
    %c0_13 = arith.constant 0 : index
    %25 = vector.load %arg5[%c0_10, %c0_11, %c0_12, %c0_13] : memref<1x16x16x32xbf16, #tpu.memory_space<vmem>>, vector<1x16x16x32xbf16>
    tpu.vector_store %arg5[%c0_10, %c0_11, %c0_12, %c0_13], %24 {strides = array<i32>} : memref<1x16x16x32xbf16, #tpu.memory_space<vmem>>, vector<1x16x16x32xbf16>,
    return
  }
  func.func @transform_0(%arg0: i32) -> (i32, i32, i32, i32) {
    %c0_i32 = arith.constant 0 : i32
    %c0_i32_0 = arith.constant 0 : i32
    %c0_i32_1 = arith.constant 0 : i32
    %c0_i32_2 = arith.constant 0 : i32
    return %arg0, %c0_i32, %c0_i32_0, %c0_i32_1 : i32, i32, i32, i32
  }
  func.func @transform_1(%arg0: i32) -> (i32, i32) {
    %c0_i32 = arith.constant 0 : i32
    %c0_i32_0 = arith.constant 0 : i32
    %c0_i32_1 = arith.constant 0 : i32
    return %c0_i32, %c0_i32_0 : i32, i32
  }
  func.func @transform_2(%arg0: i32) -> (i32, i32) {
    %c0_i32 = arith.constant 0 : i32
    %c0_i32_0 = arith.constant 0 : i32
    %c0_i32_1 = arith.constant 0 : i32
    return %c0_i32, %c0_i32_0 : i32, i32
  }
  func.func @transform_3(%arg0: i32) -> (i32, i32) {
    %c0_i32 = arith.constant 0 : i32
    %c0_i32_0 = arith.constant 0 : i32
    %c0_i32_1 = arith.constant 0 : i32
    return %c0_i32, %c0_i32_0 : i32, i32
  }
  func.func @transform_4(%arg0: i32) -> (i32, i32, i32, i32) {
    %c0_i32 = arith.constant 0 : i32
    %c0_i32_0 = arith.constant 0 : i32
    %c0_i32_1 = arith.constant 0 : i32
    %c0_i32_2 = arith.constant 0 : i32
    return %arg0, %c0_i32, %c0_i32_0, %c0_i32_1 : i32, i32, i32, i32
  }
}

module attributes {stable_mosaic.version = 11 : i64} {
  func.func @_conv3x3_fused_kernel(%arg0: i32, %arg1: memref<1x18x18x32xbf16, #tpu.memory_space<vmem>>, %arg2: memref<288x32xbf16, #tpu.memory_space<vmem>>, %arg3: memref<1x32xf32, #tpu.memory_space<vmem>>, %arg4: memref<1x32xf32, #tpu.memory_space<vmem>>, %arg5: memref<1x8x8x32xbf16, #tpu.memory_space<vmem>>) attributes {dimension_semantics = [#tpu.dimension_semantics<parallel>], iteration_bounds = array<i64: 2>, scalar_prefetch = 0 : i64, scratch_operands = 0 : i64, tpu.core_type = #tpu.core_type<tc>, window_params = [{transform_indices = @transform_0, window_bounds = array<i64: 1, 18, 18, 32>}, {pipeline_mode = #tpu.pipeline_mode<synchronous>, transform_indices = @transform_1, window_bounds = array<i64: 288, 32>}, {pipeline_mode = #tpu.pipeline_mode<synchronous>, transform_indices = @transform_2, window_bounds = array<i64: 1, 32>}, {pipeline_mode = #tpu.pipeline_mode<synchronous>, transform_indices = @transform_3, window_bounds = array<i64: 1, 32>}, {transform_indices = @transform_4, window_bounds = array<i64: 1, 8, 8, 32>}]} {
    %c0 = arith.constant 0 : index
    %c0_0 = arith.constant 0 : index
    %c0_1 = arith.constant 0 : index
    %c0_2 = arith.constant 0 : index
    %0 = vector.load %arg1[%c0, %c0_0, %c0_1, %c0_2] : memref<1x18x18x32xbf16, #tpu.memory_space<vmem>>, vector<1x18x18x32xbf16>
    %1 = vector.shape_cast %0 : vector<1x18x18x32xbf16> to vector<18x18x32xbf16>
    %2 = vector.extract_strided_slice %1 {offsets = [0, 0, 0], sizes = [16, 16, 32], strides = [1, 1, 1]} : vector<18x18x32xbf16> to vector<16x16x32xbf16>
    %3 = vector.extract_strided_slice %1 {offsets = [0, 1, 0], sizes = [16, 16, 32], strides = [1, 1, 1]} : vector<18x18x32xbf16> to vector<16x16x32xbf16>
    %4 = vector.extract_strided_slice %1 {offsets = [0, 2, 0], sizes = [16, 16, 32], strides = [1, 1, 1]} : vector<18x18x32xbf16> to vector<16x16x32xbf16>
    %5 = vector.extract_strided_slice %1 {offsets = [1, 0, 0], sizes = [16, 16, 32], strides = [1, 1, 1]} : vector<18x18x32xbf16> to vector<16x16x32xbf16>
    %6 = vector.extract_strided_slice %1 {offsets = [1, 1, 0], sizes = [16, 16, 32], strides = [1, 1, 1]} : vector<18x18x32xbf16> to vector<16x16x32xbf16>
    %7 = vector.extract_strided_slice %1 {offsets = [1, 2, 0], sizes = [16, 16, 32], strides = [1, 1, 1]} : vector<18x18x32xbf16> to vector<16x16x32xbf16>
    %8 = vector.extract_strided_slice %1 {offsets = [2, 0, 0], sizes = [16, 16, 32], strides = [1, 1, 1]} : vector<18x18x32xbf16> to vector<16x16x32xbf16>
    %9 = vector.extract_strided_slice %1 {offsets = [2, 1, 0], sizes = [16, 16, 32], strides = [1, 1, 1]} : vector<18x18x32xbf16> to vector<16x16x32xbf16>
    %10 = vector.extract_strided_slice %1 {offsets = [2, 2, 0], sizes = [16, 16, 32], strides = [1, 1, 1]} : vector<18x18x32xbf16> to vector<16x16x32xbf16>
    %11 = tpu.concatenate %2, %3, %4, %5, %6, %7, %8, %9, %10 in 2 : vector<16x16x32xbf16>, vector<16x16x32xbf16>, vector<16x16x32xbf16>, vector<16x16x32xbf16>, vector<16x16x32xbf16>, vector<16x16x32xbf16>, vector<16x16x32xbf16>, vector<16x16x32xbf16>, vector<16x16x32xbf16> -> vector<16x16x288xbf16>
    %12 = vector.shape_cast %11 : vector<16x16x288xbf16> to vector<256x288xbf16>
    %c0_3 = arith.constant 0 : index
    %c0_4 = arith.constant 0 : index
    %13 = vector.load %arg2[%c0_3, %c0_4] : memref<288x32xbf16, #tpu.memory_space<vmem>>, vector<288x32xbf16>
    %cst = arith.constant dense<0.000000e+00> : vector<256x32xf32>
    %14 = tpu.matmul %12, %13, %cst {dimension_numbers = #tpu.dot_dimension_numbers<[1], [0], [0], [1], [0, 0, 1, 1], [], []>} : vector<256x288xbf16>, vector<288x32xbf16>, vector<256x32xf32> -> vector<256x32xf32>
    %c0_5 = arith.constant 0 : index
    %c0_6 = arith.constant 0 : index
    %15 = vector.load %arg3[%c0_5, %c0_6] : memref<1x32xf32, #tpu.memory_space<vmem>>, vector<1x32xf32>
    %16 = vector.broadcast %15 : vector<1x32xf32> to vector<256x32xf32>
    %17 = arith.mulf %14, %16 : vector<256x32xf32>
    %c0_7 = arith.constant 0 : index
    %c0_8 = arith.constant 0 : index
    %18 = vector.load %arg4[%c0_7, %c0_8] : memref<1x32xf32, #tpu.memory_space<vmem>>, vector<1x32xf32>
    %19 = vector.broadcast %18 : vector<1x32xf32> to vector<256x32xf32>
    %20 = arith.addf %17, %19 : vector<256x32xf32>
    %cst_9 = arith.constant 0.000000e+00 : f32
    %21 = vector.broadcast %cst_9 : f32 to vector<256x32xf32>
    %22 = arith.maximumf %20, %21 : vector<256x32xf32>
    %23 = vector.shape_cast %22 : vector<256x32xf32> to vector<16x8x2x32xf32>
    %24 = vector.extract_strided_slice %23 {offsets = [0, 0, 0, 0], sizes = [16, 8, 1, 32], strides = [1, 1, 1, 1]} : vector<16x8x2x32xf32> to vector<16x8x1x32xf32>
    %25 = vector.shape_cast %24 : vector<16x8x1x32xf32> to vector<16x8x32xf32>
    %26 = vector.extract_strided_slice %23 {offsets = [0, 0, 1, 0], sizes = [16, 8, 1, 32], strides = [1, 1, 1, 1]} : vector<16x8x2x32xf32> to vector<16x8x1x32xf32>
    %27 = vector.shape_cast %26 : vector<16x8x1x32xf32> to vector<16x8x32xf32>
    %28 = arith.maximumf %25, %27 : vector<16x8x32xf32>
    %29 = vector.shape_cast %28 : vector<16x8x32xf32> to vector<8x2x8x32xf32>
    %30 = vector.extract_strided_slice %29 {offsets = [0, 0, 0, 0], sizes = [8, 1, 8, 32], strides = [1, 1, 1, 1]} : vector<8x2x8x32xf32> to vector<8x1x8x32xf32>
    %31 = vector.shape_cast %30 : vector<8x1x8x32xf32> to vector<8x8x32xf32>
    %32 = vector.extract_strided_slice %29 {offsets = [0, 1, 0, 0], sizes = [8, 1, 8, 32], strides = [1, 1, 1, 1]} : vector<8x2x8x32xf32> to vector<8x1x8x32xf32>
    %33 = vector.shape_cast %32 : vector<8x1x8x32xf32> to vector<8x8x32xf32>
    %34 = arith.maximumf %31, %33 : vector<8x8x32xf32>
    %35 = vector.shape_cast %34 : vector<8x8x32xf32> to vector<1x8x8x32xf32>
    %36 = arith.truncf %35 : vector<1x8x8x32xf32> to vector<1x8x8x32xbf16>
    %c0_10 = arith.constant 0 : index
    %c0_11 = arith.constant 0 : index
    %c0_12 = arith.constant 0 : index
    %c0_13 = arith.constant 0 : index
    %37 = vector.load %arg5[%c0_10, %c0_11, %c0_12, %c0_13] : memref<1x8x8x32xbf16, #tpu.memory_space<vmem>>, vector<1x8x8x32xbf16>
    tpu.vector_store %arg5[%c0_10, %c0_11, %c0_12, %c0_13], %36 {strides = array<i32>} : memref<1x8x8x32xbf16, #tpu.memory_space<vmem>>, vector<1x8x8x32xbf16>,
    return
  }
  func.func @transform_0(%arg0: i32) -> (i32, i32, i32, i32) {
    %c0_i32 = arith.constant 0 : i32
    %c0_i32_0 = arith.constant 0 : i32
    %c0_i32_1 = arith.constant 0 : i32
    %c0_i32_2 = arith.constant 0 : i32
    return %arg0, %c0_i32, %c0_i32_0, %c0_i32_1 : i32, i32, i32, i32
  }
  func.func @transform_1(%arg0: i32) -> (i32, i32) {
    %c0_i32 = arith.constant 0 : i32
    %c0_i32_0 = arith.constant 0 : i32
    %c0_i32_1 = arith.constant 0 : i32
    return %c0_i32, %c0_i32_0 : i32, i32
  }
  func.func @transform_2(%arg0: i32) -> (i32, i32) {
    %c0_i32 = arith.constant 0 : i32
    %c0_i32_0 = arith.constant 0 : i32
    %c0_i32_1 = arith.constant 0 : i32
    return %c0_i32, %c0_i32_0 : i32, i32
  }
  func.func @transform_3(%arg0: i32) -> (i32, i32) {
    %c0_i32 = arith.constant 0 : i32
    %c0_i32_0 = arith.constant 0 : i32
    %c0_i32_1 = arith.constant 0 : i32
    return %c0_i32, %c0_i32_0 : i32, i32
  }
  func.func @transform_4(%arg0: i32) -> (i32, i32, i32, i32) {
    %c0_i32 = arith.constant 0 : i32
    %c0_i32_0 = arith.constant 0 : i32
    %c0_i32_1 = arith.constant 0 : i32
    %c0_i32_2 = arith.constant 0 : i32
    return %arg0, %c0_i32, %c0_i32_0, %c0_i32_1 : i32, i32, i32, i32
  }
}

module attributes {stable_mosaic.version = 11 : i64} {
  func.func @_conv3x3_fused_kernel(%arg0: i32, %arg1: memref<1x18x18x32xbf16, #tpu.memory_space<vmem>>, %arg2: memref<288x32xbf16, #tpu.memory_space<vmem>>, %arg3: memref<1x32xf32, #tpu.memory_space<vmem>>, %arg4: memref<1x32xf32, #tpu.memory_space<vmem>>, %arg5: memref<1x16x16x32xbf16, #tpu.memory_space<vmem>>) attributes {dimension_semantics = [#tpu.dimension_semantics<parallel>], iteration_bounds = array<i64: 2>, scalar_prefetch = 0 : i64, scratch_operands = 0 : i64, tpu.core_type = #tpu.core_type<tc>, window_params = [{transform_indices = @transform_0, window_bounds = array<i64: 1, 18, 18, 32>}, {pipeline_mode = #tpu.pipeline_mode<synchronous>, transform_indices = @transform_1, window_bounds = array<i64: 288, 32>}, {pipeline_mode = #tpu.pipeline_mode<synchronous>, transform_indices = @transform_2, window_bounds = array<i64: 1, 32>}, {pipeline_mode = #tpu.pipeline_mode<synchronous>, transform_indices = @transform_3, window_bounds = array<i64: 1, 32>}, {transform_indices = @transform_4, window_bounds = array<i64: 1, 16, 16, 32>}]} {
    %c0 = arith.constant 0 : index
    %c0_0 = arith.constant 0 : index
    %c0_1 = arith.constant 0 : index
    %c0_2 = arith.constant 0 : index
    %0 = vector.load %arg1[%c0, %c0_0, %c0_1, %c0_2] : memref<1x18x18x32xbf16, #tpu.memory_space<vmem>>, vector<1x18x18x32xbf16>
    %1 = vector.shape_cast %0 : vector<1x18x18x32xbf16> to vector<18x18x32xbf16>
    %2 = vector.extract_strided_slice %1 {offsets = [0, 0, 0], sizes = [16, 16, 32], strides = [1, 1, 1]} : vector<18x18x32xbf16> to vector<16x16x32xbf16>
    %3 = vector.extract_strided_slice %1 {offsets = [0, 1, 0], sizes = [16, 16, 32], strides = [1, 1, 1]} : vector<18x18x32xbf16> to vector<16x16x32xbf16>
    %4 = vector.extract_strided_slice %1 {offsets = [0, 2, 0], sizes = [16, 16, 32], strides = [1, 1, 1]} : vector<18x18x32xbf16> to vector<16x16x32xbf16>
    %5 = vector.extract_strided_slice %1 {offsets = [1, 0, 0], sizes = [16, 16, 32], strides = [1, 1, 1]} : vector<18x18x32xbf16> to vector<16x16x32xbf16>
    %6 = vector.extract_strided_slice %1 {offsets = [1, 1, 0], sizes = [16, 16, 32], strides = [1, 1, 1]} : vector<18x18x32xbf16> to vector<16x16x32xbf16>
    %7 = vector.extract_strided_slice %1 {offsets = [1, 2, 0], sizes = [16, 16, 32], strides = [1, 1, 1]} : vector<18x18x32xbf16> to vector<16x16x32xbf16>
    %8 = vector.extract_strided_slice %1 {offsets = [2, 0, 0], sizes = [16, 16, 32], strides = [1, 1, 1]} : vector<18x18x32xbf16> to vector<16x16x32xbf16>
    %9 = vector.extract_strided_slice %1 {offsets = [2, 1, 0], sizes = [16, 16, 32], strides = [1, 1, 1]} : vector<18x18x32xbf16> to vector<16x16x32xbf16>
    %10 = vector.extract_strided_slice %1 {offsets = [2, 2, 0], sizes = [16, 16, 32], strides = [1, 1, 1]} : vector<18x18x32xbf16> to vector<16x16x32xbf16>
    %11 = tpu.concatenate %2, %3, %4, %5, %6, %7, %8, %9, %10 in 2 : vector<16x16x32xbf16>, vector<16x16x32xbf16>, vector<16x16x32xbf16>, vector<16x16x32xbf16>, vector<16x16x32xbf16>, vector<16x16x32xbf16>, vector<16x16x32xbf16>, vector<16x16x32xbf16>, vector<16x16x32xbf16> -> vector<16x16x288xbf16>
    %12 = vector.shape_cast %11 : vector<16x16x288xbf16> to vector<256x288xbf16>
    %c0_3 = arith.constant 0 : index
    %c0_4 = arith.constant 0 : index
    %13 = vector.load %arg2[%c0_3, %c0_4] : memref<288x32xbf16, #tpu.memory_space<vmem>>, vector<288x32xbf16>
    %cst = arith.constant dense<0.000000e+00> : vector<256x32xf32>
    %14 = tpu.matmul %12, %13, %cst {dimension_numbers = #tpu.dot_dimension_numbers<[1], [0], [0], [1], [0, 0, 1, 1], [], []>} : vector<256x288xbf16>, vector<288x32xbf16>, vector<256x32xf32> -> vector<256x32xf32>
    %c0_5 = arith.constant 0 : index
    %c0_6 = arith.constant 0 : index
    %15 = vector.load %arg3[%c0_5, %c0_6] : memref<1x32xf32, #tpu.memory_space<vmem>>, vector<1x32xf32>
    %16 = vector.broadcast %15 : vector<1x32xf32> to vector<256x32xf32>
    %17 = arith.mulf %14, %16 : vector<256x32xf32>
    %c0_7 = arith.constant 0 : index
    %c0_8 = arith.constant 0 : index
    %18 = vector.load %arg4[%c0_7, %c0_8] : memref<1x32xf32, #tpu.memory_space<vmem>>, vector<1x32xf32>
    %19 = vector.broadcast %18 : vector<1x32xf32> to vector<256x32xf32>
    %20 = arith.addf %17, %19 : vector<256x32xf32>
    %cst_9 = arith.constant 0.000000e+00 : f32
    %21 = vector.broadcast %cst_9 : f32 to vector<256x32xf32>
    %22 = arith.maximumf %20, %21 : vector<256x32xf32>
    %23 = vector.shape_cast %22 : vector<256x32xf32> to vector<1x16x16x32xf32>
    %24 = arith.truncf %23 : vector<1x16x16x32xf32> to vector<1x16x16x32xbf16>
    %c0_10 = arith.constant 0 : index
    %c0_11 = arith.constant 0 : index
    %c0_12 = arith.constant 0 : index
    %c0_13 = arith.constant 0 : index
    %25 = vector.load %arg5[%c0_10, %c0_11, %c0_12, %c0_13] : memref<1x16x16x32xbf16, #tpu.memory_space<vmem>>, vector<1x16x16x32xbf16>
    tpu.vector_store %arg5[%c0_10, %c0_11, %c0_12, %c0_13], %24 {strides = array<i32>} : memref<1x16x16x32xbf16, #tpu.memory_space<vmem>>, vector<1x16x16x32xbf16>,
    return
  }
  func.func @transform_0(%arg0: i32) -> (i32, i32, i32, i32) {
    %c0_i32 = arith.constant 0 : i32
    %c0_i32_0 = arith.constant 0 : i32
    %c0_i32_1 = arith.constant 0 : i32
    %c0_i32_2 = arith.constant 0 : i32
    return %arg0, %c0_i32, %c0_i32_0, %c0_i32_1 : i32, i32, i32, i32
  }
  func.func @transform_1(%arg0: i32) -> (i32, i32) {
    %c0_i32 = arith.constant 0 : i32
    %c0_i32_0 = arith.constant 0 : i32
    %c0_i32_1 = arith.constant 0 : i32
    return %c0_i32, %c0_i32_0 : i32, i32
  }
  func.func @transform_2(%arg0: i32) -> (i32, i32) {
    %c0_i32 = arith.constant 0 : i32
    %c0_i32_0 = arith.constant 0 : i32
    %c0_i32_1 = arith.constant 0 : i32
    return %c0_i32, %c0_i32_0 : i32, i32
  }
  func.func @transform_3(%arg0: i32) -> (i32, i32) {
    %c0_i32 = arith.constant 0 : i32
    %c0_i32_0 = arith.constant 0 : i32
    %c0_i32_1 = arith.constant 0 : i32
    return %c0_i32, %c0_i32_0 : i32, i32
  }
  func.func @transform_4(%arg0: i32) -> (i32, i32, i32, i32) {
    %c0_i32 = arith.constant 0 : i32
    %c0_i32_0 = arith.constant 0 : i32
    %c0_i32_1 = arith.constant 0 : i32
    %c0_i32_2 = arith.constant 0 : i32
    return %arg0, %c0_i32, %c0_i32_0, %c0_i32_1 : i32, i32, i32, i32
  }
}

module attributes {stable_mosaic.version = 11 : i64} {
  func.func @_conv3x3_fused_kernel(%arg0: i32, %arg1: memref<1x18x18x32xbf16, #tpu.memory_space<vmem>>, %arg2: memref<288x32xbf16, #tpu.memory_space<vmem>>, %arg3: memref<1x32xf32, #tpu.memory_space<vmem>>, %arg4: memref<1x32xf32, #tpu.memory_space<vmem>>, %arg5: memref<32x3xf32, #tpu.memory_space<vmem>>, %arg6: memref<1x3xf32, #tpu.memory_space<vmem>>, %arg7: memref<1x16x16x3xf32, #tpu.memory_space<vmem>>) attributes {dimension_semantics = [#tpu.dimension_semantics<parallel>], iteration_bounds = array<i64: 2>, scalar_prefetch = 0 : i64, scratch_operands = 0 : i64, tpu.core_type = #tpu.core_type<tc>, window_params = [{transform_indices = @transform_0, window_bounds = array<i64: 1, 18, 18, 32>}, {pipeline_mode = #tpu.pipeline_mode<synchronous>, transform_indices = @transform_1, window_bounds = array<i64: 288, 32>}, {pipeline_mode = #tpu.pipeline_mode<synchronous>, transform_indices = @transform_2, window_bounds = array<i64: 1, 32>}, {pipeline_mode = #tpu.pipeline_mode<synchronous>, transform_indices = @transform_3, window_bounds = array<i64: 1, 32>}, {pipeline_mode = #tpu.pipeline_mode<synchronous>, transform_indices = @transform_4, window_bounds = array<i64: 32, 3>}, {pipeline_mode = #tpu.pipeline_mode<synchronous>, transform_indices = @transform_5, window_bounds = array<i64: 1, 3>}, {transform_indices = @transform_6, window_bounds = array<i64: 1, 16, 16, 3>}]} {
    %c0 = arith.constant 0 : index
    %c0_0 = arith.constant 0 : index
    %c0_1 = arith.constant 0 : index
    %c0_2 = arith.constant 0 : index
    %0 = vector.load %arg1[%c0, %c0_0, %c0_1, %c0_2] : memref<1x18x18x32xbf16, #tpu.memory_space<vmem>>, vector<1x18x18x32xbf16>
    %1 = vector.shape_cast %0 : vector<1x18x18x32xbf16> to vector<18x18x32xbf16>
    %2 = vector.extract_strided_slice %1 {offsets = [0, 0, 0], sizes = [16, 16, 32], strides = [1, 1, 1]} : vector<18x18x32xbf16> to vector<16x16x32xbf16>
    %3 = vector.extract_strided_slice %1 {offsets = [0, 1, 0], sizes = [16, 16, 32], strides = [1, 1, 1]} : vector<18x18x32xbf16> to vector<16x16x32xbf16>
    %4 = vector.extract_strided_slice %1 {offsets = [0, 2, 0], sizes = [16, 16, 32], strides = [1, 1, 1]} : vector<18x18x32xbf16> to vector<16x16x32xbf16>
    %5 = vector.extract_strided_slice %1 {offsets = [1, 0, 0], sizes = [16, 16, 32], strides = [1, 1, 1]} : vector<18x18x32xbf16> to vector<16x16x32xbf16>
    %6 = vector.extract_strided_slice %1 {offsets = [1, 1, 0], sizes = [16, 16, 32], strides = [1, 1, 1]} : vector<18x18x32xbf16> to vector<16x16x32xbf16>
    %7 = vector.extract_strided_slice %1 {offsets = [1, 2, 0], sizes = [16, 16, 32], strides = [1, 1, 1]} : vector<18x18x32xbf16> to vector<16x16x32xbf16>
    %8 = vector.extract_strided_slice %1 {offsets = [2, 0, 0], sizes = [16, 16, 32], strides = [1, 1, 1]} : vector<18x18x32xbf16> to vector<16x16x32xbf16>
    %9 = vector.extract_strided_slice %1 {offsets = [2, 1, 0], sizes = [16, 16, 32], strides = [1, 1, 1]} : vector<18x18x32xbf16> to vector<16x16x32xbf16>
    %10 = vector.extract_strided_slice %1 {offsets = [2, 2, 0], sizes = [16, 16, 32], strides = [1, 1, 1]} : vector<18x18x32xbf16> to vector<16x16x32xbf16>
    %11 = tpu.concatenate %2, %3, %4, %5, %6, %7, %8, %9, %10 in 2 : vector<16x16x32xbf16>, vector<16x16x32xbf16>, vector<16x16x32xbf16>, vector<16x16x32xbf16>, vector<16x16x32xbf16>, vector<16x16x32xbf16>, vector<16x16x32xbf16>, vector<16x16x32xbf16>, vector<16x16x32xbf16> -> vector<16x16x288xbf16>
    %12 = vector.shape_cast %11 : vector<16x16x288xbf16> to vector<256x288xbf16>
    %c0_3 = arith.constant 0 : index
    %c0_4 = arith.constant 0 : index
    %13 = vector.load %arg2[%c0_3, %c0_4] : memref<288x32xbf16, #tpu.memory_space<vmem>>, vector<288x32xbf16>
    %cst = arith.constant dense<0.000000e+00> : vector<256x32xf32>
    %14 = tpu.matmul %12, %13, %cst {dimension_numbers = #tpu.dot_dimension_numbers<[1], [0], [0], [1], [0, 0, 1, 1], [], []>} : vector<256x288xbf16>, vector<288x32xbf16>, vector<256x32xf32> -> vector<256x32xf32>
    %c0_5 = arith.constant 0 : index
    %c0_6 = arith.constant 0 : index
    %15 = vector.load %arg3[%c0_5, %c0_6] : memref<1x32xf32, #tpu.memory_space<vmem>>, vector<1x32xf32>
    %16 = vector.broadcast %15 : vector<1x32xf32> to vector<256x32xf32>
    %17 = arith.mulf %14, %16 : vector<256x32xf32>
    %c0_7 = arith.constant 0 : index
    %c0_8 = arith.constant 0 : index
    %18 = vector.load %arg4[%c0_7, %c0_8] : memref<1x32xf32, #tpu.memory_space<vmem>>, vector<1x32xf32>
    %19 = vector.broadcast %18 : vector<1x32xf32> to vector<256x32xf32>
    %20 = arith.addf %17, %19 : vector<256x32xf32>
    %cst_9 = arith.constant 0.000000e+00 : f32
    %21 = vector.broadcast %cst_9 : f32 to vector<256x32xf32>
    %22 = arith.maximumf %20, %21 : vector<256x32xf32>
    %c0_10 = arith.constant 0 : index
    %c0_11 = arith.constant 0 : index
    %23 = vector.load %arg5[%c0_10, %c0_11] : memref<32x3xf32, #tpu.memory_space<vmem>>, vector<32x3xf32>
    %cst_12 = arith.constant dense<0.000000e+00> : vector<256x3xf32>
    %24 = tpu.matmul %22, %23, %cst_12 {dimension_numbers = #tpu.dot_dimension_numbers<[1], [0], [0], [1], [0, 0, 1, 1], [], []>} : vector<256x32xf32>, vector<32x3xf32>, vector<256x3xf32> -> vector<256x3xf32>
    %c0_13 = arith.constant 0 : index
    %c0_14 = arith.constant 0 : index
    %25 = vector.load %arg6[%c0_13, %c0_14] : memref<1x3xf32, #tpu.memory_space<vmem>>, vector<1x3xf32>
    %26 = vector.broadcast %25 : vector<1x3xf32> to vector<256x3xf32>
    %27 = arith.addf %24, %26 : vector<256x3xf32>
    %28 = vector.shape_cast %27 : vector<256x3xf32> to vector<1x16x16x3xf32>
    %c0_15 = arith.constant 0 : index
    %c0_16 = arith.constant 0 : index
    %c0_17 = arith.constant 0 : index
    %c0_18 = arith.constant 0 : index
    %29 = vector.load %arg7[%c0_15, %c0_16, %c0_17, %c0_18] : memref<1x16x16x3xf32, #tpu.memory_space<vmem>>, vector<1x16x16x3xf32>
    tpu.vector_store %arg7[%c0_15, %c0_16, %c0_17, %c0_18], %28 {strides = array<i32>} : memref<1x16x16x3xf32, #tpu.memory_space<vmem>>, vector<1x16x16x3xf32>,
    return
  }
  func.func @transform_0(%arg0: i32) -> (i32, i32, i32, i32) {
    %c0_i32 = arith.constant 0 : i32
    %c0_i32_0 = arith.constant 0 : i32
    %c0_i32_1 = arith.constant 0 : i32
    %c0_i32_2 = arith.constant 0 : i32
    return %arg0, %c0_i32, %c0_i32_0, %c0_i32_1 : i32, i32, i32, i32
  }
  func.func @transform_1(%arg0: i32) -> (i32, i32) {
    %c0_i32 = arith.constant 0 : i32
    %c0_i32_0 = arith.constant 0 : i32
    %c0_i32_1 = arith.constant 0 : i32
    return %c0_i32, %c0_i32_0 : i32, i32
  }
  func.func @transform_2(%arg0: i32) -> (i32, i32) {
    %c0_i32 = arith.constant 0 : i32
    %c0_i32_0 = arith.constant 0 : i32
    %c0_i32_1 = arith.constant 0 : i32
    return %c0_i32, %c0_i32_0 : i32, i32
  }
  func.func @transform_3(%arg0: i32) -> (i32, i32) {
    %c0_i32 = arith.constant 0 : i32
    %c0_i32_0 = arith.constant 0 : i32
    %c0_i32_1 = arith.constant 0 : i32
    return %c0_i32, %c0_i32_0 : i32, i32
  }
  func.func @transform_4(%arg0: i32) -> (i32, i32) {
    %c0_i32 = arith.constant 0 : i32
    %c0_i32_0 = arith.constant 0 : i32
    %c0_i32_1 = arith.constant 0 : i32
    return %c0_i32, %c0_i32_0 : i32, i32
  }
  func.func @transform_5(%arg0: i32) -> (i32, i32) {
    %c0_i32 = arith.constant 0 : i32
    %c0_i32_0 = arith.constant 0 : i32
    %c0_i32_1 = arith.constant 0 : i32
    return %c0_i32, %c0_i32_0 : i32, i32
  }
  func.func @transform_6(%arg0: i32) -> (i32, i32, i32, i32) {
    %c0_i32 = arith.constant 0 : i32
    %c0_i32_0 = arith.constant 0 : i32
    %c0_i32_1 = arith.constant 0 : i32
    %c0_i32_2 = arith.constant 0 : i32
    return %arg0, %c0_i32, %c0_i32_0, %c0_i32_1 : i32, i32, i32, i32
  }
}

</mosaic_0001>

<llo_original>
// kernel: fcnn2_forward.4
$region0: #{fcnn2_forward.4}
  #allocation0 [shape = 'u32[]', space=smem, size = 0x4, offset = 0x4, fixed_abs, tag = 'smem constant byte address 0x4 - core index']
  #allocation1 [shape = 'u32[144,128]{1,0:T(1,128)}', space=vmem, size = 0x12000, scoped, tag = 'internal scratch']
  %s0 = inlined_call_operand.vmem [shape: bf16[2,18,18,4], index: 0, kind: input, shape index: {}]
  %s1 = inlined_call_operand.vmem [shape: bf16[36,32], index: 1, kind: input, shape index: {}]
  %s2 = inlined_call_operand.vmem [shape: f32[1,32], index: 2, kind: input, shape index: {}]
  %s3 = inlined_call_operand.vmem [shape: f32[1,32], index: 3, kind: input, shape index: {}]
  %s4 = inlined_call_operand.vmem [shape: bf16[2,16,16,32], index: 4, kind: output, shape index: {}]
  %s5 = sld [smem:[#allocation0]]
  $region49: #{fcnn2_forward.4} parent=0
    _
  %s7 = ssub.s32 1, %s5
  %s8 = scalar_select 0, %s7, %s5
  loop: start=0, step=1, limit=4
  $region2: #{fcnn2_forward.4} parent=0 // loop_pre_header
    _
  $region3: #{fcnn2_forward.4} parent=0 // loop_header
    %s10 = sphi 0, %s14
    %p11 = scmp.ge.s32.totalorder %s10, 4
    %s20 = sphi 0, %s22
    %s23 = sphi 0, %s20
    %s24 = sphi 0, %s23
    %s40 = sphi 0, %s24
    %s44 = sphi 0, %s44
    %s46 = sphi 0, %s44
    %s47 = sphi 0, %s46
    %s61 = sphi 0, %s47
    %s65 = sphi 0, %s65
    %s67 = sphi 0, %s65
    %s68 = sphi 0, %s67
    %s82 = sphi 0, %s68
    %s86 = sphi 0, %s86
    %s88 = sphi 0, %s86
    %s89 = sphi 0, %s88
    %s103 = sphi 0, %s89
    %s109 = sphi 0, %s111
    %s112 = sphi 0, %s109
    %s113 = sphi 0, %s112
    %s129 = sphi 0, %s113
  $region4: #{fcnn2_forward.4} parent=0 // loop_header_branch
    %13 = sbr.rel (%p11) target = $region8
  $region5: #{fcnn2_forward.4} parent=0 // loop_body
    %s15 = ssub.s32 %s10, 1
    %s16 = ssub.s32 %s10, 2
    %s17 = sadd.s32 %s10, 1
    %s18 = ssub.s32 %s10, %s17
    %p19 = scmp.eq.s32.totalorder %s18, 0
    %s21 = sadd.s32 %s20, 1
    %s22 = scalar_select %p19, %s20, %s21
    %p25 = pneg %p19
    %p26 = scmp.eq.s32.totalorder %s10, 1
    %p27 = por %p25, %p26
    %p28 = scmp.ne.s32.totalorder %s20, %s23
    %p29 = scmp.eq.s32.totalorder %s10, 0
    %p30 = por %p28, %p29
    %p31 = scmp.ne.s32.totalorder %s20, %s23
    %p32 = scmp.eq.s32.totalorder %s15, 1
    %p33 = por %p31, %p32
    %p34 = scmp.ne.s32.totalorder %s23, %s24
    %p35 = scmp.eq.s32.totalorder %s15, 0
    %p36 = por %p34, %p35
    %p37 = scmp.ne.s32.totalorder %s23, %s24
    %p38 = scmp.eq.s32.totalorder %s16, 1
    %p39 = por %p37, %p38
    %p41 = scmp.ne.s32.totalorder %s24, %s40
    %p42 = scmp.eq.s32.totalorder %s16, 0
    %p43 = por %p41, %p42
    %s45 = sadd.s32 %s44, 1
    %p48 = scmp.eq.s32.totalorder %s10, 1
    %p49 = scmp.ne.s32.totalorder %s44, %s46
    %p50 = scmp.eq.s32.totalorder %s10, 0
    %p51 = por %p49, %p50
    %p52 = scmp.ne.s32.totalorder %s44, %s46
    %p53 = scmp.eq.s32.totalorder %s15, 1
    %p54 = por %p52, %p53
    %p55 = scmp.ne.s32.totalorder %s46, %s47
    %p56 = scmp.eq.s32.totalorder %s15, 0
    %p57 = por %p55, %p56
    %p58 = scmp.ne.s32.totalorder %s46, %s47
    %p59 = scmp.eq.s32.totalorder %s16, 1
    %p60 = por %p58, %p59
    %p62 = scmp.ne.s32.totalorder %s47, %s61
    %p63 = scmp.eq.s32.totalorder %s16, 0
    %p64 = por %p62, %p63
    %s66 = sadd.s32 %s65, 1
    %p69 = scmp.eq.s32.totalorder %s10, 1
    %p70 = scmp.ne.s32.totalorder %s65, %s67
    %p71 = scmp.eq.s32.totalorder %s10, 0
    %p72 = por %p70, %p71
    %p73 = scmp.ne.s32.totalorder %s65, %s67
    %p74 = scmp.eq.s32.totalorder %s15, 1
    %p75 = por %p73, %p74
    %p76 = scmp.ne.s32.totalorder %s67, %s68
    %p77 = scmp.eq.s32.totalorder %s15, 0
    %p78 = por %p76, %p77
    %p79 = scmp.ne.s32.totalorder %s67, %s68
    %p80 = scmp.eq.s32.totalorder %s16, 1
    %p81 = por %p79, %p80
    %p83 = scmp.ne.s32.totalorder %s68, %s82
    %p84 = scmp.eq.s32.totalorder %s16, 0
    %p85 = por %p83, %p84
    %s87 = sadd.s32 %s86, 1
    %p90 = scmp.eq.s32.totalorder %s10, 1
    %p91 = scmp.ne.s32.totalorder %s86, %s88
    %p92 = scmp.eq.s32.totalorder %s10, 0
    %p93 = por %p91, %p92
    %p94 = scmp.ne.s32.totalorder %s86, %s88
    %p95 = scmp.eq.s32.totalorder %s15, 1
    %p96 = por %p94, %p95
    %p97 = scmp.ne.s32.totalorder %s88, %s89
    %p98 = scmp.eq.s32.totalorder %s15, 0
    %p99 = por %p97, %p98
    %p100 = scmp.ne.s32.totalorder %s88, %s89
    %p101 = scmp.eq.s32.totalorder %s16, 1
    %p102 = por %p100, %p101
    %p104 = scmp.ne.s32.totalorder %s89, %s103
    %p105 = scmp.eq.s32.totalorder %s16, 0
    %p106 = por %p104, %p105
    %s107 = ssub.s32 %s10, %s17
    %p108 = scmp.eq.s32.totalorder %s107, 0
    %s110 = sadd.s32 %s109, 1
    %s111 = scalar_select %p108, %s109, %s110
    %p114 = pneg %p108
    %p115 = scmp.eq.s32.totalorder %s10, 1
    %p116 = por %p114, %p115
    %p117 = scmp.ne.s32.totalorder %s109, %s112
    %p118 = scmp.eq.s32.totalorder %s10, 0
    %p119 = por %p117, %p118
    %p120 = scmp.ne.s32.totalorder %s109, %s112
    %p121 = scmp.eq.s32.totalorder %s15, 1
    %p122 = por %p120, %p121
    %p123 = scmp.ne.s32.totalorder %s112, %s113
    %p124 = scmp.eq.s32.totalorder %s15, 0
    %p125 = por %p123, %p124
    %p126 = scmp.ne.s32.totalorder %s112, %s113
    %p127 = scmp.eq.s32.totalorder %s16, 1
    %p128 = por %p126, %p127
    %p130 = scmp.ne.s32.totalorder %s113, %s129
    %p131 = scmp.eq.s32.totalorder %s16, 0
    %p132 = por %p130, %p131
    %p133 = scmp.le.s32.totalorder 1, %s10
    %p134 = scmp.lt.s32.totalorder %s10, 3
    %p135 = pnand %p133, %p134
    %p136 = pneg %p135
    // Predicated region
    $region9: #{fcnn2_forward.4} parent=5 // pred_check
      _
    $region10: #{fcnn2_forward.4} parent=5 // pred_check_branch
      %138 = sbr.rel (%p135) target = $region12
    $region11: #{fcnn2_forward.4} parent=5 // pred_region
      %s139 = ssub.s32 %s10, 1
      // Predicated region
      $region13: #{fcnn2_forward.4} parent=11 // pred_check
        %p140 = pneg %p57
      $region14: #{fcnn2_forward.4} parent=11 // pred_check_branch
        %142 = sbr.rel (%p140) target = $region16
      $region15: #{fcnn2_forward.4} parent=11 // pred_region
        _
      $region16: #{fcnn2_forward.4} parent=11 // pred_fallthru
        _
      // Predicated region
      $region17: #{fcnn2_forward.4} parent=11 // pred_check
        %p143 = pneg %p78
      $region18: #{fcnn2_forward.4} parent=11 // pred_check_branch
        %145 = sbr.rel (%p143) target = $region20
      $region19: #{fcnn2_forward.4} parent=11 // pred_region
        _
      $region20: #{fcnn2_forward.4} parent=11 // pred_fallthru
        _
      // Predicated region
      $region21: #{fcnn2_forward.4} parent=11 // pred_check
        %p146 = pneg %p99
      $region22: #{fcnn2_forward.4} parent=11 // pred_check_branch
        %148 = sbr.rel (%p146) target = $region24
      $region23: #{fcnn2_forward.4} parent=11 // pred_region
        _
      $region24: #{fcnn2_forward.4} parent=11 // pred_fallthru
        _
    $region12: #{fcnn2_forward.4} parent=5 // pred_fallthru
      _
    %p149 = scmp.lt.s32.totalorder %s10, 2
    // Predicated region
    $region25: #{fcnn2_forward.4} parent=5 // pred_check
      %p150 = pneg %p149
    $region26: #{fcnn2_forward.4} parent=5 // pred_check_branch
      %152 = sbr.rel (%p150) target = $region28
    $region27: #{fcnn2_forward.4} parent=5 // pred_region
      // Predicated region
      $region29: #{fcnn2_forward.4} parent=27 // pred_check
        %p153 = pneg %p30
      $region30: #{fcnn2_forward.4} parent=27 // pred_check_branch
        %155 = sbr.rel (%p153) target = $region32
      $region31: #{fcnn2_forward.4} parent=27 // pred_region
        %p156 = scmp.lt.s32.totalorder %s10, 1
        %s157 = scalar_select %p156, %s10, 1
        %s158 = smul.addr %s157, 54
        %s159 = smul.addr %s158, 4
        %s160 = scalar_lea.vmem %s0, %s159
      $region32: #{fcnn2_forward.4} parent=27 // pred_fallthru
        _
    $region28: #{fcnn2_forward.4} parent=5 // pred_fallthru
      _
    %p161 = scmp.le.s32.totalorder 1, %s10
    %p162 = scmp.lt.s32.totalorder %s10, 3
    %p163 = pnand %p161, %p162
    %p164 = pneg %p163
    // Predicated region
    $region33: #{fcnn2_forward.4} parent=5 // pred_check
      _
    $region34: #{fcnn2_forward.4} parent=5 // pred_check_branch
      %166 = sbr.rel (%p163) target = $region36
    $region35: #{fcnn2_forward.4} parent=5 // pred_region
      %s167 = ssub.s32 %s10, 1
      %p168 = scmp.lt.s32.totalorder %s15, 1
      %s169 = scalar_select %p168, %s15, 1
      %s170 = smul.addr %s169, 54
      %s171 = smul.addr %s170, 4
      %s172 = scalar_lea.vmem %s0, %s171
      %p173 = pneg %p36
      %p174 = pneg %p33
      %p175 = pneg %p57
      %p176 = pneg %p54
      %p177 = pneg %p78
      %p178 = pneg %p75
      %p179 = pneg %p99
      %p180 = pneg %p96
      %p181 = pneg %p125
      %p182 = pneg %p122
      %p183 = scmp.lt.s32.totalorder %s15, 1
      %s184 = scalar_select %p183, %s15, 1
      %s185 = smul.addr %s184, 32
      %s186 = smul.addr %s185, 4
      %s187 = scalar_lea.vmem %s4, %s186
      %p188 = scmp.lt.s32.totalorder %s15, 1
      %s189 = scalar_select %p188, %s15, 1
      %s190 = smul.addr %s189, 54
      %s191 = smul.addr %s190, 4
      %s192 = scalar_lea.vmem %s0, %s191
      %p193 = scmp.lt.s32.totalorder %s15, 1
      %s194 = scalar_select %p193, %s15, 1
      %s195 = smul.addr %s194, 32
      %s196 = smul.addr %s195, 4
      %s197 = scalar_lea.vmem %s4, %s196
      %v199 = vld [vmem:[%s192] sm:$0xf]
      %v200 = vld [vmem:[%s192 + $0x4] sm:$0xf]
      %v201 = vld [vmem:[%s192 + $0x8] sm:$0x1]
      %v202 = vld [vmem:[%s192 + $0xc] sm:$0xf]
      %v203 = vld [vmem:[%s192 + $0x10] sm:$0xf]
      %v204 = vld [vmem:[%s192 + $0x14] sm:$0x1]
      %v205 = vld [vmem:[%s192 + $0x18] sm:$0xf]
      %v206 = vld [vmem:[%s192 + $0x1c] sm:$0xf]
      %v207 = vld [vmem:[%s192 + $0x20] sm:$0x1]
      %v208 = vld [vmem:[%s192 + $0x24] sm:$0xf]
      %v209 = vld [vmem:[%s192 + $0x28] sm:$0xf]
      %v210 = vld [vmem:[%s192 + $0x2c] sm:$0x1]
      %v211 = vld [vmem:[%s192 + $0x30] sm:$0xf]
      %v212 = vld [vmem:[%s192 + $0x34] sm:$0xf]
      %v213 = vld [vmem:[%s192 + $0x38] sm:$0x1]
      %v214 = vld [vmem:[%s192 + $0x3c] sm:$0xf]
      %v215 = vld [vmem:[%s192 + $0x40] sm:$0xf]
      %v216 = vld [vmem:[%s192 + $0x44] sm:$0x1]
      %v217 = vld [vmem:[%s192 + $0x48] sm:$0xf]
      %v218 = vld [vmem:[%s192 + $0x4c] sm:$0xf]
      %v219 = vld [vmem:[%s192 + $0x50] sm:$0x1]
      %v220 = vld [vmem:[%s192 + $0x54] sm:$0xf]
      %v221 = vld [vmem:[%s192 + $0x58] sm:$0xf]
      %v222 = vld [vmem:[%s192 + $0x5c] sm:$0x1]
      %v223 = vld [vmem:[%s192 + $0x60] sm:$0xf]
      %v224 = vld [vmem:[%s192 + $0x64] sm:$0xf]
      %v225 = vld [vmem:[%s192 + $0x68] sm:$0x1]
      %v226 = vld [vmem:[%s192 + $0x6c] sm:$0xf]
      %v227 = vld [vmem:[%s192 + $0x70] sm:$0xf]
      %v228 = vld [vmem:[%s192 + $0x74] sm:$0x1]
      %v229 = vld [vmem:[%s192 + $0x78] sm:$0xf]
      %v230 = vld [vmem:[%s192 + $0x7c] sm:$0xf]
      %v231 = vld [vmem:[%s192 + $0x80] sm:$0x1]
      %v232 = vld [vmem:[%s192 + $0x84] sm:$0xf]
      %v233 = vld [vmem:[%s192 + $0x88] sm:$0xf]
      %v234 = vld [vmem:[%s192 + $0x8c] sm:$0x1]
      %v235 = vld [vmem:[%s192 + $0x90] sm:$0xf]
      %v236 = vld [vmem:[%s192 + $0x94] sm:$0xf]
      %v237 = vld [vmem:[%s192 + $0x98] sm:$0x1]
      %v238 = vld [vmem:[%s192 + $0x9c] sm:$0xf]
      %v239 = vld [vmem:[%s192 + $0xa0] sm:$0xf]
      %v240 = vld [vmem:[%s192 + $0xa4] sm:$0x1]
      %v241 = vld [vmem:[%s192 + $0xa8] sm:$0xf]
      %v242 = vld [vmem:[%s192 + $0xac] sm:$0xf]
      %v243 = vld [vmem:[%s192 + $0xb0] sm:$0x1]
      %v244 = vld [vmem:[%s192 + $0xb4] sm:$0xf]
      %v245 = vld [vmem:[%s192 + $0xb8] sm:$0xf]
      %v246 = vld [vmem:[%s192 + $0xbc] sm:$0x1]
      %v247 = vld [vmem:[%s192 + $0xc0] sm:$0xf]
      %v248 = vld [vmem:[%s192 + $0xc4] sm:$0xf]
      %v249 = vld [vmem:[%s192 + $0xc8] sm:$0x1]
      %v250 = vld [vmem:[%s192 + $0xcc] sm:$0xf]
      %v251 = vld [vmem:[%s192 + $0xd0] sm:$0xf]
      %v252 = vld [vmem:[%s192 + $0xd4] sm:$0x1]
      %v285 = vunpack.c.l.b16 %v199
      %v286 = vunpack.c.l.b16 %v200
      %v287 = vunpack.c.l.b16 %v202
      %v288 = vunpack.c.l.b16 %v203
      %v289 = vunpack.c.l.b16 %v205
      %v290 = vunpack.c.l.b16 %v206
      %v291 = vunpack.c.l.b16 %v208
      %v292 = vunpack.c.l.b16 %v209
      %v293 = vunpack.c.l.b16 %v211
      %v294 = vunpack.c.l.b16 %v212
      %v295 = vunpack.c.l.b16 %v214
      %v296 = vunpack.c.l.b16 %v215
      %v297 = vunpack.c.l.b16 %v217
      %v298 = vunpack.c.l.b16 %v218
      %v299 = vunpack.c.l.b16 %v220
      %v300 = vunpack.c.l.b16 %v221
      %v301 = vunpack.c.l.b16 %v223
      %v302 = vunpack.c.l.b16 %v224
      %v303 = vunpack.c.l.b16 %v226
      %v304 = vunpack.c.l.b16 %v227
      %v305 = vunpack.c.l.b16 %v229
      %v306 = vunpack.c.l.b16 %v230
      %v307 = vunpack.c.l.b16 %v232
      %v308 = vunpack.c.l.b16 %v233
      %v309 = vunpack.c.l.b16 %v235
      %v310 = vunpack.c.l.b16 %v236
      %v311 = vunpack.c.l.b16 %v238
      %v312 = vunpack.c.l.b16 %v239
      %v313 = vunpack.c.l.b16 %v241
      %v314 = vunpack.c.l.b16 %v242
      %v315 = vunpack.c.l.b16 %v244
      %v316 = vunpack.c.l.b16 %v245
      %v317 = vpack.c.b16 %v286, %v285
      %v318 = vpack.c.b16 %v288, %v287
      %v319 = vpack.c.b16 %v290, %v289
      %v320 = vpack.c.b16 %v292, %v291
      %v321 = vpack.c.b16 %v294, %v293
      %v322 = vpack.c.b16 %v296, %v295
      %v323 = vpack.c.b16 %v298, %v297
      %v324 = vpack.c.b16 %v300, %v299
      %v325 = vpack.c.b16 %v302, %v301
      %v326 = vpack.c.b16 %v304, %v303
      %v327 = vpack.c.b16 %v306, %v305
      %v328 = vpack.c.b16 %v308, %v307
      %v329 = vpack.c.b16 %v310, %v309
      %v330 = vpack.c.b16 %v312, %v311
      %v331 = vpack.c.b16 %v314, %v313
      %v332 = vpack.c.b16 %v316, %v315
      %v349 = vunpack.c.l.b16 %v201
      %v350 = vunpack.c.l.b16 %v204
      %v351 = vunpack.c.l.b16 %v207
      %v352 = vunpack.c.l.b16 %v210
      %v353 = vunpack.c.l.b16 %v213
      %v354 = vunpack.c.l.b16 %v216
      %v355 = vunpack.c.l.b16 %v219
      %v356 = vunpack.c.l.b16 %v222
      %v357 = vunpack.c.l.b16 %v225
      %v358 = vunpack.c.l.b16 %v228
      %v359 = vunpack.c.l.b16 %v231
      %v360 = vunpack.c.l.b16 %v234
      %v361 = vunpack.c.l.b16 %v237
      %v362 = vunpack.c.l.b16 %v240
      %v363 = vunpack.c.l.b16 %v243
      %v364 = vunpack.c.l.b16 %v246
      %v365 = vpack.c.b16 %v349, %v349
      %v366 = vpack.c.b16 %v350, %v350
      %v367 = vpack.c.b16 %v351, %v351
      %v368 = vpack.c.b16 %v352, %v352
      %v369 = vpack.c.b16 %v353, %v353
      %v370 = vpack.c.b16 %v354, %v354
      %v371 = vpack.c.b16 %v355, %v355
      %v372 = vpack.c.b16 %v356, %v356
      %v373 = vpack.c.b16 %v357, %v357
      %v374 = vpack.c.b16 %v358, %v358
      %v375 = vpack.c.b16 %v359, %v359
      %v376 = vpack.c.b16 %v360, %v360
      %v377 = vpack.c.b16 %v361, %v361
      %v378 = vpack.c.b16 %v362, %v362
      %v379 = vpack.c.b16 %v363, %v363
      %v380 = vpack.c.b16 %v364, %v364
      %vm381 = vsmask.f32 7424
      %v383 = vshrl.u32 %v317, 16
      %v385 = vshll.u32 %v317, 16
      %v387 = vrot.slane %v385, 1
      %v388 = vor.u32 %v383, %v387
      %v390 = vshll.u32 %v365, 16
      %v392 = vrot.slane %v390, 1
      %v393 = vsel %vm381, %v388, %v392
      %v395 = vshrl.u32 %v318, 16
      %v397 = vshll.u32 %v318, 16
      %v399 = vrot.slane %v397, 1
      %v400 = vor.u32 %v395, %v399
      %v402 = vshll.u32 %v366, 16
      %v404 = vrot.slane %v402, 1
      %v405 = vsel %vm381, %v400, %v404
      %v407 = vshrl.u32 %v319, 16
      %v409 = vshll.u32 %v319, 16
      %v411 = vrot.slane %v409, 1
      %v412 = vor.u32 %v407, %v411
      %v414 = vshll.u32 %v367, 16
      %v416 = vrot.slane %v414, 1
      %v417 = vsel %vm381, %v412, %v416
      %v419 = vshrl.u32 %v320, 16
      %v421 = vshll.u32 %v320, 16
      %v423 = vrot.slane %v421, 1
      %v424 = vor.u32 %v419, %v423
      %v426 = vshll.u32 %v368, 16
      %v428 = vrot.slane %v426, 1
      %v429 = vsel %vm381, %v424, %v428
      %v431 = vshrl.u32 %v321, 16
      %v433 = vshll.u32 %v321, 16
      %v435 = vrot.slane %v433, 1
      %v436 = vor.u32 %v431, %v435
      %v438 = vshll.u32 %v369, 16
      %v440 = vrot.slane %v438, 1
      %v441 = vsel %vm381, %v436, %v440
      %v443 = vshrl.u32 %v322, 16
      %v445 = vshll.u32 %v322, 16
      %v447 = vrot.slane %v445, 1
      %v448 = vor.u32 %v443, %v447
      %v450 = vshll.u32 %v370, 16
      %v452 = vrot.slane %v450, 1
      %v453 = vsel %vm381, %v448, %v452
      %v455 = vshrl.u32 %v323, 16
      %v457 = vshll.u32 %v323, 16
      %v459 = vrot.slane %v457, 1
      %v460 = vor.u32 %v455, %v459
      %v462 = vshll.u32 %v371, 16
      %v464 = vrot.slane %v462, 1
      %v465 = vsel %vm381, %v460, %v464
      %v467 = vshrl.u32 %v324, 16
      %v469 = vshll.u32 %v324, 16
      %v471 = vrot.slane %v469, 1
      %v472 = vor.u32 %v467, %v471
      %v474 = vshll.u32 %v372, 16
      %v476 = vrot.slane %v474, 1
      %v477 = vsel %vm381, %v472, %v476
      %v479 = vshrl.u32 %v325, 16
      %v481 = vshll.u32 %v325, 16
      %v483 = vrot.slane %v481, 1
      %v484 = vor.u32 %v479, %v483
      %v486 = vshll.u32 %v373, 16
      %v488 = vrot.slane %v486, 1
      %v489 = vsel %vm381, %v484, %v488
      %v491 = vshrl.u32 %v326, 16
      %v493 = vshll.u32 %v326, 16
      %v495 = vrot.slane %v493, 1
      %v496 = vor.u32 %v491, %v495
      %v498 = vshll.u32 %v374, 16
      %v500 = vrot.slane %v498, 1
      %v501 = vsel %vm381, %v496, %v500
      %v503 = vshrl.u32 %v327, 16
      %v505 = vshll.u32 %v327, 16
      %v507 = vrot.slane %v505, 1
      %v508 = vor.u32 %v503, %v507
      %v510 = vshll.u32 %v375, 16
      %v512 = vrot.slane %v510, 1
      %v513 = vsel %vm381, %v508, %v512
      %v515 = vshrl.u32 %v328, 16
      %v517 = vshll.u32 %v328, 16
      %v519 = vrot.slane %v517, 1
      %v520 = vor.u32 %v515, %v519
      %v522 = vshll.u32 %v376, 16
      %v524 = vrot.slane %v522, 1
      %v525 = vsel %vm381, %v520, %v524
      %v527 = vshrl.u32 %v329, 16
      %v529 = vshll.u32 %v329, 16
      %v531 = vrot.slane %v529, 1
      %v532 = vor.u32 %v527, %v531
      %v534 = vshll.u32 %v377, 16
      %v536 = vrot.slane %v534, 1
      %v537 = vsel %vm381, %v532, %v536
      %v539 = vshrl.u32 %v330, 16
      %v541 = vshll.u32 %v330, 16
      %v543 = vrot.slane %v541, 1
      %v544 = vor.u32 %v539, %v543
      %v546 = vshll.u32 %v378, 16
      %v548 = vrot.slane %v546, 1
      %v549 = vsel %vm381, %v544, %v548
      %v551 = vshrl.u32 %v331, 16
      %v553 = vshll.u32 %v331, 16
      %v555 = vrot.slane %v553, 1
      %v556 = vor.u32 %v551, %v555
      %v558 = vshll.u32 %v379, 16
      %v560 = vrot.slane %v558, 1
      %v561 = vsel %vm381, %v556, %v560
      %v563 = vshrl.u32 %v332, 16
      %v565 = vshll.u32 %v332, 16
      %v567 = vrot.slane %v565, 1
      %v568 = vor.u32 %v563, %v567
      %v570 = vshll.u32 %v380, 16
      %v572 = vrot.slane %v570, 1
      %v573 = vsel %vm381, %v568, %v572
      %574 = vrot.lane.b32.xlu0 %v393, 4
      %v575 = vpop.permute.xlu0 %574
      %576 = vrot.lane.b32.xlu0 %v405, 4
      %v577 = vpop.permute.xlu0 %576
      %578 = vrot.lane.b32.xlu0 %v417, 4
      %v579 = vpop.permute.xlu0 %578
      %580 = vrot.lane.b32.xlu0 %v429, 4
      %v581 = vpop.permute.xlu0 %580
      %582 = vrot.lane.b32.xlu0 %v441, 4
      %v583 = vpop.permute.xlu0 %582
      %584 = vrot.lane.b32.xlu0 %v453, 4
      %v585 = vpop.permute.xlu0 %584
      %586 = vrot.lane.b32.xlu0 %v465, 4
      %v587 = vpop.permute.xlu0 %586
      %588 = vrot.lane.b32.xlu0 %v477, 4
      %v589 = vpop.permute.xlu0 %588
      %590 = vrot.lane.b32.xlu0 %v489, 4
      %v591 = vpop.permute.xlu0 %590
      %592 = vrot.lane.b32.xlu0 %v501, 4
      %v593 = vpop.permute.xlu0 %592
      %594 = vrot.lane.b32.xlu0 %v513, 4
      %v595 = vpop.permute.xlu0 %594
      %596 = vrot.lane.b32.xlu0 %v525, 4
      %v597 = vpop.permute.xlu0 %596
      %598 = vrot.lane.b32.xlu0 %v537, 4
      %v599 = vpop.permute.xlu0 %598
      %600 = vrot.lane.b32.xlu0 %v549, 4
      %v601 = vpop.permute.xlu0 %600
      %602 = vrot.lane.b32.xlu0 %v561, 4
      %v603 = vpop.permute.xlu0 %602
      %604 = vrot.lane.b32.xlu0 %v573, 4
      %v605 = vpop.permute.xlu0 %604
      %vm606 = vcmask 1046528
      %v607 = vrot.slane %v317, 1
      %v608 = vrot.slane %v365, 1
      %v609 = vsel %vm606, %v607, %v608
      %v610 = vrot.slane %v318, 1
      %v611 = vrot.slane %v366, 1
      %v612 = vsel %vm606, %v610, %v611
      %v613 = vrot.slane %v319, 1
      %v614 = vrot.slane %v367, 1
      %v615 = vsel %vm606, %v613, %v614
      %v616 = vrot.slane %v320, 1
      %v617 = vrot.slane %v368, 1
      %v618 = vsel %vm606, %v616, %v617
      %v619 = vrot.slane %v321, 1
      %v620 = vrot.slane %v369, 1
      %v621 = vsel %vm606, %v619, %v620
      %v622 = vrot.slane %v322, 1
      %v623 = vrot.slane %v370, 1
      %v624 = vsel %vm606, %v622, %v623
      %v625 = vrot.slane %v323, 1
      %v626 = vrot.slane %v371, 1
      %v627 = vsel %vm606, %v625, %v626
      %v628 = vrot.slane %v324, 1
      %v629 = vrot.slane %v372, 1
      %v630 = vsel %vm606, %v628, %v629
      %v631 = vrot.slane %v325, 1
      %v632 = vrot.slane %v373, 1
      %v633 = vsel %vm606, %v631, %v632
      %v634 = vrot.slane %v326, 1
      %v635 = vrot.slane %v374, 1
      %v636 = vsel %vm606, %v634, %v635
      %v637 = vrot.slane %v327, 1
      %v638 = vrot.slane %v375, 1
      %v639 = vsel %vm606, %v637, %v638
      %v640 = vrot.slane %v328, 1
      %v641 = vrot.slane %v376, 1
      %v642 = vsel %vm606, %v640, %v641
      %v643 = vrot.slane %v329, 1
      %v644 = vrot.slane %v377, 1
      %v645 = vsel %vm606, %v643, %v644
      %v646 = vrot.slane %v330, 1
      %v647 = vrot.slane %v378, 1
      %v648 = vsel %vm606, %v646, %v647
      %v649 = vrot.slane %v331, 1
      %v650 = vrot.slane %v379, 1
      %v651 = vsel %vm606, %v649, %v650
      %v652 = vrot.slane %v332, 1
      %v653 = vrot.slane %v380, 1
      %v654 = vsel %vm606, %v652, %v653
      %655 = vrot.lane.b32.xlu0 %v609, 8
      %v656 = vpop.permute.xlu0 %655
      %657 = vrot.lane.b32.xlu0 %v612, 8
      %v658 = vpop.permute.xlu0 %657
      %659 = vrot.lane.b32.xlu0 %v615, 8
      %v660 = vpop.permute.xlu0 %659
      %661 = vrot.lane.b32.xlu0 %v618, 8
      %v662 = vpop.permute.xlu0 %661
      %663 = vrot.lane.b32.xlu0 %v621, 8
      %v664 = vpop.permute.xlu0 %663
      %665 = vrot.lane.b32.xlu0 %v624, 8
      %v666 = vpop.permute.xlu0 %665
      %667 = vrot.lane.b32.xlu0 %v627, 8
      %v668 = vpop.permute.xlu0 %667
      %669 = vrot.lane.b32.xlu0 %v630, 8
      %v670 = vpop.permute.xlu0 %669
      %671 = vrot.lane.b32.xlu0 %v633, 8
      %v672 = vpop.permute.xlu0 %671
      %673 = vrot.lane.b32.xlu0 %v636, 8
      %v674 = vpop.permute.xlu0 %673
      %675 = vrot.lane.b32.xlu0 %v639, 8
      %v676 = vpop.permute.xlu0 %675
      %677 = vrot.lane.b32.xlu0 %v642, 8
      %v678 = vpop.permute.xlu0 %677
      %679 = vrot.lane.b32.xlu0 %v645, 8
      %v680 = vpop.permute.xlu0 %679
      %681 = vrot.lane.b32.xlu0 %v648, 8
      %v682 = vpop.permute.xlu0 %681
      %683 = vrot.lane.b32.xlu0 %v651, 8
      %v684 = vpop.permute.xlu0 %683
      %685 = vrot.lane.b32.xlu0 %v654, 8
      %v686 = vpop.permute.xlu0 %685
      %v689 = vunpack.c.l.b16 %v247
      %v690 = vunpack.c.l.b16 %v248
      %v691 = vpack.c.b16 %v690, %v689
      %692 = vrot.lane.b32.xlu0 %v318, 12
      %v693 = vpop.permute.xlu0 %692
      %694 = vrot.lane.b32.xlu0 %v319, 12
      %v695 = vpop.permute.xlu0 %694
      %696 = vrot.lane.b32.xlu0 %v320, 12
      %v697 = vpop.permute.xlu0 %696
      %698 = vrot.lane.b32.xlu0 %v321, 12
      %v699 = vpop.permute.xlu0 %698
      %700 = vrot.lane.b32.xlu0 %v322, 12
      %v701 = vpop.permute.xlu0 %700
      %702 = vrot.lane.b32.xlu0 %v323, 12
      %v703 = vpop.permute.xlu0 %702
      %704 = vrot.lane.b32.xlu0 %v324, 12
      %v705 = vpop.permute.xlu0 %704
      %706 = vrot.lane.b32.xlu0 %v325, 12
      %v707 = vpop.permute.xlu0 %706
      %708 = vrot.lane.b32.xlu0 %v326, 12
      %v709 = vpop.permute.xlu0 %708
      %710 = vrot.lane.b32.xlu0 %v327, 12
      %v711 = vpop.permute.xlu0 %710
      %712 = vrot.lane.b32.xlu0 %v328, 12
      %v713 = vpop.permute.xlu0 %712
      %714 = vrot.lane.b32.xlu0 %v329, 12
      %v715 = vpop.permute.xlu0 %714
      %716 = vrot.lane.b32.xlu0 %v330, 12
      %v717 = vpop.permute.xlu0 %716
      %718 = vrot.lane.b32.xlu0 %v331, 12
      %v719 = vpop.permute.xlu0 %718
      %720 = vrot.lane.b32.xlu0 %v332, 12
      %v721 = vpop.permute.xlu0 %720
      %722 = vrot.lane.b32.xlu0 %v691, 12
      %v723 = vpop.permute.xlu0 %722
      %v725 = vunpack.c.l.b16 %v249
      %v726 = vpack.c.b16 %v725, %v725
      %v728 = vshrl.u32 %v691, 16
      %v730 = vshll.u32 %v691, 16
      %v732 = vrot.slane %v730, 1
      %v733 = vor.u32 %v728, %v732
      %v735 = vshll.u32 %v726, 16
      %v737 = vrot.slane %v735, 1
      %v738 = vsel %vm381, %v733, %v737
      %739 = vrot.lane.b32.xlu0 %v405, 16
      %v740 = vpop.permute.xlu0 %739
      %741 = vrot.lane.b32.xlu0 %v417, 16
      %v742 = vpop.permute.xlu0 %741
      %743 = vrot.lane.b32.xlu0 %v429, 16
      %v744 = vpop.permute.xlu0 %743
      %745 = vrot.lane.b32.xlu0 %v441, 16
      %v746 = vpop.permute.xlu0 %745
      %747 = vrot.lane.b32.xlu0 %v453, 16
      %v748 = vpop.permute.xlu0 %747
      %749 = vrot.lane.b32.xlu0 %v465, 16
      %v750 = vpop.permute.xlu0 %749
      %751 = vrot.lane.b32.xlu0 %v477, 16
      %v752 = vpop.permute.xlu0 %751
      %753 = vrot.lane.b32.xlu0 %v489, 16
      %v754 = vpop.permute.xlu0 %753
      %755 = vrot.lane.b32.xlu0 %v501, 16
      %v756 = vpop.permute.xlu0 %755
      %757 = vrot.lane.b32.xlu0 %v513, 16
      %v758 = vpop.permute.xlu0 %757
      %759 = vrot.lane.b32.xlu0 %v525, 16
      %v760 = vpop.permute.xlu0 %759
      %761 = vrot.lane.b32.xlu0 %v537, 16
      %v762 = vpop.permute.xlu0 %761
      %763 = vrot.lane.b32.xlu0 %v549, 16
      %v764 = vpop.permute.xlu0 %763
      %765 = vrot.lane.b32.xlu0 %v561, 16
      %v766 = vpop.permute.xlu0 %765
      %767 = vrot.lane.b32.xlu0 %v573, 16
      %v768 = vpop.permute.xlu0 %767
      %769 = vrot.lane.b32.xlu0 %v738, 16
      %v770 = vpop.permute.xlu0 %769
      %v771 = vrot.slane %v691, 1
      %v772 = vrot.slane %v726, 1
      %v773 = vsel %vm606, %v771, %v772
      %774 = vrot.lane.b32.xlu0 %v612, 20
      %v775 = vpop.permute.xlu0 %774
      %776 = vrot.lane.b32.xlu0 %v615, 20
      %v777 = vpop.permute.xlu0 %776
      %778 = vrot.lane.b32.xlu0 %v618, 20
      %v779 = vpop.permute.xlu0 %778
      %780 = vrot.lane.b32.xlu0 %v621, 20
      %v781 = vpop.permute.xlu0 %780
      %782 = vrot.lane.b32.xlu0 %v624, 20
      %v783 = vpop.permute.xlu0 %782
      %784 = vrot.lane.b32.xlu0 %v627, 20
      %v785 = vpop.permute.xlu0 %784
      %786 = vrot.lane.b32.xlu0 %v630, 20
      %v787 = vpop.permute.xlu0 %786
      %788 = vrot.lane.b32.xlu0 %v633, 20
      %v789 = vpop.permute.xlu0 %788
      %790 = vrot.lane.b32.xlu0 %v636, 20
      %v791 = vpop.permute.xlu0 %790
      %792 = vrot.lane.b32.xlu0 %v639, 20
      %v793 = vpop.permute.xlu0 %792
      %794 = vrot.lane.b32.xlu0 %v642, 20
      %v795 = vpop.permute.xlu0 %794
      %796 = vrot.lane.b32.xlu0 %v645, 20
      %v797 = vpop.permute.xlu0 %796
      %798 = vrot.lane.b32.xlu0 %v648, 20
      %v799 = vpop.permute.xlu0 %798
      %800 = vrot.lane.b32.xlu0 %v651, 20
      %v801 = vpop.permute.xlu0 %800
      %802 = vrot.lane.b32.xlu0 %v654, 20
      %v803 = vpop.permute.xlu0 %802
      %804 = vrot.lane.b32.xlu0 %v773, 20
      %v805 = vpop.permute.xlu0 %804
      %v808 = vunpack.c.l.b16 %v250
      %v809 = vunpack.c.l.b16 %v251
      %v810 = vpack.c.b16 %v809, %v808
      %811 = vrot.lane.b32.xlu0 %v319, 24
      %v812 = vpop.permute.xlu0 %811
      %813 = vrot.lane.b32.xlu0 %v320, 24
      %v814 = vpop.permute.xlu0 %813
      %815 = vrot.lane.b32.xlu0 %v321, 24
      %v816 = vpop.permute.xlu0 %815
      %817 = vrot.lane.b32.xlu0 %v322, 24
      %v818 = vpop.permute.xlu0 %817
      %819 = vrot.lane.b32.xlu0 %v323, 24
      %v820 = vpop.permute.xlu0 %819
      %821 = vrot.lane.b32.xlu0 %v324, 24
      %v822 = vpop.permute.xlu0 %821
      %823 = vrot.lane.b32.xlu0 %v325, 24
      %v824 = vpop.permute.xlu0 %823
      %825 = vrot.lane.b32.xlu0 %v326, 24
      %v826 = vpop.permute.xlu0 %825
      %827 = vrot.lane.b32.xlu0 %v327, 24
      %v828 = vpop.permute.xlu0 %827
      %829 = vrot.lane.b32.xlu0 %v328, 24
      %v830 = vpop.permute.xlu0 %829
      %831 = vrot.lane.b32.xlu0 %v329, 24
      %v832 = vpop.permute.xlu0 %831
      %833 = vrot.lane.b32.xlu0 %v330, 24
      %v834 = vpop.permute.xlu0 %833
      %835 = vrot.lane.b32.xlu0 %v331, 24
      %v836 = vpop.permute.xlu0 %835
      %837 = vrot.lane.b32.xlu0 %v332, 24
      %v838 = vpop.permute.xlu0 %837
      %839 = vrot.lane.b32.xlu0 %v691, 24
      %v840 = vpop.permute.xlu0 %839
      %841 = vrot.lane.b32.xlu0 %v810, 24
      %v842 = vpop.permute.xlu0 %841
      %v844 = vunpack.c.l.b16 %v252
      %v845 = vpack.c.b16 %v844, %v844
      %v847 = vshrl.u32 %v810, 16
      %v849 = vshll.u32 %v810, 16
      %v851 = vrot.slane %v849, 1
      %v852 = vor.u32 %v847, %v851
      %v854 = vshll.u32 %v845, 16
      %v856 = vrot.slane %v854, 1
      %v857 = vsel %vm381, %v852, %v856
      %858 = vrot.lane.b32.xlu0 %v417, 28
      %v859 = vpop.permute.xlu0 %858
      %860 = vrot.lane.b32.xlu0 %v429, 28
      %v861 = vpop.permute.xlu0 %860
      %862 = vrot.lane.b32.xlu0 %v441, 28
      %v863 = vpop.permute.xlu0 %862
      %864 = vrot.lane.b32.xlu0 %v453, 28
      %v865 = vpop.permute.xlu0 %864
      %866 = vrot.lane.b32.xlu0 %v465, 28
      %v867 = vpop.permute.xlu0 %866
      %868 = vrot.lane.b32.xlu0 %v477, 28
      %v869 = vpop.permute.xlu0 %868
      %870 = vrot.lane.b32.xlu0 %v489, 28
      %v871 = vpop.permute.xlu0 %870
      %872 = vrot.lane.b32.xlu0 %v501, 28
      %v873 = vpop.permute.xlu0 %872
      %874 = vrot.lane.b32.xlu0 %v513, 28
      %v875 = vpop.permute.xlu0 %874
      %876 = vrot.lane.b32.xlu0 %v525, 28
      %v877 = vpop.permute.xlu0 %876
      %878 = vrot.lane.b32.xlu0 %v537, 28
      %v879 = vpop.permute.xlu0 %878
      %880 = vrot.lane.b32.xlu0 %v549, 28
      %v881 = vpop.permute.xlu0 %880
      %882 = vrot.lane.b32.xlu0 %v561, 28
      %v883 = vpop.permute.xlu0 %882
      %884 = vrot.lane.b32.xlu0 %v573, 28
      %v885 = vpop.permute.xlu0 %884
      %886 = vrot.lane.b32.xlu0 %v738, 28
      %v887 = vpop.permute.xlu0 %886
      %888 = vrot.lane.b32.xlu0 %v857, 28
      %v889 = vpop.permute.xlu0 %888
      %v890 = vrot.slane %v810, 1
      %v891 = vrot.slane %v845, 1
      %v892 = vsel %vm606, %v890, %v891
      %893 = vrot.lane.b32.xlu0 %v615, 32
      %v894 = vpop.permute.xlu0 %893
      %895 = vrot.lane.b32.xlu0 %v618, 32
      %v896 = vpop.permute.xlu0 %895
      %897 = vrot.lane.b32.xlu0 %v621, 32
      %v898 = vpop.permute.xlu0 %897
      %899 = vrot.lane.b32.xlu0 %v624, 32
      %v900 = vpop.permute.xlu0 %899
      %901 = vrot.lane.b32.xlu0 %v627, 32
      %v902 = vpop.permute.xlu0 %901
      %903 = vrot.lane.b32.xlu0 %v630, 32
      %v904 = vpop.permute.xlu0 %903
      %905 = vrot.lane.b32.xlu0 %v633, 32
      %v906 = vpop.permute.xlu0 %905
      %907 = vrot.lane.b32.xlu0 %v636, 32
      %v908 = vpop.permute.xlu0 %907
      %909 = vrot.lane.b32.xlu0 %v639, 32
      %v910 = vpop.permute.xlu0 %909
      %911 = vrot.lane.b32.xlu0 %v642, 32
      %v912 = vpop.permute.xlu0 %911
      %913 = vrot.lane.b32.xlu0 %v645, 32
      %v914 = vpop.permute.xlu0 %913
      %915 = vrot.lane.b32.xlu0 %v648, 32
      %v916 = vpop.permute.xlu0 %915
      %917 = vrot.lane.b32.xlu0 %v651, 32
      %v918 = vpop.permute.xlu0 %917
      %919 = vrot.lane.b32.xlu0 %v654, 32
      %v920 = vpop.permute.xlu0 %919
      %921 = vrot.lane.b32.xlu0 %v773, 32
      %v922 = vpop.permute.xlu0 %921
      %923 = vrot.lane.b32.xlu0 %v892, 32
      %v924 = vpop.permute.xlu0 %923
      %vm925 = vcmask 31744
      %v927 = vsel %vm925, %v317, %v575
      %v929 = vsel %vm925, %v318, %v577
      %v931 = vsel %vm925, %v319, %v579
      %v933 = vsel %vm925, %v320, %v581
      %v935 = vsel %vm925, %v321, %v583
      %v937 = vsel %vm925, %v322, %v585
      %v939 = vsel %vm925, %v323, %v587
      %v941 = vsel %vm925, %v324, %v589
      %v943 = vsel %vm925, %v325, %v591
      %v945 = vsel %vm925, %v326, %v593
      %v947 = vsel %vm925, %v327, %v595
      %v949 = vsel %vm925, %v328, %v597
      %v951 = vsel %vm925, %v329, %v599
      %v953 = vsel %vm925, %v330, %v601
      %v955 = vsel %vm925, %v331, %v603
      %v957 = vsel %vm925, %v332, %v605
      %vm958 = vcmask 64512
      %v960 = vsel %vm958, %v927, %v656
      %v962 = vsel %vm958, %v929, %v658
      %v964 = vsel %vm958, %v931, %v660
      %v966 = vsel %vm958, %v933, %v662
      %v968 = vsel %vm958, %v935, %v664
      %v970 = vsel %vm958, %v937, %v666
      %v972 = vsel %vm958, %v939, %v668
      %v974 = vsel %vm958, %v941, %v670
      %v976 = vsel %vm958, %v943, %v672
      %v978 = vsel %vm958, %v945, %v674
      %v980 = vsel %vm958, %v947, %v676
      %v982 = vsel %vm958, %v949, %v678
      %v984 = vsel %vm958, %v951, %v680
      %v986 = vsel %vm958, %v953, %v682
      %v988 = vsel %vm958, %v955, %v684
      %v990 = vsel %vm958, %v957, %v686
      %vm991 = vcmask 97280
      %v993 = vsel %vm991, %v960, %v693
      %v995 = vsel %vm991, %v962, %v695
      %v997 = vsel %vm991, %v964, %v697
      %v999 = vsel %vm991, %v966, %v699
      %v1001 = vsel %vm991, %v968, %v701
      %v1003 = vsel %vm991, %v970, %v703
      %v1005 = vsel %vm991, %v972, %v705
      %v1007 = vsel %vm991, %v974, %v707
      %v1009 = vsel %vm991, %v976, %v709
      %v1011 = vsel %vm991, %v978, %v711
      %v1013 = vsel %vm991, %v980, %v713
      %v1015 = vsel %vm991, %v982, %v715
      %v1017 = vsel %vm991, %v984, %v717
      %v1019 = vsel %vm991, %v986, %v719
      %v1021 = vsel %vm991, %v988, %v721
      %v1023 = vsel %vm991, %v990, %v723
      %vm1024 = vcmask 130048
      %v1026 = vsel %vm1024, %v993, %v740
      %v1028 = vsel %vm1024, %v995, %v742
      %v1030 = vsel %vm1024, %v997, %v744
      %v1032 = vsel %vm1024, %v999, %v746
      %v1034 = vsel %vm1024, %v1001, %v748
      %v1036 = vsel %vm1024, %v1003, %v750
      %v1038 = vsel %vm1024, %v1005, %v752
      %v1040 = vsel %vm1024, %v1007, %v754
      %v1042 = vsel %vm1024, %v1009, %v756
      %v1044 = vsel %vm1024, %v1011, %v758
      %v1046 = vsel %vm1024, %v1013, %v760
      %v1048 = vsel %vm1024, %v1015, %v762
      %v1050 = vsel %vm1024, %v1017, %v764
      %v1052 = vsel %vm1024, %v1019, %v766
      %v1054 = vsel %vm1024, %v1021, %v768
      %v1056 = vsel %vm1024, %v1023, %v770
      %vm1057 = vcmask 162816
      %v1059 = vsel %vm1057, %v1026, %v775
      %v1061 = vsel %vm1057, %v1028, %v777
      %v1063 = vsel %vm1057, %v1030, %v779
      %v1065 = vsel %vm1057, %v1032, %v781
      %v1067 = vsel %vm1057, %v1034, %v783
      %v1069 = vsel %vm1057, %v1036, %v785
      %v1071 = vsel %vm1057, %v1038, %v787
      %v1073 = vsel %vm1057, %v1040, %v789
      %v1075 = vsel %vm1057, %v1042, %v791
      %v1077 = vsel %vm1057, %v1044, %v793
      %v1079 = vsel %vm1057, %v1046, %v795
      %v1081 = vsel %vm1057, %v1048, %v797
      %v1083 = vsel %vm1057, %v1050, %v799
      %v1085 = vsel %vm1057, %v1052, %v801
      %v1087 = vsel %vm1057, %v1054, %v803
      %v1089 = vsel %vm1057, %v1056, %v805
      %vm1090 = vcmask 195584
      %v1092 = vsel %vm1090, %v1059, %v812
      %v1094 = vsel %vm1090, %v1061, %v814
      %v1096 = vsel %vm1090, %v1063, %v816
      %v1098 = vsel %vm1090, %v1065, %v818
      %v1100 = vsel %vm1090, %v1067, %v820
      %v1102 = vsel %vm1090, %v1069, %v822
      %v1104 = vsel %vm1090, %v1071, %v824
      %v1106 = vsel %vm1090, %v1073, %v826
      %v1108 = vsel %vm1090, %v1075, %v828
      %v1110 = vsel %vm1090, %v1077, %v830
      %v1112 = vsel %vm1090, %v1079, %v832
      %v1114 = vsel %vm1090, %v1081, %v834
      %v1116 = vsel %vm1090, %v1083, %v836
      %v1118 = vsel %vm1090, %v1085, %v838
      %v1120 = vsel %vm1090, %v1087, %v840
      %v1122 = vsel %vm1090, %v1089, %v842
      %vm1123 = vcmask 228352
      %v1125 = vsel %vm1123, %v1092, %v859
      %v1127 = vsel %vm1123, %v1094, %v861
      %v1129 = vsel %vm1123, %v1096, %v863
      %v1131 = vsel %vm1123, %v1098, %v865
      %v1133 = vsel %vm1123, %v1100, %v867
      %v1135 = vsel %vm1123, %v1102, %v869
      %v1137 = vsel %vm1123, %v1104, %v871
      %v1139 = vsel %vm1123, %v1106, %v873
      %v1141 = vsel %vm1123, %v1108, %v875
      %v1143 = vsel %vm1123, %v1110, %v877
      %v1145 = vsel %vm1123, %v1112, %v879
      %v1147 = vsel %vm1123, %v1114, %v881
      %v1149 = vsel %vm1123, %v1116, %v883
      %v1151 = vsel %vm1123, %v1118, %v885
      %v1153 = vsel %vm1123, %v1120, %v887
      %v1155 = vsel %vm1123, %v1122, %v889
      %vm1156 = vcmask 261120
      %v1158 = vsel %vm1156, %v1125, %v894
      %v1160 = vsel %vm1156, %v1127, %v896
      %v1162 = vsel %vm1156, %v1129, %v898
      %v1164 = vsel %vm1156, %v1131, %v900
      %v1166 = vsel %vm1156, %v1133, %v902
      %v1168 = vsel %vm1156, %v1135, %v904
      %v1170 = vsel %vm1156, %v1137, %v906
      %v1172 = vsel %vm1156, %v1139, %v908
      %v1174 = vsel %vm1156, %v1141, %v910
      %v1176 = vsel %vm1156, %v1143, %v912
      %v1178 = vsel %vm1156, %v1145, %v914
      %v1180 = vsel %vm1156, %v1147, %v916
      %v1182 = vsel %vm1156, %v1149, %v918
      %v1184 = vsel %vm1156, %v1151, %v920
      %v1186 = vsel %vm1156, %v1153, %v922
      %v1188 = vsel %vm1156, %v1155, %v924
      %v1189 = vld [vmem:[%s1] sm:$0xf]
      %v1190 = vld [vmem:[%s1 + $0x4] sm:$0xf]
      %v1191 = vld [vmem:[%s1 + $0x8] sm:$0xf]
      %v1192 = vld [vmem:[%s1 + $0xc] sm:$0xf]
      %v1193 = vld [vmem:[%s1 + $0x10] sm:$0x3]
      %v1199 = vunpack.c.l.b16 %v1189
      %v1200 = vunpack.c.l.b16 %v1190
      %v1201 = vunpack.c.l.b16 %v1191
      %v1202 = vunpack.c.l.b16 %v1192
      %v1203 = vunpack.c.l.b16 %v1193
      %v1204 = vpack.c.b16 %v1200, %v1199
      %v1205 = vpack.c.b16 %v1202, %v1201
      %v1206 = vpack.c.b16 %v1203, %v1203
      %vm1209 = vcmask 293888
      %v1210 = vsel %vm1209, %v1158, 0
      %v1212 = vsel %vm1209, %v1160, 0
      %v1214 = vsel %vm1209, %v1162, 0
      %v1216 = vsel %vm1209, %v1164, 0
      %v1218 = vsel %vm1209, %v1166, 0
      %v1220 = vsel %vm1209, %v1168, 0
      %v1222 = vsel %vm1209, %v1170, 0
      %v1224 = vsel %vm1209, %v1172, 0
      %v1226 = vsel %vm1209, %v1174, 0
      %v1228 = vsel %vm1209, %v1176, 0
      %v1230 = vsel %vm1209, %v1178, 0
      %v1232 = vsel %vm1209, %v1180, 0
      %v1234 = vsel %vm1209, %v1182, 0
      %v1236 = vsel %vm1209, %v1184, 0
      %v1238 = vsel %vm1209, %v1186, 0
      %v1240 = vsel %vm1209, %v1188, 0
      %vm1242 = vcmask 1041408
      %v1244 = vsel %vm1242, %v1206, 0
      %1246 = vmatprep.subr.bf16.mxu0 0
      %1247 = vmatpush1.bf16.msra.mxu0 %v1204
      %1248 = vmatprep.subr.bf16.mxu0 0
      %1249 = vmatpush1.bf16.msra.mxu0 %v1205
      %1250 = vmatprep.subr.bf16.mxu0 0
      %1251 = vmatpush1.bf16.msra.mxu0 %v1244
      %1252 = vmatprep.subr.bf16.mxu0 0
      %1253 = vmatpush1.bf16.msra.mxu0 0
      %1254 = vmatprep.subr.bf16.mxu0 0
      %1255 = vmatpush1.bf16.msra.mxu0 0
      %1256 = vmatprep.subr.bf16.mxu0 0
      %1257 = vmatpush1.bf16.msra.mxu0 0
      %1258 = vmatprep.subr.bf16.mxu0 0
      %1259 = vmatpush1.bf16.msra.mxu0 0
      %1260 = vmatprep.subr.bf16.mxu0 0
      %1261 = vmatpush1.bf16.msra.mxu0 0
      %1262 = vmatprep.subr.bf16.mxu0 0
      %1263 = vmatpush1.bf16.msra.mxu0 0
      %1264 = vmatprep.subr.bf16.mxu0 0
      %1265 = vmatpush1.bf16.msra.mxu0 0
      %1266 = vmatprep.subr.bf16.mxu0 0
      %1267 = vmatpush1.bf16.msra.mxu0 0
      %1268 = vmatprep.subr.bf16.mxu0 0
      %1269 = vmatpush1.bf16.msra.mxu0 0
      %1270 = vmatprep.subr.bf16.mxu0 0
      %1271 = vmatpush1.bf16.msra.mxu0 0
      %1272 = vmatprep.subr.bf16.mxu0 0
      %1273 = vmatpush1.bf16.msra.mxu0 0
      %1274 = vmatprep.subr.bf16.mxu0 0
      %1275 = vmatpush1.bf16.msra.mxu0 0
      %1276 = vmatprep.subr.bf16.mxu0 0
      %1277 = vmatpush1.bf16.msra.mxu0 0
      %1278 = vmatprep.mubr.bf16.mxu0 0
      %1279 = vmatmul.mubr.bf16.gmra.mrb[0].mxu0 %v1210
      %v1280 = vpop.f32.mrb[0].mxu0
      %v1281 = vadd.f32 0.0, %v1280
      %v1282 = vpop.f32.mrb[0].mxu0
      %v1283 = vpop.f32.mrb[0].mxu0
      %v1284 = vadd.f32 0.0, %v1283
      %v1285 = vpop.f32.mrb[0].mxu0
      %1286 = vmatprep.mubr.bf16.mxu0 0
      %1287 = vmatmul.mubr.bf16.gmra.mrb[0].mxu0 %v1212
      %v1288 = vpop.f32.mrb[0].mxu0
      %v1289 = vadd.f32 0.0, %v1288
      %v1290 = vpop.f32.mrb[0].mxu0
      %v1291 = vpop.f32.mrb[0].mxu0
      %v1292 = vadd.f32 0.0, %v1291
      %v1293 = vpop.f32.mrb[0].mxu0
      %1294 = vmatprep.mubr.bf16.mxu0 0
      %1295 = vmatmul.mubr.bf16.gmra.mrb[0].mxu0 %v1214
      %v1296 = vpop.f32.mrb[0].mxu0
      %v1297 = vadd.f32 0.0, %v1296
      %v1298 = vpop.f32.mrb[0].mxu0
      %v1299 = vpop.f32.mrb[0].mxu0
      %v1300 = vadd.f32 0.0, %v1299
      %v1301 = vpop.f32.mrb[0].mxu0
      %1302 = vmatprep.mubr.bf16.mxu0 0
      %1303 = vmatmul.mubr.bf16.gmra.mrb[0].mxu0 %v1216
      %v1304 = vpop.f32.mrb[0].mxu0
      %v1305 = vadd.f32 0.0, %v1304
      %v1306 = vpop.f32.mrb[0].mxu0
      %v1307 = vpop.f32.mrb[0].mxu0
      %v1308 = vadd.f32 0.0, %v1307
      %v1309 = vpop.f32.mrb[0].mxu0
      %1310 = vmatprep.mubr.bf16.mxu0 0
      %1311 = vmatmul.mubr.bf16.gmra.mrb[0].mxu0 %v1218
      %v1312 = vpop.f32.mrb[0].mxu0
      %v1313 = vadd.f32 0.0, %v1312
      %v1314 = vpop.f32.mrb[0].mxu0
      %v1315 = vpop.f32.mrb[0].mxu0
      %v1316 = vadd.f32 0.0, %v1315
      %v1317 = vpop.f32.mrb[0].mxu0
      %1318 = vmatprep.mubr.bf16.mxu0 0
      %1319 = vmatmul.mubr.bf16.gmra.mrb[0].mxu0 %v1220
      %v1320 = vpop.f32.mrb[0].mxu0
      %v1321 = vadd.f32 0.0, %v1320
      %v1322 = vpop.f32.mrb[0].mxu0
      %v1323 = vpop.f32.mrb[0].mxu0
      %v1324 = vadd.f32 0.0, %v1323
      %v1325 = vpop.f32.mrb[0].mxu0
      %1326 = vmatprep.mubr.bf16.mxu0 0
      %1327 = vmatmul.mubr.bf16.gmra.mrb[0].mxu0 %v1222
      %v1328 = vpop.f32.mrb[0].mxu0
      %v1329 = vadd.f32 0.0, %v1328
      %v1330 = vpop.f32.mrb[0].mxu0
      %v1331 = vpop.f32.mrb[0].mxu0
      %v1332 = vadd.f32 0.0, %v1331
      %v1333 = vpop.f32.mrb[0].mxu0
      %1334 = vmatprep.mubr.bf16.mxu0 0
      %1335 = vmatmul.mubr.bf16.gmra.mrb[0].mxu0 %v1224
      %v1336 = vpop.f32.mrb[0].mxu0
      %v1337 = vadd.f32 0.0, %v1336
      %v1338 = vpop.f32.mrb[0].mxu0
      %v1339 = vpop.f32.mrb[0].mxu0
      %v1340 = vadd.f32 0.0, %v1339
      %v1341 = vpop.f32.mrb[0].mxu0
      %1342 = vmatprep.mubr.bf16.mxu0 0
      %1343 = vmatmul.mubr.bf16.gmra.mrb[0].mxu0 %v1226
      %v1344 = vpop.f32.mrb[0].mxu0
      %v1345 = vadd.f32 0.0, %v1344
      %v1346 = vpop.f32.mrb[0].mxu0
      %v1347 = vpop.f32.mrb[0].mxu0
      %v1348 = vadd.f32 0.0, %v1347
      %v1349 = vpop.f32.mrb[0].mxu0
      %1350 = vmatprep.mubr.bf16.mxu0 0
      %1351 = vmatmul.mubr.bf16.gmra.mrb[0].mxu0 %v1228
      %v1352 = vpop.f32.mrb[0].mxu0
      %v1353 = vadd.f32 0.0, %v1352
      %v1354 = vpop.f32.mrb[0].mxu0
      %v1355 = vpop.f32.mrb[0].mxu0
      %v1356 = vadd.f32 0.0, %v1355
      %v1357 = vpop.f32.mrb[0].mxu0
      %1358 = vmatprep.mubr.bf16.mxu0 0
      %1359 = vmatmul.mubr.bf16.gmra.mrb[0].mxu0 %v1230
      %v1360 = vpop.f32.mrb[0].mxu0
      %v1361 = vadd.f32 0.0, %v1360
      %v1362 = vpop.f32.mrb[0].mxu0
      %v1363 = vpop.f32.mrb[0].mxu0
      %v1364 = vadd.f32 0.0, %v1363
      %v1365 = vpop.f32.mrb[0].mxu0
      %1366 = vmatprep.mubr.bf16.mxu0 0
      %1367 = vmatmul.mubr.bf16.gmra.mrb[0].mxu0 %v1232
      %v1368 = vpop.f32.mrb[0].mxu0
      %v1369 = vadd.f32 0.0, %v1368
      %v1370 = vpop.f32.mrb[0].mxu0
      %v1371 = vpop.f32.mrb[0].mxu0
      %v1372 = vadd.f32 0.0, %v1371
      %v1373 = vpop.f32.mrb[0].mxu0
      %1374 = vmatprep.mubr.bf16.mxu0 0
      %1375 = vmatmul.mubr.bf16.gmra.mrb[0].mxu0 %v1234
      %v1376 = vpop.f32.mrb[0].mxu0
      %v1377 = vadd.f32 0.0, %v1376
      %v1378 = vpop.f32.mrb[0].mxu0
      %v1379 = vpop.f32.mrb[0].mxu0
      %v1380 = vadd.f32 0.0, %v1379
      %v1381 = vpop.f32.mrb[0].mxu0
      %1382 = vmatprep.mubr.bf16.mxu0 0
      %1383 = vmatmul.mubr.bf16.gmra.mrb[0].mxu0 %v1236
      %v1384 = vpop.f32.mrb[0].mxu0
      %v1385 = vadd.f32 0.0, %v1384
      %v1386 = vpop.f32.mrb[0].mxu0
      %v1387 = vpop.f32.mrb[0].mxu0
      %v1388 = vadd.f32 0.0, %v1387
      %v1389 = vpop.f32.mrb[0].mxu0
      %1390 = vmatprep.mubr.bf16.mxu0 0
      %1391 = vmatmul.mubr.bf16.gmra.mrb[0].mxu0 %v1238
      %v1392 = vpop.f32.mrb[0].mxu0
      %v1393 = vadd.f32 0.0, %v1392
      %v1394 = vpop.f32.mrb[0].mxu0
      %v1395 = vpop.f32.mrb[0].mxu0
      %v1396 = vadd.f32 0.0, %v1395
      %v1397 = vpop.f32.mrb[0].mxu0
      %1398 = vmatprep.mubr.bf16.mxu0 0
      %1399 = vmatmul.mubr.bf16.gmra.mrb[0].mxu0 %v1240
      %v1400 = vpop.f32.mrb[0].mxu0
      %v1401 = vadd.f32 0.0, %v1400
      %v1402 = vpop.f32.mrb[0].mxu0
      %v1403 = vpop.f32.mrb[0].mxu0
      %v1404 = vadd.f32 0.0, %v1403
      %v1405 = vpop.f32.mrb[0].mxu0
      %1406 = vdwg.mxu0
      %v1407 = vld [vmem:[%s2] sm:$0x1]
      %v1409 = vlaneseq
      %v1410 = vshrl.u32 %v1409, 7
      %v1411 = vsub.s32 0, %v1410
      %v1412 = vrot.slane %v1407, %v1411
      %v1414 = vmul.f32 %v1281, %v1412
      %v1415 = vmul.f32 %v1284, %v1412
      %v1416 = vmul.f32 %v1289, %v1412
      %v1417 = vmul.f32 %v1292, %v1412
      %v1418 = vmul.f32 %v1297, %v1412
      %v1419 = vmul.f32 %v1300, %v1412
      %v1420 = vmul.f32 %v1305, %v1412
      %v1421 = vmul.f32 %v1308, %v1412
      %v1422 = vmul.f32 %v1313, %v1412
      %v1423 = vmul.f32 %v1316, %v1412
      %v1424 = vmul.f32 %v1321, %v1412
      %v1425 = vmul.f32 %v1324, %v1412
      %v1426 = vmul.f32 %v1329, %v1412
      %v1427 = vmul.f32 %v1332, %v1412
      %v1428 = vmul.f32 %v1337, %v1412
      %v1429 = vmul.f32 %v1340, %v1412
      %v1430 = vmul.f32 %v1345, %v1412
      %v1431 = vmul.f32 %v1348, %v1412
      %v1432 = vmul.f32 %v1353, %v1412
      %v1433 = vmul.f32 %v1356, %v1412
      %v1434 = vmul.f32 %v1361, %v1412
      %v1435 = vmul.f32 %v1364, %v1412
      %v1436 = vmul.f32 %v1369, %v1412
      %v1437 = vmul.f32 %v1372, %v1412
      %v1438 = vmul.f32 %v1377, %v1412
      %v1439 = vmul.f32 %v1380, %v1412
      %v1440 = vmul.f32 %v1385, %v1412
      %v1441 = vmul.f32 %v1388, %v1412
      %v1442 = vmul.f32 %v1393, %v1412
      %v1443 = vmul.f32 %v1396, %v1412
      %v1444 = vmul.f32 %v1401, %v1412
      %v1445 = vmul.f32 %v1404, %v1412
      %v1446 = vld [vmem:[%s3] sm:$0x1]
      %v1448 = vlaneseq
      %v1449 = vshrl.u32 %v1448, 7
      %v1450 = vsub.s32 0, %v1449
      %v1451 = vrot.slane %v1446, %v1450
      %v1453 = vadd.f32 %v1414, %v1451
      %v1454 = vadd.f32 %v1415, %v1451
      %v1455 = vadd.f32 %v1416, %v1451
      %v1456 = vadd.f32 %v1417, %v1451
      %v1457 = vadd.f32 %v1418, %v1451
      %v1458 = vadd.f32 %v1419, %v1451
      %v1459 = vadd.f32 %v1420, %v1451
      %v1460 = vadd.f32 %v1421, %v1451
      %v1461 = vadd.f32 %v1422, %v1451
      %v1462 = vadd.f32 %v1423, %v1451
      %v1463 = vadd.f32 %v1424, %v1451
      %v1464 = vadd.f32 %v1425, %v1451
      %v1465 = vadd.f32 %v1426, %v1451
      %v1466 = vadd.f32 %v1427, %v1451
      %v1467 = vadd.f32 %v1428, %v1451
      %v1468 = vadd.f32 %v1429, %v1451
      %v1469 = vadd.f32 %v1430, %v1451
      %v1470 = vadd.f32 %v1431, %v1451
      %v1471 = vadd.f32 %v1432, %v1451
      %v1472 = vadd.f32 %v1433, %v1451
      %v1473 = vadd.f32 %v1434, %v1451
      %v1474 = vadd.f32 %v1435, %v1451
      %v1475 = vadd.f32 %v1436, %v1451
      %v1476 = vadd.f32 %v1437, %v1451
      %v1477 = vadd.f32 %v1438, %v1451
      %v1478 = vadd.f32 %v1439, %v1451
      %v1479 = vadd.f32 %v1440, %v1451
      %v1480 = vadd.f32 %v1441, %v1451
      %v1481 = vadd.f32 %v1442, %v1451
      %v1482 = vadd.f32 %v1443, %v1451
      %v1483 = vadd.f32 %v1444, %v1451
      %v1484 = vadd.f32 %v1445, %v1451
      %v1485 = vmax.f32 %v1453, 0.0
      %v1486 = vmax.f32 %v1454, 0.0
      %v1487 = vmax.f32 %v1455, 0.0
      %v1488 = vmax.f32 %v1456, 0.0
      %v1489 = vmax.f32 %v1457, 0.0
      %v1490 = vmax.f32 %v1458, 0.0
      %v1491 = vmax.f32 %v1459, 0.0
      %v1492 = vmax.f32 %v1460, 0.0
      %v1493 = vmax.f32 %v1461, 0.0
      %v1494 = vmax.f32 %v1462, 0.0
      %v1495 = vmax.f32 %v1463, 0.0
      %v1496 = vmax.f32 %v1464, 0.0
      %v1497 = vmax.f32 %v1465, 0.0
      %v1498 = vmax.f32 %v1466, 0.0
      %v1499 = vmax.f32 %v1467, 0.0
      %v1500 = vmax.f32 %v1468, 0.0
      %v1501 = vmax.f32 %v1469, 0.0
      %v1502 = vmax.f32 %v1470, 0.0
      %v1503 = vmax.f32 %v1471, 0.0
      %v1504 = vmax.f32 %v1472, 0.0
      %v1505 = vmax.f32 %v1473, 0.0
      %v1506 = vmax.f32 %v1474, 0.0
      %v1507 = vmax.f32 %v1475, 0.0
      %v1508 = vmax.f32 %v1476, 0.0
      %v1509 = vmax.f32 %v1477, 0.0
      %v1510 = vmax.f32 %v1478, 0.0
      %v1511 = vmax.f32 %v1479, 0.0
      %v1512 = vmax.f32 %v1480, 0.0
      %v1513 = vmax.f32 %v1481, 0.0
      %v1514 = vmax.f32 %v1482, 0.0
      %v1515 = vmax.f32 %v1483, 0.0
      %v1516 = vmax.f32 %v1484, 0.0
      %v1517 = vpack.c.bf16 %v1486, %v1485
      %v1518 = vpack.c.bf16 %v1488, %v1487
      %v1519 = vpack.c.bf16 %v1490, %v1489
      %v1520 = vpack.c.bf16 %v1492, %v1491
      %v1521 = vpack.c.bf16 %v1494, %v1493
      %v1522 = vpack.c.bf16 %v1496, %v1495
      %v1523 = vpack.c.bf16 %v1498, %v1497
      %v1524 = vpack.c.bf16 %v1500, %v1499
      %v1525 = vpack.c.bf16 %v1502, %v1501
      %v1526 = vpack.c.bf16 %v1504, %v1503
      %v1527 = vpack.c.bf16 %v1506, %v1505
      %v1528 = vpack.c.bf16 %v1508, %v1507
      %v1529 = vpack.c.bf16 %v1510, %v1509
      %v1530 = vpack.c.bf16 %v1512, %v1511
      %v1531 = vpack.c.bf16 %v1514, %v1513
      %v1532 = vpack.c.bf16 %v1516, %v1515
      %v1549 = vunpack.c.l.b16 %v1517
      %v1550 = vunpack.c.h.b16 %v1517
      %v1551 = vunpack.c.l.b16 %v1518
      %v1552 = vunpack.c.h.b16 %v1518
      %v1553 = vunpack.c.l.b16 %v1519
      %v1554 = vunpack.c.h.b16 %v1519
      %v1555 = vunpack.c.l.b16 %v1520
      %v1556 = vunpack.c.h.b16 %v1520
      %v1557 = vunpack.c.l.b16 %v1521
      %v1558 = vunpack.c.h.b16 %v1521
      %v1559 = vunpack.c.l.b16 %v1522
      %v1560 = vunpack.c.h.b16 %v1522
      %v1561 = vunpack.c.l.b16 %v1523
      %v1562 = vunpack.c.h.b16 %v1523
      %v1563 = vunpack.c.l.b16 %v1524
      %v1564 = vunpack.c.h.b16 %v1524
      %v1565 = vunpack.c.l.b16 %v1525
      %v1566 = vunpack.c.h.b16 %v1525
      %v1567 = vunpack.c.l.b16 %v1526
      %v1568 = vunpack.c.h.b16 %v1526
      %v1569 = vunpack.c.l.b16 %v1527
      %v1570 = vunpack.c.h.b16 %v1527
      %v1571 = vunpack.c.l.b16 %v1528
      %v1572 = vunpack.c.h.b16 %v1528
      %v1573 = vunpack.c.l.b16 %v1529
      %v1574 = vunpack.c.h.b16 %v1529
      %v1575 = vunpack.c.l.b16 %v1530
      %v1576 = vunpack.c.h.b16 %v1530
      %v1577 = vunpack.c.l.b16 %v1531
      %v1578 = vunpack.c.h.b16 %v1531
      %v1579 = vunpack.c.l.b16 %v1532
      %v1580 = vunpack.c.h.b16 %v1532
      %v1581 = vpack.c.b16 %v1549, %v1549
      %v1582 = vpack.c.b16 %v1550, %v1550
      %v1583 = vpack.c.b16 %v1551, %v1551
      %v1584 = vpack.c.b16 %v1552, %v1552
      %v1585 = vpack.c.b16 %v1553, %v1553
      %v1586 = vpack.c.b16 %v1554, %v1554
      %v1587 = vpack.c.b16 %v1555, %v1555
      %v1588 = vpack.c.b16 %v1556, %v1556
      %v1589 = vpack.c.b16 %v1557, %v1557
      %v1590 = vpack.c.b16 %v1558, %v1558
      %v1591 = vpack.c.b16 %v1559, %v1559
      %v1592 = vpack.c.b16 %v1560, %v1560
      %v1593 = vpack.c.b16 %v1561, %v1561
      %v1594 = vpack.c.b16 %v1562, %v1562
      %v1595 = vpack.c.b16 %v1563, %v1563
      %v1596 = vpack.c.b16 %v1564, %v1564
      %v1597 = vpack.c.b16 %v1565, %v1565
      %v1598 = vpack.c.b16 %v1566, %v1566
      %v1599 = vpack.c.b16 %v1567, %v1567
      %v1600 = vpack.c.b16 %v1568, %v1568
      %v1601 = vpack.c.b16 %v1569, %v1569
      %v1602 = vpack.c.b16 %v1570, %v1570
      %v1603 = vpack.c.b16 %v1571, %v1571
      %v1604 = vpack.c.b16 %v1572, %v1572
      %v1605 = vpack.c.b16 %v1573, %v1573
      %v1606 = vpack.c.b16 %v1574, %v1574
      %v1607 = vpack.c.b16 %v1575, %v1575
      %v1608 = vpack.c.b16 %v1576, %v1576
      %v1609 = vpack.c.b16 %v1577, %v1577
      %v1610 = vpack.c.b16 %v1578, %v1578
      %v1611 = vpack.c.b16 %v1579, %v1579
      %v1612 = vpack.c.b16 %v1580, %v1580
      %vm1645 = vcmask 257024
      %1646 = vst.msk [vmem:[%s197] sm:$0xf] %vm1645, %v1581
      %1647 = vst.msk [vmem:[%s197 + $0x4] sm:$0xf] %vm1645, %v1582
      %1648 = vst.msk [vmem:[%s197 + $0x8] sm:$0xf] %vm1645, %v1583
      %1649 = vst.msk [vmem:[%s197 + $0xc] sm:$0xf] %vm1645, %v1584
      %1650 = vst.msk [vmem:[%s197 + $0x10] sm:$0xf] %vm1645, %v1585
      %1651 = vst.msk [vmem:[%s197 + $0x14] sm:$0xf] %vm1645, %v1586
      %1652 = vst.msk [vmem:[%s197 + $0x18] sm:$0xf] %vm1645, %v1587
      %1653 = vst.msk [vmem:[%s197 + $0x1c] sm:$0xf] %vm1645, %v1588
      %1654 = vst.msk [vmem:[%s197 + $0x20] sm:$0xf] %vm1645, %v1589
      %1655 = vst.msk [vmem:[%s197 + $0x24] sm:$0xf] %vm1645, %v1590
      %1656 = vst.msk [vmem:[%s197 + $0x28] sm:$0xf] %vm1645, %v1591
      %1657 = vst.msk [vmem:[%s197 + $0x2c] sm:$0xf] %vm1645, %v1592
      %1658 = vst.msk [vmem:[%s197 + $0x30] sm:$0xf] %vm1645, %v1593
      %1659 = vst.msk [vmem:[%s197 + $0x34] sm:$0xf] %vm1645, %v1594
      %1660 = vst.msk [vmem:[%s197 + $0x38] sm:$0xf] %vm1645, %v1595
      %1661 = vst.msk [vmem:[%s197 + $0x3c] sm:$0xf] %vm1645, %v1596
      %1662 = vst.msk [vmem:[%s197 + $0x40] sm:$0xf] %vm1645, %v1597
      %1663 = vst.msk [vmem:[%s197 + $0x44] sm:$0xf] %vm1645, %v1598
      %1664 = vst.msk [vmem:[%s197 + $0x48] sm:$0xf] %vm1645, %v1599
      %1665 = vst.msk [vmem:[%s197 + $0x4c] sm:$0xf] %vm1645, %v1600
      %1666 = vst.msk [vmem:[%s197 + $0x50] sm:$0xf] %vm1645, %v1601
      %1667 = vst.msk [vmem:[%s197 + $0x54] sm:$0xf] %vm1645, %v1602
      %1668 = vst.msk [vmem:[%s197 + $0x58] sm:$0xf] %vm1645, %v1603
      %1669 = vst.msk [vmem:[%s197 + $0x5c] sm:$0xf] %vm1645, %v1604
      %1670 = vst.msk [vmem:[%s197 + $0x60] sm:$0xf] %vm1645, %v1605
      %1671 = vst.msk [vmem:[%s197 + $0x64] sm:$0xf] %vm1645, %v1606
      %1672 = vst.msk [vmem:[%s197 + $0x68] sm:$0xf] %vm1645, %v1607
      %1673 = vst.msk [vmem:[%s197 + $0x6c] sm:$0xf] %vm1645, %v1608
      %1674 = vst.msk [vmem:[%s197 + $0x70] sm:$0xf] %vm1645, %v1609
      %1675 = vst.msk [vmem:[%s197 + $0x74] sm:$0xf] %vm1645, %v1610
      %1676 = vst.msk [vmem:[%s197 + $0x78] sm:$0xf] %vm1645, %v1611
      %1677 = vst.msk [vmem:[%s197 + $0x7c] sm:$0xf] %vm1645, %v1612
      %p1678 = scmp.lt.s32.totalorder %s15, 1
      %s1679 = scalar_select %p1678, %s15, 1
      %s1680 = smul.addr %s1679, 32
      %s1681 = smul.addr %s1680, 4
      %s1682 = scalar_lea.vmem %s4, %s1681
      // Predicated region
      $region37: #{fcnn2_forward.4} parent=35 // pred_check
        %p1683 = pneg %p122
      $region38: #{fcnn2_forward.4} parent=35 // pred_check_branch
        %1685 = sbr.rel (%p1683) target = $region40
      $region39: #{fcnn2_forward.4} parent=35 // pred_region
        _
      $region40: #{fcnn2_forward.4} parent=35 // pred_fallthru
        _
    $region36: #{fcnn2_forward.4} parent=5 // pred_fallthru
      _
    %p1686 = scmp.le.s32.totalorder 2, %s10
    // Predicated region
    $region41: #{fcnn2_forward.4} parent=5 // pred_check
      %p1687 = pneg %p1686
    $region42: #{fcnn2_forward.4} parent=5 // pred_check_branch
      %1689 = sbr.rel (%p1687) target = $region44
    $region43: #{fcnn2_forward.4} parent=5 // pred_region
      %s1690 = ssub.s32 %s10, 2
      // Predicated region
      $region45: #{fcnn2_forward.4} parent=43 // pred_check
        %p1691 = pneg %p128
      $region46: #{fcnn2_forward.4} parent=43 // pred_check_branch
        %1693 = sbr.rel (%p1691) target = $region48
      $region47: #{fcnn2_forward.4} parent=43 // pred_region
        %p1694 = scmp.lt.s32.totalorder %s16, 1
        %s1695 = scalar_select %p1694, %s16, 1
        %s1696 = smul.addr %s1695, 32
        %s1697 = smul.addr %s1696, 4
        %s1698 = scalar_lea.vmem %s4, %s1697
      $region48: #{fcnn2_forward.4} parent=43 // pred_fallthru
        _
    $region44: #{fcnn2_forward.4} parent=5 // pred_fallthru
      _
  $region6: #{fcnn2_forward.4} parent=0 // loop_footer
    %s14 = sadd.s32 1, %s10
  $region7: #{fcnn2_forward.4} parent=0 // loop_footer_branch
    %9 = sbr.rel target = $region3
  $region8: #{fcnn2_forward.4} parent=0 // loop_exit
    _

// kernel: fcnn2_forward.5
$region0: #{fcnn2_forward.5}
  #allocation0 [shape = 'u32[]', space=smem, size = 0x4, offset = 0x4, fixed_abs, tag = 'smem constant byte address 0x4 - core index']
  #allocation1 [shape = 'u32[144,128]{1,0:T(1,128)}', space=vmem, size = 0x12000, scoped, tag = 'internal scratch']
  %s0 = inlined_call_operand.vmem [shape: bf16[2,18,18,32], index: 0, kind: input, shape index: {}]
  %s1 = inlined_call_operand.vmem [shape: bf16[288,32], index: 1, kind: input, shape index: {}]
  %s2 = inlined_call_operand.vmem [shape: f32[1,32], index: 2, kind: input, shape index: {}]
  %s3 = inlined_call_operand.vmem [shape: f32[1,32], index: 3, kind: input, shape index: {}]
  %s4 = inlined_call_operand.vmem [shape: bf16[2,8,8,32], index: 4, kind: output, shape index: {}]
  %s5 = sld [smem:[#allocation0]]
  $region49: #{fcnn2_forward.5} parent=0
    _
  %s7 = ssub.s32 1, %s5
  %s8 = scalar_select 0, %s7, %s5
  loop: start=0, step=1, limit=4
  $region2: #{fcnn2_forward.5} parent=0 // loop_pre_header
    _
  $region3: #{fcnn2_forward.5} parent=0 // loop_header
    %s10 = sphi 0, %s14
    %p11 = scmp.ge.s32.totalorder %s10, 4
    %s20 = sphi 0, %s22
    %s23 = sphi 0, %s20
    %s24 = sphi 0, %s23
    %s40 = sphi 0, %s24
    %s44 = sphi 0, %s44
    %s46 = sphi 0, %s44
    %s47 = sphi 0, %s46
    %s61 = sphi 0, %s47
    %s65 = sphi 0, %s65
    %s67 = sphi 0, %s65
    %s68 = sphi 0, %s67
    %s82 = sphi 0, %s68
    %s86 = sphi 0, %s86
    %s88 = sphi 0, %s86
    %s89 = sphi 0, %s88
    %s103 = sphi 0, %s89
    %s109 = sphi 0, %s111
    %s112 = sphi 0, %s109
    %s113 = sphi 0, %s112
    %s129 = sphi 0, %s113
  $region4: #{fcnn2_forward.5} parent=0 // loop_header_branch
    %13 = sbr.rel (%p11) target = $region8
  $region5: #{fcnn2_forward.5} parent=0 // loop_body
    %s15 = ssub.s32 %s10, 1
    %s16 = ssub.s32 %s10, 2
    %s17 = sadd.s32 %s10, 1
    %s18 = ssub.s32 %s10, %s17
    %p19 = scmp.eq.s32.totalorder %s18, 0
    %s21 = sadd.s32 %s20, 1
    %s22 = scalar_select %p19, %s20, %s21
    %p25 = pneg %p19
    %p26 = scmp.eq.s32.totalorder %s10, 1
    %p27 = por %p25, %p26
    %p28 = scmp.ne.s32.totalorder %s20, %s23
    %p29 = scmp.eq.s32.totalorder %s10, 0
    %p30 = por %p28, %p29
    %p31 = scmp.ne.s32.totalorder %s20, %s23
    %p32 = scmp.eq.s32.totalorder %s15, 1
    %p33 = por %p31, %p32
    %p34 = scmp.ne.s32.totalorder %s23, %s24
    %p35 = scmp.eq.s32.totalorder %s15, 0
    %p36 = por %p34, %p35
    %p37 = scmp.ne.s32.totalorder %s23, %s24
    %p38 = scmp.eq.s32.totalorder %s16, 1
    %p39 = por %p37, %p38
    %p41 = scmp.ne.s32.totalorder %s24, %s40
    %p42 = scmp.eq.s32.totalorder %s16, 0
    %p43 = por %p41, %p42
    %s45 = sadd.s32 %s44, 1
    %p48 = scmp.eq.s32.totalorder %s10, 1
    %p49 = scmp.ne.s32.totalorder %s44, %s46
    %p50 = scmp.eq.s32.totalorder %s10, 0
    %p51 = por %p49, %p50
    %p52 = scmp.ne.s32.totalorder %s44, %s46
    %p53 = scmp.eq.s32.totalorder %s15, 1
    %p54 = por %p52, %p53
    %p55 = scmp.ne.s32.totalorder %s46, %s47
    %p56 = scmp.eq.s32.totalorder %s15, 0
    %p57 = por %p55, %p56
    %p58 = scmp.ne.s32.totalorder %s46, %s47
    %p59 = scmp.eq.s32.totalorder %s16, 1
    %p60 = por %p58, %p59
    %p62 = scmp.ne.s32.totalorder %s47, %s61
    %p63 = scmp.eq.s32.totalorder %s16, 0
    %p64 = por %p62, %p63
    %s66 = sadd.s32 %s65, 1
    %p69 = scmp.eq.s32.totalorder %s10, 1
    %p70 = scmp.ne.s32.totalorder %s65, %s67
    %p71 = scmp.eq.s32.totalorder %s10, 0
    %p72 = por %p70, %p71
    %p73 = scmp.ne.s32.totalorder %s65, %s67
    %p74 = scmp.eq.s32.totalorder %s15, 1
    %p75 = por %p73, %p74
    %p76 = scmp.ne.s32.totalorder %s67, %s68
    %p77 = scmp.eq.s32.totalorder %s15, 0
    %p78 = por %p76, %p77
    %p79 = scmp.ne.s32.totalorder %s67, %s68
    %p80 = scmp.eq.s32.totalorder %s16, 1
    %p81 = por %p79, %p80
    %p83 = scmp.ne.s32.totalorder %s68, %s82
    %p84 = scmp.eq.s32.totalorder %s16, 0
    %p85 = por %p83, %p84
    %s87 = sadd.s32 %s86, 1
    %p90 = scmp.eq.s32.totalorder %s10, 1
    %p91 = scmp.ne.s32.totalorder %s86, %s88
    %p92 = scmp.eq.s32.totalorder %s10, 0
    %p93 = por %p91, %p92
    %p94 = scmp.ne.s32.totalorder %s86, %s88
    %p95 = scmp.eq.s32.totalorder %s15, 1
    %p96 = por %p94, %p95
    %p97 = scmp.ne.s32.totalorder %s88, %s89
    %p98 = scmp.eq.s32.totalorder %s15, 0
    %p99 = por %p97, %p98
    %p100 = scmp.ne.s32.totalorder %s88, %s89
    %p101 = scmp.eq.s32.totalorder %s16, 1
    %p102 = por %p100, %p101
    %p104 = scmp.ne.s32.totalorder %s89, %s103
    %p105 = scmp.eq.s32.totalorder %s16, 0
    %p106 = por %p104, %p105
    %s107 = ssub.s32 %s10, %s17
    %p108 = scmp.eq.s32.totalorder %s107, 0
    %s110 = sadd.s32 %s109, 1
    %s111 = scalar_select %p108, %s109, %s110
    %p114 = pneg %p108
    %p115 = scmp.eq.s32.totalorder %s10, 1
    %p116 = por %p114, %p115
    %p117 = scmp.ne.s32.totalorder %s109, %s112
    %p118 = scmp.eq.s32.totalorder %s10, 0
    %p119 = por %p117, %p118
    %p120 = scmp.ne.s32.totalorder %s109, %s112
    %p121 = scmp.eq.s32.totalorder %s15, 1
    %p122 = por %p120, %p121
    %p123 = scmp.ne.s32.totalorder %s112, %s113
    %p124 = scmp.eq.s32.totalorder %s15, 0
    %p125 = por %p123, %p124
    %p126 = scmp.ne.s32.totalorder %s112, %s113
    %p127 = scmp.eq.s32.totalorder %s16, 1
    %p128 = por %p126, %p127
    %p130 = scmp.ne.s32.totalorder %s113, %s129
    %p131 = scmp.eq.s32.totalorder %s16, 0
    %p132 = por %p130, %p131
    %p133 = scmp.le.s32.totalorder 1, %s10
    %p134 = scmp.lt.s32.totalorder %s10, 3
    %p135 = pnand %p133, %p134
    %p136 = pneg %p135
    // Predicated region
    $region9: #{fcnn2_forward.5} parent=5 // pred_check
      _
    $region10: #{fcnn2_forward.5} parent=5 // pred_check_branch
      %138 = sbr.rel (%p135) target = $region12
    $region11: #{fcnn2_forward.5} parent=5 // pred_region
      %s139 = ssub.s32 %s10, 1
      // Predicated region
      $region13: #{fcnn2_forward.5} parent=11 // pred_check
        %p140 = pneg %p57
      $region14: #{fcnn2_forward.5} parent=11 // pred_check_branch
        %142 = sbr.rel (%p140) target = $region16
      $region15: #{fcnn2_forward.5} parent=11 // pred_region
        _
      $region16: #{fcnn2_forward.5} parent=11 // pred_fallthru
        _
      // Predicated region
      $region17: #{fcnn2_forward.5} parent=11 // pred_check
        %p143 = pneg %p78
      $region18: #{fcnn2_forward.5} parent=11 // pred_check_branch
        %145 = sbr.rel (%p143) target = $region20
      $region19: #{fcnn2_forward.5} parent=11 // pred_region
        _
      $region20: #{fcnn2_forward.5} parent=11 // pred_fallthru
        _
      // Predicated region
      $region21: #{fcnn2_forward.5} parent=11 // pred_check
        %p146 = pneg %p99
      $region22: #{fcnn2_forward.5} parent=11 // pred_check_branch
        %148 = sbr.rel (%p146) target = $region24
      $region23: #{fcnn2_forward.5} parent=11 // pred_region
        _
      $region24: #{fcnn2_forward.5} parent=11 // pred_fallthru
        _
    $region12: #{fcnn2_forward.5} parent=5 // pred_fallthru
      _
    %p149 = scmp.lt.s32.totalorder %s10, 2
    // Predicated region
    $region25: #{fcnn2_forward.5} parent=5 // pred_check
      %p150 = pneg %p149
    $region26: #{fcnn2_forward.5} parent=5 // pred_check_branch
      %152 = sbr.rel (%p150) target = $region28
    $region27: #{fcnn2_forward.5} parent=5 // pred_region
      // Predicated region
      $region29: #{fcnn2_forward.5} parent=27 // pred_check
        %p153 = pneg %p30
      $region30: #{fcnn2_forward.5} parent=27 // pred_check_branch
        %155 = sbr.rel (%p153) target = $region32
      $region31: #{fcnn2_forward.5} parent=27 // pred_region
        %p156 = scmp.lt.s32.totalorder %s10, 1
        %s157 = scalar_select %p156, %s10, 1
        %s158 = smul.addr %s157, 54
        %s159 = smul.addr %s158, 4
        %s160 = scalar_lea.vmem %s0, %s159
      $region32: #{fcnn2_forward.5} parent=27 // pred_fallthru
        _
    $region28: #{fcnn2_forward.5} parent=5 // pred_fallthru
      _
    %p161 = scmp.le.s32.totalorder 1, %s10
    %p162 = scmp.lt.s32.totalorder %s10, 3
    %p163 = pnand %p161, %p162
    %p164 = pneg %p163
    // Predicated region
    $region33: #{fcnn2_forward.5} parent=5 // pred_check
      _
    $region34: #{fcnn2_forward.5} parent=5 // pred_check_branch
      %166 = sbr.rel (%p163) target = $region36
    $region35: #{fcnn2_forward.5} parent=5 // pred_region
      %s167 = ssub.s32 %s10, 1
      %p168 = scmp.lt.s32.totalorder %s15, 1
      %s169 = scalar_select %p168, %s15, 1
      %s170 = smul.addr %s169, 54
      %s171 = smul.addr %s170, 4
      %s172 = scalar_lea.vmem %s0, %s171
      %p173 = pneg %p36
      %p174 = pneg %p33
      %p175 = pneg %p57
      %p176 = pneg %p54
      %p177 = pneg %p78
      %p178 = pneg %p75
      %p179 = pneg %p99
      %p180 = pneg %p96
      %p181 = pneg %p125
      %p182 = pneg %p122
      %p183 = scmp.lt.s32.totalorder %s15, 1
      %s184 = scalar_select %p183, %s15, 1
      %s185 = smul.addr %s184, 8
      %s186 = smul.addr %s185, 4
      %s187 = scalar_lea.vmem %s4, %s186
      %p188 = scmp.lt.s32.totalorder %s15, 1
      %s189 = scalar_select %p188, %s15, 1
      %s190 = smul.addr %s189, 54
      %s191 = smul.addr %s190, 4
      %s192 = scalar_lea.vmem %s0, %s191
      %p193 = scmp.lt.s32.totalorder %s15, 1
      %s194 = scalar_select %p193, %s15, 1
      %s195 = smul.addr %s194, 8
      %s196 = smul.addr %s195, 4
      %s197 = scalar_lea.vmem %s4, %s196
      %v199 = vld [vmem:[%s192] sm:$0xf]
      %v200 = vld [vmem:[%s192 + $0x4] sm:$0xf]
      %v201 = vld [vmem:[%s192 + $0x8] sm:$0x1]
      %v202 = vld [vmem:[%s192 + $0xc] sm:$0xf]
      %v203 = vld [vmem:[%s192 + $0x10] sm:$0xf]
      %v204 = vld [vmem:[%s192 + $0x14] sm:$0x1]
      %v205 = vld [vmem:[%s192 + $0x18] sm:$0xf]
      %v206 = vld [vmem:[%s192 + $0x1c] sm:$0xf]
      %v207 = vld [vmem:[%s192 + $0x20] sm:$0x1]
      %v208 = vld [vmem:[%s192 + $0x24] sm:$0xf]
      %v209 = vld [vmem:[%s192 + $0x28] sm:$0xf]
      %v210 = vld [vmem:[%s192 + $0x2c] sm:$0x1]
      %v211 = vld [vmem:[%s192 + $0x30] sm:$0xf]
      %v212 = vld [vmem:[%s192 + $0x34] sm:$0xf]
      %v213 = vld [vmem:[%s192 + $0x38] sm:$0x1]
      %v214 = vld [vmem:[%s192 + $0x3c] sm:$0xf]
      %v215 = vld [vmem:[%s192 + $0x40] sm:$0xf]
      %v216 = vld [vmem:[%s192 + $0x44] sm:$0x1]
      %v217 = vld [vmem:[%s192 + $0x48] sm:$0xf]
      %v218 = vld [vmem:[%s192 + $0x4c] sm:$0xf]
      %v219 = vld [vmem:[%s192 + $0x50] sm:$0x1]
      %v220 = vld [vmem:[%s192 + $0x54] sm:$0xf]
      %v221 = vld [vmem:[%s192 + $0x58] sm:$0xf]
      %v222 = vld [vmem:[%s192 + $0x5c] sm:$0x1]
      %v223 = vld [vmem:[%s192 + $0x60] sm:$0xf]
      %v224 = vld [vmem:[%s192 + $0x64] sm:$0xf]
      %v225 = vld [vmem:[%s192 + $0x68] sm:$0x1]
      %v226 = vld [vmem:[%s192 + $0x6c] sm:$0xf]
      %v227 = vld [vmem:[%s192 + $0x70] sm:$0xf]
      %v228 = vld [vmem:[%s192 + $0x74] sm:$0x1]
      %v229 = vld [vmem:[%s192 + $0x78] sm:$0xf]
      %v230 = vld [vmem:[%s192 + $0x7c] sm:$0xf]
      %v231 = vld [vmem:[%s192 + $0x80] sm:$0x1]
      %v232 = vld [vmem:[%s192 + $0x84] sm:$0xf]
      %v233 = vld [vmem:[%s192 + $0x88] sm:$0xf]
      %v234 = vld [vmem:[%s192 + $0x8c] sm:$0x1]
      %v235 = vld [vmem:[%s192 + $0x90] sm:$0xf]
      %v236 = vld [vmem:[%s192 + $0x94] sm:$0xf]
      %v237 = vld [vmem:[%s192 + $0x98] sm:$0x1]
      %v238 = vld [vmem:[%s192 + $0x9c] sm:$0xf]
      %v239 = vld [vmem:[%s192 + $0xa0] sm:$0xf]
      %v240 = vld [vmem:[%s192 + $0xa4] sm:$0x1]
      %v241 = vld [vmem:[%s192 + $0xa8] sm:$0xf]
      %v242 = vld [vmem:[%s192 + $0xac] sm:$0xf]
      %v243 = vld [vmem:[%s192 + $0xb0] sm:$0x1]
      %v244 = vld [vmem:[%s192 + $0xb4] sm:$0xf]
      %v245 = vld [vmem:[%s192 + $0xb8] sm:$0xf]
      %v246 = vld [vmem:[%s192 + $0xbc] sm:$0x1]
      %v247 = vld [vmem:[%s192 + $0xc0] sm:$0xf]
      %v248 = vld [vmem:[%s192 + $0xc4] sm:$0xf]
      %v249 = vld [vmem:[%s192 + $0xc8] sm:$0x1]
      %v250 = vld [vmem:[%s192 + $0xcc] sm:$0xf]
      %v251 = vld [vmem:[%s192 + $0xd0] sm:$0xf]
      %v252 = vld [vmem:[%s192 + $0xd4] sm:$0x1]
      %v285 = vunpack.c.l.b16 %v199
      %v286 = vunpack.c.l.b16 %v200
      %v287 = vunpack.c.l.b16 %v202
      %v288 = vunpack.c.l.b16 %v203
      %v289 = vunpack.c.l.b16 %v205
      %v290 = vunpack.c.l.b16 %v206
      %v291 = vunpack.c.l.b16 %v208
      %v292 = vunpack.c.l.b16 %v209
      %v293 = vunpack.c.l.b16 %v211
      %v294 = vunpack.c.l.b16 %v212
      %v295 = vunpack.c.l.b16 %v214
      %v296 = vunpack.c.l.b16 %v215
      %v297 = vunpack.c.l.b16 %v217
      %v298 = vunpack.c.l.b16 %v218
      %v299 = vunpack.c.l.b16 %v220
      %v300 = vunpack.c.l.b16 %v221
      %v301 = vunpack.c.l.b16 %v223
      %v302 = vunpack.c.l.b16 %v224
      %v303 = vunpack.c.l.b16 %v226
      %v304 = vunpack.c.l.b16 %v227
      %v305 = vunpack.c.l.b16 %v229
      %v306 = vunpack.c.l.b16 %v230
      %v307 = vunpack.c.l.b16 %v232
      %v308 = vunpack.c.l.b16 %v233
      %v309 = vunpack.c.l.b16 %v235
      %v310 = vunpack.c.l.b16 %v236
      %v311 = vunpack.c.l.b16 %v238
      %v312 = vunpack.c.l.b16 %v239
      %v313 = vunpack.c.l.b16 %v241
      %v314 = vunpack.c.l.b16 %v242
      %v315 = vunpack.c.l.b16 %v244
      %v316 = vunpack.c.l.b16 %v245
      %v317 = vpack.c.b16 %v286, %v285
      %v318 = vpack.c.b16 %v288, %v287
      %v319 = vpack.c.b16 %v290, %v289
      %v320 = vpack.c.b16 %v292, %v291
      %v321 = vpack.c.b16 %v294, %v293
      %v322 = vpack.c.b16 %v296, %v295
      %v323 = vpack.c.b16 %v298, %v297
      %v324 = vpack.c.b16 %v300, %v299
      %v325 = vpack.c.b16 %v302, %v301
      %v326 = vpack.c.b16 %v304, %v303
      %v327 = vpack.c.b16 %v306, %v305
      %v328 = vpack.c.b16 %v308, %v307
      %v329 = vpack.c.b16 %v310, %v309
      %v330 = vpack.c.b16 %v312, %v311
      %v331 = vpack.c.b16 %v314, %v313
      %v332 = vpack.c.b16 %v316, %v315
      %v349 = vunpack.c.l.b16 %v201
      %v350 = vunpack.c.l.b16 %v204
      %v351 = vunpack.c.l.b16 %v207
      %v352 = vunpack.c.l.b16 %v210
      %v353 = vunpack.c.l.b16 %v213
      %v354 = vunpack.c.l.b16 %v216
      %v355 = vunpack.c.l.b16 %v219
      %v356 = vunpack.c.l.b16 %v222
      %v357 = vunpack.c.l.b16 %v225
      %v358 = vunpack.c.l.b16 %v228
      %v359 = vunpack.c.l.b16 %v231
      %v360 = vunpack.c.l.b16 %v234
      %v361 = vunpack.c.l.b16 %v237
      %v362 = vunpack.c.l.b16 %v240
      %v363 = vunpack.c.l.b16 %v243
      %v364 = vunpack.c.l.b16 %v246
      %v365 = vpack.c.b16 %v349, %v349
      %v366 = vpack.c.b16 %v350, %v350
      %v367 = vpack.c.b16 %v351, %v351
      %v368 = vpack.c.b16 %v352, %v352
      %v369 = vpack.c.b16 %v353, %v353
      %v370 = vpack.c.b16 %v354, %v354
      %v371 = vpack.c.b16 %v355, %v355
      %v372 = vpack.c.b16 %v356, %v356
      %v373 = vpack.c.b16 %v357, %v357
      %v374 = vpack.c.b16 %v358, %v358
      %v375 = vpack.c.b16 %v359, %v359
      %v376 = vpack.c.b16 %v360, %v360
      %v377 = vpack.c.b16 %v361, %v361
      %v378 = vpack.c.b16 %v362, %v362
      %v379 = vpack.c.b16 %v363, %v363
      %v380 = vpack.c.b16 %v364, %v364
      %vm381 = vsmask.f32 7424
      %v383 = vshrl.u32 %v317, 16
      %v385 = vshll.u32 %v317, 16
      %v387 = vrot.slane %v385, 1
      %v388 = vor.u32 %v383, %v387
      %v390 = vshll.u32 %v365, 16
      %v392 = vrot.slane %v390, 1
      %v393 = vsel %vm381, %v388, %v392
      %v395 = vshrl.u32 %v318, 16
      %v397 = vshll.u32 %v318, 16
      %v399 = vrot.slane %v397, 1
      %v400 = vor.u32 %v395, %v399
      %v402 = vshll.u32 %v366, 16
      %v404 = vrot.slane %v402, 1
      %v405 = vsel %vm381, %v400, %v404
      %v407 = vshrl.u32 %v319, 16
      %v409 = vshll.u32 %v319, 16
      %v411 = vrot.slane %v409, 1
      %v412 = vor.u32 %v407, %v411
      %v414 = vshll.u32 %v367, 16
      %v416 = vrot.slane %v414, 1
      %v417 = vsel %vm381, %v412, %v416
      %v419 = vshrl.u32 %v320, 16
      %v421 = vshll.u32 %v320, 16
      %v423 = vrot.slane %v421, 1
      %v424 = vor.u32 %v419, %v423
      %v426 = vshll.u32 %v368, 16
      %v428 = vrot.slane %v426, 1
      %v429 = vsel %vm381, %v424, %v428
      %v431 = vshrl.u32 %v321, 16
      %v433 = vshll.u32 %v321, 16
      %v435 = vrot.slane %v433, 1
      %v436 = vor.u32 %v431, %v435
      %v438 = vshll.u32 %v369, 16
      %v440 = vrot.slane %v438, 1
      %v441 = vsel %vm381, %v436, %v440
      %v443 = vshrl.u32 %v322, 16
      %v445 = vshll.u32 %v322, 16
      %v447 = vrot.slane %v445, 1
      %v448 = vor.u32 %v443, %v447
      %v450 = vshll.u32 %v370, 16
      %v452 = vrot.slane %v450, 1
      %v453 = vsel %vm381, %v448, %v452
      %v455 = vshrl.u32 %v323, 16
      %v457 = vshll.u32 %v323, 16
      %v459 = vrot.slane %v457, 1
      %v460 = vor.u32 %v455, %v459
      %v462 = vshll.u32 %v371, 16
      %v464 = vrot.slane %v462, 1
      %v465 = vsel %vm381, %v460, %v464
      %v467 = vshrl.u32 %v324, 16
      %v469 = vshll.u32 %v324, 16
      %v471 = vrot.slane %v469, 1
      %v472 = vor.u32 %v467, %v471
      %v474 = vshll.u32 %v372, 16
      %v476 = vrot.slane %v474, 1
      %v477 = vsel %vm381, %v472, %v476
      %v479 = vshrl.u32 %v325, 16
      %v481 = vshll.u32 %v325, 16
      %v483 = vrot.slane %v481, 1
      %v484 = vor.u32 %v479, %v483
      %v486 = vshll.u32 %v373, 16
      %v488 = vrot.slane %v486, 1
      %v489 = vsel %vm381, %v484, %v488
      %v491 = vshrl.u32 %v326, 16
      %v493 = vshll.u32 %v326, 16
      %v495 = vrot.slane %v493, 1
      %v496 = vor.u32 %v491, %v495
      %v498 = vshll.u32 %v374, 16
      %v500 = vrot.slane %v498, 1
      %v501 = vsel %vm381, %v496, %v500
      %v503 = vshrl.u32 %v327, 16
      %v505 = vshll.u32 %v327, 16
      %v507 = vrot.slane %v505, 1
      %v508 = vor.u32 %v503, %v507
      %v510 = vshll.u32 %v375, 16
      %v512 = vrot.slane %v510, 1
      %v513 = vsel %vm381, %v508, %v512
      %v515 = vshrl.u32 %v328, 16
      %v517 = vshll.u32 %v328, 16
      %v519 = vrot.slane %v517, 1
      %v520 = vor.u32 %v515, %v519
      %v522 = vshll.u32 %v376, 16
      %v524 = vrot.slane %v522, 1
      %v525 = vsel %vm381, %v520, %v524
      %v527 = vshrl.u32 %v329, 16
      %v529 = vshll.u32 %v329, 16
      %v531 = vrot.slane %v529, 1
      %v532 = vor.u32 %v527, %v531
      %v534 = vshll.u32 %v377, 16
      %v536 = vrot.slane %v534, 1
      %v537 = vsel %vm381, %v532, %v536
      %v539 = vshrl.u32 %v330, 16
      %v541 = vshll.u32 %v330, 16
      %v543 = vrot.slane %v541, 1
      %v544 = vor.u32 %v539, %v543
      %v546 = vshll.u32 %v378, 16
      %v548 = vrot.slane %v546, 1
      %v549 = vsel %vm381, %v544, %v548
      %v551 = vshrl.u32 %v331, 16
      %v553 = vshll.u32 %v331, 16
      %v555 = vrot.slane %v553, 1
      %v556 = vor.u32 %v551, %v555
      %v558 = vshll.u32 %v379, 16
      %v560 = vrot.slane %v558, 1
      %v561 = vsel %vm381, %v556, %v560
      %v563 = vshrl.u32 %v332, 16
      %v565 = vshll.u32 %v332, 16
      %v567 = vrot.slane %v565, 1
      %v568 = vor.u32 %v563, %v567
      %v570 = vshll.u32 %v380, 16
      %v572 = vrot.slane %v570, 1
      %v573 = vsel %vm381, %v568, %v572
      %574 = vrot.lane.b32.xlu0 %v393, 32
      %v575 = vpop.permute.xlu0 %574
      %576 = vrot.lane.b32.xlu0 %v405, 32
      %v577 = vpop.permute.xlu0 %576
      %578 = vrot.lane.b32.xlu0 %v417, 32
      %v579 = vpop.permute.xlu0 %578
      %580 = vrot.lane.b32.xlu0 %v429, 32
      %v581 = vpop.permute.xlu0 %580
      %582 = vrot.lane.b32.xlu0 %v441, 32
      %v583 = vpop.permute.xlu0 %582
      %584 = vrot.lane.b32.xlu0 %v453, 32
      %v585 = vpop.permute.xlu0 %584
      %586 = vrot.lane.b32.xlu0 %v465, 32
      %v587 = vpop.permute.xlu0 %586
      %588 = vrot.lane.b32.xlu0 %v477, 32
      %v589 = vpop.permute.xlu0 %588
      %590 = vrot.lane.b32.xlu0 %v489, 32
      %v591 = vpop.permute.xlu0 %590
      %592 = vrot.lane.b32.xlu0 %v501, 32
      %v593 = vpop.permute.xlu0 %592
      %594 = vrot.lane.b32.xlu0 %v513, 32
      %v595 = vpop.permute.xlu0 %594
      %596 = vrot.lane.b32.xlu0 %v525, 32
      %v597 = vpop.permute.xlu0 %596
      %598 = vrot.lane.b32.xlu0 %v537, 32
      %v599 = vpop.permute.xlu0 %598
      %600 = vrot.lane.b32.xlu0 %v549, 32
      %v601 = vpop.permute.xlu0 %600
      %602 = vrot.lane.b32.xlu0 %v561, 32
      %v603 = vpop.permute.xlu0 %602
      %604 = vrot.lane.b32.xlu0 %v573, 32
      %v605 = vpop.permute.xlu0 %604
      %vm606 = vcmask 1046528
      %v607 = vrot.slane %v317, 1
      %v608 = vrot.slane %v365, 1
      %v609 = vsel %vm606, %v607, %v608
      %v610 = vrot.slane %v318, 1
      %v611 = vrot.slane %v366, 1
      %v612 = vsel %vm606, %v610, %v611
      %v613 = vrot.slane %v319, 1
      %v614 = vrot.slane %v367, 1
      %v615 = vsel %vm606, %v613, %v614
      %v616 = vrot.slane %v320, 1
      %v617 = vrot.slane %v368, 1
      %v618 = vsel %vm606, %v616, %v617
      %v619 = vrot.slane %v321, 1
      %v620 = vrot.slane %v369, 1
      %v621 = vsel %vm606, %v619, %v620
      %v622 = vrot.slane %v322, 1
      %v623 = vrot.slane %v370, 1
      %v624 = vsel %vm606, %v622, %v623
      %v625 = vrot.slane %v323, 1
      %v626 = vrot.slane %v371, 1
      %v627 = vsel %vm606, %v625, %v626
      %v628 = vrot.slane %v324, 1
      %v629 = vrot.slane %v372, 1
      %v630 = vsel %vm606, %v628, %v629
      %v631 = vrot.slane %v325, 1
      %v632 = vrot.slane %v373, 1
      %v633 = vsel %vm606, %v631, %v632
      %v634 = vrot.slane %v326, 1
      %v635 = vrot.slane %v374, 1
      %v636 = vsel %vm606, %v634, %v635
      %v637 = vrot.slane %v327, 1
      %v638 = vrot.slane %v375, 1
      %v639 = vsel %vm606, %v637, %v638
      %v640 = vrot.slane %v328, 1
      %v641 = vrot.slane %v376, 1
      %v642 = vsel %vm606, %v640, %v641
      %v643 = vrot.slane %v329, 1
      %v644 = vrot.slane %v377, 1
      %v645 = vsel %vm606, %v643, %v644
      %v646 = vrot.slane %v330, 1
      %v647 = vrot.slane %v378, 1
      %v648 = vsel %vm606, %v646, %v647
      %v649 = vrot.slane %v331, 1
      %v650 = vrot.slane %v379, 1
      %v651 = vsel %vm606, %v649, %v650
      %v652 = vrot.slane %v332, 1
      %v653 = vrot.slane %v380, 1
      %v654 = vsel %vm606, %v652, %v653
      %655 = vrot.lane.b32.xlu0 %v609, 64
      %v656 = vpop.permute.xlu0 %655
      %657 = vrot.lane.b32.xlu0 %v612, 64
      %v658 = vpop.permute.xlu0 %657
      %659 = vrot.lane.b32.xlu0 %v615, 64
      %v660 = vpop.permute.xlu0 %659
      %661 = vrot.lane.b32.xlu0 %v618, 64
      %v662 = vpop.permute.xlu0 %661
      %663 = vrot.lane.b32.xlu0 %v621, 64
      %v664 = vpop.permute.xlu0 %663
      %665 = vrot.lane.b32.xlu0 %v624, 64
      %v666 = vpop.permute.xlu0 %665
      %667 = vrot.lane.b32.xlu0 %v627, 64
      %v668 = vpop.permute.xlu0 %667
      %669 = vrot.lane.b32.xlu0 %v630, 64
      %v670 = vpop.permute.xlu0 %669
      %671 = vrot.lane.b32.xlu0 %v633, 64
      %v672 = vpop.permute.xlu0 %671
      %673 = vrot.lane.b32.xlu0 %v636, 64
      %v674 = vpop.permute.xlu0 %673
      %675 = vrot.lane.b32.xlu0 %v639, 64
      %v676 = vpop.permute.xlu0 %675
      %677 = vrot.lane.b32.xlu0 %v642, 64
      %v678 = vpop.permute.xlu0 %677
      %679 = vrot.lane.b32.xlu0 %v645, 64
      %v680 = vpop.permute.xlu0 %679
      %681 = vrot.lane.b32.xlu0 %v648, 64
      %v682 = vpop.permute.xlu0 %681
      %683 = vrot.lane.b32.xlu0 %v651, 64
      %v684 = vpop.permute.xlu0 %683
      %685 = vrot.lane.b32.xlu0 %v654, 64
      %v686 = vpop.permute.xlu0 %685
      %v689 = vunpack.c.l.b16 %v247
      %v690 = vunpack.c.l.b16 %v248
      %v691 = vpack.c.b16 %v690, %v689
      %692 = vrot.lane.b32.xlu0 %v318, 96
      %v693 = vpop.permute.xlu0 %692
      %694 = vrot.lane.b32.xlu0 %v319, 96
      %v695 = vpop.permute.xlu0 %694
      %696 = vrot.lane.b32.xlu0 %v320, 96
      %v697 = vpop.permute.xlu0 %696
      %698 = vrot.lane.b32.xlu0 %v321, 96
      %v699 = vpop.permute.xlu0 %698
      %700 = vrot.lane.b32.xlu0 %v322, 96
      %v701 = vpop.permute.xlu0 %700
      %702 = vrot.lane.b32.xlu0 %v323, 96
      %v703 = vpop.permute.xlu0 %702
      %704 = vrot.lane.b32.xlu0 %v324, 96
      %v705 = vpop.permute.xlu0 %704
      %706 = vrot.lane.b32.xlu0 %v325, 96
      %v707 = vpop.permute.xlu0 %706
      %708 = vrot.lane.b32.xlu0 %v326, 96
      %v709 = vpop.permute.xlu0 %708
      %710 = vrot.lane.b32.xlu0 %v327, 96
      %v711 = vpop.permute.xlu0 %710
      %712 = vrot.lane.b32.xlu0 %v328, 96
      %v713 = vpop.permute.xlu0 %712
      %714 = vrot.lane.b32.xlu0 %v329, 96
      %v715 = vpop.permute.xlu0 %714
      %716 = vrot.lane.b32.xlu0 %v330, 96
      %v717 = vpop.permute.xlu0 %716
      %718 = vrot.lane.b32.xlu0 %v331, 96
      %v719 = vpop.permute.xlu0 %718
      %720 = vrot.lane.b32.xlu0 %v332, 96
      %v721 = vpop.permute.xlu0 %720
      %722 = vrot.lane.b32.xlu0 %v691, 96
      %v723 = vpop.permute.xlu0 %722
      %v725 = vunpack.c.l.b16 %v249
      %v726 = vpack.c.b16 %v725, %v725
      %v728 = vshrl.u32 %v691, 16
      %v730 = vshll.u32 %v691, 16
      %v732 = vrot.slane %v730, 1
      %v733 = vor.u32 %v728, %v732
      %v735 = vshll.u32 %v726, 16
      %v737 = vrot.slane %v735, 1
      %v738 = vsel %vm381, %v733, %v737
      %v739 = vrot.slane %v691, 1
      %v740 = vrot.slane %v726, 1
      %v741 = vsel %vm606, %v739, %v740
      %742 = vrot.lane.b32.xlu0 %v612, 32
      %v743 = vpop.permute.xlu0 %742
      %744 = vrot.lane.b32.xlu0 %v615, 32
      %v745 = vpop.permute.xlu0 %744
      %746 = vrot.lane.b32.xlu0 %v618, 32
      %v747 = vpop.permute.xlu0 %746
      %748 = vrot.lane.b32.xlu0 %v621, 32
      %v749 = vpop.permute.xlu0 %748
      %750 = vrot.lane.b32.xlu0 %v624, 32
      %v751 = vpop.permute.xlu0 %750
      %752 = vrot.lane.b32.xlu0 %v627, 32
      %v753 = vpop.permute.xlu0 %752
      %754 = vrot.lane.b32.xlu0 %v630, 32
      %v755 = vpop.permute.xlu0 %754
      %756 = vrot.lane.b32.xlu0 %v633, 32
      %v757 = vpop.permute.xlu0 %756
      %758 = vrot.lane.b32.xlu0 %v636, 32
      %v759 = vpop.permute.xlu0 %758
      %760 = vrot.lane.b32.xlu0 %v639, 32
      %v761 = vpop.permute.xlu0 %760
      %762 = vrot.lane.b32.xlu0 %v642, 32
      %v763 = vpop.permute.xlu0 %762
      %764 = vrot.lane.b32.xlu0 %v645, 32
      %v765 = vpop.permute.xlu0 %764
      %766 = vrot.lane.b32.xlu0 %v648, 32
      %v767 = vpop.permute.xlu0 %766
      %768 = vrot.lane.b32.xlu0 %v651, 32
      %v769 = vpop.permute.xlu0 %768
      %770 = vrot.lane.b32.xlu0 %v654, 32
      %v771 = vpop.permute.xlu0 %770
      %772 = vrot.lane.b32.xlu0 %v741, 32
      %v773 = vpop.permute.xlu0 %772
      %v776 = vunpack.c.l.b16 %v250
      %v777 = vunpack.c.l.b16 %v251
      %v778 = vpack.c.b16 %v777, %v776
      %779 = vrot.lane.b32.xlu0 %v319, 64
      %v780 = vpop.permute.xlu0 %779
      %781 = vrot.lane.b32.xlu0 %v320, 64
      %v782 = vpop.permute.xlu0 %781
      %783 = vrot.lane.b32.xlu0 %v321, 64
      %v784 = vpop.permute.xlu0 %783
      %785 = vrot.lane.b32.xlu0 %v322, 64
      %v786 = vpop.permute.xlu0 %785
      %787 = vrot.lane.b32.xlu0 %v323, 64
      %v788 = vpop.permute.xlu0 %787
      %789 = vrot.lane.b32.xlu0 %v324, 64
      %v790 = vpop.permute.xlu0 %789
      %791 = vrot.lane.b32.xlu0 %v325, 64
      %v792 = vpop.permute.xlu0 %791
      %793 = vrot.lane.b32.xlu0 %v326, 64
      %v794 = vpop.permute.xlu0 %793
      %795 = vrot.lane.b32.xlu0 %v327, 64
      %v796 = vpop.permute.xlu0 %795
      %797 = vrot.lane.b32.xlu0 %v328, 64
      %v798 = vpop.permute.xlu0 %797
      %799 = vrot.lane.b32.xlu0 %v329, 64
      %v800 = vpop.permute.xlu0 %799
      %801 = vrot.lane.b32.xlu0 %v330, 64
      %v802 = vpop.permute.xlu0 %801
      %803 = vrot.lane.b32.xlu0 %v331, 64
      %v804 = vpop.permute.xlu0 %803
      %805 = vrot.lane.b32.xlu0 %v332, 64
      %v806 = vpop.permute.xlu0 %805
      %807 = vrot.lane.b32.xlu0 %v691, 64
      %v808 = vpop.permute.xlu0 %807
      %809 = vrot.lane.b32.xlu0 %v778, 64
      %v810 = vpop.permute.xlu0 %809
      %v812 = vunpack.c.l.b16 %v252
      %v813 = vpack.c.b16 %v812, %v812
      %v815 = vshrl.u32 %v778, 16
      %v817 = vshll.u32 %v778, 16
      %v819 = vrot.slane %v817, 1
      %v820 = vor.u32 %v815, %v819
      %v822 = vshll.u32 %v813, 16
      %v824 = vrot.slane %v822, 1
      %v825 = vsel %vm381, %v820, %v824
      %826 = vrot.lane.b32.xlu0 %v417, 96
      %v827 = vpop.permute.xlu0 %826
      %828 = vrot.lane.b32.xlu0 %v429, 96
      %v829 = vpop.permute.xlu0 %828
      %830 = vrot.lane.b32.xlu0 %v441, 96
      %v831 = vpop.permute.xlu0 %830
      %832 = vrot.lane.b32.xlu0 %v453, 96
      %v833 = vpop.permute.xlu0 %832
      %834 = vrot.lane.b32.xlu0 %v465, 96
      %v835 = vpop.permute.xlu0 %834
      %836 = vrot.lane.b32.xlu0 %v477, 96
      %v837 = vpop.permute.xlu0 %836
      %838 = vrot.lane.b32.xlu0 %v489, 96
      %v839 = vpop.permute.xlu0 %838
      %840 = vrot.lane.b32.xlu0 %v501, 96
      %v841 = vpop.permute.xlu0 %840
      %842 = vrot.lane.b32.xlu0 %v513, 96
      %v843 = vpop.permute.xlu0 %842
      %844 = vrot.lane.b32.xlu0 %v525, 96
      %v845 = vpop.permute.xlu0 %844
      %846 = vrot.lane.b32.xlu0 %v537, 96
      %v847 = vpop.permute.xlu0 %846
      %848 = vrot.lane.b32.xlu0 %v549, 96
      %v849 = vpop.permute.xlu0 %848
      %850 = vrot.lane.b32.xlu0 %v561, 96
      %v851 = vpop.permute.xlu0 %850
      %852 = vrot.lane.b32.xlu0 %v573, 96
      %v853 = vpop.permute.xlu0 %852
      %854 = vrot.lane.b32.xlu0 %v738, 96
      %v855 = vpop.permute.xlu0 %854
      %856 = vrot.lane.b32.xlu0 %v825, 96
      %v857 = vpop.permute.xlu0 %856
      %v858 = vrot.slane %v778, 1
      %v859 = vrot.slane %v813, 1
      %v860 = vsel %vm606, %v858, %v859
      %vm861 = vcmask 261120
      %v863 = vsel %vm861, %v317, %v575
      %v865 = vsel %vm861, %v318, %v577
      %v867 = vsel %vm861, %v319, %v579
      %v869 = vsel %vm861, %v320, %v581
      %v871 = vsel %vm861, %v321, %v583
      %v873 = vsel %vm861, %v322, %v585
      %v875 = vsel %vm861, %v323, %v587
      %v877 = vsel %vm861, %v324, %v589
      %v879 = vsel %vm861, %v325, %v591
      %v881 = vsel %vm861, %v326, %v593
      %v883 = vsel %vm861, %v327, %v595
      %v885 = vsel %vm861, %v328, %v597
      %v887 = vsel %vm861, %v329, %v599
      %v889 = vsel %vm861, %v330, %v601
      %v891 = vsel %vm861, %v331, %v603
      %v893 = vsel %vm861, %v332, %v605
      %vm894 = vcmask 523264
      %v896 = vsel %vm894, %v863, %v656
      %v898 = vsel %vm894, %v865, %v658
      %v900 = vsel %vm894, %v867, %v660
      %v902 = vsel %vm894, %v869, %v662
      %v904 = vsel %vm894, %v871, %v664
      %v906 = vsel %vm894, %v873, %v666
      %v908 = vsel %vm894, %v875, %v668
      %v910 = vsel %vm894, %v877, %v670
      %v912 = vsel %vm894, %v879, %v672
      %v914 = vsel %vm894, %v881, %v674
      %v916 = vsel %vm894, %v883, %v676
      %v918 = vsel %vm894, %v885, %v678
      %v920 = vsel %vm894, %v887, %v680
      %v922 = vsel %vm894, %v889, %v682
      %v924 = vsel %vm894, %v891, %v684
      %v926 = vsel %vm894, %v893, %v686
      %vm927 = vcmask 785408
      %v929 = vsel %vm927, %v896, %v693
      %v932 = vsel %vm927, %v898, %v695
      %v935 = vsel %vm927, %v900, %v697
      %v938 = vsel %vm927, %v902, %v699
      %v941 = vsel %vm927, %v904, %v701
      %v944 = vsel %vm927, %v906, %v703
      %v947 = vsel %vm927, %v908, %v705
      %v950 = vsel %vm927, %v910, %v707
      %v953 = vsel %vm927, %v912, %v709
      %v956 = vsel %vm927, %v914, %v711
      %v959 = vsel %vm927, %v916, %v713
      %v962 = vsel %vm927, %v918, %v715
      %v965 = vsel %vm927, %v920, %v717
      %v968 = vsel %vm927, %v922, %v719
      %v971 = vsel %vm927, %v924, %v721
      %v974 = vsel %vm927, %v926, %v723
      %v978 = vsel %vm861, %v405, %v743
      %v981 = vsel %vm861, %v417, %v745
      %v984 = vsel %vm861, %v429, %v747
      %v987 = vsel %vm861, %v441, %v749
      %v990 = vsel %vm861, %v453, %v751
      %v993 = vsel %vm861, %v465, %v753
      %v996 = vsel %vm861, %v477, %v755
      %v999 = vsel %vm861, %v489, %v757
      %v1002 = vsel %vm861, %v501, %v759
      %v1005 = vsel %vm861, %v513, %v761
      %v1008 = vsel %vm861, %v525, %v763
      %v1011 = vsel %vm861, %v537, %v765
      %v1014 = vsel %vm861, %v549, %v767
      %v1017 = vsel %vm861, %v561, %v769
      %v1020 = vsel %vm861, %v573, %v771
      %v1023 = vsel %vm861, %v738, %v773
      %v1025 = vsel %vm894, %v978, %v780
      %v1027 = vsel %vm894, %v981, %v782
      %v1029 = vsel %vm894, %v984, %v784
      %v1031 = vsel %vm894, %v987, %v786
      %v1033 = vsel %vm894, %v990, %v788
      %v1035 = vsel %vm894, %v993, %v790
      %v1037 = vsel %vm894, %v996, %v792
      %v1039 = vsel %vm894, %v999, %v794
      %v1041 = vsel %vm894, %v1002, %v796
      %v1043 = vsel %vm894, %v1005, %v798
      %v1045 = vsel %vm894, %v1008, %v800
      %v1047 = vsel %vm894, %v1011, %v802
      %v1049 = vsel %vm894, %v1014, %v804
      %v1051 = vsel %vm894, %v1017, %v806
      %v1053 = vsel %vm894, %v1020, %v808
      %v1055 = vsel %vm894, %v1023, %v810
      %v1057 = vsel %vm927, %v1025, %v827
      %v1060 = vsel %vm927, %v1027, %v829
      %v1063 = vsel %vm927, %v1029, %v831
      %v1066 = vsel %vm927, %v1031, %v833
      %v1069 = vsel %vm927, %v1033, %v835
      %v1072 = vsel %vm927, %v1035, %v837
      %v1075 = vsel %vm927, %v1037, %v839
      %v1078 = vsel %vm927, %v1039, %v841
      %v1081 = vsel %vm927, %v1041, %v843
      %v1084 = vsel %vm927, %v1043, %v845
      %v1087 = vsel %vm927, %v1045, %v847
      %v1090 = vsel %vm927, %v1047, %v849
      %v1093 = vsel %vm927, %v1049, %v851
      %v1096 = vsel %vm927, %v1051, %v853
      %v1099 = vsel %vm927, %v1053, %v855
      %v1102 = vsel %vm927, %v1055, %v857
      %v1104 = vld [vmem:[%s1] sm:$0xf]
      %v1105 = vld [vmem:[%s1 + $0x4] sm:$0xf]
      %v1106 = vld [vmem:[%s1 + $0x8] sm:$0xf]
      %v1107 = vld [vmem:[%s1 + $0xc] sm:$0xf]
      %v1108 = vld [vmem:[%s1 + $0x10] sm:$0xf]
      %v1109 = vld [vmem:[%s1 + $0x14] sm:$0xf]
      %v1110 = vld [vmem:[%s1 + $0x18] sm:$0xf]
      %v1111 = vld [vmem:[%s1 + $0x1c] sm:$0xf]
      %v1112 = vld [vmem:[%s1 + $0x20] sm:$0xf]
      %v1113 = vld [vmem:[%s1 + $0x24] sm:$0xf]
      %v1114 = vld [vmem:[%s1 + $0x28] sm:$0xf]
      %v1115 = vld [vmem:[%s1 + $0x2c] sm:$0xf]
      %v1116 = vld [vmem:[%s1 + $0x30] sm:$0xf]
      %v1117 = vld [vmem:[%s1 + $0x34] sm:$0xf]
      %v1118 = vld [vmem:[%s1 + $0x38] sm:$0xf]
      %v1119 = vld [vmem:[%s1 + $0x3c] sm:$0xf]
      %v1120 = vld [vmem:[%s1 + $0x40] sm:$0xf]
      %v1121 = vld [vmem:[%s1 + $0x44] sm:$0xf]
      %v1122 = vld [vmem:[%s1 + $0x48] sm:$0xf]
      %v1123 = vld [vmem:[%s1 + $0x4c] sm:$0xf]
      %v1124 = vld [vmem:[%s1 + $0x50] sm:$0xf]
      %v1125 = vld [vmem:[%s1 + $0x54] sm:$0xf]
      %v1126 = vld [vmem:[%s1 + $0x58] sm:$0xf]
      %v1127 = vld [vmem:[%s1 + $0x5c] sm:$0xf]
      %v1128 = vld [vmem:[%s1 + $0x60] sm:$0xf]
      %v1129 = vld [vmem:[%s1 + $0x64] sm:$0xf]
      %v1130 = vld [vmem:[%s1 + $0x68] sm:$0xf]
      %v1131 = vld [vmem:[%s1 + $0x6c] sm:$0xf]
      %v1132 = vld [vmem:[%s1 + $0x70] sm:$0xf]
      %v1133 = vld [vmem:[%s1 + $0x74] sm:$0xf]
      %v1134 = vld [vmem:[%s1 + $0x78] sm:$0xf]
      %v1135 = vld [vmem:[%s1 + $0x7c] sm:$0xf]
      %v1136 = vld [vmem:[%s1 + $0x80] sm:$0xf]
      %v1137 = vld [vmem:[%s1 + $0x84] sm:$0xf]
      %v1138 = vld [vmem:[%s1 + $0x88] sm:$0xf]
      %v1139 = vld [vmem:[%s1 + $0x8c] sm:$0xf]
      %v1176 = vunpack.c.l.b16 %v1104
      %v1177 = vunpack.c.l.b16 %v1105
      %v1178 = vunpack.c.l.b16 %v1106
      %v1179 = vunpack.c.l.b16 %v1107
      %v1180 = vunpack.c.l.b16 %v1108
      %v1181 = vunpack.c.l.b16 %v1109
      %v1182 = vunpack.c.l.b16 %v1110
      %v1183 = vunpack.c.l.b16 %v1111
      %v1184 = vunpack.c.l.b16 %v1112
      %v1185 = vunpack.c.l.b16 %v1113
      %v1186 = vunpack.c.l.b16 %v1114
      %v1187 = vunpack.c.l.b16 %v1115
      %v1188 = vunpack.c.l.b16 %v1116
      %v1189 = vunpack.c.l.b16 %v1117
      %v1190 = vunpack.c.l.b16 %v1118
      %v1191 = vunpack.c.l.b16 %v1119
      %v1192 = vunpack.c.l.b16 %v1120
      %v1193 = vunpack.c.l.b16 %v1121
      %v1194 = vunpack.c.l.b16 %v1122
      %v1195 = vunpack.c.l.b16 %v1123
      %v1196 = vunpack.c.l.b16 %v1124
      %v1197 = vunpack.c.l.b16 %v1125
      %v1198 = vunpack.c.l.b16 %v1126
      %v1199 = vunpack.c.l.b16 %v1127
      %v1200 = vunpack.c.l.b16 %v1128
      %v1201 = vunpack.c.l.b16 %v1129
      %v1202 = vunpack.c.l.b16 %v1130
      %v1203 = vunpack.c.l.b16 %v1131
      %v1204 = vunpack.c.l.b16 %v1132
      %v1205 = vunpack.c.l.b16 %v1133
      %v1206 = vunpack.c.l.b16 %v1134
      %v1207 = vunpack.c.l.b16 %v1135
      %v1208 = vunpack.c.l.b16 %v1136
      %v1209 = vunpack.c.l.b16 %v1137
      %v1210 = vunpack.c.l.b16 %v1138
      %v1211 = vunpack.c.l.b16 %v1139
      %v1212 = vpack.c.b16 %v1177, %v1176
      %v1213 = vpack.c.b16 %v1179, %v1178
      %v1214 = vpack.c.b16 %v1181, %v1180
      %v1215 = vpack.c.b16 %v1183, %v1182
      %v1216 = vpack.c.b16 %v1185, %v1184
      %v1217 = vpack.c.b16 %v1187, %v1186
      %v1218 = vpack.c.b16 %v1189, %v1188
      %v1219 = vpack.c.b16 %v1191, %v1190
      %v1220 = vpack.c.b16 %v1193, %v1192
      %v1221 = vpack.c.b16 %v1195, %v1194
      %v1222 = vpack.c.b16 %v1197, %v1196
      %v1223 = vpack.c.b16 %v1199, %v1198
      %v1224 = vpack.c.b16 %v1201, %v1200
      %v1225 = vpack.c.b16 %v1203, %v1202
      %v1226 = vpack.c.b16 %v1205, %v1204
      %v1227 = vpack.c.b16 %v1207, %v1206
      %v1228 = vpack.c.b16 %v1209, %v1208
      %v1229 = vpack.c.b16 %v1211, %v1210
      %v1249 = vsel %vm861, %v615, 0
      %v1252 = vsel %vm861, %v618, 0
      %v1255 = vsel %vm861, %v621, 0
      %v1258 = vsel %vm861, %v624, 0
      %v1261 = vsel %vm861, %v627, 0
      %v1264 = vsel %vm861, %v630, 0
      %v1267 = vsel %vm861, %v633, 0
      %v1270 = vsel %vm861, %v636, 0
      %v1273 = vsel %vm861, %v639, 0
      %v1276 = vsel %vm861, %v642, 0
      %v1279 = vsel %vm861, %v645, 0
      %v1282 = vsel %vm861, %v648, 0
      %v1285 = vsel %vm861, %v651, 0
      %v1288 = vsel %vm861, %v654, 0
      %v1291 = vsel %vm861, %v741, 0
      %v1294 = vsel %vm861, %v860, 0
      %1296 = vmatprep.subr.bf16.mxu0 0
      %1297 = vmatpush1.bf16.msra.mxu0 %v1212
      %1298 = vmatprep.subr.bf16.mxu0 0
      %1299 = vmatpush1.bf16.msra.mxu0 %v1213
      %1300 = vmatprep.subr.bf16.mxu0 0
      %1301 = vmatpush1.bf16.msra.mxu0 %v1214
      %1302 = vmatprep.subr.bf16.mxu0 0
      %1303 = vmatpush1.bf16.msra.mxu0 %v1215
      %1304 = vmatprep.subr.bf16.mxu0 0
      %1305 = vmatpush1.bf16.msra.mxu0 %v1216
      %1306 = vmatprep.subr.bf16.mxu0 0
      %1307 = vmatpush1.bf16.msra.mxu0 %v1217
      %1308 = vmatprep.subr.bf16.mxu0 0
      %1309 = vmatpush1.bf16.msra.mxu0 %v1218
      %1310 = vmatprep.subr.bf16.mxu0 0
      %1311 = vmatpush1.bf16.msra.mxu0 %v1219
      %1312 = vmatprep.subr.bf16.mxu0 0
      %1313 = vmatpush1.bf16.msra.mxu0 %v1220
      %1314 = vmatprep.subr.bf16.mxu0 0
      %1315 = vmatpush1.bf16.msra.mxu0 %v1221
      %1316 = vmatprep.subr.bf16.mxu0 0
      %1317 = vmatpush1.bf16.msra.mxu0 %v1222
      %1318 = vmatprep.subr.bf16.mxu0 0
      %1319 = vmatpush1.bf16.msra.mxu0 %v1223
      %1320 = vmatprep.subr.bf16.mxu0 0
      %1321 = vmatpush1.bf16.msra.mxu0 %v1224
      %1322 = vmatprep.subr.bf16.mxu0 0
      %1323 = vmatpush1.bf16.msra.mxu0 %v1225
      %1324 = vmatprep.subr.bf16.mxu0 0
      %1325 = vmatpush1.bf16.msra.mxu0 %v1226
      %1326 = vmatprep.subr.bf16.mxu0 0
      %1327 = vmatpush1.bf16.msra.mxu0 %v1227
      %1328 = vmatprep.mubr.bf16.mxu0 %v1057
      %1329 = vmatmul.mubr.bf16.gmra.mrb[0].mxu0 %v929
      %v1330 = vpop.f32.mrb[0].mxu0
      %v1331 = vadd.f32 0.0, %v1330
      %v1332 = vpop.f32.mrb[0].mxu0
      %v1333 = vpop.f32.mrb[0].mxu0
      %v1334 = vadd.f32 0.0, %v1333
      %v1335 = vpop.f32.mrb[0].mxu0
      %1336 = vmatprep.mubr.bf16.mxu0 %v1060
      %1337 = vmatmul.mubr.bf16.gmra.mrb[0].mxu0 %v932
      %v1338 = vpop.f32.mrb[0].mxu0
      %v1339 = vadd.f32 0.0, %v1338
      %v1340 = vpop.f32.mrb[0].mxu0
      %v1341 = vpop.f32.mrb[0].mxu0
      %v1342 = vadd.f32 0.0, %v1341
      %v1343 = vpop.f32.mrb[0].mxu0
      %1344 = vmatprep.mubr.bf16.mxu0 %v1063
      %1345 = vmatmul.mubr.bf16.gmra.mrb[0].mxu0 %v935
      %v1346 = vpop.f32.mrb[0].mxu0
      %v1347 = vadd.f32 0.0, %v1346
      %v1348 = vpop.f32.mrb[0].mxu0
      %v1349 = vpop.f32.mrb[0].mxu0
      %v1350 = vadd.f32 0.0, %v1349
      %v1351 = vpop.f32.mrb[0].mxu0
      %1352 = vmatprep.mubr.bf16.mxu0 %v1066
      %1353 = vmatmul.mubr.bf16.gmra.mrb[0].mxu0 %v938
      %v1354 = vpop.f32.mrb[0].mxu0
      %v1355 = vadd.f32 0.0, %v1354
      %v1356 = vpop.f32.mrb[0].mxu0
      %v1357 = vpop.f32.mrb[0].mxu0
      %v1358 = vadd.f32 0.0, %v1357
      %v1359 = vpop.f32.mrb[0].mxu0
      %1360 = vmatprep.mubr.bf16.mxu0 %v1069
      %1361 = vmatmul.mubr.bf16.gmra.mrb[0].mxu0 %v941
      %v1362 = vpop.f32.mrb[0].mxu0
      %v1363 = vadd.f32 0.0, %v1362
      %v1364 = vpop.f32.mrb[0].mxu0
      %v1365 = vpop.f32.mrb[0].mxu0
      %v1366 = vadd.f32 0.0, %v1365
      %v1367 = vpop.f32.mrb[0].mxu0
      %1368 = vmatprep.mubr.bf16.mxu0 %v1072
      %1369 = vmatmul.mubr.bf16.gmra.mrb[0].mxu0 %v944
      %v1370 = vpop.f32.mrb[0].mxu0
      %v1371 = vadd.f32 0.0, %v1370
      %v1372 = vpop.f32.mrb[0].mxu0
      %v1373 = vpop.f32.mrb[0].mxu0
      %v1374 = vadd.f32 0.0, %v1373
      %v1375 = vpop.f32.mrb[0].mxu0
      %1376 = vmatprep.mubr.bf16.mxu0 %v1075
      %1377 = vmatmul.mubr.bf16.gmra.mrb[0].mxu0 %v947
      %v1378 = vpop.f32.mrb[0].mxu0
      %v1379 = vadd.f32 0.0, %v1378
      %v1380 = vpop.f32.mrb[0].mxu0
      %v1381 = vpop.f32.mrb[0].mxu0
      %v1382 = vadd.f32 0.0, %v1381
      %v1383 = vpop.f32.mrb[0].mxu0
      %1384 = vmatprep.mubr.bf16.mxu0 %v1078
      %1385 = vmatmul.mubr.bf16.gmra.mrb[0].mxu0 %v950
      %v1386 = vpop.f32.mrb[0].mxu0
      %v1387 = vadd.f32 0.0, %v1386
      %v1388 = vpop.f32.mrb[0].mxu0
      %v1389 = vpop.f32.mrb[0].mxu0
      %v1390 = vadd.f32 0.0, %v1389
      %v1391 = vpop.f32.mrb[0].mxu0
      %1392 = vmatprep.mubr.bf16.mxu0 %v1081
      %1393 = vmatmul.mubr.bf16.gmra.mrb[0].mxu0 %v953
      %v1394 = vpop.f32.mrb[0].mxu0
      %v1395 = vadd.f32 0.0, %v1394
      %v1396 = vpop.f32.mrb[0].mxu0
      %v1397 = vpop.f32.mrb[0].mxu0
      %v1398 = vadd.f32 0.0, %v1397
      %v1399 = vpop.f32.mrb[0].mxu0
      %1400 = vmatprep.mubr.bf16.mxu0 %v1084
      %1401 = vmatmul.mubr.bf16.gmra.mrb[0].mxu0 %v956
      %v1402 = vpop.f32.mrb[0].mxu0
      %v1403 = vadd.f32 0.0, %v1402
      %v1404 = vpop.f32.mrb[0].mxu0
      %v1405 = vpop.f32.mrb[0].mxu0
      %v1406 = vadd.f32 0.0, %v1405
      %v1407 = vpop.f32.mrb[0].mxu0
      %1408 = vmatprep.mubr.bf16.mxu0 %v1087
      %1409 = vmatmul.mubr.bf16.gmra.mrb[0].mxu0 %v959
      %v1410 = vpop.f32.mrb[0].mxu0
      %v1411 = vadd.f32 0.0, %v1410
      %v1412 = vpop.f32.mrb[0].mxu0
      %v1413 = vpop.f32.mrb[0].mxu0
      %v1414 = vadd.f32 0.0, %v1413
      %v1415 = vpop.f32.mrb[0].mxu0
      %1416 = vmatprep.mubr.bf16.mxu0 %v1090
      %1417 = vmatmul.mubr.bf16.gmra.mrb[0].mxu0 %v962
      %v1418 = vpop.f32.mrb[0].mxu0
      %v1419 = vadd.f32 0.0, %v1418
      %v1420 = vpop.f32.mrb[0].mxu0
      %v1421 = vpop.f32.mrb[0].mxu0
      %v1422 = vadd.f32 0.0, %v1421
      %v1423 = vpop.f32.mrb[0].mxu0
      %1424 = vmatprep.mubr.bf16.mxu0 %v1093
      %1425 = vmatmul.mubr.bf16.gmra.mrb[0].mxu0 %v965
      %v1426 = vpop.f32.mrb[0].mxu0
      %v1427 = vadd.f32 0.0, %v1426
      %v1428 = vpop.f32.mrb[0].mxu0
      %v1429 = vpop.f32.mrb[0].mxu0
      %v1430 = vadd.f32 0.0, %v1429
      %v1431 = vpop.f32.mrb[0].mxu0
      %1432 = vmatprep.mubr.bf16.mxu0 %v1096
      %1433 = vmatmul.mubr.bf16.gmra.mrb[0].mxu0 %v968
      %v1434 = vpop.f32.mrb[0].mxu0
      %v1435 = vadd.f32 0.0, %v1434
      %v1436 = vpop.f32.mrb[0].mxu0
      %v1437 = vpop.f32.mrb[0].mxu0
      %v1438 = vadd.f32 0.0, %v1437
      %v1439 = vpop.f32.mrb[0].mxu0
      %1440 = vmatprep.mubr.bf16.mxu0 %v1099
      %1441 = vmatmul.mubr.bf16.gmra.mrb[0].mxu0 %v971
      %v1442 = vpop.f32.mrb[0].mxu0
      %v1443 = vadd.f32 0.0, %v1442
      %v1444 = vpop.f32.mrb[0].mxu0
      %v1445 = vpop.f32.mrb[0].mxu0
      %v1446 = vadd.f32 0.0, %v1445
      %v1447 = vpop.f32.mrb[0].mxu0
      %1448 = vmatprep.mubr.bf16.mxu0 %v1102
      %1449 = vmatmul.mubr.bf16.gmra.mrb[0].mxu0 %v974
      %v1450 = vpop.f32.mrb[0].mxu0
      %v1451 = vadd.f32 0.0, %v1450
      %v1452 = vpop.f32.mrb[0].mxu0
      %v1453 = vpop.f32.mrb[0].mxu0
      %v1454 = vadd.f32 0.0, %v1453
      %v1455 = vpop.f32.mrb[0].mxu0
      %1456 = vdwg.mxu0
      %1457 = vmatprep.subr.bf16.mxu0 0
      %1458 = vmatpush1.bf16.msra.mxu0 %v1228
      %1459 = vmatprep.subr.bf16.mxu0 0
      %1460 = vmatpush1.bf16.msra.mxu0 %v1229
      %1461 = vmatprep.subr.bf16.mxu0 0
      %1462 = vmatpush1.bf16.msra.mxu0 0
      %1463 = vmatprep.subr.bf16.mxu0 0
      %1464 = vmatpush1.bf16.msra.mxu0 0
      %1465 = vmatprep.subr.bf16.mxu0 0
      %1466 = vmatpush1.bf16.msra.mxu0 0
      %1467 = vmatprep.subr.bf16.mxu0 0
      %1468 = vmatpush1.bf16.msra.mxu0 0
      %1469 = vmatprep.subr.bf16.mxu0 0
      %1470 = vmatpush1.bf16.msra.mxu0 0
      %1471 = vmatprep.subr.bf16.mxu0 0
      %1472 = vmatpush1.bf16.msra.mxu0 0
      %1473 = vmatprep.subr.bf16.mxu0 0
      %1474 = vmatpush1.bf16.msra.mxu0 0
      %1475 = vmatprep.subr.bf16.mxu0 0
      %1476 = vmatpush1.bf16.msra.mxu0 0
      %1477 = vmatprep.subr.bf16.mxu0 0
      %1478 = vmatpush1.bf16.msra.mxu0 0
      %1479 = vmatprep.subr.bf16.mxu0 0
      %1480 = vmatpush1.bf16.msra.mxu0 0
      %1481 = vmatprep.subr.bf16.mxu0 0
      %1482 = vmatpush1.bf16.msra.mxu0 0
      %1483 = vmatprep.subr.bf16.mxu0 0
      %1484 = vmatpush1.bf16.msra.mxu0 0
      %1485 = vmatprep.subr.bf16.mxu0 0
      %1486 = vmatpush1.bf16.msra.mxu0 0
      %1487 = vmatprep.subr.bf16.mxu0 0
      %1488 = vmatpush1.bf16.msra.mxu0 0
      %1489 = vmatprep.mubr.bf16.mxu0 0
      %1490 = vmatmul.mubr.bf16.gmra.mrb[0].mxu0 %v1249
      %v1491 = vpop.f32.mrb[0].mxu0
      %v1492 = vadd.f32 %v1331, %v1491
      %v1493 = vpop.f32.mrb[0].mxu0
      %v1494 = vpop.f32.mrb[0].mxu0
      %v1495 = vadd.f32 %v1334, %v1494
      %v1496 = vpop.f32.mrb[0].mxu0
      %1497 = vmatprep.mubr.bf16.mxu0 0
      %1498 = vmatmul.mubr.bf16.gmra.mrb[0].mxu0 %v1252
      %v1499 = vpop.f32.mrb[0].mxu0
      %v1500 = vadd.f32 %v1339, %v1499
      %v1501 = vpop.f32.mrb[0].mxu0
      %v1502 = vpop.f32.mrb[0].mxu0
      %v1503 = vadd.f32 %v1342, %v1502
      %v1504 = vpop.f32.mrb[0].mxu0
      %1505 = vmatprep.mubr.bf16.mxu0 0
      %1506 = vmatmul.mubr.bf16.gmra.mrb[0].mxu0 %v1255
      %v1507 = vpop.f32.mrb[0].mxu0
      %v1508 = vadd.f32 %v1347, %v1507
      %v1509 = vpop.f32.mrb[0].mxu0
      %v1510 = vpop.f32.mrb[0].mxu0
      %v1511 = vadd.f32 %v1350, %v1510
      %v1512 = vpop.f32.mrb[0].mxu0
      %1513 = vmatprep.mubr.bf16.mxu0 0
      %1514 = vmatmul.mubr.bf16.gmra.mrb[0].mxu0 %v1258
      %v1515 = vpop.f32.mrb[0].mxu0
      %v1516 = vadd.f32 %v1355, %v1515
      %v1517 = vpop.f32.mrb[0].mxu0
      %v1518 = vpop.f32.mrb[0].mxu0
      %v1519 = vadd.f32 %v1358, %v1518
      %v1520 = vpop.f32.mrb[0].mxu0
      %1521 = vmatprep.mubr.bf16.mxu0 0
      %1522 = vmatmul.mubr.bf16.gmra.mrb[0].mxu0 %v1261
      %v1523 = vpop.f32.mrb[0].mxu0
      %v1524 = vadd.f32 %v1363, %v1523
      %v1525 = vpop.f32.mrb[0].mxu0
      %v1526 = vpop.f32.mrb[0].mxu0
      %v1527 = vadd.f32 %v1366, %v1526
      %v1528 = vpop.f32.mrb[0].mxu0
      %1529 = vmatprep.mubr.bf16.mxu0 0
      %1530 = vmatmul.mubr.bf16.gmra.mrb[0].mxu0 %v1264
      %v1531 = vpop.f32.mrb[0].mxu0
      %v1532 = vadd.f32 %v1371, %v1531
      %v1533 = vpop.f32.mrb[0].mxu0
      %v1534 = vpop.f32.mrb[0].mxu0
      %v1535 = vadd.f32 %v1374, %v1534
      %v1536 = vpop.f32.mrb[0].mxu0
      %1537 = vmatprep.mubr.bf16.mxu0 0
      %1538 = vmatmul.mubr.bf16.gmra.mrb[0].mxu0 %v1267
      %v1539 = vpop.f32.mrb[0].mxu0
      %v1540 = vadd.f32 %v1379, %v1539
      %v1541 = vpop.f32.mrb[0].mxu0
      %v1542 = vpop.f32.mrb[0].mxu0
      %v1543 = vadd.f32 %v1382, %v1542
      %v1544 = vpop.f32.mrb[0].mxu0
      %1545 = vmatprep.mubr.bf16.mxu0 0
      %1546 = vmatmul.mubr.bf16.gmra.mrb[0].mxu0 %v1270
      %v1547 = vpop.f32.mrb[0].mxu0
      %v1548 = vadd.f32 %v1387, %v1547
      %v1549 = vpop.f32.mrb[0].mxu0
      %v1550 = vpop.f32.mrb[0].mxu0
      %v1551 = vadd.f32 %v1390, %v1550
      %v1552 = vpop.f32.mrb[0].mxu0
      %1553 = vmatprep.mubr.bf16.mxu0 0
      %1554 = vmatmul.mubr.bf16.gmra.mrb[0].mxu0 %v1273
      %v1555 = vpop.f32.mrb[0].mxu0
      %v1556 = vadd.f32 %v1395, %v1555
      %v1557 = vpop.f32.mrb[0].mxu0
      %v1558 = vpop.f32.mrb[0].mxu0
      %v1559 = vadd.f32 %v1398, %v1558
      %v1560 = vpop.f32.mrb[0].mxu0
      %1561 = vmatprep.mubr.bf16.mxu0 0
      %1562 = vmatmul.mubr.bf16.gmra.mrb[0].mxu0 %v1276
      %v1563 = vpop.f32.mrb[0].mxu0
      %v1564 = vadd.f32 %v1403, %v1563
      %v1565 = vpop.f32.mrb[0].mxu0
      %v1566 = vpop.f32.mrb[0].mxu0
      %v1567 = vadd.f32 %v1406, %v1566
      %v1568 = vpop.f32.mrb[0].mxu0
      %1569 = vmatprep.mubr.bf16.mxu0 0
      %1570 = vmatmul.mubr.bf16.gmra.mrb[0].mxu0 %v1279
      %v1571 = vpop.f32.mrb[0].mxu0
      %v1572 = vadd.f32 %v1411, %v1571
      %v1573 = vpop.f32.mrb[0].mxu0
      %v1574 = vpop.f32.mrb[0].mxu0
      %v1575 = vadd.f32 %v1414, %v1574
      %v1576 = vpop.f32.mrb[0].mxu0
      %1577 = vmatprep.mubr.bf16.mxu0 0
      %1578 = vmatmul.mubr.bf16.gmra.mrb[0].mxu0 %v1282
      %v1579 = vpop.f32.mrb[0].mxu0
      %v1580 = vadd.f32 %v1419, %v1579
      %v1581 = vpop.f32.mrb[0].mxu0
      %v1582 = vpop.f32.mrb[0].mxu0
      %v1583 = vadd.f32 %v1422, %v1582
      %v1584 = vpop.f32.mrb[0].mxu0
      %1585 = vmatprep.mubr.bf16.mxu0 0
      %1586 = vmatmul.mubr.bf16.gmra.mrb[0].mxu0 %v1285
      %v1587 = vpop.f32.mrb[0].mxu0
      %v1588 = vadd.f32 %v1427, %v1587
      %v1589 = vpop.f32.mrb[0].mxu0
      %v1590 = vpop.f32.mrb[0].mxu0
      %v1591 = vadd.f32 %v1430, %v1590
      %v1592 = vpop.f32.mrb[0].mxu0
      %1593 = vmatprep.mubr.bf16.mxu0 0
      %1594 = vmatmul.mubr.bf16.gmra.mrb[0].mxu0 %v1288
      %v1595 = vpop.f32.mrb[0].mxu0
      %v1596 = vadd.f32 %v1435, %v1595
      %v1597 = vpop.f32.mrb[0].mxu0
      %v1598 = vpop.f32.mrb[0].mxu0
      %v1599 = vadd.f32 %v1438, %v1598
      %v1600 = vpop.f32.mrb[0].mxu0
      %1601 = vmatprep.mubr.bf16.mxu0 0
      %1602 = vmatmul.mubr.bf16.gmra.mrb[0].mxu0 %v1291
      %v1603 = vpop.f32.mrb[0].mxu0
      %v1604 = vadd.f32 %v1443, %v1603
      %v1605 = vpop.f32.mrb[0].mxu0
      %v1606 = vpop.f32.mrb[0].mxu0
      %v1607 = vadd.f32 %v1446, %v1606
      %v1608 = vpop.f32.mrb[0].mxu0
      %1609 = vmatprep.mubr.bf16.mxu0 0
      %1610 = vmatmul.mubr.bf16.gmra.mrb[0].mxu0 %v1294
      %v1611 = vpop.f32.mrb[0].mxu0
      %v1612 = vadd.f32 %v1451, %v1611
      %v1613 = vpop.f32.mrb[0].mxu0
      %v1614 = vpop.f32.mrb[0].mxu0
      %v1615 = vadd.f32 %v1454, %v1614
      %v1616 = vpop.f32.mrb[0].mxu0
      %1617 = vdwg.mxu0
      %v1618 = vld [vmem:[%s2] sm:$0x1]
      %v1620 = vlaneseq
      %v1621 = vshrl.u32 %v1620, 7
      %v1622 = vsub.s32 0, %v1621
      %v1623 = vrot.slane %v1618, %v1622
      %v1625 = vmul.f32 %v1492, %v1623
      %v1626 = vmul.f32 %v1495, %v1623
      %v1627 = vmul.f32 %v1500, %v1623
      %v1628 = vmul.f32 %v1503, %v1623
      %v1629 = vmul.f32 %v1508, %v1623
      %v1630 = vmul.f32 %v1511, %v1623
      %v1631 = vmul.f32 %v1516, %v1623
      %v1632 = vmul.f32 %v1519, %v1623
      %v1633 = vmul.f32 %v1524, %v1623
      %v1634 = vmul.f32 %v1527, %v1623
      %v1635 = vmul.f32 %v1532, %v1623
      %v1636 = vmul.f32 %v1535, %v1623
      %v1637 = vmul.f32 %v1540, %v1623
      %v1638 = vmul.f32 %v1543, %v1623
      %v1639 = vmul.f32 %v1548, %v1623
      %v1640 = vmul.f32 %v1551, %v1623
      %v1641 = vmul.f32 %v1556, %v1623
      %v1642 = vmul.f32 %v1559, %v1623
      %v1643 = vmul.f32 %v1564, %v1623
      %v1644 = vmul.f32 %v1567, %v1623
      %v1645 = vmul.f32 %v1572, %v1623
      %v1646 = vmul.f32 %v1575, %v1623
      %v1647 = vmul.f32 %v1580, %v1623
      %v1648 = vmul.f32 %v1583, %v1623
      %v1649 = vmul.f32 %v1588, %v1623
      %v1650 = vmul.f32 %v1591, %v1623
      %v1651 = vmul.f32 %v1596, %v1623
      %v1652 = vmul.f32 %v1599, %v1623
      %v1653 = vmul.f32 %v1604, %v1623
      %v1654 = vmul.f32 %v1607, %v1623
      %v1655 = vmul.f32 %v1612, %v1623
      %v1656 = vmul.f32 %v1615, %v1623
      %v1657 = vld [vmem:[%s3] sm:$0x1]
      %v1659 = vlaneseq
      %v1660 = vshrl.u32 %v1659, 7
      %v1661 = vsub.s32 0, %v1660
      %v1662 = vrot.slane %v1657, %v1661
      %v1664 = vadd.f32 %v1625, %v1662
      %v1665 = vadd.f32 %v1626, %v1662
      %v1666 = vadd.f32 %v1627, %v1662
      %v1667 = vadd.f32 %v1628, %v1662
      %v1668 = vadd.f32 %v1629, %v1662
      %v1669 = vadd.f32 %v1630, %v1662
      %v1670 = vadd.f32 %v1631, %v1662
      %v1671 = vadd.f32 %v1632, %v1662
      %v1672 = vadd.f32 %v1633, %v1662
      %v1673 = vadd.f32 %v1634, %v1662
      %v1674 = vadd.f32 %v1635, %v1662
      %v1675 = vadd.f32 %v1636, %v1662
      %v1676 = vadd.f32 %v1637, %v1662
      %v1677 = vadd.f32 %v1638, %v1662
      %v1678 = vadd.f32 %v1639, %v1662
      %v1679 = vadd.f32 %v1640, %v1662
      %v1680 = vadd.f32 %v1641, %v1662
      %v1681 = vadd.f32 %v1642, %v1662
      %v1682 = vadd.f32 %v1643, %v1662
      %v1683 = vadd.f32 %v1644, %v1662
      %v1684 = vadd.f32 %v1645, %v1662
      %v1685 = vadd.f32 %v1646, %v1662
      %v1686 = vadd.f32 %v1647, %v1662
      %v1687 = vadd.f32 %v1648, %v1662
      %v1688 = vadd.f32 %v1649, %v1662
      %v1689 = vadd.f32 %v1650, %v1662
      %v1690 = vadd.f32 %v1651, %v1662
      %v1691 = vadd.f32 %v1652, %v1662
      %v1692 = vadd.f32 %v1653, %v1662
      %v1693 = vadd.f32 %v1654, %v1662
      %v1694 = vadd.f32 %v1655, %v1662
      %v1695 = vadd.f32 %v1656, %v1662
      %v1696 = vmax.f32 %v1664, 0.0
      %v1697 = vmax.f32 %v1665, 0.0
      %v1698 = vmax.f32 %v1666, 0.0
      %v1699 = vmax.f32 %v1667, 0.0
      %v1700 = vmax.f32 %v1668, 0.0
      %v1701 = vmax.f32 %v1669, 0.0
      %v1702 = vmax.f32 %v1670, 0.0
      %v1703 = vmax.f32 %v1671, 0.0
      %v1704 = vmax.f32 %v1672, 0.0
      %v1705 = vmax.f32 %v1673, 0.0
      %v1706 = vmax.f32 %v1674, 0.0
      %v1707 = vmax.f32 %v1675, 0.0
      %v1708 = vmax.f32 %v1676, 0.0
      %v1709 = vmax.f32 %v1677, 0.0
      %v1710 = vmax.f32 %v1678, 0.0
      %v1711 = vmax.f32 %v1679, 0.0
      %v1712 = vmax.f32 %v1680, 0.0
      %v1713 = vmax.f32 %v1681, 0.0
      %v1714 = vmax.f32 %v1682, 0.0
      %v1715 = vmax.f32 %v1683, 0.0
      %v1716 = vmax.f32 %v1684, 0.0
      %v1717 = vmax.f32 %v1685, 0.0
      %v1718 = vmax.f32 %v1686, 0.0
      %v1719 = vmax.f32 %v1687, 0.0
      %v1720 = vmax.f32 %v1688, 0.0
      %v1721 = vmax.f32 %v1689, 0.0
      %v1722 = vmax.f32 %v1690, 0.0
      %v1723 = vmax.f32 %v1691, 0.0
      %v1724 = vmax.f32 %v1692, 0.0
      %v1725 = vmax.f32 %v1693, 0.0
      %v1726 = vmax.f32 %v1694, 0.0
      %v1727 = vmax.f32 %v1695, 0.0
      %v1760 = vcombine.high %v1696, %v1696
      %v1762 = vunpack.c.l.s4 1983009808
      %v1763 = vunpack.c.0.s8 %v1762
      %v1764 = vlaneseq
      %v1765 = vshrl.u32 %v1764, 7
      %v1766 = vsub.s32 %v1763, %v1765
      %v1767 = vrot.slane %v1696, %v1766
      %v1769 = vunpack.c.l.s4 1983009808
      %v1770 = vunpack.c.0.s8 %v1769
      %v1771 = vlaneseq
      %v1772 = vshrl.u32 %v1771, 7
      %v1773 = vsub.s32 %v1770, %v1772
      %v1774 = vrot.slane %v1760, %v1773
      %v1775 = vcombine.high %v1767, %v1767
      %v1776 = vcombine.high %v1774, %v1774
      %v1777 = vcombine.high %v1697, %v1697
      %v1779 = vunpack.c.l.s4 1983009808
      %v1780 = vunpack.c.0.s8 %v1779
      %v1781 = vlaneseq
      %v1782 = vshrl.u32 %v1781, 7
      %v1783 = vsub.s32 %v1780, %v1782
      %v1784 = vrot.slane %v1697, %v1783
      %v1786 = vunpack.c.l.s4 1983009808
      %v1787 = vunpack.c.0.s8 %v1786
      %v1788 = vlaneseq
      %v1789 = vshrl.u32 %v1788, 7
      %v1790 = vsub.s32 %v1787, %v1789
      %v1791 = vrot.slane %v1777, %v1790
      %v1792 = vcombine.high %v1784, %v1784
      %v1793 = vcombine.high %v1791, %v1791
      %v1794 = vcombine.high %v1698, %v1698
      %v1796 = vunpack.c.l.s4 1983009808
      %v1797 = vunpack.c.0.s8 %v1796
      %v1798 = vlaneseq
      %v1799 = vshrl.u32 %v1798, 7
      %v1800 = vsub.s32 %v1797, %v1799
      %v1801 = vrot.slane %v1698, %v1800
      %v1803 = vunpack.c.l.s4 1983009808
      %v1804 = vunpack.c.0.s8 %v1803
      %v1805 = vlaneseq
      %v1806 = vshrl.u32 %v1805, 7
      %v1807 = vsub.s32 %v1804, %v1806
      %v1808 = vrot.slane %v1794, %v1807
      %v1809 = vcombine.high %v1801, %v1801
      %v1810 = vcombine.high %v1808, %v1808
      %v1811 = vcombine.high %v1699, %v1699
      %v1813 = vunpack.c.l.s4 1983009808
      %v1814 = vunpack.c.0.s8 %v1813
      %v1815 = vlaneseq
      %v1816 = vshrl.u32 %v1815, 7
      %v1817 = vsub.s32 %v1814, %v1816
      %v1818 = vrot.slane %v1699, %v1817
      %v1820 = vunpack.c.l.s4 1983009808
      %v1821 = vunpack.c.0.s8 %v1820
      %v1822 = vlaneseq
      %v1823 = vshrl.u32 %v1822, 7
      %v1824 = vsub.s32 %v1821, %v1823
      %v1825 = vrot.slane %v1811, %v1824
      %v1826 = vcombine.high %v1818, %v1818
      %v1827 = vcombine.high %v1825, %v1825
      %v1828 = vcombine.high %v1700, %v1700
      %v1830 = vunpack.c.l.s4 1983009808
      %v1831 = vunpack.c.0.s8 %v1830
      %v1832 = vlaneseq
      %v1833 = vshrl.u32 %v1832, 7
      %v1834 = vsub.s32 %v1831, %v1833
      %v1835 = vrot.slane %v1700, %v1834
      %v1837 = vunpack.c.l.s4 1983009808
      %v1838 = vunpack.c.0.s8 %v1837
      %v1839 = vlaneseq
      %v1840 = vshrl.u32 %v1839, 7
      %v1841 = vsub.s32 %v1838, %v1840
      %v1842 = vrot.slane %v1828, %v1841
      %v1843 = vcombine.high %v1835, %v1835
      %v1844 = vcombine.high %v1842, %v1842
      %v1845 = vcombine.high %v1701, %v1701
      %v1847 = vunpack.c.l.s4 1983009808
      %v1848 = vunpack.c.0.s8 %v1847
      %v1849 = vlaneseq
      %v1850 = vshrl.u32 %v1849, 7
      %v1851 = vsub.s32 %v1848, %v1850
      %v1852 = vrot.slane %v1701, %v1851
      %v1854 = vunpack.c.l.s4 1983009808
      %v1855 = vunpack.c.0.s8 %v1854
      %v1856 = vlaneseq
      %v1857 = vshrl.u32 %v1856, 7
      %v1858 = vsub.s32 %v1855, %v1857
      %v1859 = vrot.slane %v1845, %v1858
      %v1860 = vcombine.high %v1852, %v1852
      %v1861 = vcombine.high %v1859, %v1859
      %v1862 = vcombine.high %v1702, %v1702
      %v1864 = vunpack.c.l.s4 1983009808
      %v1865 = vunpack.c.0.s8 %v1864
      %v1866 = vlaneseq
      %v1867 = vshrl.u32 %v1866, 7
      %v1868 = vsub.s32 %v1865, %v1867
      %v1869 = vrot.slane %v1702, %v1868
      %v1871 = vunpack.c.l.s4 1983009808
      %v1872 = vunpack.c.0.s8 %v1871
      %v1873 = vlaneseq
      %v1874 = vshrl.u32 %v1873, 7
      %v1875 = vsub.s32 %v1872, %v1874
      %v1876 = vrot.slane %v1862, %v1875
      %v1877 = vcombine.high %v1869, %v1869
      %v1878 = vcombine.high %v1876, %v1876
      %v1879 = vcombine.high %v1703, %v1703
      %v1881 = vunpack.c.l.s4 1983009808
      %v1882 = vunpack.c.0.s8 %v1881
      %v1883 = vlaneseq
      %v1884 = vshrl.u32 %v1883, 7
      %v1885 = vsub.s32 %v1882, %v1884
      %v1886 = vrot.slane %v1703, %v1885
      %v1888 = vunpack.c.l.s4 1983009808
      %v1889 = vunpack.c.0.s8 %v1888
      %v1890 = vlaneseq
      %v1891 = vshrl.u32 %v1890, 7
      %v1892 = vsub.s32 %v1889, %v1891
      %v1893 = vrot.slane %v1879, %v1892
      %v1894 = vcombine.high %v1886, %v1886
      %v1895 = vcombine.high %v1893, %v1893
      %v1896 = vcombine.high %v1704, %v1704
      %v1898 = vunpack.c.l.s4 1983009808
      %v1899 = vunpack.c.0.s8 %v1898
      %v1900 = vlaneseq
      %v1901 = vshrl.u32 %v1900, 7
      %v1902 = vsub.s32 %v1899, %v1901
      %v1903 = vrot.slane %v1704, %v1902
      %v1905 = vunpack.c.l.s4 1983009808
      %v1906 = vunpack.c.0.s8 %v1905
      %v1907 = vlaneseq
      %v1908 = vshrl.u32 %v1907, 7
      %v1909 = vsub.s32 %v1906, %v1908
      %v1910 = vrot.slane %v1896, %v1909
      %v1911 = vcombine.high %v1903, %v1903
      %v1912 = vcombine.high %v1910, %v1910
      %v1913 = vcombine.high %v1705, %v1705
      %v1915 = vunpack.c.l.s4 1983009808
      %v1916 = vunpack.c.0.s8 %v1915
      %v1917 = vlaneseq
      %v1918 = vshrl.u32 %v1917, 7
      %v1919 = vsub.s32 %v1916, %v1918
      %v1920 = vrot.slane %v1705, %v1919
      %v1922 = vunpack.c.l.s4 1983009808
      %v1923 = vunpack.c.0.s8 %v1922
      %v1924 = vlaneseq
      %v1925 = vshrl.u32 %v1924, 7
      %v1926 = vsub.s32 %v1923, %v1925
      %v1927 = vrot.slane %v1913, %v1926
      %v1928 = vcombine.high %v1920, %v1920
      %v1929 = vcombine.high %v1927, %v1927
      %v1930 = vcombine.high %v1706, %v1706
      %v1932 = vunpack.c.l.s4 1983009808
      %v1933 = vunpack.c.0.s8 %v1932
      %v1934 = vlaneseq
      %v1935 = vshrl.u32 %v1934, 7
      %v1936 = vsub.s32 %v1933, %v1935
      %v1937 = vrot.slane %v1706, %v1936
      %v1939 = vunpack.c.l.s4 1983009808
      %v1940 = vunpack.c.0.s8 %v1939
      %v1941 = vlaneseq
      %v1942 = vshrl.u32 %v1941, 7
      %v1943 = vsub.s32 %v1940, %v1942
      %v1944 = vrot.slane %v1930, %v1943
      %v1945 = vcombine.high %v1937, %v1937
      %v1946 = vcombine.high %v1944, %v1944
      %v1947 = vcombine.high %v1707, %v1707
      %v1949 = vunpack.c.l.s4 1983009808
      %v1950 = vunpack.c.0.s8 %v1949
      %v1951 = vlaneseq
      %v1952 = vshrl.u32 %v1951, 7
      %v1953 = vsub.s32 %v1950, %v1952
      %v1954 = vrot.slane %v1707, %v1953
      %v1956 = vunpack.c.l.s4 1983009808
      %v1957 = vunpack.c.0.s8 %v1956
      %v1958 = vlaneseq
      %v1959 = vshrl.u32 %v1958, 7
      %v1960 = vsub.s32 %v1957, %v1959
      %v1961 = vrot.slane %v1947, %v1960
      %v1962 = vcombine.high %v1954, %v1954
      %v1963 = vcombine.high %v1961, %v1961
      %v1964 = vcombine.high %v1708, %v1708
      %v1966 = vunpack.c.l.s4 1983009808
      %v1967 = vunpack.c.0.s8 %v1966
      %v1968 = vlaneseq
      %v1969 = vshrl.u32 %v1968, 7
      %v1970 = vsub.s32 %v1967, %v1969
      %v1971 = vrot.slane %v1708, %v1970
      %v1973 = vunpack.c.l.s4 1983009808
      %v1974 = vunpack.c.0.s8 %v1973
      %v1975 = vlaneseq
      %v1976 = vshrl.u32 %v1975, 7
      %v1977 = vsub.s32 %v1974, %v1976
      %v1978 = vrot.slane %v1964, %v1977
      %v1979 = vcombine.high %v1971, %v1971
      %v1980 = vcombine.high %v1978, %v1978
      %v1981 = vcombine.high %v1709, %v1709
      %v1983 = vunpack.c.l.s4 1983009808
      %v1984 = vunpack.c.0.s8 %v1983
      %v1985 = vlaneseq
      %v1986 = vshrl.u32 %v1985, 7
      %v1987 = vsub.s32 %v1984, %v1986
      %v1988 = vrot.slane %v1709, %v1987
      %v1990 = vunpack.c.l.s4 1983009808
      %v1991 = vunpack.c.0.s8 %v1990
      %v1992 = vlaneseq
      %v1993 = vshrl.u32 %v1992, 7
      %v1994 = vsub.s32 %v1991, %v1993
      %v1995 = vrot.slane %v1981, %v1994
      %v1996 = vcombine.high %v1988, %v1988
      %v1997 = vcombine.high %v1995, %v1995
      %v1998 = vcombine.high %v1710, %v1710
      %v2000 = vunpack.c.l.s4 1983009808
      %v2001 = vunpack.c.0.s8 %v2000
      %v2002 = vlaneseq
      %v2003 = vshrl.u32 %v2002, 7
      %v2004 = vsub.s32 %v2001, %v2003
      %v2005 = vrot.slane %v1710, %v2004
      %v2007 = vunpack.c.l.s4 1983009808
      %v2008 = vunpack.c.0.s8 %v2007
      %v2009 = vlaneseq
      %v2010 = vshrl.u32 %v2009, 7
      %v2011 = vsub.s32 %v2008, %v2010
      %v2012 = vrot.slane %v1998, %v2011
      %v2013 = vcombine.high %v2005, %v2005
      %v2014 = vcombine.high %v2012, %v2012
      %v2015 = vcombine.high %v1711, %v1711
      %v2017 = vunpack.c.l.s4 1983009808
      %v2018 = vunpack.c.0.s8 %v2017
      %v2019 = vlaneseq
      %v2020 = vshrl.u32 %v2019, 7
      %v2021 = vsub.s32 %v2018, %v2020
      %v2022 = vrot.slane %v1711, %v2021
      %v2024 = vunpack.c.l.s4 1983009808
      %v2025 = vunpack.c.0.s8 %v2024
      %v2026 = vlaneseq
      %v2027 = vshrl.u32 %v2026, 7
      %v2028 = vsub.s32 %v2025, %v2027
      %v2029 = vrot.slane %v2015, %v2028
      %v2030 = vcombine.high %v2022, %v2022
      %v2031 = vcombine.high %v2029, %v2029
      %v2032 = vcombine.high %v1712, %v1712
      %v2034 = vunpack.c.l.s4 1983009808
      %v2035 = vunpack.c.0.s8 %v2034
      %v2036 = vlaneseq
      %v2037 = vshrl.u32 %v2036, 7
      %v2038 = vsub.s32 %v2035, %v2037
      %v2039 = vrot.slane %v1712, %v2038
      %v2041 = vunpack.c.l.s4 1983009808
      %v2042 = vunpack.c.0.s8 %v2041
      %v2043 = vlaneseq
      %v2044 = vshrl.u32 %v2043, 7
      %v2045 = vsub.s32 %v2042, %v2044
      %v2046 = vrot.slane %v2032, %v2045
      %v2047 = vcombine.high %v2039, %v2039
      %v2048 = vcombine.high %v2046, %v2046
      %v2049 = vcombine.high %v1713, %v1713
      %v2051 = vunpack.c.l.s4 1983009808
      %v2052 = vunpack.c.0.s8 %v2051
      %v2053 = vlaneseq
      %v2054 = vshrl.u32 %v2053, 7
      %v2055 = vsub.s32 %v2052, %v2054
      %v2056 = vrot.slane %v1713, %v2055
      %v2058 = vunpack.c.l.s4 1983009808
      %v2059 = vunpack.c.0.s8 %v2058
      %v2060 = vlaneseq
      %v2061 = vshrl.u32 %v2060, 7
      %v2062 = vsub.s32 %v2059, %v2061
      %v2063 = vrot.slane %v2049, %v2062
      %v2064 = vcombine.high %v2056, %v2056
      %v2065 = vcombine.high %v2063, %v2063
      %v2066 = vcombine.high %v1714, %v1714
      %v2068 = vunpack.c.l.s4 1983009808
      %v2069 = vunpack.c.0.s8 %v2068
      %v2070 = vlaneseq
      %v2071 = vshrl.u32 %v2070, 7
      %v2072 = vsub.s32 %v2069, %v2071
      %v2073 = vrot.slane %v1714, %v2072
      %v2075 = vunpack.c.l.s4 1983009808
      %v2076 = vunpack.c.0.s8 %v2075
      %v2077 = vlaneseq
      %v2078 = vshrl.u32 %v2077, 7
      %v2079 = vsub.s32 %v2076, %v2078
      %v2080 = vrot.slane %v2066, %v2079
      %v2081 = vcombine.high %v2073, %v2073
      %v2082 = vcombine.high %v2080, %v2080
      %v2083 = vcombine.high %v1715, %v1715
      %v2085 = vunpack.c.l.s4 1983009808
      %v2086 = vunpack.c.0.s8 %v2085
      %v2087 = vlaneseq
      %v2088 = vshrl.u32 %v2087, 7
      %v2089 = vsub.s32 %v2086, %v2088
      %v2090 = vrot.slane %v1715, %v2089
      %v2092 = vunpack.c.l.s4 1983009808
      %v2093 = vunpack.c.0.s8 %v2092
      %v2094 = vlaneseq
      %v2095 = vshrl.u32 %v2094, 7
      %v2096 = vsub.s32 %v2093, %v2095
      %v2097 = vrot.slane %v2083, %v2096
      %v2098 = vcombine.high %v2090, %v2090
      %v2099 = vcombine.high %v2097, %v2097
      %v2100 = vcombine.high %v1716, %v1716
      %v2102 = vunpack.c.l.s4 1983009808
      %v2103 = vunpack.c.0.s8 %v2102
      %v2104 = vlaneseq
      %v2105 = vshrl.u32 %v2104, 7
      %v2106 = vsub.s32 %v2103, %v2105
      %v2107 = vrot.slane %v1716, %v2106
      %v2109 = vunpack.c.l.s4 1983009808
      %v2110 = vunpack.c.0.s8 %v2109
      %v2111 = vlaneseq
      %v2112 = vshrl.u32 %v2111, 7
      %v2113 = vsub.s32 %v2110, %v2112
      %v2114 = vrot.slane %v2100, %v2113
      %v2115 = vcombine.high %v2107, %v2107
      %v2116 = vcombine.high %v2114, %v2114
      %v2117 = vcombine.high %v1717, %v1717
      %v2119 = vunpack.c.l.s4 1983009808
      %v2120 = vunpack.c.0.s8 %v2119
      %v2121 = vlaneseq
      %v2122 = vshrl.u32 %v2121, 7
      %v2123 = vsub.s32 %v2120, %v2122
      %v2124 = vrot.slane %v1717, %v2123
      %v2126 = vunpack.c.l.s4 1983009808
      %v2127 = vunpack.c.0.s8 %v2126
      %v2128 = vlaneseq
      %v2129 = vshrl.u32 %v2128, 7
      %v2130 = vsub.s32 %v2127, %v2129
      %v2131 = vrot.slane %v2117, %v2130
      %v2132 = vcombine.high %v2124, %v2124
      %v2133 = vcombine.high %v2131, %v2131
      %v2134 = vcombine.high %v1718, %v1718
      %v2136 = vunpack.c.l.s4 1983009808
      %v2137 = vunpack.c.0.s8 %v2136
      %v2138 = vlaneseq
      %v2139 = vshrl.u32 %v2138, 7
      %v2140 = vsub.s32 %v2137, %v2139
      %v2141 = vrot.slane %v1718, %v2140
      %v2143 = vunpack.c.l.s4 1983009808
      %v2144 = vunpack.c.0.s8 %v2143
      %v2145 = vlaneseq
      %v2146 = vshrl.u32 %v2145, 7
      %v2147 = vsub.s32 %v2144, %v2146
      %v2148 = vrot.slane %v2134, %v2147
      %v2149 = vcombine.high %v2141, %v2141
      %v2150 = vcombine.high %v2148, %v2148
      %v2151 = vcombine.high %v1719, %v1719
      %v2153 = vunpack.c.l.s4 1983009808
      %v2154 = vunpack.c.0.s8 %v2153
      %v2155 = vlaneseq
      %v2156 = vshrl.u32 %v2155, 7
      %v2157 = vsub.s32 %v2154, %v2156
      %v2158 = vrot.slane %v1719, %v2157
      %v2160 = vunpack.c.l.s4 1983009808
      %v2161 = vunpack.c.0.s8 %v2160
      %v2162 = vlaneseq
      %v2163 = vshrl.u32 %v2162, 7
      %v2164 = vsub.s32 %v2161, %v2163
      %v2165 = vrot.slane %v2151, %v2164
      %v2166 = vcombine.high %v2158, %v2158
      %v2167 = vcombine.high %v2165, %v2165
      %v2168 = vcombine.high %v1720, %v1720
      %v2170 = vunpack.c.l.s4 1983009808
      %v2171 = vunpack.c.0.s8 %v2170
      %v2172 = vlaneseq
      %v2173 = vshrl.u32 %v2172, 7
      %v2174 = vsub.s32 %v2171, %v2173
      %v2175 = vrot.slane %v1720, %v2174
      %v2177 = vunpack.c.l.s4 1983009808
      %v2178 = vunpack.c.0.s8 %v2177
      %v2179 = vlaneseq
      %v2180 = vshrl.u32 %v2179, 7
      %v2181 = vsub.s32 %v2178, %v2180
      %v2182 = vrot.slane %v2168, %v2181
      %v2183 = vcombine.high %v2175, %v2175
      %v2184 = vcombine.high %v2182, %v2182
      %v2185 = vcombine.high %v1721, %v1721
      %v2187 = vunpack.c.l.s4 1983009808
      %v2188 = vunpack.c.0.s8 %v2187
      %v2189 = vlaneseq
      %v2190 = vshrl.u32 %v2189, 7
      %v2191 = vsub.s32 %v2188, %v2190
      %v2192 = vrot.slane %v1721, %v2191
      %v2194 = vunpack.c.l.s4 1983009808
      %v2195 = vunpack.c.0.s8 %v2194
      %v2196 = vlaneseq
      %v2197 = vshrl.u32 %v2196, 7
      %v2198 = vsub.s32 %v2195, %v2197
      %v2199 = vrot.slane %v2185, %v2198
      %v2200 = vcombine.high %v2192, %v2192
      %v2201 = vcombine.high %v2199, %v2199
      %v2202 = vcombine.high %v1722, %v1722
      %v2204 = vunpack.c.l.s4 1983009808
      %v2205 = vunpack.c.0.s8 %v2204
      %v2206 = vlaneseq
      %v2207 = vshrl.u32 %v2206, 7
      %v2208 = vsub.s32 %v2205, %v2207
      %v2209 = vrot.slane %v1722, %v2208
      %v2211 = vunpack.c.l.s4 1983009808
      %v2212 = vunpack.c.0.s8 %v2211
      %v2213 = vlaneseq
      %v2214 = vshrl.u32 %v2213, 7
      %v2215 = vsub.s32 %v2212, %v2214
      %v2216 = vrot.slane %v2202, %v2215
      %v2217 = vcombine.high %v2209, %v2209
      %v2218 = vcombine.high %v2216, %v2216
      %v2219 = vcombine.high %v1723, %v1723
      %v2221 = vunpack.c.l.s4 1983009808
      %v2222 = vunpack.c.0.s8 %v2221
      %v2223 = vlaneseq
      %v2224 = vshrl.u32 %v2223, 7
      %v2225 = vsub.s32 %v2222, %v2224
      %v2226 = vrot.slane %v1723, %v2225
      %v2228 = vunpack.c.l.s4 1983009808
      %v2229 = vunpack.c.0.s8 %v2228
      %v2230 = vlaneseq
      %v2231 = vshrl.u32 %v2230, 7
      %v2232 = vsub.s32 %v2229, %v2231
      %v2233 = vrot.slane %v2219, %v2232
      %v2234 = vcombine.high %v2226, %v2226
      %v2235 = vcombine.high %v2233, %v2233
      %v2236 = vcombine.high %v1724, %v1724
      %v2238 = vunpack.c.l.s4 1983009808
      %v2239 = vunpack.c.0.s8 %v2238
      %v2240 = vlaneseq
      %v2241 = vshrl.u32 %v2240, 7
      %v2242 = vsub.s32 %v2239, %v2241
      %v2243 = vrot.slane %v1724, %v2242
      %v2245 = vunpack.c.l.s4 1983009808
      %v2246 = vunpack.c.0.s8 %v2245
      %v2247 = vlaneseq
      %v2248 = vshrl.u32 %v2247, 7
      %v2249 = vsub.s32 %v2246, %v2248
      %v2250 = vrot.slane %v2236, %v2249
      %v2251 = vcombine.high %v2243, %v2243
      %v2252 = vcombine.high %v2250, %v2250
      %v2253 = vcombine.high %v1725, %v1725
      %v2255 = vunpack.c.l.s4 1983009808
      %v2256 = vunpack.c.0.s8 %v2255
      %v2257 = vlaneseq
      %v2258 = vshrl.u32 %v2257, 7
      %v2259 = vsub.s32 %v2256, %v2258
      %v2260 = vrot.slane %v1725, %v2259
      %v2262 = vunpack.c.l.s4 1983009808
      %v2263 = vunpack.c.0.s8 %v2262
      %v2264 = vlaneseq
      %v2265 = vshrl.u32 %v2264, 7
      %v2266 = vsub.s32 %v2263, %v2265
      %v2267 = vrot.slane %v2253, %v2266
      %v2268 = vcombine.high %v2260, %v2260
      %v2269 = vcombine.high %v2267, %v2267
      %v2270 = vcombine.high %v1726, %v1726
      %v2272 = vunpack.c.l.s4 1983009808
      %v2273 = vunpack.c.0.s8 %v2272
      %v2274 = vlaneseq
      %v2275 = vshrl.u32 %v2274, 7
      %v2276 = vsub.s32 %v2273, %v2275
      %v2277 = vrot.slane %v1726, %v2276
      %v2279 = vunpack.c.l.s4 1983009808
      %v2280 = vunpack.c.0.s8 %v2279
      %v2281 = vlaneseq
      %v2282 = vshrl.u32 %v2281, 7
      %v2283 = vsub.s32 %v2280, %v2282
      %v2284 = vrot.slane %v2270, %v2283
      %v2285 = vcombine.high %v2277, %v2277
      %v2286 = vcombine.high %v2284, %v2284
      %v2287 = vcombine.high %v1727, %v1727
      %v2289 = vunpack.c.l.s4 1983009808
      %v2290 = vunpack.c.0.s8 %v2289
      %v2291 = vlaneseq
      %v2292 = vshrl.u32 %v2291, 7
      %v2293 = vsub.s32 %v2290, %v2292
      %v2294 = vrot.slane %v1727, %v2293
      %v2296 = vunpack.c.l.s4 1983009808
      %v2297 = vunpack.c.0.s8 %v2296
      %v2298 = vlaneseq
      %v2299 = vshrl.u32 %v2298, 7
      %v2300 = vsub.s32 %v2297, %v2299
      %v2301 = vrot.slane %v2287, %v2300
      %v2302 = vcombine.high %v2294, %v2294
      %v2303 = vcombine.high %v2301, %v2301
      %v2432 = vrot.slane %v1767, 7
      %v2433 = vrot.slane %v2432, 2
      %v2434 = vrot.slane %v1775, 7
      %v2435 = vrot.slane %v2434, 2
      %v2436 = vrot.slane %v1774, 7
      %v2437 = vrot.slane %v2436, 2
      %v2438 = vrot.slane %v1776, 7
      %v2439 = vrot.slane %v2438, 2
      %v2440 = vrot.slane %v1784, 7
      %v2441 = vrot.slane %v2440, 2
      %v2442 = vrot.slane %v1792, 7
      %v2443 = vrot.slane %v2442, 2
      %v2444 = vrot.slane %v1791, 7
      %v2445 = vrot.slane %v2444, 2
      %v2446 = vrot.slane %v1793, 7
      %v2447 = vrot.slane %v2446, 2
      %v2448 = vrot.slane %v1801, 7
      %v2449 = vrot.slane %v2448, 2
      %v2450 = vrot.slane %v1809, 7
      %v2451 = vrot.slane %v2450, 2
      %v2452 = vrot.slane %v1808, 7
      %v2453 = vrot.slane %v2452, 2
      %v2454 = vrot.slane %v1810, 7
      %v2455 = vrot.slane %v2454, 2
      %v2456 = vrot.slane %v1818, 7
      %v2457 = vrot.slane %v2456, 2
      %v2458 = vrot.slane %v1826, 7
      %v2459 = vrot.slane %v2458, 2
      %v2460 = vrot.slane %v1825, 7
      %v2461 = vrot.slane %v2460, 2
      %v2462 = vrot.slane %v1827, 7
      %v2463 = vrot.slane %v2462, 2
      %v2464 = vrot.slane %v1835, 7
      %v2465 = vrot.slane %v2464, 2
      %v2466 = vrot.slane %v1843, 7
      %v2467 = vrot.slane %v2466, 2
      %v2468 = vrot.slane %v1842, 7
      %v2469 = vrot.slane %v2468, 2
      %v2470 = vrot.slane %v1844, 7
      %v2471 = vrot.slane %v2470, 2
      %v2472 = vrot.slane %v1852, 7
      %v2473 = vrot.slane %v2472, 2
      %v2474 = vrot.slane %v1860, 7
      %v2475 = vrot.slane %v2474, 2
      %v2476 = vrot.slane %v1859, 7
      %v2477 = vrot.slane %v2476, 2
      %v2478 = vrot.slane %v1861, 7
      %v2479 = vrot.slane %v2478, 2
      %v2480 = vrot.slane %v1869, 7
      %v2481 = vrot.slane %v2480, 2
      %v2482 = vrot.slane %v1877, 7
      %v2483 = vrot.slane %v2482, 2
      %v2484 = vrot.slane %v1876, 7
      %v2485 = vrot.slane %v2484, 2
      %v2486 = vrot.slane %v1878, 7
      %v2487 = vrot.slane %v2486, 2
      %v2488 = vrot.slane %v1886, 7
      %v2489 = vrot.slane %v2488, 2
      %v2490 = vrot.slane %v1894, 7
      %v2491 = vrot.slane %v2490, 2
      %v2492 = vrot.slane %v1893, 7
      %v2493 = vrot.slane %v2492, 2
      %v2494 = vrot.slane %v1895, 7
      %v2495 = vrot.slane %v2494, 2
      %v2496 = vrot.slane %v1903, 7
      %v2497 = vrot.slane %v2496, 2
      %v2498 = vrot.slane %v1911, 7
      %v2499 = vrot.slane %v2498, 2
      %v2500 = vrot.slane %v1910, 7
      %v2501 = vrot.slane %v2500, 2
      %v2502 = vrot.slane %v1912, 7
      %v2503 = vrot.slane %v2502, 2
      %v2504 = vrot.slane %v1920, 7
      %v2505 = vrot.slane %v2504, 2
      %v2506 = vrot.slane %v1928, 7
      %v2507 = vrot.slane %v2506, 2
      %v2508 = vrot.slane %v1927, 7
      %v2509 = vrot.slane %v2508, 2
      %v2510 = vrot.slane %v1929, 7
      %v2511 = vrot.slane %v2510, 2
      %v2512 = vrot.slane %v1937, 7
      %v2513 = vrot.slane %v2512, 2
      %v2514 = vrot.slane %v1945, 7
      %v2515 = vrot.slane %v2514, 2
      %v2516 = vrot.slane %v1944, 7
      %v2517 = vrot.slane %v2516, 2
      %v2518 = vrot.slane %v1946, 7
      %v2519 = vrot.slane %v2518, 2
      %v2520 = vrot.slane %v1954, 7
      %v2521 = vrot.slane %v2520, 2
      %v2522 = vrot.slane %v1962, 7
      %v2523 = vrot.slane %v2522, 2
      %v2524 = vrot.slane %v1961, 7
      %v2525 = vrot.slane %v2524, 2
      %v2526 = vrot.slane %v1963, 7
      %v2527 = vrot.slane %v2526, 2
      %v2528 = vrot.slane %v1971, 7
      %v2529 = vrot.slane %v2528, 2
      %v2530 = vrot.slane %v1979, 7
      %v2531 = vrot.slane %v2530, 2
      %v2532 = vrot.slane %v1978, 7
      %v2533 = vrot.slane %v2532, 2
      %v2534 = vrot.slane %v1980, 7
      %v2535 = vrot.slane %v2534, 2
      %v2536 = vrot.slane %v1988, 7
      %v2537 = vrot.slane %v2536, 2
      %v2538 = vrot.slane %v1996, 7
      %v2539 = vrot.slane %v2538, 2
      %v2540 = vrot.slane %v1995, 7
      %v2541 = vrot.slane %v2540, 2
      %v2542 = vrot.slane %v1997, 7
      %v2543 = vrot.slane %v2542, 2
      %v2544 = vrot.slane %v2005, 7
      %v2545 = vrot.slane %v2544, 2
      %v2546 = vrot.slane %v2013, 7
      %v2547 = vrot.slane %v2546, 2
      %v2548 = vrot.slane %v2012, 7
      %v2549 = vrot.slane %v2548, 2
      %v2550 = vrot.slane %v2014, 7
      %v2551 = vrot.slane %v2550, 2
      %v2552 = vrot.slane %v2022, 7
      %v2553 = vrot.slane %v2552, 2
      %v2554 = vrot.slane %v2030, 7
      %v2555 = vrot.slane %v2554, 2
      %v2556 = vrot.slane %v2029, 7
      %v2557 = vrot.slane %v2556, 2
      %v2558 = vrot.slane %v2031, 7
      %v2559 = vrot.slane %v2558, 2
      %v2560 = vrot.slane %v2039, 7
      %v2561 = vrot.slane %v2560, 2
      %v2562 = vrot.slane %v2047, 7
      %v2563 = vrot.slane %v2562, 2
      %v2564 = vrot.slane %v2046, 7
      %v2565 = vrot.slane %v2564, 2
      %v2566 = vrot.slane %v2048, 7
      %v2567 = vrot.slane %v2566, 2
      %v2568 = vrot.slane %v2056, 7
      %v2569 = vrot.slane %v2568, 2
      %v2570 = vrot.slane %v2064, 7
      %v2571 = vrot.slane %v2570, 2
      %v2572 = vrot.slane %v2063, 7
      %v2573 = vrot.slane %v2572, 2
      %v2574 = vrot.slane %v2065, 7
      %v2575 = vrot.slane %v2574, 2
      %v2576 = vrot.slane %v2073, 7
      %v2577 = vrot.slane %v2576, 2
      %v2578 = vrot.slane %v2081, 7
      %v2579 = vrot.slane %v2578, 2
      %v2580 = vrot.slane %v2080, 7
      %v2581 = vrot.slane %v2580, 2
      %v2582 = vrot.slane %v2082, 7
      %v2583 = vrot.slane %v2582, 2
      %v2584 = vrot.slane %v2090, 7
      %v2585 = vrot.slane %v2584, 2
      %v2586 = vrot.slane %v2098, 7
      %v2587 = vrot.slane %v2586, 2
      %v2588 = vrot.slane %v2097, 7
      %v2589 = vrot.slane %v2588, 2
      %v2590 = vrot.slane %v2099, 7
      %v2591 = vrot.slane %v2590, 2
      %v2592 = vrot.slane %v2107, 7
      %v2593 = vrot.slane %v2592, 2
      %v2594 = vrot.slane %v2115, 7
      %v2595 = vrot.slane %v2594, 2
      %v2596 = vrot.slane %v2114, 7
      %v2597 = vrot.slane %v2596, 2
      %v2598 = vrot.slane %v2116, 7
      %v2599 = vrot.slane %v2598, 2
      %v2600 = vrot.slane %v2124, 7
      %v2601 = vrot.slane %v2600, 2
      %v2602 = vrot.slane %v2132, 7
      %v2603 = vrot.slane %v2602, 2
      %v2604 = vrot.slane %v2131, 7
      %v2605 = vrot.slane %v2604, 2
      %v2606 = vrot.slane %v2133, 7
      %v2607 = vrot.slane %v2606, 2
      %v2608 = vrot.slane %v2141, 7
      %v2609 = vrot.slane %v2608, 2
      %v2610 = vrot.slane %v2149, 7
      %v2611 = vrot.slane %v2610, 2
      %v2612 = vrot.slane %v2148, 7
      %v2613 = vrot.slane %v2612, 2
      %v2614 = vrot.slane %v2150, 7
      %v2615 = vrot.slane %v2614, 2
      %v2616 = vrot.slane %v2158, 7
      %v2617 = vrot.slane %v2616, 2
      %v2618 = vrot.slane %v2166, 7
      %v2619 = vrot.slane %v2618, 2
      %v2620 = vrot.slane %v2165, 7
      %v2621 = vrot.slane %v2620, 2
      %v2622 = vrot.slane %v2167, 7
      %v2623 = vrot.slane %v2622, 2
      %v2624 = vrot.slane %v2175, 7
      %v2625 = vrot.slane %v2624, 2
      %v2626 = vrot.slane %v2183, 7
      %v2627 = vrot.slane %v2626, 2
      %v2628 = vrot.slane %v2182, 7
      %v2629 = vrot.slane %v2628, 2
      %v2630 = vrot.slane %v2184, 7
      %v2631 = vrot.slane %v2630, 2
      %v2632 = vrot.slane %v2192, 7
      %v2633 = vrot.slane %v2632, 2
      %v2634 = vrot.slane %v2200, 7
      %v2635 = vrot.slane %v2634, 2
      %v2636 = vrot.slane %v2199, 7
      %v2637 = vrot.slane %v2636, 2
      %v2638 = vrot.slane %v2201, 7
      %v2639 = vrot.slane %v2638, 2
      %v2640 = vrot.slane %v2209, 7
      %v2641 = vrot.slane %v2640, 2
      %v2642 = vrot.slane %v2217, 7
      %v2643 = vrot.slane %v2642, 2
      %v2644 = vrot.slane %v2216, 7
      %v2645 = vrot.slane %v2644, 2
      %v2646 = vrot.slane %v2218, 7
      %v2647 = vrot.slane %v2646, 2
      %v2648 = vrot.slane %v2226, 7
      %v2649 = vrot.slane %v2648, 2
      %v2650 = vrot.slane %v2234, 7
      %v2651 = vrot.slane %v2650, 2
      %v2652 = vrot.slane %v2233, 7
      %v2653 = vrot.slane %v2652, 2
      %v2654 = vrot.slane %v2235, 7
      %v2655 = vrot.slane %v2654, 2
      %v2656 = vrot.slane %v2243, 7
      %v2657 = vrot.slane %v2656, 2
      %v2658 = vrot.slane %v2251, 7
      %v2659 = vrot.slane %v2658, 2
      %v2660 = vrot.slane %v2250, 7
      %v2661 = vrot.slane %v2660, 2
      %v2662 = vrot.slane %v2252, 7
      %v2663 = vrot.slane %v2662, 2
      %v2664 = vrot.slane %v2260, 7
      %v2665 = vrot.slane %v2664, 2
      %v2666 = vrot.slane %v2268, 7
      %v2667 = vrot.slane %v2666, 2
      %v2668 = vrot.slane %v2267, 7
      %v2669 = vrot.slane %v2668, 2
      %v2670 = vrot.slane %v2269, 7
      %v2671 = vrot.slane %v2670, 2
      %v2672 = vrot.slane %v2277, 7
      %v2673 = vrot.slane %v2672, 2
      %v2674 = vrot.slane %v2285, 7
      %v2675 = vrot.slane %v2674, 2
      %v2676 = vrot.slane %v2284, 7
      %v2677 = vrot.slane %v2676, 2
      %v2678 = vrot.slane %v2286, 7
      %v2679 = vrot.slane %v2678, 2
      %v2680 = vrot.slane %v2294, 7
      %v2681 = vrot.slane %v2680, 2
      %v2682 = vrot.slane %v2302, 7
      %v2683 = vrot.slane %v2682, 2
      %v2684 = vrot.slane %v2301, 7
      %v2685 = vrot.slane %v2684, 2
      %v2686 = vrot.slane %v2303, 7
      %v2687 = vrot.slane %v2686, 2
      %v2816 = vmax.f32 %v1767, %v2433
      %v2817 = vmax.f32 %v1775, %v2435
      %v2818 = vmax.f32 %v1774, %v2437
      %v2819 = vmax.f32 %v1776, %v2439
      %v2820 = vmax.f32 %v1784, %v2441
      %v2821 = vmax.f32 %v1792, %v2443
      %v2822 = vmax.f32 %v1791, %v2445
      %v2823 = vmax.f32 %v1793, %v2447
      %v2824 = vmax.f32 %v1801, %v2449
      %v2825 = vmax.f32 %v1809, %v2451
      %v2826 = vmax.f32 %v1808, %v2453
      %v2827 = vmax.f32 %v1810, %v2455
      %v2828 = vmax.f32 %v1818, %v2457
      %v2829 = vmax.f32 %v1826, %v2459
      %v2830 = vmax.f32 %v1825, %v2461
      %v2831 = vmax.f32 %v1827, %v2463
      %v2832 = vmax.f32 %v1835, %v2465
      %v2833 = vmax.f32 %v1843, %v2467
      %v2834 = vmax.f32 %v1842, %v2469
      %v2835 = vmax.f32 %v1844, %v2471
      %v2836 = vmax.f32 %v1852, %v2473
      %v2837 = vmax.f32 %v1860, %v2475
      %v2838 = vmax.f32 %v1859, %v2477
      %v2839 = vmax.f32 %v1861, %v2479
      %v2840 = vmax.f32 %v1869, %v2481
      %v2841 = vmax.f32 %v1877, %v2483
      %v2842 = vmax.f32 %v1876, %v2485
      %v2843 = vmax.f32 %v1878, %v2487
      %v2844 = vmax.f32 %v1886, %v2489
      %v2845 = vmax.f32 %v1894, %v2491
      %v2846 = vmax.f32 %v1893, %v2493
      %v2847 = vmax.f32 %v1895, %v2495
      %v2848 = vmax.f32 %v1903, %v2497
      %v2849 = vmax.f32 %v1911, %v2499
      %v2850 = vmax.f32 %v1910, %v2501
      %v2851 = vmax.f32 %v1912, %v2503
      %v2852 = vmax.f32 %v1920, %v2505
      %v2853 = vmax.f32 %v1928, %v2507
      %v2854 = vmax.f32 %v1927, %v2509
      %v2855 = vmax.f32 %v1929, %v2511
      %v2856 = vmax.f32 %v1937, %v2513
      %v2857 = vmax.f32 %v1945, %v2515
      %v2858 = vmax.f32 %v1944, %v2517
      %v2859 = vmax.f32 %v1946, %v2519
      %v2860 = vmax.f32 %v1954, %v2521
      %v2861 = vmax.f32 %v1962, %v2523
      %v2862 = vmax.f32 %v1961, %v2525
      %v2863 = vmax.f32 %v1963, %v2527
      %v2864 = vmax.f32 %v1971, %v2529
      %v2865 = vmax.f32 %v1979, %v2531
      %v2866 = vmax.f32 %v1978, %v2533
      %v2867 = vmax.f32 %v1980, %v2535
      %v2868 = vmax.f32 %v1988, %v2537
      %v2869 = vmax.f32 %v1996, %v2539
      %v2870 = vmax.f32 %v1995, %v2541
      %v2871 = vmax.f32 %v1997, %v2543
      %v2872 = vmax.f32 %v2005, %v2545
      %v2873 = vmax.f32 %v2013, %v2547
      %v2874 = vmax.f32 %v2012, %v2549
      %v2875 = vmax.f32 %v2014, %v2551
      %v2876 = vmax.f32 %v2022, %v2553
      %v2877 = vmax.f32 %v2030, %v2555
      %v2878 = vmax.f32 %v2029, %v2557
      %v2879 = vmax.f32 %v2031, %v2559
      %v2880 = vmax.f32 %v2039, %v2561
      %v2881 = vmax.f32 %v2047, %v2563
      %v2882 = vmax.f32 %v2046, %v2565
      %v2883 = vmax.f32 %v2048, %v2567
      %v2884 = vmax.f32 %v2056, %v2569
      %v2885 = vmax.f32 %v2064, %v2571
      %v2886 = vmax.f32 %v2063, %v2573
      %v2887 = vmax.f32 %v2065, %v2575
      %v2888 = vmax.f32 %v2073, %v2577
      %v2889 = vmax.f32 %v2081, %v2579
      %v2890 = vmax.f32 %v2080, %v2581
      %v2891 = vmax.f32 %v2082, %v2583
      %v2892 = vmax.f32 %v2090, %v2585
      %v2893 = vmax.f32 %v2098, %v2587
      %v2894 = vmax.f32 %v2097, %v2589
      %v2895 = vmax.f32 %v2099, %v2591
      %v2896 = vmax.f32 %v2107, %v2593
      %v2897 = vmax.f32 %v2115, %v2595
      %v2898 = vmax.f32 %v2114, %v2597
      %v2899 = vmax.f32 %v2116, %v2599
      %v2900 = vmax.f32 %v2124, %v2601
      %v2901 = vmax.f32 %v2132, %v2603
      %v2902 = vmax.f32 %v2131, %v2605
      %v2903 = vmax.f32 %v2133, %v2607
      %v2904 = vmax.f32 %v2141, %v2609
      %v2905 = vmax.f32 %v2149, %v2611
      %v2906 = vmax.f32 %v2148, %v2613
      %v2907 = vmax.f32 %v2150, %v2615
      %v2908 = vmax.f32 %v2158, %v2617
      %v2909 = vmax.f32 %v2166, %v2619
      %v2910 = vmax.f32 %v2165, %v2621
      %v2911 = vmax.f32 %v2167, %v2623
      %v2912 = vmax.f32 %v2175, %v2625
      %v2913 = vmax.f32 %v2183, %v2627
      %v2914 = vmax.f32 %v2182, %v2629
      %v2915 = vmax.f32 %v2184, %v2631
      %v2916 = vmax.f32 %v2192, %v2633
      %v2917 = vmax.f32 %v2200, %v2635
      %v2918 = vmax.f32 %v2199, %v2637
      %v2919 = vmax.f32 %v2201, %v2639
      %v2920 = vmax.f32 %v2209, %v2641
      %v2921 = vmax.f32 %v2217, %v2643
      %v2922 = vmax.f32 %v2216, %v2645
      %v2923 = vmax.f32 %v2218, %v2647
      %v2924 = vmax.f32 %v2226, %v2649
      %v2925 = vmax.f32 %v2234, %v2651
      %v2926 = vmax.f32 %v2233, %v2653
      %v2927 = vmax.f32 %v2235, %v2655
      %v2928 = vmax.f32 %v2243, %v2657
      %v2929 = vmax.f32 %v2251, %v2659
      %v2930 = vmax.f32 %v2250, %v2661
      %v2931 = vmax.f32 %v2252, %v2663
      %v2932 = vmax.f32 %v2260, %v2665
      %v2933 = vmax.f32 %v2268, %v2667
      %v2934 = vmax.f32 %v2267, %v2669
      %v2935 = vmax.f32 %v2269, %v2671
      %v2936 = vmax.f32 %v2277, %v2673
      %v2937 = vmax.f32 %v2285, %v2675
      %v2938 = vmax.f32 %v2284, %v2677
      %v2939 = vmax.f32 %v2286, %v2679
      %v2940 = vmax.f32 %v2294, %v2681
      %v2941 = vmax.f32 %v2302, %v2683
      %v2942 = vmax.f32 %v2301, %v2685
      %v2943 = vmax.f32 %v2303, %v2687
      %v2944 = vmax.f32 %v2816, %v2824
      %v2945 = vmax.f32 %v2817, %v2825
      %v2946 = vmax.f32 %v2818, %v2826
      %v2947 = vmax.f32 %v2819, %v2827
      %v2948 = vmax.f32 %v2820, %v2828
      %v2949 = vmax.f32 %v2821, %v2829
      %v2950 = vmax.f32 %v2822, %v2830
      %v2951 = vmax.f32 %v2823, %v2831
      %v2952 = vmax.f32 %v2832, %v2840
      %v2953 = vmax.f32 %v2833, %v2841
      %v2954 = vmax.f32 %v2834, %v2842
      %v2955 = vmax.f32 %v2835, %v2843
      %v2956 = vmax.f32 %v2836, %v2844
      %v2957 = vmax.f32 %v2837, %v2845
      %v2958 = vmax.f32 %v2838, %v2846
      %v2959 = vmax.f32 %v2839, %v2847
      %v2960 = vmax.f32 %v2848, %v2856
      %v2961 = vmax.f32 %v2849, %v2857
      %v2962 = vmax.f32 %v2850, %v2858
      %v2963 = vmax.f32 %v2851, %v2859
      %v2964 = vmax.f32 %v2852, %v2860
      %v2965 = vmax.f32 %v2853, %v2861
      %v2966 = vmax.f32 %v2854, %v2862
      %v2967 = vmax.f32 %v2855, %v2863
      %v2968 = vmax.f32 %v2864, %v2872
      %v2969 = vmax.f32 %v2865, %v2873
      %v2970 = vmax.f32 %v2866, %v2874
      %v2971 = vmax.f32 %v2867, %v2875
      %v2972 = vmax.f32 %v2868, %v2876
      %v2973 = vmax.f32 %v2869, %v2877
      %v2974 = vmax.f32 %v2870, %v2878
      %v2975 = vmax.f32 %v2871, %v2879
      %v2976 = vmax.f32 %v2880, %v2888
      %v2977 = vmax.f32 %v2881, %v2889
      %v2978 = vmax.f32 %v2882, %v2890
      %v2979 = vmax.f32 %v2883, %v2891
      %v2980 = vmax.f32 %v2884, %v2892
      %v2981 = vmax.f32 %v2885, %v2893
      %v2982 = vmax.f32 %v2886, %v2894
      %v2983 = vmax.f32 %v2887, %v2895
      %v2984 = vmax.f32 %v2896, %v2904
      %v2985 = vmax.f32 %v2897, %v2905
      %v2986 = vmax.f32 %v2898, %v2906
      %v2987 = vmax.f32 %v2899, %v2907
      %v2988 = vmax.f32 %v2900, %v2908
      %v2989 = vmax.f32 %v2901, %v2909
      %v2990 = vmax.f32 %v2902, %v2910
      %v2991 = vmax.f32 %v2903, %v2911
      %v2992 = vmax.f32 %v2912, %v2920
      %v2993 = vmax.f32 %v2913, %v2921
      %v2994 = vmax.f32 %v2914, %v2922
      %v2995 = vmax.f32 %v2915, %v2923
      %v2996 = vmax.f32 %v2916, %v2924
      %v2997 = vmax.f32 %v2917, %v2925
      %v2998 = vmax.f32 %v2918, %v2926
      %v2999 = vmax.f32 %v2919, %v2927
      %v3000 = vmax.f32 %v2928, %v2936
      %v3001 = vmax.f32 %v2929, %v2937
      %v3002 = vmax.f32 %v2930, %v2938
      %v3003 = vmax.f32 %v2931, %v2939
      %v3004 = vmax.f32 %v2932, %v2940
      %v3005 = vmax.f32 %v2933, %v2941
      %v3006 = vmax.f32 %v2934, %v2942
      %v3007 = vmax.f32 %v2935, %v2943
      %v3008 = vpack.c.bf16 %v2944, %v2944
      %v3009 = vpack.c.bf16 %v2945, %v2945
      %v3010 = vpack.c.bf16 %v2946, %v2946
      %v3011 = vpack.c.bf16 %v2947, %v2947
      %v3012 = vpack.c.bf16 %v2948, %v2948
      %v3013 = vpack.c.bf16 %v2949, %v2949
      %v3014 = vpack.c.bf16 %v2950, %v2950
      %v3015 = vpack.c.bf16 %v2951, %v2951
      %v3016 = vpack.c.bf16 %v2952, %v2952
      %v3017 = vpack.c.bf16 %v2953, %v2953
      %v3018 = vpack.c.bf16 %v2954, %v2954
      %v3019 = vpack.c.bf16 %v2955, %v2955
      %v3020 = vpack.c.bf16 %v2956, %v2956
      %v3021 = vpack.c.bf16 %v2957, %v2957
      %v3022 = vpack.c.bf16 %v2958, %v2958
      %v3023 = vpack.c.bf16 %v2959, %v2959
      %v3024 = vpack.c.bf16 %v2960, %v2960
      %v3025 = vpack.c.bf16 %v2961, %v2961
      %v3026 = vpack.c.bf16 %v2962, %v2962
      %v3027 = vpack.c.bf16 %v2963, %v2963
      %v3028 = vpack.c.bf16 %v2964, %v2964
      %v3029 = vpack.c.bf16 %v2965, %v2965
      %v3030 = vpack.c.bf16 %v2966, %v2966
      %v3031 = vpack.c.bf16 %v2967, %v2967
      %v3032 = vpack.c.bf16 %v2968, %v2968
      %v3033 = vpack.c.bf16 %v2969, %v2969
      %v3034 = vpack.c.bf16 %v2970, %v2970
      %v3035 = vpack.c.bf16 %v2971, %v2971
      %v3036 = vpack.c.bf16 %v2972, %v2972
      %v3037 = vpack.c.bf16 %v2973, %v2973
      %v3038 = vpack.c.bf16 %v2974, %v2974
      %v3039 = vpack.c.bf16 %v2975, %v2975
      %v3040 = vpack.c.bf16 %v2976, %v2976
      %v3041 = vpack.c.bf16 %v2977, %v2977
      %v3042 = vpack.c.bf16 %v2978, %v2978
      %v3043 = vpack.c.bf16 %v2979, %v2979
      %v3044 = vpack.c.bf16 %v2980, %v2980
      %v3045 = vpack.c.bf16 %v2981, %v2981
      %v3046 = vpack.c.bf16 %v2982, %v2982
      %v3047 = vpack.c.bf16 %v2983, %v2983
      %v3048 = vpack.c.bf16 %v2984, %v2984
      %v3049 = vpack.c.bf16 %v2985, %v2985
      %v3050 = vpack.c.bf16 %v2986, %v2986
      %v3051 = vpack.c.bf16 %v2987, %v2987
      %v3052 = vpack.c.bf16 %v2988, %v2988
      %v3053 = vpack.c.bf16 %v2989, %v2989
      %v3054 = vpack.c.bf16 %v2990, %v2990
      %v3055 = vpack.c.bf16 %v2991, %v2991
      %v3056 = vpack.c.bf16 %v2992, %v2992
      %v3057 = vpack.c.bf16 %v2993, %v2993
      %v3058 = vpack.c.bf16 %v2994, %v2994
      %v3059 = vpack.c.bf16 %v2995, %v2995
      %v3060 = vpack.c.bf16 %v2996, %v2996
      %v3061 = vpack.c.bf16 %v2997, %v2997
      %v3062 = vpack.c.bf16 %v2998, %v2998
      %v3063 = vpack.c.bf16 %v2999, %v2999
      %v3064 = vpack.c.bf16 %v3000, %v3000
      %v3065 = vpack.c.bf16 %v3001, %v3001
      %v3066 = vpack.c.bf16 %v3002, %v3002
      %v3067 = vpack.c.bf16 %v3003, %v3003
      %v3068 = vpack.c.bf16 %v3004, %v3004
      %v3069 = vpack.c.bf16 %v3005, %v3005
      %v3070 = vpack.c.bf16 %v3006, %v3006
      %v3071 = vpack.c.bf16 %v3007, %v3007
      %v3136 = vunpack.c.l.b16 %v3008
      %v3137 = vunpack.c.l.b16 %v3009
      %v3138 = vunpack.c.l.b16 %v3010
      %v3139 = vunpack.c.l.b16 %v3011
      %v3140 = vunpack.c.l.b16 %v3012
      %v3141 = vunpack.c.l.b16 %v3013
      %v3142 = vunpack.c.l.b16 %v3014
      %v3143 = vunpack.c.l.b16 %v3015
      %v3144 = vunpack.c.l.b16 %v3016
      %v3145 = vunpack.c.l.b16 %v3017
      %v3146 = vunpack.c.l.b16 %v3018
      %v3147 = vunpack.c.l.b16 %v3019
      %v3148 = vunpack.c.l.b16 %v3020
      %v3149 = vunpack.c.l.b16 %v3021
      %v3150 = vunpack.c.l.b16 %v3022
      %v3151 = vunpack.c.l.b16 %v3023
      %v3152 = vunpack.c.l.b16 %v3024
      %v3153 = vunpack.c.l.b16 %v3025
      %v3154 = vunpack.c.l.b16 %v3026
      %v3155 = vunpack.c.l.b16 %v3027
      %v3156 = vunpack.c.l.b16 %v3028
      %v3157 = vunpack.c.l.b16 %v3029
      %v3158 = vunpack.c.l.b16 %v3030
      %v3159 = vunpack.c.l.b16 %v3031
      %v3160 = vunpack.c.l.b16 %v3032
      %v3161 = vunpack.c.l.b16 %v3033
      %v3162 = vunpack.c.l.b16 %v3034
      %v3163 = vunpack.c.l.b16 %v3035
      %v3164 = vunpack.c.l.b16 %v3036
      %v3165 = vunpack.c.l.b16 %v3037
      %v3166 = vunpack.c.l.b16 %v3038
      %v3167 = vunpack.c.l.b16 %v3039
      %v3168 = vunpack.c.l.b16 %v3040
      %v3169 = vunpack.c.l.b16 %v3041
      %v3170 = vunpack.c.l.b16 %v3042
      %v3171 = vunpack.c.l.b16 %v3043
      %v3172 = vunpack.c.l.b16 %v3044
      %v3173 = vunpack.c.l.b16 %v3045
      %v3174 = vunpack.c.l.b16 %v3046
      %v3175 = vunpack.c.l.b16 %v3047
      %v3176 = vunpack.c.l.b16 %v3048
      %v3177 = vunpack.c.l.b16 %v3049
      %v3178 = vunpack.c.l.b16 %v3050
      %v3179 = vunpack.c.l.b16 %v3051
      %v3180 = vunpack.c.l.b16 %v3052
      %v3181 = vunpack.c.l.b16 %v3053
      %v3182 = vunpack.c.l.b16 %v3054
      %v3183 = vunpack.c.l.b16 %v3055
      %v3184 = vunpack.c.l.b16 %v3056
      %v3185 = vunpack.c.l.b16 %v3057
      %v3186 = vunpack.c.l.b16 %v3058
      %v3187 = vunpack.c.l.b16 %v3059
      %v3188 = vunpack.c.l.b16 %v3060
      %v3189 = vunpack.c.l.b16 %v3061
      %v3190 = vunpack.c.l.b16 %v3062
      %v3191 = vunpack.c.l.b16 %v3063
      %v3192 = vunpack.c.l.b16 %v3064
      %v3193 = vunpack.c.l.b16 %v3065
      %v3194 = vunpack.c.l.b16 %v3066
      %v3195 = vunpack.c.l.b16 %v3067
      %v3196 = vunpack.c.l.b16 %v3068
      %v3197 = vunpack.c.l.b16 %v3069
      %v3198 = vunpack.c.l.b16 %v3070
      %v3199 = vunpack.c.l.b16 %v3071
      %v3200 = vpack.c.b16 %v3136, %v3136
      %v3201 = vpack.c.b16 %v3137, %v3137
      %v3202 = vpack.c.b16 %v3138, %v3138
      %v3203 = vpack.c.b16 %v3139, %v3139
      %v3204 = vpack.c.b16 %v3140, %v3140
      %v3205 = vpack.c.b16 %v3141, %v3141
      %v3206 = vpack.c.b16 %v3142, %v3142
      %v3207 = vpack.c.b16 %v3143, %v3143
      %v3208 = vpack.c.b16 %v3144, %v3144
      %v3209 = vpack.c.b16 %v3145, %v3145
      %v3210 = vpack.c.b16 %v3146, %v3146
      %v3211 = vpack.c.b16 %v3147, %v3147
      %v3212 = vpack.c.b16 %v3148, %v3148
      %v3213 = vpack.c.b16 %v3149, %v3149
      %v3214 = vpack.c.b16 %v3150, %v3150
      %v3215 = vpack.c.b16 %v3151, %v3151
      %v3216 = vpack.c.b16 %v3152, %v3152
      %v3217 = vpack.c.b16 %v3153, %v3153
      %v3218 = vpack.c.b16 %v3154, %v3154
      %v3219 = vpack.c.b16 %v3155, %v3155
      %v3220 = vpack.c.b16 %v3156, %v3156
      %v3221 = vpack.c.b16 %v3157, %v3157
      %v3222 = vpack.c.b16 %v3158, %v3158
      %v3223 = vpack.c.b16 %v3159, %v3159
      %v3224 = vpack.c.b16 %v3160, %v3160
      %v3225 = vpack.c.b16 %v3161, %v3161
      %v3226 = vpack.c.b16 %v3162, %v3162
      %v3227 = vpack.c.b16 %v3163, %v3163
      %v3228 = vpack.c.b16 %v3164, %v3164
      %v3229 = vpack.c.b16 %v3165, %v3165
      %v3230 = vpack.c.b16 %v3166, %v3166
      %v3231 = vpack.c.b16 %v3167, %v3167
      %v3232 = vpack.c.b16 %v3168, %v3168
      %v3233 = vpack.c.b16 %v3169, %v3169
      %v3234 = vpack.c.b16 %v3170, %v3170
      %v3235 = vpack.c.b16 %v3171, %v3171
      %v3236 = vpack.c.b16 %v3172, %v3172
      %v3237 = vpack.c.b16 %v3173, %v3173
      %v3238 = vpack.c.b16 %v3174, %v3174
      %v3239 = vpack.c.b16 %v3175, %v3175
      %v3240 = vpack.c.b16 %v3176, %v3176
      %v3241 = vpack.c.b16 %v3177, %v3177
      %v3242 = vpack.c.b16 %v3178, %v3178
      %v3243 = vpack.c.b16 %v3179, %v3179
      %v3244 = vpack.c.b16 %v3180, %v3180
      %v3245 = vpack.c.b16 %v3181, %v3181
      %v3246 = vpack.c.b16 %v3182, %v3182
      %v3247 = vpack.c.b16 %v3183, %v3183
      %v3248 = vpack.c.b16 %v3184, %v3184
      %v3249 = vpack.c.b16 %v3185, %v3185
      %v3250 = vpack.c.b16 %v3186, %v3186
      %v3251 = vpack.c.b16 %v3187, %v3187
      %v3252 = vpack.c.b16 %v3188, %v3188
      %v3253 = vpack.c.b16 %v3189, %v3189
      %v3254 = vpack.c.b16 %v3190, %v3190
      %v3255 = vpack.c.b16 %v3191, %v3191
      %v3256 = vpack.c.b16 %v3192, %v3192
      %v3257 = vpack.c.b16 %v3193, %v3193
      %v3258 = vpack.c.b16 %v3194, %v3194
      %v3259 = vpack.c.b16 %v3195, %v3195
      %v3260 = vpack.c.b16 %v3196, %v3196
      %v3261 = vpack.c.b16 %v3197, %v3197
      %v3262 = vpack.c.b16 %v3198, %v3198
      %v3263 = vpack.c.b16 %v3199, %v3199
      %v3264 = vunpack.c.l.b16 %v3200
      %v3265 = vunpack.c.l.b16 %v3201
      %v3266 = vunpack.c.l.b16 %v3202
      %v3267 = vunpack.c.l.b16 %v3203
      %v3268 = vunpack.c.l.b16 %v3204
      %v3269 = vunpack.c.l.b16 %v3205
      %v3270 = vunpack.c.l.b16 %v3206
      %v3271 = vunpack.c.l.b16 %v3207
      %v3272 = vunpack.c.l.b16 %v3208
      %v3273 = vunpack.c.l.b16 %v3209
      %v3274 = vunpack.c.l.b16 %v3210
      %v3275 = vunpack.c.l.b16 %v3211
      %v3276 = vunpack.c.l.b16 %v3212
      %v3277 = vunpack.c.l.b16 %v3213
      %v3278 = vunpack.c.l.b16 %v3214
      %v3279 = vunpack.c.l.b16 %v3215
      %v3280 = vunpack.c.l.b16 %v3216
      %v3281 = vunpack.c.l.b16 %v3217
      %v3282 = vunpack.c.l.b16 %v3218
      %v3283 = vunpack.c.l.b16 %v3219
      %v3284 = vunpack.c.l.b16 %v3220
      %v3285 = vunpack.c.l.b16 %v3221
      %v3286 = vunpack.c.l.b16 %v3222
      %v3287 = vunpack.c.l.b16 %v3223
      %v3288 = vunpack.c.l.b16 %v3224
      %v3289 = vunpack.c.l.b16 %v3225
      %v3290 = vunpack.c.l.b16 %v3226
      %v3291 = vunpack.c.l.b16 %v3227
      %v3292 = vunpack.c.l.b16 %v3228
      %v3293 = vunpack.c.l.b16 %v3229
      %v3294 = vunpack.c.l.b16 %v3230
      %v3295 = vunpack.c.l.b16 %v3231
      %v3296 = vunpack.c.l.b16 %v3232
      %v3297 = vunpack.c.l.b16 %v3233
      %v3298 = vunpack.c.l.b16 %v3234
      %v3299 = vunpack.c.l.b16 %v3235
      %v3300 = vunpack.c.l.b16 %v3236
      %v3301 = vunpack.c.l.b16 %v3237
      %v3302 = vunpack.c.l.b16 %v3238
      %v3303 = vunpack.c.l.b16 %v3239
      %v3304 = vunpack.c.l.b16 %v3240
      %v3305 = vunpack.c.l.b16 %v3241
      %v3306 = vunpack.c.l.b16 %v3242
      %v3307 = vunpack.c.l.b16 %v3243
      %v3308 = vunpack.c.l.b16 %v3244
      %v3309 = vunpack.c.l.b16 %v3245
      %v3310 = vunpack.c.l.b16 %v3246
      %v3311 = vunpack.c.l.b16 %v3247
      %v3312 = vunpack.c.l.b16 %v3248
      %v3313 = vunpack.c.l.b16 %v3249
      %v3314 = vunpack.c.l.b16 %v3250
      %v3315 = vunpack.c.l.b16 %v3251
      %v3316 = vunpack.c.l.b16 %v3252
      %v3317 = vunpack.c.l.b16 %v3253
      %v3318 = vunpack.c.l.b16 %v3254
      %v3319 = vunpack.c.l.b16 %v3255
      %v3320 = vunpack.c.l.b16 %v3256
      %v3321 = vunpack.c.l.b16 %v3257
      %v3322 = vunpack.c.l.b16 %v3258
      %v3323 = vunpack.c.l.b16 %v3259
      %v3324 = vunpack.c.l.b16 %v3260
      %v3325 = vunpack.c.l.b16 %v3261
      %v3326 = vunpack.c.l.b16 %v3262
      %v3327 = vunpack.c.l.b16 %v3263
      %v3328 = vrot.slane %v3265, 7
      %vm3329 = vcmask 1041409
      %v3330 = vsel %vm3329, %v3328, %v3264
      %v3331 = vrot.slane %v3266, 6
      %vm3332 = vcmask 1042434
      %v3333 = vsel %vm3332, %v3331, %v3330
      %v3334 = vrot.slane %v3267, 5
      %vm3335 = vcmask 1043459
      %v3336 = vsel %vm3335, %v3334, %v3333
      %v3337 = vrot.slane %v3268, 4
      %vm3338 = vcmask 1044484
      %v3339 = vsel %vm3338, %v3337, %v3336
      %v3340 = vrot.slane %v3269, 3
      %vm3341 = vcmask 1045509
      %v3342 = vsel %vm3341, %v3340, %v3339
      %v3343 = vrot.slane %v3270, 2
      %vm3344 = vcmask 1046534
      %v3345 = vsel %vm3344, %v3343, %v3342
      %v3346 = vrot.slane %v3271, 1
      %vm3347 = vcmask 1047559
      %v3348 = vsel %vm3347, %v3346, %v3345
      %v3349 = vrot.slane %v3273, 7
      %v3350 = vsel %vm3329, %v3349, %v3272
      %v3351 = vrot.slane %v3274, 6
      %v3352 = vsel %vm3332, %v3351, %v3350
      %v3353 = vrot.slane %v3275, 5
      %v3354 = vsel %vm3335, %v3353, %v3352
      %v3355 = vrot.slane %v3276, 4
      %v3356 = vsel %vm3338, %v3355, %v3354
      %v3357 = vrot.slane %v3277, 3
      %v3358 = vsel %vm3341, %v3357, %v3356
      %v3359 = vrot.slane %v3278, 2
      %v3360 = vsel %vm3344, %v3359, %v3358
      %v3361 = vrot.slane %v3279, 1
      %v3362 = vsel %vm3347, %v3361, %v3360
      %v3363 = vrot.slane %v3281, 7
      %v3364 = vsel %vm3329, %v3363, %v3280
      %v3365 = vrot.slane %v3282, 6
      %v3366 = vsel %vm3332, %v3365, %v3364
      %v3367 = vrot.slane %v3283, 5
      %v3368 = vsel %vm3335, %v3367, %v3366
      %v3369 = vrot.slane %v3284, 4
      %v3370 = vsel %vm3338, %v3369, %v3368
      %v3371 = vrot.slane %v3285, 3
      %v3372 = vsel %vm3341, %v3371, %v3370
      %v3373 = vrot.slane %v3286, 2
      %v3374 = vsel %vm3344, %v3373, %v3372
      %v3375 = vrot.slane %v3287, 1
      %v3376 = vsel %vm3347, %v3375, %v3374
      %v3377 = vrot.slane %v3289, 7
      %v3378 = vsel %vm3329, %v3377, %v3288
      %v3379 = vrot.slane %v3290, 6
      %v3380 = vsel %vm3332, %v3379, %v3378
      %v3381 = vrot.slane %v3291, 5
      %v3382 = vsel %vm3335, %v3381, %v3380
      %v3383 = vrot.slane %v3292, 4
      %v3384 = vsel %vm3338, %v3383, %v3382
      %v3385 = vrot.slane %v3293, 3
      %v3386 = vsel %vm3341, %v3385, %v3384
      %v3387 = vrot.slane %v3294, 2
      %v3388 = vsel %vm3344, %v3387, %v3386
      %v3389 = vrot.slane %v3295, 1
      %v3390 = vsel %vm3347, %v3389, %v3388
      %v3391 = vrot.slane %v3297, 7
      %v3392 = vsel %vm3329, %v3391, %v3296
      %v3393 = vrot.slane %v3298, 6
      %v3394 = vsel %vm3332, %v3393, %v3392
      %v3395 = vrot.slane %v3299, 5
      %v3396 = vsel %vm3335, %v3395, %v3394
      %v3397 = vrot.slane %v3300, 4
      %v3398 = vsel %vm3338, %v3397, %v3396
      %v3399 = vrot.slane %v3301, 3
      %v3400 = vsel %vm3341, %v3399, %v3398
      %v3401 = vrot.slane %v3302, 2
      %v3402 = vsel %vm3344, %v3401, %v3400
      %v3403 = vrot.slane %v3303, 1
      %v3404 = vsel %vm3347, %v3403, %v3402
      %v3405 = vrot.slane %v3305, 7
      %v3406 = vsel %vm3329, %v3405, %v3304
      %v3407 = vrot.slane %v3306, 6
      %v3408 = vsel %vm3332, %v3407, %v3406
      %v3409 = vrot.slane %v3307, 5
      %v3410 = vsel %vm3335, %v3409, %v3408
      %v3411 = vrot.slane %v3308, 4
      %v3412 = vsel %vm3338, %v3411, %v3410
      %v3413 = vrot.slane %v3309, 3
      %v3414 = vsel %vm3341, %v3413, %v3412
      %v3415 = vrot.slane %v3310, 2
      %v3416 = vsel %vm3344, %v3415, %v3414
      %v3417 = vrot.slane %v3311, 1
      %v3418 = vsel %vm3347, %v3417, %v3416
      %v3419 = vrot.slane %v3313, 7
      %v3420 = vsel %vm3329, %v3419, %v3312
      %v3421 = vrot.slane %v3314, 6
      %v3422 = vsel %vm3332, %v3421, %v3420
      %v3423 = vrot.slane %v3315, 5
      %v3424 = vsel %vm3335, %v3423, %v3422
      %v3425 = vrot.slane %v3316, 4
      %v3426 = vsel %vm3338, %v3425, %v3424
      %v3427 = vrot.slane %v3317, 3
      %v3428 = vsel %vm3341, %v3427, %v3426
      %v3429 = vrot.slane %v3318, 2
      %v3430 = vsel %vm3344, %v3429, %v3428
      %v3431 = vrot.slane %v3319, 1
      %v3432 = vsel %vm3347, %v3431, %v3430
      %v3433 = vrot.slane %v3321, 7
      %v3434 = vsel %vm3329, %v3433, %v3320
      %v3435 = vrot.slane %v3322, 6
      %v3436 = vsel %vm3332, %v3435, %v3434
      %v3437 = vrot.slane %v3323, 5
      %v3438 = vsel %vm3335, %v3437, %v3436
      %v3439 = vrot.slane %v3324, 4
      %v3440 = vsel %vm3338, %v3439, %v3438
      %v3441 = vrot.slane %v3325, 3
      %v3442 = vsel %vm3341, %v3441, %v3440
      %v3443 = vrot.slane %v3326, 2
      %v3444 = vsel %vm3344, %v3443, %v3442
      %v3445 = vrot.slane %v3327, 1
      %v3446 = vsel %vm3347, %v3445, %v3444
      %v3447 = vpack.c.b16 %v3348, %v3348
      %v3448 = vpack.c.b16 %v3362, %v3362
      %v3449 = vpack.c.b16 %v3376, %v3376
      %v3450 = vpack.c.b16 %v3390, %v3390
      %v3451 = vpack.c.b16 %v3404, %v3404
      %v3452 = vpack.c.b16 %v3418, %v3418
      %v3453 = vpack.c.b16 %v3432, %v3432
      %v3454 = vpack.c.b16 %v3446, %v3446
      %vm3463 = vcmask 257024
      %3464 = vst.msk [vmem:[%s197] sm:$0xf] %vm3463, %v3447
      %3465 = vst.msk [vmem:[%s197 + $0x4] sm:$0xf] %vm3463, %v3448
      %3466 = vst.msk [vmem:[%s197 + $0x8] sm:$0xf] %vm3463, %v3449
      %3467 = vst.msk [vmem:[%s197 + $0xc] sm:$0xf] %vm3463, %v3450
      %3468 = vst.msk [vmem:[%s197 + $0x10] sm:$0xf] %vm3463, %v3451
      %3469 = vst.msk [vmem:[%s197 + $0x14] sm:$0xf] %vm3463, %v3452
      %3470 = vst.msk [vmem:[%s197 + $0x18] sm:$0xf] %vm3463, %v3453
      %3471 = vst.msk [vmem:[%s197 + $0x1c] sm:$0xf] %vm3463, %v3454
      %p3472 = scmp.lt.s32.totalorder %s15, 1
      %s3473 = scalar_select %p3472, %s15, 1
      %s3474 = smul.addr %s3473, 8
      %s3475 = smul.addr %s3474, 4
      %s3476 = scalar_lea.vmem %s4, %s3475
      // Predicated region
      $region37: #{fcnn2_forward.5} parent=35 // pred_check
        %p3477 = pneg %p122
      $region38: #{fcnn2_forward.5} parent=35 // pred_check_branch
        %3479 = sbr.rel (%p3477) target = $region40
      $region39: #{fcnn2_forward.5} parent=35 // pred_region
        _
      $region40: #{fcnn2_forward.5} parent=35 // pred_fallthru
        _
    $region36: #{fcnn2_forward.5} parent=5 // pred_fallthru
      _
    %p3480 = scmp.le.s32.totalorder 2, %s10
    // Predicated region
    $region41: #{fcnn2_forward.5} parent=5 // pred_check
      %p3481 = pneg %p3480
    $region42: #{fcnn2_forward.5} parent=5 // pred_check_branch
      %3483 = sbr.rel (%p3481) target = $region44
    $region43: #{fcnn2_forward.5} parent=5 // pred_region
      %s3484 = ssub.s32 %s10, 2
      // Predicated region
      $region45: #{fcnn2_forward.5} parent=43 // pred_check
        %p3485 = pneg %p128
      $region46: #{fcnn2_forward.5} parent=43 // pred_check_branch
        %3487 = sbr.rel (%p3485) target = $region48
      $region47: #{fcnn2_forward.5} parent=43 // pred_region
        %p3488 = scmp.lt.s32.totalorder %s16, 1
        %s3489 = scalar_select %p3488, %s16, 1
        %s3490 = smul.addr %s3489, 8
        %s3491 = smul.addr %s3490, 4
        %s3492 = scalar_lea.vmem %s4, %s3491
      $region48: #{fcnn2_forward.5} parent=43 // pred_fallthru
        _
    $region44: #{fcnn2_forward.5} parent=5 // pred_fallthru
      _
  $region6: #{fcnn2_forward.5} parent=0 // loop_footer
    %s14 = sadd.s32 1, %s10
  $region7: #{fcnn2_forward.5} parent=0 // loop_footer_branch
    %9 = sbr.rel target = $region3
  $region8: #{fcnn2_forward.5} parent=0 // loop_exit
    _

// kernel: fcnn2_forward.6
$region0: #{fcnn2_forward.6}
  #allocation0 [shape = 'u32[]', space=smem, size = 0x4, offset = 0x4, fixed_abs, tag = 'smem constant byte address 0x4 - core index']
  #allocation1 [shape = 'u32[144,128]{1,0:T(1,128)}', space=vmem, size = 0x12000, scoped, tag = 'internal scratch']
  %s0 = inlined_call_operand.vmem [shape: bf16[2,18,18,32], index: 0, kind: input, shape index: {}]
  %s1 = inlined_call_operand.vmem [shape: bf16[288,32], index: 1, kind: input, shape index: {}]
  %s2 = inlined_call_operand.vmem [shape: f32[1,32], index: 2, kind: input, shape index: {}]
  %s3 = inlined_call_operand.vmem [shape: f32[1,32], index: 3, kind: input, shape index: {}]
  %s4 = inlined_call_operand.vmem [shape: bf16[2,16,16,32], index: 4, kind: output, shape index: {}]
  %s5 = sld [smem:[#allocation0]]
  $region49: #{fcnn2_forward.6} parent=0
    _
  %s7 = ssub.s32 1, %s5
  %s8 = scalar_select 0, %s7, %s5
  loop: start=0, step=1, limit=4
  $region2: #{fcnn2_forward.6} parent=0 // loop_pre_header
    _
  $region3: #{fcnn2_forward.6} parent=0 // loop_header
    %s10 = sphi 0, %s14
    %p11 = scmp.ge.s32.totalorder %s10, 4
    %s20 = sphi 0, %s22
    %s23 = sphi 0, %s20
    %s24 = sphi 0, %s23
    %s40 = sphi 0, %s24
    %s44 = sphi 0, %s44
    %s46 = sphi 0, %s44
    %s47 = sphi 0, %s46
    %s61 = sphi 0, %s47
    %s65 = sphi 0, %s65
    %s67 = sphi 0, %s65
    %s68 = sphi 0, %s67
    %s82 = sphi 0, %s68
    %s86 = sphi 0, %s86
    %s88 = sphi 0, %s86
    %s89 = sphi 0, %s88
    %s103 = sphi 0, %s89
    %s109 = sphi 0, %s111
    %s112 = sphi 0, %s109
    %s113 = sphi 0, %s112
    %s129 = sphi 0, %s113
  $region4: #{fcnn2_forward.6} parent=0 // loop_header_branch
    %13 = sbr.rel (%p11) target = $region8
  $region5: #{fcnn2_forward.6} parent=0 // loop_body
    %s15 = ssub.s32 %s10, 1
    %s16 = ssub.s32 %s10, 2
    %s17 = sadd.s32 %s10, 1
    %s18 = ssub.s32 %s10, %s17
    %p19 = scmp.eq.s32.totalorder %s18, 0
    %s21 = sadd.s32 %s20, 1
    %s22 = scalar_select %p19, %s20, %s21
    %p25 = pneg %p19
    %p26 = scmp.eq.s32.totalorder %s10, 1
    %p27 = por %p25, %p26
    %p28 = scmp.ne.s32.totalorder %s20, %s23
    %p29 = scmp.eq.s32.totalorder %s10, 0
    %p30 = por %p28, %p29
    %p31 = scmp.ne.s32.totalorder %s20, %s23
    %p32 = scmp.eq.s32.totalorder %s15, 1
    %p33 = por %p31, %p32
    %p34 = scmp.ne.s32.totalorder %s23, %s24
    %p35 = scmp.eq.s32.totalorder %s15, 0
    %p36 = por %p34, %p35
    %p37 = scmp.ne.s32.totalorder %s23, %s24
    %p38 = scmp.eq.s32.totalorder %s16, 1
    %p39 = por %p37, %p38
    %p41 = scmp.ne.s32.totalorder %s24, %s40
    %p42 = scmp.eq.s32.totalorder %s16, 0
    %p43 = por %p41, %p42
    %s45 = sadd.s32 %s44, 1
    %p48 = scmp.eq.s32.totalorder %s10, 1
    %p49 = scmp.ne.s32.totalorder %s44, %s46
    %p50 = scmp.eq.s32.totalorder %s10, 0
    %p51 = por %p49, %p50
    %p52 = scmp.ne.s32.totalorder %s44, %s46
    %p53 = scmp.eq.s32.totalorder %s15, 1
    %p54 = por %p52, %p53
    %p55 = scmp.ne.s32.totalorder %s46, %s47
    %p56 = scmp.eq.s32.totalorder %s15, 0
    %p57 = por %p55, %p56
    %p58 = scmp.ne.s32.totalorder %s46, %s47
    %p59 = scmp.eq.s32.totalorder %s16, 1
    %p60 = por %p58, %p59
    %p62 = scmp.ne.s32.totalorder %s47, %s61
    %p63 = scmp.eq.s32.totalorder %s16, 0
    %p64 = por %p62, %p63
    %s66 = sadd.s32 %s65, 1
    %p69 = scmp.eq.s32.totalorder %s10, 1
    %p70 = scmp.ne.s32.totalorder %s65, %s67
    %p71 = scmp.eq.s32.totalorder %s10, 0
    %p72 = por %p70, %p71
    %p73 = scmp.ne.s32.totalorder %s65, %s67
    %p74 = scmp.eq.s32.totalorder %s15, 1
    %p75 = por %p73, %p74
    %p76 = scmp.ne.s32.totalorder %s67, %s68
    %p77 = scmp.eq.s32.totalorder %s15, 0
    %p78 = por %p76, %p77
    %p79 = scmp.ne.s32.totalorder %s67, %s68
    %p80 = scmp.eq.s32.totalorder %s16, 1
    %p81 = por %p79, %p80
    %p83 = scmp.ne.s32.totalorder %s68, %s82
    %p84 = scmp.eq.s32.totalorder %s16, 0
    %p85 = por %p83, %p84
    %s87 = sadd.s32 %s86, 1
    %p90 = scmp.eq.s32.totalorder %s10, 1
    %p91 = scmp.ne.s32.totalorder %s86, %s88
    %p92 = scmp.eq.s32.totalorder %s10, 0
    %p93 = por %p91, %p92
    %p94 = scmp.ne.s32.totalorder %s86, %s88
    %p95 = scmp.eq.s32.totalorder %s15, 1
    %p96 = por %p94, %p95
    %p97 = scmp.ne.s32.totalorder %s88, %s89
    %p98 = scmp.eq.s32.totalorder %s15, 0
    %p99 = por %p97, %p98
    %p100 = scmp.ne.s32.totalorder %s88, %s89
    %p101 = scmp.eq.s32.totalorder %s16, 1
    %p102 = por %p100, %p101
    %p104 = scmp.ne.s32.totalorder %s89, %s103
    %p105 = scmp.eq.s32.totalorder %s16, 0
    %p106 = por %p104, %p105
    %s107 = ssub.s32 %s10, %s17
    %p108 = scmp.eq.s32.totalorder %s107, 0
    %s110 = sadd.s32 %s109, 1
    %s111 = scalar_select %p108, %s109, %s110
    %p114 = pneg %p108
    %p115 = scmp.eq.s32.totalorder %s10, 1
    %p116 = por %p114, %p115
    %p117 = scmp.ne.s32.totalorder %s109, %s112
    %p118 = scmp.eq.s32.totalorder %s10, 0
    %p119 = por %p117, %p118
    %p120 = scmp.ne.s32.totalorder %s109, %s112
    %p121 = scmp.eq.s32.totalorder %s15, 1
    %p122 = por %p120, %p121
    %p123 = scmp.ne.s32.totalorder %s112, %s113
    %p124 = scmp.eq.s32.totalorder %s15, 0
    %p125 = por %p123, %p124
    %p126 = scmp.ne.s32.totalorder %s112, %s113
    %p127 = scmp.eq.s32.totalorder %s16, 1
    %p128 = por %p126, %p127
    %p130 = scmp.ne.s32.totalorder %s113, %s129
    %p131 = scmp.eq.s32.totalorder %s16, 0
    %p132 = por %p130, %p131
    %p133 = scmp.le.s32.totalorder 1, %s10
    %p134 = scmp.lt.s32.totalorder %s10, 3
    %p135 = pnand %p133, %p134
    %p136 = pneg %p135
    // Predicated region
    $region9: #{fcnn2_forward.6} parent=5 // pred_check
      _
    $region10: #{fcnn2_forward.6} parent=5 // pred_check_branch
      %138 = sbr.rel (%p135) target = $region12
    $region11: #{fcnn2_forward.6} parent=5 // pred_region
      %s139 = ssub.s32 %s10, 1
      // Predicated region
      $region13: #{fcnn2_forward.6} parent=11 // pred_check
        %p140 = pneg %p57
      $region14: #{fcnn2_forward.6} parent=11 // pred_check_branch
        %142 = sbr.rel (%p140) target = $region16
      $region15: #{fcnn2_forward.6} parent=11 // pred_region
        _
      $region16: #{fcnn2_forward.6} parent=11 // pred_fallthru
        _
      // Predicated region
      $region17: #{fcnn2_forward.6} parent=11 // pred_check
        %p143 = pneg %p78
      $region18: #{fcnn2_forward.6} parent=11 // pred_check_branch
        %145 = sbr.rel (%p143) target = $region20
      $region19: #{fcnn2_forward.6} parent=11 // pred_region
        _
      $region20: #{fcnn2_forward.6} parent=11 // pred_fallthru
        _
      // Predicated region
      $region21: #{fcnn2_forward.6} parent=11 // pred_check
        %p146 = pneg %p99
      $region22: #{fcnn2_forward.6} parent=11 // pred_check_branch
        %148 = sbr.rel (%p146) target = $region24
      $region23: #{fcnn2_forward.6} parent=11 // pred_region
        _
      $region24: #{fcnn2_forward.6} parent=11 // pred_fallthru
        _
    $region12: #{fcnn2_forward.6} parent=5 // pred_fallthru
      _
    %p149 = scmp.lt.s32.totalorder %s10, 2
    // Predicated region
    $region25: #{fcnn2_forward.6} parent=5 // pred_check
      %p150 = pneg %p149
    $region26: #{fcnn2_forward.6} parent=5 // pred_check_branch
      %152 = sbr.rel (%p150) target = $region28
    $region27: #{fcnn2_forward.6} parent=5 // pred_region
      // Predicated region
      $region29: #{fcnn2_forward.6} parent=27 // pred_check
        %p153 = pneg %p30
      $region30: #{fcnn2_forward.6} parent=27 // pred_check_branch
        %155 = sbr.rel (%p153) target = $region32
      $region31: #{fcnn2_forward.6} parent=27 // pred_region
        %p156 = scmp.lt.s32.totalorder %s10, 1
        %s157 = scalar_select %p156, %s10, 1
        %s158 = smul.addr %s157, 54
        %s159 = smul.addr %s158, 4
        %s160 = scalar_lea.vmem %s0, %s159
      $region32: #{fcnn2_forward.6} parent=27 // pred_fallthru
        _
    $region28: #{fcnn2_forward.6} parent=5 // pred_fallthru
      _
    %p161 = scmp.le.s32.totalorder 1, %s10
    %p162 = scmp.lt.s32.totalorder %s10, 3
    %p163 = pnand %p161, %p162
    %p164 = pneg %p163
    // Predicated region
    $region33: #{fcnn2_forward.6} parent=5 // pred_check
      _
    $region34: #{fcnn2_forward.6} parent=5 // pred_check_branch
      %166 = sbr.rel (%p163) target = $region36
    $region35: #{fcnn2_forward.6} parent=5 // pred_region
      %s167 = ssub.s32 %s10, 1
      %p168 = scmp.lt.s32.totalorder %s15, 1
      %s169 = scalar_select %p168, %s15, 1
      %s170 = smul.addr %s169, 54
      %s171 = smul.addr %s170, 4
      %s172 = scalar_lea.vmem %s0, %s171
      %p173 = pneg %p36
      %p174 = pneg %p33
      %p175 = pneg %p57
      %p176 = pneg %p54
      %p177 = pneg %p78
      %p178 = pneg %p75
      %p179 = pneg %p99
      %p180 = pneg %p96
      %p181 = pneg %p125
      %p182 = pneg %p122
      %p183 = scmp.lt.s32.totalorder %s15, 1
      %s184 = scalar_select %p183, %s15, 1
      %s185 = smul.addr %s184, 32
      %s186 = smul.addr %s185, 4
      %s187 = scalar_lea.vmem %s4, %s186
      %p188 = scmp.lt.s32.totalorder %s15, 1
      %s189 = scalar_select %p188, %s15, 1
      %s190 = smul.addr %s189, 54
      %s191 = smul.addr %s190, 4
      %s192 = scalar_lea.vmem %s0, %s191
      %p193 = scmp.lt.s32.totalorder %s15, 1
      %s194 = scalar_select %p193, %s15, 1
      %s195 = smul.addr %s194, 32
      %s196 = smul.addr %s195, 4
      %s197 = scalar_lea.vmem %s4, %s196
      %v199 = vld [vmem:[%s192] sm:$0xf]
      %v200 = vld [vmem:[%s192 + $0x4] sm:$0xf]
      %v201 = vld [vmem:[%s192 + $0x8] sm:$0x1]
      %v202 = vld [vmem:[%s192 + $0xc] sm:$0xf]
      %v203 = vld [vmem:[%s192 + $0x10] sm:$0xf]
      %v204 = vld [vmem:[%s192 + $0x14] sm:$0x1]
      %v205 = vld [vmem:[%s192 + $0x18] sm:$0xf]
      %v206 = vld [vmem:[%s192 + $0x1c] sm:$0xf]
      %v207 = vld [vmem:[%s192 + $0x20] sm:$0x1]
      %v208 = vld [vmem:[%s192 + $0x24] sm:$0xf]
      %v209 = vld [vmem:[%s192 + $0x28] sm:$0xf]
      %v210 = vld [vmem:[%s192 + $0x2c] sm:$0x1]
      %v211 = vld [vmem:[%s192 + $0x30] sm:$0xf]
      %v212 = vld [vmem:[%s192 + $0x34] sm:$0xf]
      %v213 = vld [vmem:[%s192 + $0x38] sm:$0x1]
      %v214 = vld [vmem:[%s192 + $0x3c] sm:$0xf]
      %v215 = vld [vmem:[%s192 + $0x40] sm:$0xf]
      %v216 = vld [vmem:[%s192 + $0x44] sm:$0x1]
      %v217 = vld [vmem:[%s192 + $0x48] sm:$0xf]
      %v218 = vld [vmem:[%s192 + $0x4c] sm:$0xf]
      %v219 = vld [vmem:[%s192 + $0x50] sm:$0x1]
      %v220 = vld [vmem:[%s192 + $0x54] sm:$0xf]
      %v221 = vld [vmem:[%s192 + $0x58] sm:$0xf]
      %v222 = vld [vmem:[%s192 + $0x5c] sm:$0x1]
      %v223 = vld [vmem:[%s192 + $0x60] sm:$0xf]
      %v224 = vld [vmem:[%s192 + $0x64] sm:$0xf]
      %v225 = vld [vmem:[%s192 + $0x68] sm:$0x1]
      %v226 = vld [vmem:[%s192 + $0x6c] sm:$0xf]
      %v227 = vld [vmem:[%s192 + $0x70] sm:$0xf]
      %v228 = vld [vmem:[%s192 + $0x74] sm:$0x1]
      %v229 = vld [vmem:[%s192 + $0x78] sm:$0xf]
      %v230 = vld [vmem:[%s192 + $0x7c] sm:$0xf]
      %v231 = vld [vmem:[%s192 + $0x80] sm:$0x1]
      %v232 = vld [vmem:[%s192 + $0x84] sm:$0xf]
      %v233 = vld [vmem:[%s192 + $0x88] sm:$0xf]
      %v234 = vld [vmem:[%s192 + $0x8c] sm:$0x1]
      %v235 = vld [vmem:[%s192 + $0x90] sm:$0xf]
      %v236 = vld [vmem:[%s192 + $0x94] sm:$0xf]
      %v237 = vld [vmem:[%s192 + $0x98] sm:$0x1]
      %v238 = vld [vmem:[%s192 + $0x9c] sm:$0xf]
      %v239 = vld [vmem:[%s192 + $0xa0] sm:$0xf]
      %v240 = vld [vmem:[%s192 + $0xa4] sm:$0x1]
      %v241 = vld [vmem:[%s192 + $0xa8] sm:$0xf]
      %v242 = vld [vmem:[%s192 + $0xac] sm:$0xf]
      %v243 = vld [vmem:[%s192 + $0xb0] sm:$0x1]
      %v244 = vld [vmem:[%s192 + $0xb4] sm:$0xf]
      %v245 = vld [vmem:[%s192 + $0xb8] sm:$0xf]
      %v246 = vld [vmem:[%s192 + $0xbc] sm:$0x1]
      %v247 = vld [vmem:[%s192 + $0xc0] sm:$0xf]
      %v248 = vld [vmem:[%s192 + $0xc4] sm:$0xf]
      %v249 = vld [vmem:[%s192 + $0xc8] sm:$0x1]
      %v250 = vld [vmem:[%s192 + $0xcc] sm:$0xf]
      %v251 = vld [vmem:[%s192 + $0xd0] sm:$0xf]
      %v252 = vld [vmem:[%s192 + $0xd4] sm:$0x1]
      %v285 = vunpack.c.l.b16 %v199
      %v286 = vunpack.c.l.b16 %v200
      %v287 = vunpack.c.l.b16 %v202
      %v288 = vunpack.c.l.b16 %v203
      %v289 = vunpack.c.l.b16 %v205
      %v290 = vunpack.c.l.b16 %v206
      %v291 = vunpack.c.l.b16 %v208
      %v292 = vunpack.c.l.b16 %v209
      %v293 = vunpack.c.l.b16 %v211
      %v294 = vunpack.c.l.b16 %v212
      %v295 = vunpack.c.l.b16 %v214
      %v296 = vunpack.c.l.b16 %v215
      %v297 = vunpack.c.l.b16 %v217
      %v298 = vunpack.c.l.b16 %v218
      %v299 = vunpack.c.l.b16 %v220
      %v300 = vunpack.c.l.b16 %v221
      %v301 = vunpack.c.l.b16 %v223
      %v302 = vunpack.c.l.b16 %v224
      %v303 = vunpack.c.l.b16 %v226
      %v304 = vunpack.c.l.b16 %v227
      %v305 = vunpack.c.l.b16 %v229
      %v306 = vunpack.c.l.b16 %v230
      %v307 = vunpack.c.l.b16 %v232
      %v308 = vunpack.c.l.b16 %v233
      %v309 = vunpack.c.l.b16 %v235
      %v310 = vunpack.c.l.b16 %v236
      %v311 = vunpack.c.l.b16 %v238
      %v312 = vunpack.c.l.b16 %v239
      %v313 = vunpack.c.l.b16 %v241
      %v314 = vunpack.c.l.b16 %v242
      %v315 = vunpack.c.l.b16 %v244
      %v316 = vunpack.c.l.b16 %v245
      %v317 = vpack.c.b16 %v286, %v285
      %v318 = vpack.c.b16 %v288, %v287
      %v319 = vpack.c.b16 %v290, %v289
      %v320 = vpack.c.b16 %v292, %v291
      %v321 = vpack.c.b16 %v294, %v293
      %v322 = vpack.c.b16 %v296, %v295
      %v323 = vpack.c.b16 %v298, %v297
      %v324 = vpack.c.b16 %v300, %v299
      %v325 = vpack.c.b16 %v302, %v301
      %v326 = vpack.c.b16 %v304, %v303
      %v327 = vpack.c.b16 %v306, %v305
      %v328 = vpack.c.b16 %v308, %v307
      %v329 = vpack.c.b16 %v310, %v309
      %v330 = vpack.c.b16 %v312, %v311
      %v331 = vpack.c.b16 %v314, %v313
      %v332 = vpack.c.b16 %v316, %v315
      %v349 = vunpack.c.l.b16 %v201
      %v350 = vunpack.c.l.b16 %v204
      %v351 = vunpack.c.l.b16 %v207
      %v352 = vunpack.c.l.b16 %v210
      %v353 = vunpack.c.l.b16 %v213
      %v354 = vunpack.c.l.b16 %v216
      %v355 = vunpack.c.l.b16 %v219
      %v356 = vunpack.c.l.b16 %v222
      %v357 = vunpack.c.l.b16 %v225
      %v358 = vunpack.c.l.b16 %v228
      %v359 = vunpack.c.l.b16 %v231
      %v360 = vunpack.c.l.b16 %v234
      %v361 = vunpack.c.l.b16 %v237
      %v362 = vunpack.c.l.b16 %v240
      %v363 = vunpack.c.l.b16 %v243
      %v364 = vunpack.c.l.b16 %v246
      %v365 = vpack.c.b16 %v349, %v349
      %v366 = vpack.c.b16 %v350, %v350
      %v367 = vpack.c.b16 %v351, %v351
      %v368 = vpack.c.b16 %v352, %v352
      %v369 = vpack.c.b16 %v353, %v353
      %v370 = vpack.c.b16 %v354, %v354
      %v371 = vpack.c.b16 %v355, %v355
      %v372 = vpack.c.b16 %v356, %v356
      %v373 = vpack.c.b16 %v357, %v357
      %v374 = vpack.c.b16 %v358, %v358
      %v375 = vpack.c.b16 %v359, %v359
      %v376 = vpack.c.b16 %v360, %v360
      %v377 = vpack.c.b16 %v361, %v361
      %v378 = vpack.c.b16 %v362, %v362
      %v379 = vpack.c.b16 %v363, %v363
      %v380 = vpack.c.b16 %v364, %v364
      %vm381 = vsmask.f32 7424
      %v383 = vshrl.u32 %v317, 16
      %v385 = vshll.u32 %v317, 16
      %v387 = vrot.slane %v385, 1
      %v388 = vor.u32 %v383, %v387
      %v390 = vshll.u32 %v365, 16
      %v392 = vrot.slane %v390, 1
      %v393 = vsel %vm381, %v388, %v392
      %v395 = vshrl.u32 %v318, 16
      %v397 = vshll.u32 %v318, 16
      %v399 = vrot.slane %v397, 1
      %v400 = vor.u32 %v395, %v399
      %v402 = vshll.u32 %v366, 16
      %v404 = vrot.slane %v402, 1
      %v405 = vsel %vm381, %v400, %v404
      %v407 = vshrl.u32 %v319, 16
      %v409 = vshll.u32 %v319, 16
      %v411 = vrot.slane %v409, 1
      %v412 = vor.u32 %v407, %v411
      %v414 = vshll.u32 %v367, 16
      %v416 = vrot.slane %v414, 1
      %v417 = vsel %vm381, %v412, %v416
      %v419 = vshrl.u32 %v320, 16
      %v421 = vshll.u32 %v320, 16
      %v423 = vrot.slane %v421, 1
      %v424 = vor.u32 %v419, %v423
      %v426 = vshll.u32 %v368, 16
      %v428 = vrot.slane %v426, 1
      %v429 = vsel %vm381, %v424, %v428
      %v431 = vshrl.u32 %v321, 16
      %v433 = vshll.u32 %v321, 16
      %v435 = vrot.slane %v433, 1
      %v436 = vor.u32 %v431, %v435
      %v438 = vshll.u32 %v369, 16
      %v440 = vrot.slane %v438, 1
      %v441 = vsel %vm381, %v436, %v440
      %v443 = vshrl.u32 %v322, 16
      %v445 = vshll.u32 %v322, 16
      %v447 = vrot.slane %v445, 1
      %v448 = vor.u32 %v443, %v447
      %v450 = vshll.u32 %v370, 16
      %v452 = vrot.slane %v450, 1
      %v453 = vsel %vm381, %v448, %v452
      %v455 = vshrl.u32 %v323, 16
      %v457 = vshll.u32 %v323, 16
      %v459 = vrot.slane %v457, 1
      %v460 = vor.u32 %v455, %v459
      %v462 = vshll.u32 %v371, 16
      %v464 = vrot.slane %v462, 1
      %v465 = vsel %vm381, %v460, %v464
      %v467 = vshrl.u32 %v324, 16
      %v469 = vshll.u32 %v324, 16
      %v471 = vrot.slane %v469, 1
      %v472 = vor.u32 %v467, %v471
      %v474 = vshll.u32 %v372, 16
      %v476 = vrot.slane %v474, 1
      %v477 = vsel %vm381, %v472, %v476
      %v479 = vshrl.u32 %v325, 16
      %v481 = vshll.u32 %v325, 16
      %v483 = vrot.slane %v481, 1
      %v484 = vor.u32 %v479, %v483
      %v486 = vshll.u32 %v373, 16
      %v488 = vrot.slane %v486, 1
      %v489 = vsel %vm381, %v484, %v488
      %v491 = vshrl.u32 %v326, 16
      %v493 = vshll.u32 %v326, 16
      %v495 = vrot.slane %v493, 1
      %v496 = vor.u32 %v491, %v495
      %v498 = vshll.u32 %v374, 16
      %v500 = vrot.slane %v498, 1
      %v501 = vsel %vm381, %v496, %v500
      %v503 = vshrl.u32 %v327, 16
      %v505 = vshll.u32 %v327, 16
      %v507 = vrot.slane %v505, 1
      %v508 = vor.u32 %v503, %v507
      %v510 = vshll.u32 %v375, 16
      %v512 = vrot.slane %v510, 1
      %v513 = vsel %vm381, %v508, %v512
      %v515 = vshrl.u32 %v328, 16
      %v517 = vshll.u32 %v328, 16
      %v519 = vrot.slane %v517, 1
      %v520 = vor.u32 %v515, %v519
      %v522 = vshll.u32 %v376, 16
      %v524 = vrot.slane %v522, 1
      %v525 = vsel %vm381, %v520, %v524
      %v527 = vshrl.u32 %v329, 16
      %v529 = vshll.u32 %v329, 16
      %v531 = vrot.slane %v529, 1
      %v532 = vor.u32 %v527, %v531
      %v534 = vshll.u32 %v377, 16
      %v536 = vrot.slane %v534, 1
      %v537 = vsel %vm381, %v532, %v536
      %v539 = vshrl.u32 %v330, 16
      %v541 = vshll.u32 %v330, 16
      %v543 = vrot.slane %v541, 1
      %v544 = vor.u32 %v539, %v543
      %v546 = vshll.u32 %v378, 16
      %v548 = vrot.slane %v546, 1
      %v549 = vsel %vm381, %v544, %v548
      %v551 = vshrl.u32 %v331, 16
      %v553 = vshll.u32 %v331, 16
      %v555 = vrot.slane %v553, 1
      %v556 = vor.u32 %v551, %v555
      %v558 = vshll.u32 %v379, 16
      %v560 = vrot.slane %v558, 1
      %v561 = vsel %vm381, %v556, %v560
      %v563 = vshrl.u32 %v332, 16
      %v565 = vshll.u32 %v332, 16
      %v567 = vrot.slane %v565, 1
      %v568 = vor.u32 %v563, %v567
      %v570 = vshll.u32 %v380, 16
      %v572 = vrot.slane %v570, 1
      %v573 = vsel %vm381, %v568, %v572
      %574 = vrot.lane.b32.xlu0 %v393, 32
      %v575 = vpop.permute.xlu0 %574
      %576 = vrot.lane.b32.xlu0 %v405, 32
      %v577 = vpop.permute.xlu0 %576
      %578 = vrot.lane.b32.xlu0 %v417, 32
      %v579 = vpop.permute.xlu0 %578
      %580 = vrot.lane.b32.xlu0 %v429, 32
      %v581 = vpop.permute.xlu0 %580
      %582 = vrot.lane.b32.xlu0 %v441, 32
      %v583 = vpop.permute.xlu0 %582
      %584 = vrot.lane.b32.xlu0 %v453, 32
      %v585 = vpop.permute.xlu0 %584
      %586 = vrot.lane.b32.xlu0 %v465, 32
      %v587 = vpop.permute.xlu0 %586
      %588 = vrot.lane.b32.xlu0 %v477, 32
      %v589 = vpop.permute.xlu0 %588
      %590 = vrot.lane.b32.xlu0 %v489, 32
      %v591 = vpop.permute.xlu0 %590
      %592 = vrot.lane.b32.xlu0 %v501, 32
      %v593 = vpop.permute.xlu0 %592
      %594 = vrot.lane.b32.xlu0 %v513, 32
      %v595 = vpop.permute.xlu0 %594
      %596 = vrot.lane.b32.xlu0 %v525, 32
      %v597 = vpop.permute.xlu0 %596
      %598 = vrot.lane.b32.xlu0 %v537, 32
      %v599 = vpop.permute.xlu0 %598
      %600 = vrot.lane.b32.xlu0 %v549, 32
      %v601 = vpop.permute.xlu0 %600
      %602 = vrot.lane.b32.xlu0 %v561, 32
      %v603 = vpop.permute.xlu0 %602
      %604 = vrot.lane.b32.xlu0 %v573, 32
      %v605 = vpop.permute.xlu0 %604
      %vm606 = vcmask 1046528
      %v607 = vrot.slane %v317, 1
      %v608 = vrot.slane %v365, 1
      %v609 = vsel %vm606, %v607, %v608
      %v610 = vrot.slane %v318, 1
      %v611 = vrot.slane %v366, 1
      %v612 = vsel %vm606, %v610, %v611
      %v613 = vrot.slane %v319, 1
      %v614 = vrot.slane %v367, 1
      %v615 = vsel %vm606, %v613, %v614
      %v616 = vrot.slane %v320, 1
      %v617 = vrot.slane %v368, 1
      %v618 = vsel %vm606, %v616, %v617
      %v619 = vrot.slane %v321, 1
      %v620 = vrot.slane %v369, 1
      %v621 = vsel %vm606, %v619, %v620
      %v622 = vrot.slane %v322, 1
      %v623 = vrot.slane %v370, 1
      %v624 = vsel %vm606, %v622, %v623
      %v625 = vrot.slane %v323, 1
      %v626 = vrot.slane %v371, 1
      %v627 = vsel %vm606, %v625, %v626
      %v628 = vrot.slane %v324, 1
      %v629 = vrot.slane %v372, 1
      %v630 = vsel %vm606, %v628, %v629
      %v631 = vrot.slane %v325, 1
      %v632 = vrot.slane %v373, 1
      %v633 = vsel %vm606, %v631, %v632
      %v634 = vrot.slane %v326, 1
      %v635 = vrot.slane %v374, 1
      %v636 = vsel %vm606, %v634, %v635
      %v637 = vrot.slane %v327, 1
      %v638 = vrot.slane %v375, 1
      %v639 = vsel %vm606, %v637, %v638
      %v640 = vrot.slane %v328, 1
      %v641 = vrot.slane %v376, 1
      %v642 = vsel %vm606, %v640, %v641
      %v643 = vrot.slane %v329, 1
      %v644 = vrot.slane %v377, 1
      %v645 = vsel %vm606, %v643, %v644
      %v646 = vrot.slane %v330, 1
      %v647 = vrot.slane %v378, 1
      %v648 = vsel %vm606, %v646, %v647
      %v649 = vrot.slane %v331, 1
      %v650 = vrot.slane %v379, 1
      %v651 = vsel %vm606, %v649, %v650
      %v652 = vrot.slane %v332, 1
      %v653 = vrot.slane %v380, 1
      %v654 = vsel %vm606, %v652, %v653
      %655 = vrot.lane.b32.xlu0 %v609, 64
      %v656 = vpop.permute.xlu0 %655
      %657 = vrot.lane.b32.xlu0 %v612, 64
      %v658 = vpop.permute.xlu0 %657
      %659 = vrot.lane.b32.xlu0 %v615, 64
      %v660 = vpop.permute.xlu0 %659
      %661 = vrot.lane.b32.xlu0 %v618, 64
      %v662 = vpop.permute.xlu0 %661
      %663 = vrot.lane.b32.xlu0 %v621, 64
      %v664 = vpop.permute.xlu0 %663
      %665 = vrot.lane.b32.xlu0 %v624, 64
      %v666 = vpop.permute.xlu0 %665
      %667 = vrot.lane.b32.xlu0 %v627, 64
      %v668 = vpop.permute.xlu0 %667
      %669 = vrot.lane.b32.xlu0 %v630, 64
      %v670 = vpop.permute.xlu0 %669
      %671 = vrot.lane.b32.xlu0 %v633, 64
      %v672 = vpop.permute.xlu0 %671
      %673 = vrot.lane.b32.xlu0 %v636, 64
      %v674 = vpop.permute.xlu0 %673
      %675 = vrot.lane.b32.xlu0 %v639, 64
      %v676 = vpop.permute.xlu0 %675
      %677 = vrot.lane.b32.xlu0 %v642, 64
      %v678 = vpop.permute.xlu0 %677
      %679 = vrot.lane.b32.xlu0 %v645, 64
      %v680 = vpop.permute.xlu0 %679
      %681 = vrot.lane.b32.xlu0 %v648, 64
      %v682 = vpop.permute.xlu0 %681
      %683 = vrot.lane.b32.xlu0 %v651, 64
      %v684 = vpop.permute.xlu0 %683
      %685 = vrot.lane.b32.xlu0 %v654, 64
      %v686 = vpop.permute.xlu0 %685
      %v689 = vunpack.c.l.b16 %v247
      %v690 = vunpack.c.l.b16 %v248
      %v691 = vpack.c.b16 %v690, %v689
      %692 = vrot.lane.b32.xlu0 %v318, 96
      %v693 = vpop.permute.xlu0 %692
      %694 = vrot.lane.b32.xlu0 %v319, 96
      %v695 = vpop.permute.xlu0 %694
      %696 = vrot.lane.b32.xlu0 %v320, 96
      %v697 = vpop.permute.xlu0 %696
      %698 = vrot.lane.b32.xlu0 %v321, 96
      %v699 = vpop.permute.xlu0 %698
      %700 = vrot.lane.b32.xlu0 %v322, 96
      %v701 = vpop.permute.xlu0 %700
      %702 = vrot.lane.b32.xlu0 %v323, 96
      %v703 = vpop.permute.xlu0 %702
      %704 = vrot.lane.b32.xlu0 %v324, 96
      %v705 = vpop.permute.xlu0 %704
      %706 = vrot.lane.b32.xlu0 %v325, 96
      %v707 = vpop.permute.xlu0 %706
      %708 = vrot.lane.b32.xlu0 %v326, 96
      %v709 = vpop.permute.xlu0 %708
      %710 = vrot.lane.b32.xlu0 %v327, 96
      %v711 = vpop.permute.xlu0 %710
      %712 = vrot.lane.b32.xlu0 %v328, 96
      %v713 = vpop.permute.xlu0 %712
      %714 = vrot.lane.b32.xlu0 %v329, 96
      %v715 = vpop.permute.xlu0 %714
      %716 = vrot.lane.b32.xlu0 %v330, 96
      %v717 = vpop.permute.xlu0 %716
      %718 = vrot.lane.b32.xlu0 %v331, 96
      %v719 = vpop.permute.xlu0 %718
      %720 = vrot.lane.b32.xlu0 %v332, 96
      %v721 = vpop.permute.xlu0 %720
      %722 = vrot.lane.b32.xlu0 %v691, 96
      %v723 = vpop.permute.xlu0 %722
      %v725 = vunpack.c.l.b16 %v249
      %v726 = vpack.c.b16 %v725, %v725
      %v728 = vshrl.u32 %v691, 16
      %v730 = vshll.u32 %v691, 16
      %v732 = vrot.slane %v730, 1
      %v733 = vor.u32 %v728, %v732
      %v735 = vshll.u32 %v726, 16
      %v737 = vrot.slane %v735, 1
      %v738 = vsel %vm381, %v733, %v737
      %v739 = vrot.slane %v691, 1
      %v740 = vrot.slane %v726, 1
      %v741 = vsel %vm606, %v739, %v740
      %742 = vrot.lane.b32.xlu0 %v612, 32
      %v743 = vpop.permute.xlu0 %742
      %744 = vrot.lane.b32.xlu0 %v615, 32
      %v745 = vpop.permute.xlu0 %744
      %746 = vrot.lane.b32.xlu0 %v618, 32
      %v747 = vpop.permute.xlu0 %746
      %748 = vrot.lane.b32.xlu0 %v621, 32
      %v749 = vpop.permute.xlu0 %748
      %750 = vrot.lane.b32.xlu0 %v624, 32
      %v751 = vpop.permute.xlu0 %750
      %752 = vrot.lane.b32.xlu0 %v627, 32
      %v753 = vpop.permute.xlu0 %752
      %754 = vrot.lane.b32.xlu0 %v630, 32
      %v755 = vpop.permute.xlu0 %754
      %756 = vrot.lane.b32.xlu0 %v633, 32
      %v757 = vpop.permute.xlu0 %756
      %758 = vrot.lane.b32.xlu0 %v636, 32
      %v759 = vpop.permute.xlu0 %758
      %760 = vrot.lane.b32.xlu0 %v639, 32
      %v761 = vpop.permute.xlu0 %760
      %762 = vrot.lane.b32.xlu0 %v642, 32
      %v763 = vpop.permute.xlu0 %762
      %764 = vrot.lane.b32.xlu0 %v645, 32
      %v765 = vpop.permute.xlu0 %764
      %766 = vrot.lane.b32.xlu0 %v648, 32
      %v767 = vpop.permute.xlu0 %766
      %768 = vrot.lane.b32.xlu0 %v651, 32
      %v769 = vpop.permute.xlu0 %768
      %770 = vrot.lane.b32.xlu0 %v654, 32
      %v771 = vpop.permute.xlu0 %770
      %772 = vrot.lane.b32.xlu0 %v741, 32
      %v773 = vpop.permute.xlu0 %772
      %v776 = vunpack.c.l.b16 %v250
      %v777 = vunpack.c.l.b16 %v251
      %v778 = vpack.c.b16 %v777, %v776
      %779 = vrot.lane.b32.xlu0 %v319, 64
      %v780 = vpop.permute.xlu0 %779
      %781 = vrot.lane.b32.xlu0 %v320, 64
      %v782 = vpop.permute.xlu0 %781
      %783 = vrot.lane.b32.xlu0 %v321, 64
      %v784 = vpop.permute.xlu0 %783
      %785 = vrot.lane.b32.xlu0 %v322, 64
      %v786 = vpop.permute.xlu0 %785
      %787 = vrot.lane.b32.xlu0 %v323, 64
      %v788 = vpop.permute.xlu0 %787
      %789 = vrot.lane.b32.xlu0 %v324, 64
      %v790 = vpop.permute.xlu0 %789
      %791 = vrot.lane.b32.xlu0 %v325, 64
      %v792 = vpop.permute.xlu0 %791
      %793 = vrot.lane.b32.xlu0 %v326, 64
      %v794 = vpop.permute.xlu0 %793
      %795 = vrot.lane.b32.xlu0 %v327, 64
      %v796 = vpop.permute.xlu0 %795
      %797 = vrot.lane.b32.xlu0 %v328, 64
      %v798 = vpop.permute.xlu0 %797
      %799 = vrot.lane.b32.xlu0 %v329, 64
      %v800 = vpop.permute.xlu0 %799
      %801 = vrot.lane.b32.xlu0 %v330, 64
      %v802 = vpop.permute.xlu0 %801
      %803 = vrot.lane.b32.xlu0 %v331, 64
      %v804 = vpop.permute.xlu0 %803
      %805 = vrot.lane.b32.xlu0 %v332, 64
      %v806 = vpop.permute.xlu0 %805
      %807 = vrot.lane.b32.xlu0 %v691, 64
      %v808 = vpop.permute.xlu0 %807
      %809 = vrot.lane.b32.xlu0 %v778, 64
      %v810 = vpop.permute.xlu0 %809
      %v812 = vunpack.c.l.b16 %v252
      %v813 = vpack.c.b16 %v812, %v812
      %v815 = vshrl.u32 %v778, 16
      %v817 = vshll.u32 %v778, 16
      %v819 = vrot.slane %v817, 1
      %v820 = vor.u32 %v815, %v819
      %v822 = vshll.u32 %v813, 16
      %v824 = vrot.slane %v822, 1
      %v825 = vsel %vm381, %v820, %v824
      %826 = vrot.lane.b32.xlu0 %v417, 96
      %v827 = vpop.permute.xlu0 %826
      %828 = vrot.lane.b32.xlu0 %v429, 96
      %v829 = vpop.permute.xlu0 %828
      %830 = vrot.lane.b32.xlu0 %v441, 96
      %v831 = vpop.permute.xlu0 %830
      %832 = vrot.lane.b32.xlu0 %v453, 96
      %v833 = vpop.permute.xlu0 %832
      %834 = vrot.lane.b32.xlu0 %v465, 96
      %v835 = vpop.permute.xlu0 %834
      %836 = vrot.lane.b32.xlu0 %v477, 96
      %v837 = vpop.permute.xlu0 %836
      %838 = vrot.lane.b32.xlu0 %v489, 96
      %v839 = vpop.permute.xlu0 %838
      %840 = vrot.lane.b32.xlu0 %v501, 96
      %v841 = vpop.permute.xlu0 %840
      %842 = vrot.lane.b32.xlu0 %v513, 96
      %v843 = vpop.permute.xlu0 %842
      %844 = vrot.lane.b32.xlu0 %v525, 96
      %v845 = vpop.permute.xlu0 %844
      %846 = vrot.lane.b32.xlu0 %v537, 96
      %v847 = vpop.permute.xlu0 %846
      %848 = vrot.lane.b32.xlu0 %v549, 96
      %v849 = vpop.permute.xlu0 %848
      %850 = vrot.lane.b32.xlu0 %v561, 96
      %v851 = vpop.permute.xlu0 %850
      %852 = vrot.lane.b32.xlu0 %v573, 96
      %v853 = vpop.permute.xlu0 %852
      %854 = vrot.lane.b32.xlu0 %v738, 96
      %v855 = vpop.permute.xlu0 %854
      %856 = vrot.lane.b32.xlu0 %v825, 96
      %v857 = vpop.permute.xlu0 %856
      %v858 = vrot.slane %v778, 1
      %v859 = vrot.slane %v813, 1
      %v860 = vsel %vm606, %v858, %v859
      %vm861 = vcmask 261120
      %v863 = vsel %vm861, %v317, %v575
      %v865 = vsel %vm861, %v318, %v577
      %v867 = vsel %vm861, %v319, %v579
      %v869 = vsel %vm861, %v320, %v581
      %v871 = vsel %vm861, %v321, %v583
      %v873 = vsel %vm861, %v322, %v585
      %v875 = vsel %vm861, %v323, %v587
      %v877 = vsel %vm861, %v324, %v589
      %v879 = vsel %vm861, %v325, %v591
      %v881 = vsel %vm861, %v326, %v593
      %v883 = vsel %vm861, %v327, %v595
      %v885 = vsel %vm861, %v328, %v597
      %v887 = vsel %vm861, %v329, %v599
      %v889 = vsel %vm861, %v330, %v601
      %v891 = vsel %vm861, %v331, %v603
      %v893 = vsel %vm861, %v332, %v605
      %vm894 = vcmask 523264
      %v896 = vsel %vm894, %v863, %v656
      %v898 = vsel %vm894, %v865, %v658
      %v900 = vsel %vm894, %v867, %v660
      %v902 = vsel %vm894, %v869, %v662
      %v904 = vsel %vm894, %v871, %v664
      %v906 = vsel %vm894, %v873, %v666
      %v908 = vsel %vm894, %v875, %v668
      %v910 = vsel %vm894, %v877, %v670
      %v912 = vsel %vm894, %v879, %v672
      %v914 = vsel %vm894, %v881, %v674
      %v916 = vsel %vm894, %v883, %v676
      %v918 = vsel %vm894, %v885, %v678
      %v920 = vsel %vm894, %v887, %v680
      %v922 = vsel %vm894, %v889, %v682
      %v924 = vsel %vm894, %v891, %v684
      %v926 = vsel %vm894, %v893, %v686
      %vm927 = vcmask 785408
      %v929 = vsel %vm927, %v896, %v693
      %v932 = vsel %vm927, %v898, %v695
      %v935 = vsel %vm927, %v900, %v697
      %v938 = vsel %vm927, %v902, %v699
      %v941 = vsel %vm927, %v904, %v701
      %v944 = vsel %vm927, %v906, %v703
      %v947 = vsel %vm927, %v908, %v705
      %v950 = vsel %vm927, %v910, %v707
      %v953 = vsel %vm927, %v912, %v709
      %v956 = vsel %vm927, %v914, %v711
      %v959 = vsel %vm927, %v916, %v713
      %v962 = vsel %vm927, %v918, %v715
      %v965 = vsel %vm927, %v920, %v717
      %v968 = vsel %vm927, %v922, %v719
      %v971 = vsel %vm927, %v924, %v721
      %v974 = vsel %vm927, %v926, %v723
      %v978 = vsel %vm861, %v405, %v743
      %v981 = vsel %vm861, %v417, %v745
      %v984 = vsel %vm861, %v429, %v747
      %v987 = vsel %vm861, %v441, %v749
      %v990 = vsel %vm861, %v453, %v751
      %v993 = vsel %vm861, %v465, %v753
      %v996 = vsel %vm861, %v477, %v755
      %v999 = vsel %vm861, %v489, %v757
      %v1002 = vsel %vm861, %v501, %v759
      %v1005 = vsel %vm861, %v513, %v761
      %v1008 = vsel %vm861, %v525, %v763
      %v1011 = vsel %vm861, %v537, %v765
      %v1014 = vsel %vm861, %v549, %v767
      %v1017 = vsel %vm861, %v561, %v769
      %v1020 = vsel %vm861, %v573, %v771
      %v1023 = vsel %vm861, %v738, %v773
      %v1025 = vsel %vm894, %v978, %v780
      %v1027 = vsel %vm894, %v981, %v782
      %v1029 = vsel %vm894, %v984, %v784
      %v1031 = vsel %vm894, %v987, %v786
      %v1033 = vsel %vm894, %v990, %v788
      %v1035 = vsel %vm894, %v993, %v790
      %v1037 = vsel %vm894, %v996, %v792
      %v1039 = vsel %vm894, %v999, %v794
      %v1041 = vsel %vm894, %v1002, %v796
      %v1043 = vsel %vm894, %v1005, %v798
      %v1045 = vsel %vm894, %v1008, %v800
      %v1047 = vsel %vm894, %v1011, %v802
      %v1049 = vsel %vm894, %v1014, %v804
      %v1051 = vsel %vm894, %v1017, %v806
      %v1053 = vsel %vm894, %v1020, %v808
      %v1055 = vsel %vm894, %v1023, %v810
      %v1057 = vsel %vm927, %v1025, %v827
      %v1060 = vsel %vm927, %v1027, %v829
      %v1063 = vsel %vm927, %v1029, %v831
      %v1066 = vsel %vm927, %v1031, %v833
      %v1069 = vsel %vm927, %v1033, %v835
      %v1072 = vsel %vm927, %v1035, %v837
      %v1075 = vsel %vm927, %v1037, %v839
      %v1078 = vsel %vm927, %v1039, %v841
      %v1081 = vsel %vm927, %v1041, %v843
      %v1084 = vsel %vm927, %v1043, %v845
      %v1087 = vsel %vm927, %v1045, %v847
      %v1090 = vsel %vm927, %v1047, %v849
      %v1093 = vsel %vm927, %v1049, %v851
      %v1096 = vsel %vm927, %v1051, %v853
      %v1099 = vsel %vm927, %v1053, %v855
      %v1102 = vsel %vm927, %v1055, %v857
      %v1104 = vld [vmem:[%s1] sm:$0xf]
      %v1105 = vld [vmem:[%s1 + $0x4] sm:$0xf]
      %v1106 = vld [vmem:[%s1 + $0x8] sm:$0xf]
      %v1107 = vld [vmem:[%s1 + $0xc] sm:$0xf]
      %v1108 = vld [vmem:[%s1 + $0x10] sm:$0xf]
      %v1109 = vld [vmem:[%s1 + $0x14] sm:$0xf]
      %v1110 = vld [vmem:[%s1 + $0x18] sm:$0xf]
      %v1111 = vld [vmem:[%s1 + $0x1c] sm:$0xf]
      %v1112 = vld [vmem:[%s1 + $0x20] sm:$0xf]
      %v1113 = vld [vmem:[%s1 + $0x24] sm:$0xf]
      %v1114 = vld [vmem:[%s1 + $0x28] sm:$0xf]
      %v1115 = vld [vmem:[%s1 + $0x2c] sm:$0xf]
      %v1116 = vld [vmem:[%s1 + $0x30] sm:$0xf]
      %v1117 = vld [vmem:[%s1 + $0x34] sm:$0xf]
      %v1118 = vld [vmem:[%s1 + $0x38] sm:$0xf]
      %v1119 = vld [vmem:[%s1 + $0x3c] sm:$0xf]
      %v1120 = vld [vmem:[%s1 + $0x40] sm:$0xf]
      %v1121 = vld [vmem:[%s1 + $0x44] sm:$0xf]
      %v1122 = vld [vmem:[%s1 + $0x48] sm:$0xf]
      %v1123 = vld [vmem:[%s1 + $0x4c] sm:$0xf]
      %v1124 = vld [vmem:[%s1 + $0x50] sm:$0xf]
      %v1125 = vld [vmem:[%s1 + $0x54] sm:$0xf]
      %v1126 = vld [vmem:[%s1 + $0x58] sm:$0xf]
      %v1127 = vld [vmem:[%s1 + $0x5c] sm:$0xf]
      %v1128 = vld [vmem:[%s1 + $0x60] sm:$0xf]
      %v1129 = vld [vmem:[%s1 + $0x64] sm:$0xf]
      %v1130 = vld [vmem:[%s1 + $0x68] sm:$0xf]
      %v1131 = vld [vmem:[%s1 + $0x6c] sm:$0xf]
      %v1132 = vld [vmem:[%s1 + $0x70] sm:$0xf]
      %v1133 = vld [vmem:[%s1 + $0x74] sm:$0xf]
      %v1134 = vld [vmem:[%s1 + $0x78] sm:$0xf]
      %v1135 = vld [vmem:[%s1 + $0x7c] sm:$0xf]
      %v1136 = vld [vmem:[%s1 + $0x80] sm:$0xf]
      %v1137 = vld [vmem:[%s1 + $0x84] sm:$0xf]
      %v1138 = vld [vmem:[%s1 + $0x88] sm:$0xf]
      %v1139 = vld [vmem:[%s1 + $0x8c] sm:$0xf]
      %v1176 = vunpack.c.l.b16 %v1104
      %v1177 = vunpack.c.l.b16 %v1105
      %v1178 = vunpack.c.l.b16 %v1106
      %v1179 = vunpack.c.l.b16 %v1107
      %v1180 = vunpack.c.l.b16 %v1108
      %v1181 = vunpack.c.l.b16 %v1109
      %v1182 = vunpack.c.l.b16 %v1110
      %v1183 = vunpack.c.l.b16 %v1111
      %v1184 = vunpack.c.l.b16 %v1112
      %v1185 = vunpack.c.l.b16 %v1113
      %v1186 = vunpack.c.l.b16 %v1114
      %v1187 = vunpack.c.l.b16 %v1115
      %v1188 = vunpack.c.l.b16 %v1116
      %v1189 = vunpack.c.l.b16 %v1117
      %v1190 = vunpack.c.l.b16 %v1118
      %v1191 = vunpack.c.l.b16 %v1119
      %v1192 = vunpack.c.l.b16 %v1120
      %v1193 = vunpack.c.l.b16 %v1121
      %v1194 = vunpack.c.l.b16 %v1122
      %v1195 = vunpack.c.l.b16 %v1123
      %v1196 = vunpack.c.l.b16 %v1124
      %v1197 = vunpack.c.l.b16 %v1125
      %v1198 = vunpack.c.l.b16 %v1126
      %v1199 = vunpack.c.l.b16 %v1127
      %v1200 = vunpack.c.l.b16 %v1128
      %v1201 = vunpack.c.l.b16 %v1129
      %v1202 = vunpack.c.l.b16 %v1130
      %v1203 = vunpack.c.l.b16 %v1131
      %v1204 = vunpack.c.l.b16 %v1132
      %v1205 = vunpack.c.l.b16 %v1133
      %v1206 = vunpack.c.l.b16 %v1134
      %v1207 = vunpack.c.l.b16 %v1135
      %v1208 = vunpack.c.l.b16 %v1136
      %v1209 = vunpack.c.l.b16 %v1137
      %v1210 = vunpack.c.l.b16 %v1138
      %v1211 = vunpack.c.l.b16 %v1139
      %v1212 = vpack.c.b16 %v1177, %v1176
      %v1213 = vpack.c.b16 %v1179, %v1178
      %v1214 = vpack.c.b16 %v1181, %v1180
      %v1215 = vpack.c.b16 %v1183, %v1182
      %v1216 = vpack.c.b16 %v1185, %v1184
      %v1217 = vpack.c.b16 %v1187, %v1186
      %v1218 = vpack.c.b16 %v1189, %v1188
      %v1219 = vpack.c.b16 %v1191, %v1190
      %v1220 = vpack.c.b16 %v1193, %v1192
      %v1221 = vpack.c.b16 %v1195, %v1194
      %v1222 = vpack.c.b16 %v1197, %v1196
      %v1223 = vpack.c.b16 %v1199, %v1198
      %v1224 = vpack.c.b16 %v1201, %v1200
      %v1225 = vpack.c.b16 %v1203, %v1202
      %v1226 = vpack.c.b16 %v1205, %v1204
      %v1227 = vpack.c.b16 %v1207, %v1206
      %v1228 = vpack.c.b16 %v1209, %v1208
      %v1229 = vpack.c.b16 %v1211, %v1210
      %v1249 = vsel %vm861, %v615, 0
      %v1252 = vsel %vm861, %v618, 0
      %v1255 = vsel %vm861, %v621, 0
      %v1258 = vsel %vm861, %v624, 0
      %v1261 = vsel %vm861, %v627, 0
      %v1264 = vsel %vm861, %v630, 0
      %v1267 = vsel %vm861, %v633, 0
      %v1270 = vsel %vm861, %v636, 0
      %v1273 = vsel %vm861, %v639, 0
      %v1276 = vsel %vm861, %v642, 0
      %v1279 = vsel %vm861, %v645, 0
      %v1282 = vsel %vm861, %v648, 0
      %v1285 = vsel %vm861, %v651, 0
      %v1288 = vsel %vm861, %v654, 0
      %v1291 = vsel %vm861, %v741, 0
      %v1294 = vsel %vm861, %v860, 0
      %1296 = vmatprep.subr.bf16.mxu0 0
      %1297 = vmatpush1.bf16.msra.mxu0 %v1212
      %1298 = vmatprep.subr.bf16.mxu0 0
      %1299 = vmatpush1.bf16.msra.mxu0 %v1213
      %1300 = vmatprep.subr.bf16.mxu0 0
      %1301 = vmatpush1.bf16.msra.mxu0 %v1214
      %1302 = vmatprep.subr.bf16.mxu0 0
      %1303 = vmatpush1.bf16.msra.mxu0 %v1215
      %1304 = vmatprep.subr.bf16.mxu0 0
      %1305 = vmatpush1.bf16.msra.mxu0 %v1216
      %1306 = vmatprep.subr.bf16.mxu0 0
      %1307 = vmatpush1.bf16.msra.mxu0 %v1217
      %1308 = vmatprep.subr.bf16.mxu0 0
      %1309 = vmatpush1.bf16.msra.mxu0 %v1218
      %1310 = vmatprep.subr.bf16.mxu0 0
      %1311 = vmatpush1.bf16.msra.mxu0 %v1219
      %1312 = vmatprep.subr.bf16.mxu0 0
      %1313 = vmatpush1.bf16.msra.mxu0 %v1220
      %1314 = vmatprep.subr.bf16.mxu0 0
      %1315 = vmatpush1.bf16.msra.mxu0 %v1221
      %1316 = vmatprep.subr.bf16.mxu0 0
      %1317 = vmatpush1.bf16.msra.mxu0 %v1222
      %1318 = vmatprep.subr.bf16.mxu0 0
      %1319 = vmatpush1.bf16.msra.mxu0 %v1223
      %1320 = vmatprep.subr.bf16.mxu0 0
      %1321 = vmatpush1.bf16.msra.mxu0 %v1224
      %1322 = vmatprep.subr.bf16.mxu0 0
      %1323 = vmatpush1.bf16.msra.mxu0 %v1225
      %1324 = vmatprep.subr.bf16.mxu0 0
      %1325 = vmatpush1.bf16.msra.mxu0 %v1226
      %1326 = vmatprep.subr.bf16.mxu0 0
      %1327 = vmatpush1.bf16.msra.mxu0 %v1227
      %1328 = vmatprep.mubr.bf16.mxu0 %v1057
      %1329 = vmatmul.mubr.bf16.gmra.mrb[0].mxu0 %v929
      %v1330 = vpop.f32.mrb[0].mxu0
      %v1331 = vadd.f32 0.0, %v1330
      %v1332 = vpop.f32.mrb[0].mxu0
      %v1333 = vpop.f32.mrb[0].mxu0
      %v1334 = vadd.f32 0.0, %v1333
      %v1335 = vpop.f32.mrb[0].mxu0
      %1336 = vmatprep.mubr.bf16.mxu0 %v1060
      %1337 = vmatmul.mubr.bf16.gmra.mrb[0].mxu0 %v932
      %v1338 = vpop.f32.mrb[0].mxu0
      %v1339 = vadd.f32 0.0, %v1338
      %v1340 = vpop.f32.mrb[0].mxu0
      %v1341 = vpop.f32.mrb[0].mxu0
      %v1342 = vadd.f32 0.0, %v1341
      %v1343 = vpop.f32.mrb[0].mxu0
      %1344 = vmatprep.mubr.bf16.mxu0 %v1063
      %1345 = vmatmul.mubr.bf16.gmra.mrb[0].mxu0 %v935
      %v1346 = vpop.f32.mrb[0].mxu0
      %v1347 = vadd.f32 0.0, %v1346
      %v1348 = vpop.f32.mrb[0].mxu0
      %v1349 = vpop.f32.mrb[0].mxu0
      %v1350 = vadd.f32 0.0, %v1349
      %v1351 = vpop.f32.mrb[0].mxu0
      %1352 = vmatprep.mubr.bf16.mxu0 %v1066
      %1353 = vmatmul.mubr.bf16.gmra.mrb[0].mxu0 %v938
      %v1354 = vpop.f32.mrb[0].mxu0
      %v1355 = vadd.f32 0.0, %v1354
      %v1356 = vpop.f32.mrb[0].mxu0
      %v1357 = vpop.f32.mrb[0].mxu0
      %v1358 = vadd.f32 0.0, %v1357
      %v1359 = vpop.f32.mrb[0].mxu0
      %1360 = vmatprep.mubr.bf16.mxu0 %v1069
      %1361 = vmatmul.mubr.bf16.gmra.mrb[0].mxu0 %v941
      %v1362 = vpop.f32.mrb[0].mxu0
      %v1363 = vadd.f32 0.0, %v1362
      %v1364 = vpop.f32.mrb[0].mxu0
      %v1365 = vpop.f32.mrb[0].mxu0
      %v1366 = vadd.f32 0.0, %v1365
      %v1367 = vpop.f32.mrb[0].mxu0
      %1368 = vmatprep.mubr.bf16.mxu0 %v1072
      %1369 = vmatmul.mubr.bf16.gmra.mrb[0].mxu0 %v944
      %v1370 = vpop.f32.mrb[0].mxu0
      %v1371 = vadd.f32 0.0, %v1370
      %v1372 = vpop.f32.mrb[0].mxu0
      %v1373 = vpop.f32.mrb[0].mxu0
      %v1374 = vadd.f32 0.0, %v1373
      %v1375 = vpop.f32.mrb[0].mxu0
      %1376 = vmatprep.mubr.bf16.mxu0 %v1075
      %1377 = vmatmul.mubr.bf16.gmra.mrb[0].mxu0 %v947
      %v1378 = vpop.f32.mrb[0].mxu0
      %v1379 = vadd.f32 0.0, %v1378
      %v1380 = vpop.f32.mrb[0].mxu0
      %v1381 = vpop.f32.mrb[0].mxu0
      %v1382 = vadd.f32 0.0, %v1381
      %v1383 = vpop.f32.mrb[0].mxu0
      %1384 = vmatprep.mubr.bf16.mxu0 %v1078
      %1385 = vmatmul.mubr.bf16.gmra.mrb[0].mxu0 %v950
      %v1386 = vpop.f32.mrb[0].mxu0
      %v1387 = vadd.f32 0.0, %v1386
      %v1388 = vpop.f32.mrb[0].mxu0
      %v1389 = vpop.f32.mrb[0].mxu0
      %v1390 = vadd.f32 0.0, %v1389
      %v1391 = vpop.f32.mrb[0].mxu0
      %1392 = vmatprep.mubr.bf16.mxu0 %v1081
      %1393 = vmatmul.mubr.bf16.gmra.mrb[0].mxu0 %v953
      %v1394 = vpop.f32.mrb[0].mxu0
      %v1395 = vadd.f32 0.0, %v1394
      %v1396 = vpop.f32.mrb[0].mxu0
      %v1397 = vpop.f32.mrb[0].mxu0
      %v1398 = vadd.f32 0.0, %v1397
      %v1399 = vpop.f32.mrb[0].mxu0
      %1400 = vmatprep.mubr.bf16.mxu0 %v1084
      %1401 = vmatmul.mubr.bf16.gmra.mrb[0].mxu0 %v956
      %v1402 = vpop.f32.mrb[0].mxu0
      %v1403 = vadd.f32 0.0, %v1402
      %v1404 = vpop.f32.mrb[0].mxu0
      %v1405 = vpop.f32.mrb[0].mxu0
      %v1406 = vadd.f32 0.0, %v1405
      %v1407 = vpop.f32.mrb[0].mxu0
      %1408 = vmatprep.mubr.bf16.mxu0 %v1087
      %1409 = vmatmul.mubr.bf16.gmra.mrb[0].mxu0 %v959
      %v1410 = vpop.f32.mrb[0].mxu0
      %v1411 = vadd.f32 0.0, %v1410
      %v1412 = vpop.f32.mrb[0].mxu0
      %v1413 = vpop.f32.mrb[0].mxu0
      %v1414 = vadd.f32 0.0, %v1413
      %v1415 = vpop.f32.mrb[0].mxu0
      %1416 = vmatprep.mubr.bf16.mxu0 %v1090
      %1417 = vmatmul.mubr.bf16.gmra.mrb[0].mxu0 %v962
      %v1418 = vpop.f32.mrb[0].mxu0
      %v1419 = vadd.f32 0.0, %v1418
      %v1420 = vpop.f32.mrb[0].mxu0
      %v1421 = vpop.f32.mrb[0].mxu0
      %v1422 = vadd.f32 0.0, %v1421
      %v1423 = vpop.f32.mrb[0].mxu0
      %1424 = vmatprep.mubr.bf16.mxu0 %v1093
      %1425 = vmatmul.mubr.bf16.gmra.mrb[0].mxu0 %v965
      %v1426 = vpop.f32.mrb[0].mxu0
      %v1427 = vadd.f32 0.0, %v1426
      %v1428 = vpop.f32.mrb[0].mxu0
      %v1429 = vpop.f32.mrb[0].mxu0
      %v1430 = vadd.f32 0.0, %v1429
      %v1431 = vpop.f32.mrb[0].mxu0
      %1432 = vmatprep.mubr.bf16.mxu0 %v1096
      %1433 = vmatmul.mubr.bf16.gmra.mrb[0].mxu0 %v968
      %v1434 = vpop.f32.mrb[0].mxu0
      %v1435 = vadd.f32 0.0, %v1434
      %v1436 = vpop.f32.mrb[0].mxu0
      %v1437 = vpop.f32.mrb[0].mxu0
      %v1438 = vadd.f32 0.0, %v1437
      %v1439 = vpop.f32.mrb[0].mxu0
      %1440 = vmatprep.mubr.bf16.mxu0 %v1099
      %1441 = vmatmul.mubr.bf16.gmra.mrb[0].mxu0 %v971
      %v1442 = vpop.f32.mrb[0].mxu0
      %v1443 = vadd.f32 0.0, %v1442
      %v1444 = vpop.f32.mrb[0].mxu0
      %v1445 = vpop.f32.mrb[0].mxu0
      %v1446 = vadd.f32 0.0, %v1445
      %v1447 = vpop.f32.mrb[0].mxu0
      %1448 = vmatprep.mubr.bf16.mxu0 %v1102
      %1449 = vmatmul.mubr.bf16.gmra.mrb[0].mxu0 %v974
      %v1450 = vpop.f32.mrb[0].mxu0
      %v1451 = vadd.f32 0.0, %v1450
      %v1452 = vpop.f32.mrb[0].mxu0
      %v1453 = vpop.f32.mrb[0].mxu0
      %v1454 = vadd.f32 0.0, %v1453
      %v1455 = vpop.f32.mrb[0].mxu0
      %1456 = vdwg.mxu0
      %1457 = vmatprep.subr.bf16.mxu0 0
      %1458 = vmatpush1.bf16.msra.mxu0 %v1228
      %1459 = vmatprep.subr.bf16.mxu0 0
      %1460 = vmatpush1.bf16.msra.mxu0 %v1229
      %1461 = vmatprep.subr.bf16.mxu0 0
      %1462 = vmatpush1.bf16.msra.mxu0 0
      %1463 = vmatprep.subr.bf16.mxu0 0
      %1464 = vmatpush1.bf16.msra.mxu0 0
      %1465 = vmatprep.subr.bf16.mxu0 0
      %1466 = vmatpush1.bf16.msra.mxu0 0
      %1467 = vmatprep.subr.bf16.mxu0 0
      %1468 = vmatpush1.bf16.msra.mxu0 0
      %1469 = vmatprep.subr.bf16.mxu0 0
      %1470 = vmatpush1.bf16.msra.mxu0 0
      %1471 = vmatprep.subr.bf16.mxu0 0
      %1472 = vmatpush1.bf16.msra.mxu0 0
      %1473 = vmatprep.subr.bf16.mxu0 0
      %1474 = vmatpush1.bf16.msra.mxu0 0
      %1475 = vmatprep.subr.bf16.mxu0 0
      %1476 = vmatpush1.bf16.msra.mxu0 0
      %1477 = vmatprep.subr.bf16.mxu0 0
      %1478 = vmatpush1.bf16.msra.mxu0 0
      %1479 = vmatprep.subr.bf16.mxu0 0
      %1480 = vmatpush1.bf16.msra.mxu0 0
      %1481 = vmatprep.subr.bf16.mxu0 0
      %1482 = vmatpush1.bf16.msra.mxu0 0
      %1483 = vmatprep.subr.bf16.mxu0 0
      %1484 = vmatpush1.bf16.msra.mxu0 0
      %1485 = vmatprep.subr.bf16.mxu0 0
      %1486 = vmatpush1.bf16.msra.mxu0 0
      %1487 = vmatprep.subr.bf16.mxu0 0
      %1488 = vmatpush1.bf16.msra.mxu0 0
      %1489 = vmatprep.mubr.bf16.mxu0 0
      %1490 = vmatmul.mubr.bf16.gmra.mrb[0].mxu0 %v1249
      %v1491 = vpop.f32.mrb[0].mxu0
      %v1492 = vadd.f32 %v1331, %v1491
      %v1493 = vpop.f32.mrb[0].mxu0
      %v1494 = vpop.f32.mrb[0].mxu0
      %v1495 = vadd.f32 %v1334, %v1494
      %v1496 = vpop.f32.mrb[0].mxu0
      %1497 = vmatprep.mubr.bf16.mxu0 0
      %1498 = vmatmul.mubr.bf16.gmra.mrb[0].mxu0 %v1252
      %v1499 = vpop.f32.mrb[0].mxu0
      %v1500 = vadd.f32 %v1339, %v1499
      %v1501 = vpop.f32.mrb[0].mxu0
      %v1502 = vpop.f32.mrb[0].mxu0
      %v1503 = vadd.f32 %v1342, %v1502
      %v1504 = vpop.f32.mrb[0].mxu0
      %1505 = vmatprep.mubr.bf16.mxu0 0
      %1506 = vmatmul.mubr.bf16.gmra.mrb[0].mxu0 %v1255
      %v1507 = vpop.f32.mrb[0].mxu0
      %v1508 = vadd.f32 %v1347, %v1507
      %v1509 = vpop.f32.mrb[0].mxu0
      %v1510 = vpop.f32.mrb[0].mxu0
      %v1511 = vadd.f32 %v1350, %v1510
      %v1512 = vpop.f32.mrb[0].mxu0
      %1513 = vmatprep.mubr.bf16.mxu0 0
      %1514 = vmatmul.mubr.bf16.gmra.mrb[0].mxu0 %v1258
      %v1515 = vpop.f32.mrb[0].mxu0
      %v1516 = vadd.f32 %v1355, %v1515
      %v1517 = vpop.f32.mrb[0].mxu0
      %v1518 = vpop.f32.mrb[0].mxu0
      %v1519 = vadd.f32 %v1358, %v1518
      %v1520 = vpop.f32.mrb[0].mxu0
      %1521 = vmatprep.mubr.bf16.mxu0 0
      %1522 = vmatmul.mubr.bf16.gmra.mrb[0].mxu0 %v1261
      %v1523 = vpop.f32.mrb[0].mxu0
      %v1524 = vadd.f32 %v1363, %v1523
      %v1525 = vpop.f32.mrb[0].mxu0
      %v1526 = vpop.f32.mrb[0].mxu0
      %v1527 = vadd.f32 %v1366, %v1526
      %v1528 = vpop.f32.mrb[0].mxu0
      %1529 = vmatprep.mubr.bf16.mxu0 0
      %1530 = vmatmul.mubr.bf16.gmra.mrb[0].mxu0 %v1264
      %v1531 = vpop.f32.mrb[0].mxu0
      %v1532 = vadd.f32 %v1371, %v1531
      %v1533 = vpop.f32.mrb[0].mxu0
      %v1534 = vpop.f32.mrb[0].mxu0
      %v1535 = vadd.f32 %v1374, %v1534
      %v1536 = vpop.f32.mrb[0].mxu0
      %1537 = vmatprep.mubr.bf16.mxu0 0
      %1538 = vmatmul.mubr.bf16.gmra.mrb[0].mxu0 %v1267
      %v1539 = vpop.f32.mrb[0].mxu0
      %v1540 = vadd.f32 %v1379, %v1539
      %v1541 = vpop.f32.mrb[0].mxu0
      %v1542 = vpop.f32.mrb[0].mxu0
      %v1543 = vadd.f32 %v1382, %v1542
      %v1544 = vpop.f32.mrb[0].mxu0
      %1545 = vmatprep.mubr.bf16.mxu0 0
      %1546 = vmatmul.mubr.bf16.gmra.mrb[0].mxu0 %v1270
      %v1547 = vpop.f32.mrb[0].mxu0
      %v1548 = vadd.f32 %v1387, %v1547
      %v1549 = vpop.f32.mrb[0].mxu0
      %v1550 = vpop.f32.mrb[0].mxu0
      %v1551 = vadd.f32 %v1390, %v1550
      %v1552 = vpop.f32.mrb[0].mxu0
      %1553 = vmatprep.mubr.bf16.mxu0 0
      %1554 = vmatmul.mubr.bf16.gmra.mrb[0].mxu0 %v1273
      %v1555 = vpop.f32.mrb[0].mxu0
      %v1556 = vadd.f32 %v1395, %v1555
      %v1557 = vpop.f32.mrb[0].mxu0
      %v1558 = vpop.f32.mrb[0].mxu0
      %v1559 = vadd.f32 %v1398, %v1558
      %v1560 = vpop.f32.mrb[0].mxu0
      %1561 = vmatprep.mubr.bf16.mxu0 0
      %1562 = vmatmul.mubr.bf16.gmra.mrb[0].mxu0 %v1276
      %v1563 = vpop.f32.mrb[0].mxu0
      %v1564 = vadd.f32 %v1403, %v1563
      %v1565 = vpop.f32.mrb[0].mxu0
      %v1566 = vpop.f32.mrb[0].mxu0
      %v1567 = vadd.f32 %v1406, %v1566
      %v1568 = vpop.f32.mrb[0].mxu0
      %1569 = vmatprep.mubr.bf16.mxu0 0
      %1570 = vmatmul.mubr.bf16.gmra.mrb[0].mxu0 %v1279
      %v1571 = vpop.f32.mrb[0].mxu0
      %v1572 = vadd.f32 %v1411, %v1571
      %v1573 = vpop.f32.mrb[0].mxu0
      %v1574 = vpop.f32.mrb[0].mxu0
      %v1575 = vadd.f32 %v1414, %v1574
      %v1576 = vpop.f32.mrb[0].mxu0
      %1577 = vmatprep.mubr.bf16.mxu0 0
      %1578 = vmatmul.mubr.bf16.gmra.mrb[0].mxu0 %v1282
      %v1579 = vpop.f32.mrb[0].mxu0
      %v1580 = vadd.f32 %v1419, %v1579
      %v1581 = vpop.f32.mrb[0].mxu0
      %v1582 = vpop.f32.mrb[0].mxu0
      %v1583 = vadd.f32 %v1422, %v1582
      %v1584 = vpop.f32.mrb[0].mxu0
      %1585 = vmatprep.mubr.bf16.mxu0 0
      %1586 = vmatmul.mubr.bf16.gmra.mrb[0].mxu0 %v1285
      %v1587 = vpop.f32.mrb[0].mxu0
      %v1588 = vadd.f32 %v1427, %v1587
      %v1589 = vpop.f32.mrb[0].mxu0
      %v1590 = vpop.f32.mrb[0].mxu0
      %v1591 = vadd.f32 %v1430, %v1590
      %v1592 = vpop.f32.mrb[0].mxu0
      %1593 = vmatprep.mubr.bf16.mxu0 0
      %1594 = vmatmul.mubr.bf16.gmra.mrb[0].mxu0 %v1288
      %v1595 = vpop.f32.mrb[0].mxu0
      %v1596 = vadd.f32 %v1435, %v1595
      %v1597 = vpop.f32.mrb[0].mxu0
      %v1598 = vpop.f32.mrb[0].mxu0
      %v1599 = vadd.f32 %v1438, %v1598
      %v1600 = vpop.f32.mrb[0].mxu0
      %1601 = vmatprep.mubr.bf16.mxu0 0
      %1602 = vmatmul.mubr.bf16.gmra.mrb[0].mxu0 %v1291
      %v1603 = vpop.f32.mrb[0].mxu0
      %v1604 = vadd.f32 %v1443, %v1603
      %v1605 = vpop.f32.mrb[0].mxu0
      %v1606 = vpop.f32.mrb[0].mxu0
      %v1607 = vadd.f32 %v1446, %v1606
      %v1608 = vpop.f32.mrb[0].mxu0
      %1609 = vmatprep.mubr.bf16.mxu0 0
      %1610 = vmatmul.mubr.bf16.gmra.mrb[0].mxu0 %v1294
      %v1611 = vpop.f32.mrb[0].mxu0
      %v1612 = vadd.f32 %v1451, %v1611
      %v1613 = vpop.f32.mrb[0].mxu0
      %v1614 = vpop.f32.mrb[0].mxu0
      %v1615 = vadd.f32 %v1454, %v1614
      %v1616 = vpop.f32.mrb[0].mxu0
      %1617 = vdwg.mxu0
      %v1618 = vld [vmem:[%s2] sm:$0x1]
      %v1620 = vlaneseq
      %v1621 = vshrl.u32 %v1620, 7
      %v1622 = vsub.s32 0, %v1621
      %v1623 = vrot.slane %v1618, %v1622
      %v1625 = vmul.f32 %v1492, %v1623
      %v1626 = vmul.f32 %v1495, %v1623
      %v1627 = vmul.f32 %v1500, %v1623
      %v1628 = vmul.f32 %v1503, %v1623
      %v1629 = vmul.f32 %v1508, %v1623
      %v1630 = vmul.f32 %v1511, %v1623
      %v1631 = vmul.f32 %v1516, %v1623
      %v1632 = vmul.f32 %v1519, %v1623
      %v1633 = vmul.f32 %v1524, %v1623
      %v1634 = vmul.f32 %v1527, %v1623
      %v1635 = vmul.f32 %v1532, %v1623
      %v1636 = vmul.f32 %v1535, %v1623
      %v1637 = vmul.f32 %v1540, %v1623
      %v1638 = vmul.f32 %v1543, %v1623
      %v1639 = vmul.f32 %v1548, %v1623
      %v1640 = vmul.f32 %v1551, %v1623
      %v1641 = vmul.f32 %v1556, %v1623
      %v1642 = vmul.f32 %v1559, %v1623
      %v1643 = vmul.f32 %v1564, %v1623
      %v1644 = vmul.f32 %v1567, %v1623
      %v1645 = vmul.f32 %v1572, %v1623
      %v1646 = vmul.f32 %v1575, %v1623
      %v1647 = vmul.f32 %v1580, %v1623
      %v1648 = vmul.f32 %v1583, %v1623
      %v1649 = vmul.f32 %v1588, %v1623
      %v1650 = vmul.f32 %v1591, %v1623
      %v1651 = vmul.f32 %v1596, %v1623
      %v1652 = vmul.f32 %v1599, %v1623
      %v1653 = vmul.f32 %v1604, %v1623
      %v1654 = vmul.f32 %v1607, %v1623
      %v1655 = vmul.f32 %v1612, %v1623
      %v1656 = vmul.f32 %v1615, %v1623
      %v1657 = vld [vmem:[%s3] sm:$0x1]
      %v1659 = vlaneseq
      %v1660 = vshrl.u32 %v1659, 7
      %v1661 = vsub.s32 0, %v1660
      %v1662 = vrot.slane %v1657, %v1661
      %v1664 = vadd.f32 %v1625, %v1662
      %v1665 = vadd.f32 %v1626, %v1662
      %v1666 = vadd.f32 %v1627, %v1662
      %v1667 = vadd.f32 %v1628, %v1662
      %v1668 = vadd.f32 %v1629, %v1662
      %v1669 = vadd.f32 %v1630, %v1662
      %v1670 = vadd.f32 %v1631, %v1662
      %v1671 = vadd.f32 %v1632, %v1662
      %v1672 = vadd.f32 %v1633, %v1662
      %v1673 = vadd.f32 %v1634, %v1662
      %v1674 = vadd.f32 %v1635, %v1662
      %v1675 = vadd.f32 %v1636, %v1662
      %v1676 = vadd.f32 %v1637, %v1662
      %v1677 = vadd.f32 %v1638, %v1662
      %v1678 = vadd.f32 %v1639, %v1662
      %v1679 = vadd.f32 %v1640, %v1662
      %v1680 = vadd.f32 %v1641, %v1662
      %v1681 = vadd.f32 %v1642, %v1662
      %v1682 = vadd.f32 %v1643, %v1662
      %v1683 = vadd.f32 %v1644, %v1662
      %v1684 = vadd.f32 %v1645, %v1662
      %v1685 = vadd.f32 %v1646, %v1662
      %v1686 = vadd.f32 %v1647, %v1662
      %v1687 = vadd.f32 %v1648, %v1662
      %v1688 = vadd.f32 %v1649, %v1662
      %v1689 = vadd.f32 %v1650, %v1662
      %v1690 = vadd.f32 %v1651, %v1662
      %v1691 = vadd.f32 %v1652, %v1662
      %v1692 = vadd.f32 %v1653, %v1662
      %v1693 = vadd.f32 %v1654, %v1662
      %v1694 = vadd.f32 %v1655, %v1662
      %v1695 = vadd.f32 %v1656, %v1662
      %v1696 = vmax.f32 %v1664, 0.0
      %v1697 = vmax.f32 %v1665, 0.0
      %v1698 = vmax.f32 %v1666, 0.0
      %v1699 = vmax.f32 %v1667, 0.0
      %v1700 = vmax.f32 %v1668, 0.0
      %v1701 = vmax.f32 %v1669, 0.0
      %v1702 = vmax.f32 %v1670, 0.0
      %v1703 = vmax.f32 %v1671, 0.0
      %v1704 = vmax.f32 %v1672, 0.0
      %v1705 = vmax.f32 %v1673, 0.0
      %v1706 = vmax.f32 %v1674, 0.0
      %v1707 = vmax.f32 %v1675, 0.0
      %v1708 = vmax.f32 %v1676, 0.0
      %v1709 = vmax.f32 %v1677, 0.0
      %v1710 = vmax.f32 %v1678, 0.0
      %v1711 = vmax.f32 %v1679, 0.0
      %v1712 = vmax.f32 %v1680, 0.0
      %v1713 = vmax.f32 %v1681, 0.0
      %v1714 = vmax.f32 %v1682, 0.0
      %v1715 = vmax.f32 %v1683, 0.0
      %v1716 = vmax.f32 %v1684, 0.0
      %v1717 = vmax.f32 %v1685, 0.0
      %v1718 = vmax.f32 %v1686, 0.0
      %v1719 = vmax.f32 %v1687, 0.0
      %v1720 = vmax.f32 %v1688, 0.0
      %v1721 = vmax.f32 %v1689, 0.0
      %v1722 = vmax.f32 %v1690, 0.0
      %v1723 = vmax.f32 %v1691, 0.0
      %v1724 = vmax.f32 %v1692, 0.0
      %v1725 = vmax.f32 %v1693, 0.0
      %v1726 = vmax.f32 %v1694, 0.0
      %v1727 = vmax.f32 %v1695, 0.0
      %v1728 = vpack.c.bf16 %v1697, %v1696
      %v1729 = vpack.c.bf16 %v1699, %v1698
      %v1730 = vpack.c.bf16 %v1701, %v1700
      %v1731 = vpack.c.bf16 %v1703, %v1702
      %v1732 = vpack.c.bf16 %v1705, %v1704
      %v1733 = vpack.c.bf16 %v1707, %v1706
      %v1734 = vpack.c.bf16 %v1709, %v1708
      %v1735 = vpack.c.bf16 %v1711, %v1710
      %v1736 = vpack.c.bf16 %v1713, %v1712
      %v1737 = vpack.c.bf16 %v1715, %v1714
      %v1738 = vpack.c.bf16 %v1717, %v1716
      %v1739 = vpack.c.bf16 %v1719, %v1718
      %v1740 = vpack.c.bf16 %v1721, %v1720
      %v1741 = vpack.c.bf16 %v1723, %v1722
      %v1742 = vpack.c.bf16 %v1725, %v1724
      %v1743 = vpack.c.bf16 %v1727, %v1726
      %v1760 = vunpack.c.l.b16 %v1728
      %v1761 = vunpack.c.h.b16 %v1728
      %v1762 = vunpack.c.l.b16 %v1729
      %v1763 = vunpack.c.h.b16 %v1729
      %v1764 = vunpack.c.l.b16 %v1730
      %v1765 = vunpack.c.h.b16 %v1730
      %v1766 = vunpack.c.l.b16 %v1731
      %v1767 = vunpack.c.h.b16 %v1731
      %v1768 = vunpack.c.l.b16 %v1732
      %v1769 = vunpack.c.h.b16 %v1732
      %v1770 = vunpack.c.l.b16 %v1733
      %v1771 = vunpack.c.h.b16 %v1733
      %v1772 = vunpack.c.l.b16 %v1734
      %v1773 = vunpack.c.h.b16 %v1734
      %v1774 = vunpack.c.l.b16 %v1735
      %v1775 = vunpack.c.h.b16 %v1735
      %v1776 = vunpack.c.l.b16 %v1736
      %v1777 = vunpack.c.h.b16 %v1736
      %v1778 = vunpack.c.l.b16 %v1737
      %v1779 = vunpack.c.h.b16 %v1737
      %v1780 = vunpack.c.l.b16 %v1738
      %v1781 = vunpack.c.h.b16 %v1738
      %v1782 = vunpack.c.l.b16 %v1739
      %v1783 = vunpack.c.h.b16 %v1739
      %v1784 = vunpack.c.l.b16 %v1740
      %v1785 = vunpack.c.h.b16 %v1740
      %v1786 = vunpack.c.l.b16 %v1741
      %v1787 = vunpack.c.h.b16 %v1741
      %v1788 = vunpack.c.l.b16 %v1742
      %v1789 = vunpack.c.h.b16 %v1742
      %v1790 = vunpack.c.l.b16 %v1743
      %v1791 = vunpack.c.h.b16 %v1743
      %v1792 = vpack.c.b16 %v1760, %v1760
      %v1793 = vpack.c.b16 %v1761, %v1761
      %v1794 = vpack.c.b16 %v1762, %v1762
      %v1795 = vpack.c.b16 %v1763, %v1763
      %v1796 = vpack.c.b16 %v1764, %v1764
      %v1797 = vpack.c.b16 %v1765, %v1765
      %v1798 = vpack.c.b16 %v1766, %v1766
      %v1799 = vpack.c.b16 %v1767, %v1767
      %v1800 = vpack.c.b16 %v1768, %v1768
      %v1801 = vpack.c.b16 %v1769, %v1769
      %v1802 = vpack.c.b16 %v1770, %v1770
      %v1803 = vpack.c.b16 %v1771, %v1771
      %v1804 = vpack.c.b16 %v1772, %v1772
      %v1805 = vpack.c.b16 %v1773, %v1773
      %v1806 = vpack.c.b16 %v1774, %v1774
      %v1807 = vpack.c.b16 %v1775, %v1775
      %v1808 = vpack.c.b16 %v1776, %v1776
      %v1809 = vpack.c.b16 %v1777, %v1777
      %v1810 = vpack.c.b16 %v1778, %v1778
      %v1811 = vpack.c.b16 %v1779, %v1779
      %v1812 = vpack.c.b16 %v1780, %v1780
      %v1813 = vpack.c.b16 %v1781, %v1781
      %v1814 = vpack.c.b16 %v1782, %v1782
      %v1815 = vpack.c.b16 %v1783, %v1783
      %v1816 = vpack.c.b16 %v1784, %v1784
      %v1817 = vpack.c.b16 %v1785, %v1785
      %v1818 = vpack.c.b16 %v1786, %v1786
      %v1819 = vpack.c.b16 %v1787, %v1787
      %v1820 = vpack.c.b16 %v1788, %v1788
      %v1821 = vpack.c.b16 %v1789, %v1789
      %v1822 = vpack.c.b16 %v1790, %v1790
      %v1823 = vpack.c.b16 %v1791, %v1791
      %vm1856 = vcmask 257024
      %1857 = vst.msk [vmem:[%s197] sm:$0xf] %vm1856, %v1792
      %1858 = vst.msk [vmem:[%s197 + $0x4] sm:$0xf] %vm1856, %v1793
      %1859 = vst.msk [vmem:[%s197 + $0x8] sm:$0xf] %vm1856, %v1794
      %1860 = vst.msk [vmem:[%s197 + $0xc] sm:$0xf] %vm1856, %v1795
      %1861 = vst.msk [vmem:[%s197 + $0x10] sm:$0xf] %vm1856, %v1796
      %1862 = vst.msk [vmem:[%s197 + $0x14] sm:$0xf] %vm1856, %v1797
      %1863 = vst.msk [vmem:[%s197 + $0x18] sm:$0xf] %vm1856, %v1798
      %1864 = vst.msk [vmem:[%s197 + $0x1c] sm:$0xf] %vm1856, %v1799
      %1865 = vst.msk [vmem:[%s197 + $0x20] sm:$0xf] %vm1856, %v1800
      %1866 = vst.msk [vmem:[%s197 + $0x24] sm:$0xf] %vm1856, %v1801
      %1867 = vst.msk [vmem:[%s197 + $0x28] sm:$0xf] %vm1856, %v1802
      %1868 = vst.msk [vmem:[%s197 + $0x2c] sm:$0xf] %vm1856, %v1803
      %1869 = vst.msk [vmem:[%s197 + $0x30] sm:$0xf] %vm1856, %v1804
      %1870 = vst.msk [vmem:[%s197 + $0x34] sm:$0xf] %vm1856, %v1805
      %1871 = vst.msk [vmem:[%s197 + $0x38] sm:$0xf] %vm1856, %v1806
      %1872 = vst.msk [vmem:[%s197 + $0x3c] sm:$0xf] %vm1856, %v1807
      %1873 = vst.msk [vmem:[%s197 + $0x40] sm:$0xf] %vm1856, %v1808
      %1874 = vst.msk [vmem:[%s197 + $0x44] sm:$0xf] %vm1856, %v1809
      %1875 = vst.msk [vmem:[%s197 + $0x48] sm:$0xf] %vm1856, %v1810
      %1876 = vst.msk [vmem:[%s197 + $0x4c] sm:$0xf] %vm1856, %v1811
      %1877 = vst.msk [vmem:[%s197 + $0x50] sm:$0xf] %vm1856, %v1812
      %1878 = vst.msk [vmem:[%s197 + $0x54] sm:$0xf] %vm1856, %v1813
      %1879 = vst.msk [vmem:[%s197 + $0x58] sm:$0xf] %vm1856, %v1814
      %1880 = vst.msk [vmem:[%s197 + $0x5c] sm:$0xf] %vm1856, %v1815
      %1881 = vst.msk [vmem:[%s197 + $0x60] sm:$0xf] %vm1856, %v1816
      %1882 = vst.msk [vmem:[%s197 + $0x64] sm:$0xf] %vm1856, %v1817
      %1883 = vst.msk [vmem:[%s197 + $0x68] sm:$0xf] %vm1856, %v1818
      %1884 = vst.msk [vmem:[%s197 + $0x6c] sm:$0xf] %vm1856, %v1819
      %1885 = vst.msk [vmem:[%s197 + $0x70] sm:$0xf] %vm1856, %v1820
      %1886 = vst.msk [vmem:[%s197 + $0x74] sm:$0xf] %vm1856, %v1821
      %1887 = vst.msk [vmem:[%s197 + $0x78] sm:$0xf] %vm1856, %v1822
      %1888 = vst.msk [vmem:[%s197 + $0x7c] sm:$0xf] %vm1856, %v1823
      %p1889 = scmp.lt.s32.totalorder %s15, 1
      %s1890 = scalar_select %p1889, %s15, 1
      %s1891 = smul.addr %s1890, 32
      %s1892 = smul.addr %s1891, 4
      %s1893 = scalar_lea.vmem %s4, %s1892
      // Predicated region
      $region37: #{fcnn2_forward.6} parent=35 // pred_check
        %p1894 = pneg %p122
      $region38: #{fcnn2_forward.6} parent=35 // pred_check_branch
        %1896 = sbr.rel (%p1894) target = $region40
      $region39: #{fcnn2_forward.6} parent=35 // pred_region
        _
      $region40: #{fcnn2_forward.6} parent=35 // pred_fallthru
        _
    $region36: #{fcnn2_forward.6} parent=5 // pred_fallthru
      _
    %p1897 = scmp.le.s32.totalorder 2, %s10
    // Predicated region
    $region41: #{fcnn2_forward.6} parent=5 // pred_check
      %p1898 = pneg %p1897
    $region42: #{fcnn2_forward.6} parent=5 // pred_check_branch
      %1900 = sbr.rel (%p1898) target = $region44
    $region43: #{fcnn2_forward.6} parent=5 // pred_region
      %s1901 = ssub.s32 %s10, 2
      // Predicated region
      $region45: #{fcnn2_forward.6} parent=43 // pred_check
        %p1902 = pneg %p128
      $region46: #{fcnn2_forward.6} parent=43 // pred_check_branch
        %1904 = sbr.rel (%p1902) target = $region48
      $region47: #{fcnn2_forward.6} parent=43 // pred_region
        %p1905 = scmp.lt.s32.totalorder %s16, 1
        %s1906 = scalar_select %p1905, %s16, 1
        %s1907 = smul.addr %s1906, 32
        %s1908 = smul.addr %s1907, 4
        %s1909 = scalar_lea.vmem %s4, %s1908
      $region48: #{fcnn2_forward.6} parent=43 // pred_fallthru
        _
    $region44: #{fcnn2_forward.6} parent=5 // pred_fallthru
      _
  $region6: #{fcnn2_forward.6} parent=0 // loop_footer
    %s14 = sadd.s32 1, %s10
  $region7: #{fcnn2_forward.6} parent=0 // loop_footer_branch
    %9 = sbr.rel target = $region3
  $region8: #{fcnn2_forward.6} parent=0 // loop_exit
    _

// kernel: fcnn2_forward.7
$region0: #{fcnn2_forward.7}
  #allocation0 [shape = 'u32[]', space=smem, size = 0x4, offset = 0x4, fixed_abs, tag = 'smem constant byte address 0x4 - core index']
  #allocation1 [shape = 'u32[144,128]{1,0:T(1,128)}', space=vmem, size = 0x12000, scoped, tag = 'internal scratch']
  %s0 = inlined_call_operand.vmem [shape: bf16[2,18,18,32], index: 0, kind: input, shape index: {}]
  %s1 = inlined_call_operand.vmem [shape: bf16[288,32], index: 1, kind: input, shape index: {}]
  %s2 = inlined_call_operand.vmem [shape: f32[1,32], index: 2, kind: input, shape index: {}]
  %s3 = inlined_call_operand.vmem [shape: f32[1,32], index: 3, kind: input, shape index: {}]
  %s4 = inlined_call_operand.vmem [shape: f32[32,3], index: 4, kind: input, shape index: {}]
  %s5 = inlined_call_operand.vmem [shape: f32[1,3], index: 5, kind: input, shape index: {}]
  %s6 = inlined_call_operand.vmem [shape: f32[2,16,16,3], index: 6, kind: output, shape index: {}]
  %s7 = sld [smem:[#allocation0]]
  $region57: #{fcnn2_forward.7} parent=0
    _
  %s9 = ssub.s32 1, %s7
  %s10 = scalar_select 0, %s9, %s7
  loop: start=0, step=1, limit=4
  $region2: #{fcnn2_forward.7} parent=0 // loop_pre_header
    _
  $region3: #{fcnn2_forward.7} parent=0 // loop_header
    %s12 = sphi 0, %s16
    %p13 = scmp.ge.s32.totalorder %s12, 4
    %s22 = sphi 0, %s24
    %s25 = sphi 0, %s22
    %s26 = sphi 0, %s25
    %s42 = sphi 0, %s26
    %s46 = sphi 0, %s46
    %s48 = sphi 0, %s46
    %s49 = sphi 0, %s48
    %s63 = sphi 0, %s49
    %s67 = sphi 0, %s67
    %s69 = sphi 0, %s67
    %s70 = sphi 0, %s69
    %s84 = sphi 0, %s70
    %s88 = sphi 0, %s88
    %s90 = sphi 0, %s88
    %s91 = sphi 0, %s90
    %s105 = sphi 0, %s91
    %s109 = sphi 0, %s109
    %s111 = sphi 0, %s109
    %s112 = sphi 0, %s111
    %s126 = sphi 0, %s112
    %s130 = sphi 0, %s130
    %s132 = sphi 0, %s130
    %s133 = sphi 0, %s132
    %s147 = sphi 0, %s133
    %s153 = sphi 0, %s155
    %s156 = sphi 0, %s153
    %s157 = sphi 0, %s156
    %s173 = sphi 0, %s157
  $region4: #{fcnn2_forward.7} parent=0 // loop_header_branch
    %15 = sbr.rel (%p13) target = $region8
  $region5: #{fcnn2_forward.7} parent=0 // loop_body
    %s17 = ssub.s32 %s12, 1
    %s18 = ssub.s32 %s12, 2
    %s19 = sadd.s32 %s12, 1
    %s20 = ssub.s32 %s12, %s19
    %p21 = scmp.eq.s32.totalorder %s20, 0
    %s23 = sadd.s32 %s22, 1
    %s24 = scalar_select %p21, %s22, %s23
    %p27 = pneg %p21
    %p28 = scmp.eq.s32.totalorder %s12, 1
    %p29 = por %p27, %p28
    %p30 = scmp.ne.s32.totalorder %s22, %s25
    %p31 = scmp.eq.s32.totalorder %s12, 0
    %p32 = por %p30, %p31
    %p33 = scmp.ne.s32.totalorder %s22, %s25
    %p34 = scmp.eq.s32.totalorder %s17, 1
    %p35 = por %p33, %p34
    %p36 = scmp.ne.s32.totalorder %s25, %s26
    %p37 = scmp.eq.s32.totalorder %s17, 0
    %p38 = por %p36, %p37
    %p39 = scmp.ne.s32.totalorder %s25, %s26
    %p40 = scmp.eq.s32.totalorder %s18, 1
    %p41 = por %p39, %p40
    %p43 = scmp.ne.s32.totalorder %s26, %s42
    %p44 = scmp.eq.s32.totalorder %s18, 0
    %p45 = por %p43, %p44
    %s47 = sadd.s32 %s46, 1
    %p50 = scmp.eq.s32.totalorder %s12, 1
    %p51 = scmp.ne.s32.totalorder %s46, %s48
    %p52 = scmp.eq.s32.totalorder %s12, 0
    %p53 = por %p51, %p52
    %p54 = scmp.ne.s32.totalorder %s46, %s48
    %p55 = scmp.eq.s32.totalorder %s17, 1
    %p56 = por %p54, %p55
    %p57 = scmp.ne.s32.totalorder %s48, %s49
    %p58 = scmp.eq.s32.totalorder %s17, 0
    %p59 = por %p57, %p58
    %p60 = scmp.ne.s32.totalorder %s48, %s49
    %p61 = scmp.eq.s32.totalorder %s18, 1
    %p62 = por %p60, %p61
    %p64 = scmp.ne.s32.totalorder %s49, %s63
    %p65 = scmp.eq.s32.totalorder %s18, 0
    %p66 = por %p64, %p65
    %s68 = sadd.s32 %s67, 1
    %p71 = scmp.eq.s32.totalorder %s12, 1
    %p72 = scmp.ne.s32.totalorder %s67, %s69
    %p73 = scmp.eq.s32.totalorder %s12, 0
    %p74 = por %p72, %p73
    %p75 = scmp.ne.s32.totalorder %s67, %s69
    %p76 = scmp.eq.s32.totalorder %s17, 1
    %p77 = por %p75, %p76
    %p78 = scmp.ne.s32.totalorder %s69, %s70
    %p79 = scmp.eq.s32.totalorder %s17, 0
    %p80 = por %p78, %p79
    %p81 = scmp.ne.s32.totalorder %s69, %s70
    %p82 = scmp.eq.s32.totalorder %s18, 1
    %p83 = por %p81, %p82
    %p85 = scmp.ne.s32.totalorder %s70, %s84
    %p86 = scmp.eq.s32.totalorder %s18, 0
    %p87 = por %p85, %p86
    %s89 = sadd.s32 %s88, 1
    %p92 = scmp.eq.s32.totalorder %s12, 1
    %p93 = scmp.ne.s32.totalorder %s88, %s90
    %p94 = scmp.eq.s32.totalorder %s12, 0
    %p95 = por %p93, %p94
    %p96 = scmp.ne.s32.totalorder %s88, %s90
    %p97 = scmp.eq.s32.totalorder %s17, 1
    %p98 = por %p96, %p97
    %p99 = scmp.ne.s32.totalorder %s90, %s91
    %p100 = scmp.eq.s32.totalorder %s17, 0
    %p101 = por %p99, %p100
    %p102 = scmp.ne.s32.totalorder %s90, %s91
    %p103 = scmp.eq.s32.totalorder %s18, 1
    %p104 = por %p102, %p103
    %p106 = scmp.ne.s32.totalorder %s91, %s105
    %p107 = scmp.eq.s32.totalorder %s18, 0
    %p108 = por %p106, %p107
    %s110 = sadd.s32 %s109, 1
    %p113 = scmp.eq.s32.totalorder %s12, 1
    %p114 = scmp.ne.s32.totalorder %s109, %s111
    %p115 = scmp.eq.s32.totalorder %s12, 0
    %p116 = por %p114, %p115
    %p117 = scmp.ne.s32.totalorder %s109, %s111
    %p118 = scmp.eq.s32.totalorder %s17, 1
    %p119 = por %p117, %p118
    %p120 = scmp.ne.s32.totalorder %s111, %s112
    %p121 = scmp.eq.s32.totalorder %s17, 0
    %p122 = por %p120, %p121
    %p123 = scmp.ne.s32.totalorder %s111, %s112
    %p124 = scmp.eq.s32.totalorder %s18, 1
    %p125 = por %p123, %p124
    %p127 = scmp.ne.s32.totalorder %s112, %s126
    %p128 = scmp.eq.s32.totalorder %s18, 0
    %p129 = por %p127, %p128
    %s131 = sadd.s32 %s130, 1
    %p134 = scmp.eq.s32.totalorder %s12, 1
    %p135 = scmp.ne.s32.totalorder %s130, %s132
    %p136 = scmp.eq.s32.totalorder %s12, 0
    %p137 = por %p135, %p136
    %p138 = scmp.ne.s32.totalorder %s130, %s132
    %p139 = scmp.eq.s32.totalorder %s17, 1
    %p140 = por %p138, %p139
    %p141 = scmp.ne.s32.totalorder %s132, %s133
    %p142 = scmp.eq.s32.totalorder %s17, 0
    %p143 = por %p141, %p142
    %p144 = scmp.ne.s32.totalorder %s132, %s133
    %p145 = scmp.eq.s32.totalorder %s18, 1
    %p146 = por %p144, %p145
    %p148 = scmp.ne.s32.totalorder %s133, %s147
    %p149 = scmp.eq.s32.totalorder %s18, 0
    %p150 = por %p148, %p149
    %s151 = ssub.s32 %s12, %s19
    %p152 = scmp.eq.s32.totalorder %s151, 0
    %s154 = sadd.s32 %s153, 1
    %s155 = scalar_select %p152, %s153, %s154
    %p158 = pneg %p152
    %p159 = scmp.eq.s32.totalorder %s12, 1
    %p160 = por %p158, %p159
    %p161 = scmp.ne.s32.totalorder %s153, %s156
    %p162 = scmp.eq.s32.totalorder %s12, 0
    %p163 = por %p161, %p162
    %p164 = scmp.ne.s32.totalorder %s153, %s156
    %p165 = scmp.eq.s32.totalorder %s17, 1
    %p166 = por %p164, %p165
    %p167 = scmp.ne.s32.totalorder %s156, %s157
    %p168 = scmp.eq.s32.totalorder %s17, 0
    %p169 = por %p167, %p168
    %p170 = scmp.ne.s32.totalorder %s156, %s157
    %p171 = scmp.eq.s32.totalorder %s18, 1
    %p172 = por %p170, %p171
    %p174 = scmp.ne.s32.totalorder %s157, %s173
    %p175 = scmp.eq.s32.totalorder %s18, 0
    %p176 = por %p174, %p175
    %p177 = scmp.le.s32.totalorder 1, %s12
    %p178 = scmp.lt.s32.totalorder %s12, 3
    %p179 = pnand %p177, %p178
    %p180 = pneg %p179
    // Predicated region
    $region9: #{fcnn2_forward.7} parent=5 // pred_check
      _
    $region10: #{fcnn2_forward.7} parent=5 // pred_check_branch
      %182 = sbr.rel (%p179) target = $region12
    $region11: #{fcnn2_forward.7} parent=5 // pred_region
      %s183 = ssub.s32 %s12, 1
      // Predicated region
      $region13: #{fcnn2_forward.7} parent=11 // pred_check
        %p184 = pneg %p59
      $region14: #{fcnn2_forward.7} parent=11 // pred_check_branch
        %186 = sbr.rel (%p184) target = $region16
      $region15: #{fcnn2_forward.7} parent=11 // pred_region
        _
      $region16: #{fcnn2_forward.7} parent=11 // pred_fallthru
        _
      // Predicated region
      $region17: #{fcnn2_forward.7} parent=11 // pred_check
        %p187 = pneg %p80
      $region18: #{fcnn2_forward.7} parent=11 // pred_check_branch
        %189 = sbr.rel (%p187) target = $region20
      $region19: #{fcnn2_forward.7} parent=11 // pred_region
        _
      $region20: #{fcnn2_forward.7} parent=11 // pred_fallthru
        _
      // Predicated region
      $region21: #{fcnn2_forward.7} parent=11 // pred_check
        %p190 = pneg %p101
      $region22: #{fcnn2_forward.7} parent=11 // pred_check_branch
        %192 = sbr.rel (%p190) target = $region24
      $region23: #{fcnn2_forward.7} parent=11 // pred_region
        _
      $region24: #{fcnn2_forward.7} parent=11 // pred_fallthru
        _
      // Predicated region
      $region25: #{fcnn2_forward.7} parent=11 // pred_check
        %p193 = pneg %p122
      $region26: #{fcnn2_forward.7} parent=11 // pred_check_branch
        %195 = sbr.rel (%p193) target = $region28
      $region27: #{fcnn2_forward.7} parent=11 // pred_region
        _
      $region28: #{fcnn2_forward.7} parent=11 // pred_fallthru
        _
      // Predicated region
      $region29: #{fcnn2_forward.7} parent=11 // pred_check
        %p196 = pneg %p143
      $region30: #{fcnn2_forward.7} parent=11 // pred_check_branch
        %198 = sbr.rel (%p196) target = $region32
      $region31: #{fcnn2_forward.7} parent=11 // pred_region
        _
      $region32: #{fcnn2_forward.7} parent=11 // pred_fallthru
        _
    $region12: #{fcnn2_forward.7} parent=5 // pred_fallthru
      _
    %p199 = scmp.lt.s32.totalorder %s12, 2
    // Predicated region
    $region33: #{fcnn2_forward.7} parent=5 // pred_check
      %p200 = pneg %p199
    $region34: #{fcnn2_forward.7} parent=5 // pred_check_branch
      %202 = sbr.rel (%p200) target = $region36
    $region35: #{fcnn2_forward.7} parent=5 // pred_region
      // Predicated region
      $region37: #{fcnn2_forward.7} parent=35 // pred_check
        %p203 = pneg %p32
      $region38: #{fcnn2_forward.7} parent=35 // pred_check_branch
        %205 = sbr.rel (%p203) target = $region40
      $region39: #{fcnn2_forward.7} parent=35 // pred_region
        %p206 = scmp.lt.s32.totalorder %s12, 1
        %s207 = scalar_select %p206, %s12, 1
        %s208 = smul.addr %s207, 54
        %s209 = smul.addr %s208, 4
        %s210 = scalar_lea.vmem %s0, %s209
      $region40: #{fcnn2_forward.7} parent=35 // pred_fallthru
        _
    $region36: #{fcnn2_forward.7} parent=5 // pred_fallthru
      _
    %p211 = scmp.le.s32.totalorder 1, %s12
    %p212 = scmp.lt.s32.totalorder %s12, 3
    %p213 = pnand %p211, %p212
    %p214 = pneg %p213
    // Predicated region
    $region41: #{fcnn2_forward.7} parent=5 // pred_check
      _
    $region42: #{fcnn2_forward.7} parent=5 // pred_check_branch
      %216 = sbr.rel (%p213) target = $region44
    $region43: #{fcnn2_forward.7} parent=5 // pred_region
      %s217 = ssub.s32 %s12, 1
      %p218 = scmp.lt.s32.totalorder %s17, 1
      %s219 = scalar_select %p218, %s17, 1
      %s220 = smul.addr %s219, 54
      %s221 = smul.addr %s220, 4
      %s222 = scalar_lea.vmem %s0, %s221
      %p223 = pneg %p38
      %p224 = pneg %p35
      %p225 = pneg %p59
      %p226 = pneg %p56
      %p227 = pneg %p80
      %p228 = pneg %p77
      %p229 = pneg %p101
      %p230 = pneg %p98
      %p231 = pneg %p122
      %p232 = pneg %p119
      %p233 = pneg %p143
      %p234 = pneg %p140
      %p235 = pneg %p169
      %p236 = pneg %p166
      %p237 = scmp.lt.s32.totalorder %s17, 1
      %s238 = scalar_select %p237, %s17, 1
      %s239 = smul.addr %s238, 32
      %s240 = smul.addr %s239, 8
      %s241 = scalar_lea.vmem %s6, %s240
      %p242 = scmp.lt.s32.totalorder %s17, 1
      %s243 = scalar_select %p242, %s17, 1
      %s244 = smul.addr %s243, 54
      %s245 = smul.addr %s244, 4
      %s246 = scalar_lea.vmem %s0, %s245
      %p247 = scmp.lt.s32.totalorder %s17, 1
      %s248 = scalar_select %p247, %s17, 1
      %s249 = smul.addr %s248, 32
      %s250 = smul.addr %s249, 8
      %s251 = scalar_lea.vmem %s6, %s250
      %v253 = vld [vmem:[%s246] sm:$0xf]
      %v254 = vld [vmem:[%s246 + $0x4] sm:$0xf]
      %v255 = vld [vmem:[%s246 + $0x8] sm:$0x1]
      %v256 = vld [vmem:[%s246 + $0xc] sm:$0xf]
      %v257 = vld [vmem:[%s246 + $0x10] sm:$0xf]
      %v258 = vld [vmem:[%s246 + $0x14] sm:$0x1]
      %v259 = vld [vmem:[%s246 + $0x18] sm:$0xf]
      %v260 = vld [vmem:[%s246 + $0x1c] sm:$0xf]
      %v261 = vld [vmem:[%s246 + $0x20] sm:$0x1]
      %v262 = vld [vmem:[%s246 + $0x24] sm:$0xf]
      %v263 = vld [vmem:[%s246 + $0x28] sm:$0xf]
      %v264 = vld [vmem:[%s246 + $0x2c] sm:$0x1]
      %v265 = vld [vmem:[%s246 + $0x30] sm:$0xf]
      %v266 = vld [vmem:[%s246 + $0x34] sm:$0xf]
      %v267 = vld [vmem:[%s246 + $0x38] sm:$0x1]
      %v268 = vld [vmem:[%s246 + $0x3c] sm:$0xf]
      %v269 = vld [vmem:[%s246 + $0x40] sm:$0xf]
      %v270 = vld [vmem:[%s246 + $0x44] sm:$0x1]
      %v271 = vld [vmem:[%s246 + $0x48] sm:$0xf]
      %v272 = vld [vmem:[%s246 + $0x4c] sm:$0xf]
      %v273 = vld [vmem:[%s246 + $0x50] sm:$0x1]
      %v274 = vld [vmem:[%s246 + $0x54] sm:$0xf]
      %v275 = vld [vmem:[%s246 + $0x58] sm:$0xf]
      %v276 = vld [vmem:[%s246 + $0x5c] sm:$0x1]
      %v277 = vld [vmem:[%s246 + $0x60] sm:$0xf]
      %v278 = vld [vmem:[%s246 + $0x64] sm:$0xf]
      %v279 = vld [vmem:[%s246 + $0x68] sm:$0x1]
      %v280 = vld [vmem:[%s246 + $0x6c] sm:$0xf]
      %v281 = vld [vmem:[%s246 + $0x70] sm:$0xf]
      %v282 = vld [vmem:[%s246 + $0x74] sm:$0x1]
      %v283 = vld [vmem:[%s246 + $0x78] sm:$0xf]
      %v284 = vld [vmem:[%s246 + $0x7c] sm:$0xf]
      %v285 = vld [vmem:[%s246 + $0x80] sm:$0x1]
      %v286 = vld [vmem:[%s246 + $0x84] sm:$0xf]
      %v287 = vld [vmem:[%s246 + $0x88] sm:$0xf]
      %v288 = vld [vmem:[%s246 + $0x8c] sm:$0x1]
      %v289 = vld [vmem:[%s246 + $0x90] sm:$0xf]
      %v290 = vld [vmem:[%s246 + $0x94] sm:$0xf]
      %v291 = vld [vmem:[%s246 + $0x98] sm:$0x1]
      %v292 = vld [vmem:[%s246 + $0x9c] sm:$0xf]
      %v293 = vld [vmem:[%s246 + $0xa0] sm:$0xf]
      %v294 = vld [vmem:[%s246 + $0xa4] sm:$0x1]
      %v295 = vld [vmem:[%s246 + $0xa8] sm:$0xf]
      %v296 = vld [vmem:[%s246 + $0xac] sm:$0xf]
      %v297 = vld [vmem:[%s246 + $0xb0] sm:$0x1]
      %v298 = vld [vmem:[%s246 + $0xb4] sm:$0xf]
      %v299 = vld [vmem:[%s246 + $0xb8] sm:$0xf]
      %v300 = vld [vmem:[%s246 + $0xbc] sm:$0x1]
      %v301 = vld [vmem:[%s246 + $0xc0] sm:$0xf]
      %v302 = vld [vmem:[%s246 + $0xc4] sm:$0xf]
      %v303 = vld [vmem:[%s246 + $0xc8] sm:$0x1]
      %v304 = vld [vmem:[%s246 + $0xcc] sm:$0xf]
      %v305 = vld [vmem:[%s246 + $0xd0] sm:$0xf]
      %v306 = vld [vmem:[%s246 + $0xd4] sm:$0x1]
      %v339 = vunpack.c.l.b16 %v253
      %v340 = vunpack.c.l.b16 %v254
      %v341 = vunpack.c.l.b16 %v256
      %v342 = vunpack.c.l.b16 %v257
      %v343 = vunpack.c.l.b16 %v259
      %v344 = vunpack.c.l.b16 %v260
      %v345 = vunpack.c.l.b16 %v262
      %v346 = vunpack.c.l.b16 %v263
      %v347 = vunpack.c.l.b16 %v265
      %v348 = vunpack.c.l.b16 %v266
      %v349 = vunpack.c.l.b16 %v268
      %v350 = vunpack.c.l.b16 %v269
      %v351 = vunpack.c.l.b16 %v271
      %v352 = vunpack.c.l.b16 %v272
      %v353 = vunpack.c.l.b16 %v274
      %v354 = vunpack.c.l.b16 %v275
      %v355 = vunpack.c.l.b16 %v277
      %v356 = vunpack.c.l.b16 %v278
      %v357 = vunpack.c.l.b16 %v280
      %v358 = vunpack.c.l.b16 %v281
      %v359 = vunpack.c.l.b16 %v283
      %v360 = vunpack.c.l.b16 %v284
      %v361 = vunpack.c.l.b16 %v286
      %v362 = vunpack.c.l.b16 %v287
      %v363 = vunpack.c.l.b16 %v289
      %v364 = vunpack.c.l.b16 %v290
      %v365 = vunpack.c.l.b16 %v292
      %v366 = vunpack.c.l.b16 %v293
      %v367 = vunpack.c.l.b16 %v295
      %v368 = vunpack.c.l.b16 %v296
      %v369 = vunpack.c.l.b16 %v298
      %v370 = vunpack.c.l.b16 %v299
      %v371 = vpack.c.b16 %v340, %v339
      %v372 = vpack.c.b16 %v342, %v341
      %v373 = vpack.c.b16 %v344, %v343
      %v374 = vpack.c.b16 %v346, %v345
      %v375 = vpack.c.b16 %v348, %v347
      %v376 = vpack.c.b16 %v350, %v349
      %v377 = vpack.c.b16 %v352, %v351
      %v378 = vpack.c.b16 %v354, %v353
      %v379 = vpack.c.b16 %v356, %v355
      %v380 = vpack.c.b16 %v358, %v357
      %v381 = vpack.c.b16 %v360, %v359
      %v382 = vpack.c.b16 %v362, %v361
      %v383 = vpack.c.b16 %v364, %v363
      %v384 = vpack.c.b16 %v366, %v365
      %v385 = vpack.c.b16 %v368, %v367
      %v386 = vpack.c.b16 %v370, %v369
      %v403 = vunpack.c.l.b16 %v255
      %v404 = vunpack.c.l.b16 %v258
      %v405 = vunpack.c.l.b16 %v261
      %v406 = vunpack.c.l.b16 %v264
      %v407 = vunpack.c.l.b16 %v267
      %v408 = vunpack.c.l.b16 %v270
      %v409 = vunpack.c.l.b16 %v273
      %v410 = vunpack.c.l.b16 %v276
      %v411 = vunpack.c.l.b16 %v279
      %v412 = vunpack.c.l.b16 %v282
      %v413 = vunpack.c.l.b16 %v285
      %v414 = vunpack.c.l.b16 %v288
      %v415 = vunpack.c.l.b16 %v291
      %v416 = vunpack.c.l.b16 %v294
      %v417 = vunpack.c.l.b16 %v297
      %v418 = vunpack.c.l.b16 %v300
      %v419 = vpack.c.b16 %v403, %v403
      %v420 = vpack.c.b16 %v404, %v404
      %v421 = vpack.c.b16 %v405, %v405
      %v422 = vpack.c.b16 %v406, %v406
      %v423 = vpack.c.b16 %v407, %v407
      %v424 = vpack.c.b16 %v408, %v408
      %v425 = vpack.c.b16 %v409, %v409
      %v426 = vpack.c.b16 %v410, %v410
      %v427 = vpack.c.b16 %v411, %v411
      %v428 = vpack.c.b16 %v412, %v412
      %v429 = vpack.c.b16 %v413, %v413
      %v430 = vpack.c.b16 %v414, %v414
      %v431 = vpack.c.b16 %v415, %v415
      %v432 = vpack.c.b16 %v416, %v416
      %v433 = vpack.c.b16 %v417, %v417
      %v434 = vpack.c.b16 %v418, %v418
      %vm435 = vsmask.f32 7424
      %v437 = vshrl.u32 %v371, 16
      %v439 = vshll.u32 %v371, 16
      %v441 = vrot.slane %v439, 1
      %v442 = vor.u32 %v437, %v441
      %v444 = vshll.u32 %v419, 16
      %v446 = vrot.slane %v444, 1
      %v447 = vsel %vm435, %v442, %v446
      %v449 = vshrl.u32 %v372, 16
      %v451 = vshll.u32 %v372, 16
      %v453 = vrot.slane %v451, 1
      %v454 = vor.u32 %v449, %v453
      %v456 = vshll.u32 %v420, 16
      %v458 = vrot.slane %v456, 1
      %v459 = vsel %vm435, %v454, %v458
      %v461 = vshrl.u32 %v373, 16
      %v463 = vshll.u32 %v373, 16
      %v465 = vrot.slane %v463, 1
      %v466 = vor.u32 %v461, %v465
      %v468 = vshll.u32 %v421, 16
      %v470 = vrot.slane %v468, 1
      %v471 = vsel %vm435, %v466, %v470
      %v473 = vshrl.u32 %v374, 16
      %v475 = vshll.u32 %v374, 16
      %v477 = vrot.slane %v475, 1
      %v478 = vor.u32 %v473, %v477
      %v480 = vshll.u32 %v422, 16
      %v482 = vrot.slane %v480, 1
      %v483 = vsel %vm435, %v478, %v482
      %v485 = vshrl.u32 %v375, 16
      %v487 = vshll.u32 %v375, 16
      %v489 = vrot.slane %v487, 1
      %v490 = vor.u32 %v485, %v489
      %v492 = vshll.u32 %v423, 16
      %v494 = vrot.slane %v492, 1
      %v495 = vsel %vm435, %v490, %v494
      %v497 = vshrl.u32 %v376, 16
      %v499 = vshll.u32 %v376, 16
      %v501 = vrot.slane %v499, 1
      %v502 = vor.u32 %v497, %v501
      %v504 = vshll.u32 %v424, 16
      %v506 = vrot.slane %v504, 1
      %v507 = vsel %vm435, %v502, %v506
      %v509 = vshrl.u32 %v377, 16
      %v511 = vshll.u32 %v377, 16
      %v513 = vrot.slane %v511, 1
      %v514 = vor.u32 %v509, %v513
      %v516 = vshll.u32 %v425, 16
      %v518 = vrot.slane %v516, 1
      %v519 = vsel %vm435, %v514, %v518
      %v521 = vshrl.u32 %v378, 16
      %v523 = vshll.u32 %v378, 16
      %v525 = vrot.slane %v523, 1
      %v526 = vor.u32 %v521, %v525
      %v528 = vshll.u32 %v426, 16
      %v530 = vrot.slane %v528, 1
      %v531 = vsel %vm435, %v526, %v530
      %v533 = vshrl.u32 %v379, 16
      %v535 = vshll.u32 %v379, 16
      %v537 = vrot.slane %v535, 1
      %v538 = vor.u32 %v533, %v537
      %v540 = vshll.u32 %v427, 16
      %v542 = vrot.slane %v540, 1
      %v543 = vsel %vm435, %v538, %v542
      %v545 = vshrl.u32 %v380, 16
      %v547 = vshll.u32 %v380, 16
      %v549 = vrot.slane %v547, 1
      %v550 = vor.u32 %v545, %v549
      %v552 = vshll.u32 %v428, 16
      %v554 = vrot.slane %v552, 1
      %v555 = vsel %vm435, %v550, %v554
      %v557 = vshrl.u32 %v381, 16
      %v559 = vshll.u32 %v381, 16
      %v561 = vrot.slane %v559, 1
      %v562 = vor.u32 %v557, %v561
      %v564 = vshll.u32 %v429, 16
      %v566 = vrot.slane %v564, 1
      %v567 = vsel %vm435, %v562, %v566
      %v569 = vshrl.u32 %v382, 16
      %v571 = vshll.u32 %v382, 16
      %v573 = vrot.slane %v571, 1
      %v574 = vor.u32 %v569, %v573
      %v576 = vshll.u32 %v430, 16
      %v578 = vrot.slane %v576, 1
      %v579 = vsel %vm435, %v574, %v578
      %v581 = vshrl.u32 %v383, 16
      %v583 = vshll.u32 %v383, 16
      %v585 = vrot.slane %v583, 1
      %v586 = vor.u32 %v581, %v585
      %v588 = vshll.u32 %v431, 16
      %v590 = vrot.slane %v588, 1
      %v591 = vsel %vm435, %v586, %v590
      %v593 = vshrl.u32 %v384, 16
      %v595 = vshll.u32 %v384, 16
      %v597 = vrot.slane %v595, 1
      %v598 = vor.u32 %v593, %v597
      %v600 = vshll.u32 %v432, 16
      %v602 = vrot.slane %v600, 1
      %v603 = vsel %vm435, %v598, %v602
      %v605 = vshrl.u32 %v385, 16
      %v607 = vshll.u32 %v385, 16
      %v609 = vrot.slane %v607, 1
      %v610 = vor.u32 %v605, %v609
      %v612 = vshll.u32 %v433, 16
      %v614 = vrot.slane %v612, 1
      %v615 = vsel %vm435, %v610, %v614
      %v617 = vshrl.u32 %v386, 16
      %v619 = vshll.u32 %v386, 16
      %v621 = vrot.slane %v619, 1
      %v622 = vor.u32 %v617, %v621
      %v624 = vshll.u32 %v434, 16
      %v626 = vrot.slane %v624, 1
      %v627 = vsel %vm435, %v622, %v626
      %628 = vrot.lane.b32.xlu0 %v447, 32
      %v629 = vpop.permute.xlu0 %628
      %630 = vrot.lane.b32.xlu0 %v459, 32
      %v631 = vpop.permute.xlu0 %630
      %632 = vrot.lane.b32.xlu0 %v471, 32
      %v633 = vpop.permute.xlu0 %632
      %634 = vrot.lane.b32.xlu0 %v483, 32
      %v635 = vpop.permute.xlu0 %634
      %636 = vrot.lane.b32.xlu0 %v495, 32
      %v637 = vpop.permute.xlu0 %636
      %638 = vrot.lane.b32.xlu0 %v507, 32
      %v639 = vpop.permute.xlu0 %638
      %640 = vrot.lane.b32.xlu0 %v519, 32
      %v641 = vpop.permute.xlu0 %640
      %642 = vrot.lane.b32.xlu0 %v531, 32
      %v643 = vpop.permute.xlu0 %642
      %644 = vrot.lane.b32.xlu0 %v543, 32
      %v645 = vpop.permute.xlu0 %644
      %646 = vrot.lane.b32.xlu0 %v555, 32
      %v647 = vpop.permute.xlu0 %646
      %648 = vrot.lane.b32.xlu0 %v567, 32
      %v649 = vpop.permute.xlu0 %648
      %650 = vrot.lane.b32.xlu0 %v579, 32
      %v651 = vpop.permute.xlu0 %650
      %652 = vrot.lane.b32.xlu0 %v591, 32
      %v653 = vpop.permute.xlu0 %652
      %654 = vrot.lane.b32.xlu0 %v603, 32
      %v655 = vpop.permute.xlu0 %654
      %656 = vrot.lane.b32.xlu0 %v615, 32
      %v657 = vpop.permute.xlu0 %656
      %658 = vrot.lane.b32.xlu0 %v627, 32
      %v659 = vpop.permute.xlu0 %658
      %vm660 = vcmask 1046528
      %v661 = vrot.slane %v371, 1
      %v662 = vrot.slane %v419, 1
      %v663 = vsel %vm660, %v661, %v662
      %v664 = vrot.slane %v372, 1
      %v665 = vrot.slane %v420, 1
      %v666 = vsel %vm660, %v664, %v665
      %v667 = vrot.slane %v373, 1
      %v668 = vrot.slane %v421, 1
      %v669 = vsel %vm660, %v667, %v668
      %v670 = vrot.slane %v374, 1
      %v671 = vrot.slane %v422, 1
      %v672 = vsel %vm660, %v670, %v671
      %v673 = vrot.slane %v375, 1
      %v674 = vrot.slane %v423, 1
      %v675 = vsel %vm660, %v673, %v674
      %v676 = vrot.slane %v376, 1
      %v677 = vrot.slane %v424, 1
      %v678 = vsel %vm660, %v676, %v677
      %v679 = vrot.slane %v377, 1
      %v680 = vrot.slane %v425, 1
      %v681 = vsel %vm660, %v679, %v680
      %v682 = vrot.slane %v378, 1
      %v683 = vrot.slane %v426, 1
      %v684 = vsel %vm660, %v682, %v683
      %v685 = vrot.slane %v379, 1
      %v686 = vrot.slane %v427, 1
      %v687 = vsel %vm660, %v685, %v686
      %v688 = vrot.slane %v380, 1
      %v689 = vrot.slane %v428, 1
      %v690 = vsel %vm660, %v688, %v689
      %v691 = vrot.slane %v381, 1
      %v692 = vrot.slane %v429, 1
      %v693 = vsel %vm660, %v691, %v692
      %v694 = vrot.slane %v382, 1
      %v695 = vrot.slane %v430, 1
      %v696 = vsel %vm660, %v694, %v695
      %v697 = vrot.slane %v383, 1
      %v698 = vrot.slane %v431, 1
      %v699 = vsel %vm660, %v697, %v698
      %v700 = vrot.slane %v384, 1
      %v701 = vrot.slane %v432, 1
      %v702 = vsel %vm660, %v700, %v701
      %v703 = vrot.slane %v385, 1
      %v704 = vrot.slane %v433, 1
      %v705 = vsel %vm660, %v703, %v704
      %v706 = vrot.slane %v386, 1
      %v707 = vrot.slane %v434, 1
      %v708 = vsel %vm660, %v706, %v707
      %709 = vrot.lane.b32.xlu0 %v663, 64
      %v710 = vpop.permute.xlu0 %709
      %711 = vrot.lane.b32.xlu0 %v666, 64
      %v712 = vpop.permute.xlu0 %711
      %713 = vrot.lane.b32.xlu0 %v669, 64
      %v714 = vpop.permute.xlu0 %713
      %715 = vrot.lane.b32.xlu0 %v672, 64
      %v716 = vpop.permute.xlu0 %715
      %717 = vrot.lane.b32.xlu0 %v675, 64
      %v718 = vpop.permute.xlu0 %717
      %719 = vrot.lane.b32.xlu0 %v678, 64
      %v720 = vpop.permute.xlu0 %719
      %721 = vrot.lane.b32.xlu0 %v681, 64
      %v722 = vpop.permute.xlu0 %721
      %723 = vrot.lane.b32.xlu0 %v684, 64
      %v724 = vpop.permute.xlu0 %723
      %725 = vrot.lane.b32.xlu0 %v687, 64
      %v726 = vpop.permute.xlu0 %725
      %727 = vrot.lane.b32.xlu0 %v690, 64
      %v728 = vpop.permute.xlu0 %727
      %729 = vrot.lane.b32.xlu0 %v693, 64
      %v730 = vpop.permute.xlu0 %729
      %731 = vrot.lane.b32.xlu0 %v696, 64
      %v732 = vpop.permute.xlu0 %731
      %733 = vrot.lane.b32.xlu0 %v699, 64
      %v734 = vpop.permute.xlu0 %733
      %735 = vrot.lane.b32.xlu0 %v702, 64
      %v736 = vpop.permute.xlu0 %735
      %737 = vrot.lane.b32.xlu0 %v705, 64
      %v738 = vpop.permute.xlu0 %737
      %739 = vrot.lane.b32.xlu0 %v708, 64
      %v740 = vpop.permute.xlu0 %739
      %v743 = vunpack.c.l.b16 %v301
      %v744 = vunpack.c.l.b16 %v302
      %v745 = vpack.c.b16 %v744, %v743
      %746 = vrot.lane.b32.xlu0 %v372, 96
      %v747 = vpop.permute.xlu0 %746
      %748 = vrot.lane.b32.xlu0 %v373, 96
      %v749 = vpop.permute.xlu0 %748
      %750 = vrot.lane.b32.xlu0 %v374, 96
      %v751 = vpop.permute.xlu0 %750
      %752 = vrot.lane.b32.xlu0 %v375, 96
      %v753 = vpop.permute.xlu0 %752
      %754 = vrot.lane.b32.xlu0 %v376, 96
      %v755 = vpop.permute.xlu0 %754
      %756 = vrot.lane.b32.xlu0 %v377, 96
      %v757 = vpop.permute.xlu0 %756
      %758 = vrot.lane.b32.xlu0 %v378, 96
      %v759 = vpop.permute.xlu0 %758
      %760 = vrot.lane.b32.xlu0 %v379, 96
      %v761 = vpop.permute.xlu0 %760
      %762 = vrot.lane.b32.xlu0 %v380, 96
      %v763 = vpop.permute.xlu0 %762
      %764 = vrot.lane.b32.xlu0 %v381, 96
      %v765 = vpop.permute.xlu0 %764
      %766 = vrot.lane.b32.xlu0 %v382, 96
      %v767 = vpop.permute.xlu0 %766
      %768 = vrot.lane.b32.xlu0 %v383, 96
      %v769 = vpop.permute.xlu0 %768
      %770 = vrot.lane.b32.xlu0 %v384, 96
      %v771 = vpop.permute.xlu0 %770
      %772 = vrot.lane.b32.xlu0 %v385, 96
      %v773 = vpop.permute.xlu0 %772
      %774 = vrot.lane.b32.xlu0 %v386, 96
      %v775 = vpop.permute.xlu0 %774
      %776 = vrot.lane.b32.xlu0 %v745, 96
      %v777 = vpop.permute.xlu0 %776
      %v779 = vunpack.c.l.b16 %v303
      %v780 = vpack.c.b16 %v779, %v779
      %v782 = vshrl.u32 %v745, 16
      %v784 = vshll.u32 %v745, 16
      %v786 = vrot.slane %v784, 1
      %v787 = vor.u32 %v782, %v786
      %v789 = vshll.u32 %v780, 16
      %v791 = vrot.slane %v789, 1
      %v792 = vsel %vm435, %v787, %v791
      %v793 = vrot.slane %v745, 1
      %v794 = vrot.slane %v780, 1
      %v795 = vsel %vm660, %v793, %v794
      %796 = vrot.lane.b32.xlu0 %v666, 32
      %v797 = vpop.permute.xlu0 %796
      %798 = vrot.lane.b32.xlu0 %v669, 32
      %v799 = vpop.permute.xlu0 %798
      %800 = vrot.lane.b32.xlu0 %v672, 32
      %v801 = vpop.permute.xlu0 %800
      %802 = vrot.lane.b32.xlu0 %v675, 32
      %v803 = vpop.permute.xlu0 %802
      %804 = vrot.lane.b32.xlu0 %v678, 32
      %v805 = vpop.permute.xlu0 %804
      %806 = vrot.lane.b32.xlu0 %v681, 32
      %v807 = vpop.permute.xlu0 %806
      %808 = vrot.lane.b32.xlu0 %v684, 32
      %v809 = vpop.permute.xlu0 %808
      %810 = vrot.lane.b32.xlu0 %v687, 32
      %v811 = vpop.permute.xlu0 %810
      %812 = vrot.lane.b32.xlu0 %v690, 32
      %v813 = vpop.permute.xlu0 %812
      %814 = vrot.lane.b32.xlu0 %v693, 32
      %v815 = vpop.permute.xlu0 %814
      %816 = vrot.lane.b32.xlu0 %v696, 32
      %v817 = vpop.permute.xlu0 %816
      %818 = vrot.lane.b32.xlu0 %v699, 32
      %v819 = vpop.permute.xlu0 %818
      %820 = vrot.lane.b32.xlu0 %v702, 32
      %v821 = vpop.permute.xlu0 %820
      %822 = vrot.lane.b32.xlu0 %v705, 32
      %v823 = vpop.permute.xlu0 %822
      %824 = vrot.lane.b32.xlu0 %v708, 32
      %v825 = vpop.permute.xlu0 %824
      %826 = vrot.lane.b32.xlu0 %v795, 32
      %v827 = vpop.permute.xlu0 %826
      %v830 = vunpack.c.l.b16 %v304
      %v831 = vunpack.c.l.b16 %v305
      %v832 = vpack.c.b16 %v831, %v830
      %833 = vrot.lane.b32.xlu0 %v373, 64
      %v834 = vpop.permute.xlu0 %833
      %835 = vrot.lane.b32.xlu0 %v374, 64
      %v836 = vpop.permute.xlu0 %835
      %837 = vrot.lane.b32.xlu0 %v375, 64
      %v838 = vpop.permute.xlu0 %837
      %839 = vrot.lane.b32.xlu0 %v376, 64
      %v840 = vpop.permute.xlu0 %839
      %841 = vrot.lane.b32.xlu0 %v377, 64
      %v842 = vpop.permute.xlu0 %841
      %843 = vrot.lane.b32.xlu0 %v378, 64
      %v844 = vpop.permute.xlu0 %843
      %845 = vrot.lane.b32.xlu0 %v379, 64
      %v846 = vpop.permute.xlu0 %845
      %847 = vrot.lane.b32.xlu0 %v380, 64
      %v848 = vpop.permute.xlu0 %847
      %849 = vrot.lane.b32.xlu0 %v381, 64
      %v850 = vpop.permute.xlu0 %849
      %851 = vrot.lane.b32.xlu0 %v382, 64
      %v852 = vpop.permute.xlu0 %851
      %853 = vrot.lane.b32.xlu0 %v383, 64
      %v854 = vpop.permute.xlu0 %853
      %855 = vrot.lane.b32.xlu0 %v384, 64
      %v856 = vpop.permute.xlu0 %855
      %857 = vrot.lane.b32.xlu0 %v385, 64
      %v858 = vpop.permute.xlu0 %857
      %859 = vrot.lane.b32.xlu0 %v386, 64
      %v860 = vpop.permute.xlu0 %859
      %861 = vrot.lane.b32.xlu0 %v745, 64
      %v862 = vpop.permute.xlu0 %861
      %863 = vrot.lane.b32.xlu0 %v832, 64
      %v864 = vpop.permute.xlu0 %863
      %v866 = vunpack.c.l.b16 %v306
      %v867 = vpack.c.b16 %v866, %v866
      %v869 = vshrl.u32 %v832, 16
      %v871 = vshll.u32 %v832, 16
      %v873 = vrot.slane %v871, 1
      %v874 = vor.u32 %v869, %v873
      %v876 = vshll.u32 %v867, 16
      %v878 = vrot.slane %v876, 1
      %v879 = vsel %vm435, %v874, %v878
      %880 = vrot.lane.b32.xlu0 %v471, 96
      %v881 = vpop.permute.xlu0 %880
      %882 = vrot.lane.b32.xlu0 %v483, 96
      %v883 = vpop.permute.xlu0 %882
      %884 = vrot.lane.b32.xlu0 %v495, 96
      %v885 = vpop.permute.xlu0 %884
      %886 = vrot.lane.b32.xlu0 %v507, 96
      %v887 = vpop.permute.xlu0 %886
      %888 = vrot.lane.b32.xlu0 %v519, 96
      %v889 = vpop.permute.xlu0 %888
      %890 = vrot.lane.b32.xlu0 %v531, 96
      %v891 = vpop.permute.xlu0 %890
      %892 = vrot.lane.b32.xlu0 %v543, 96
      %v893 = vpop.permute.xlu0 %892
      %894 = vrot.lane.b32.xlu0 %v555, 96
      %v895 = vpop.permute.xlu0 %894
      %896 = vrot.lane.b32.xlu0 %v567, 96
      %v897 = vpop.permute.xlu0 %896
      %898 = vrot.lane.b32.xlu0 %v579, 96
      %v899 = vpop.permute.xlu0 %898
      %900 = vrot.lane.b32.xlu0 %v591, 96
      %v901 = vpop.permute.xlu0 %900
      %902 = vrot.lane.b32.xlu0 %v603, 96
      %v903 = vpop.permute.xlu0 %902
      %904 = vrot.lane.b32.xlu0 %v615, 96
      %v905 = vpop.permute.xlu0 %904
      %906 = vrot.lane.b32.xlu0 %v627, 96
      %v907 = vpop.permute.xlu0 %906
      %908 = vrot.lane.b32.xlu0 %v792, 96
      %v909 = vpop.permute.xlu0 %908
      %910 = vrot.lane.b32.xlu0 %v879, 96
      %v911 = vpop.permute.xlu0 %910
      %v912 = vrot.slane %v832, 1
      %v913 = vrot.slane %v867, 1
      %v914 = vsel %vm660, %v912, %v913
      %vm915 = vcmask 261120
      %v917 = vsel %vm915, %v371, %v629
      %v919 = vsel %vm915, %v372, %v631
      %v921 = vsel %vm915, %v373, %v633
      %v923 = vsel %vm915, %v374, %v635
      %v925 = vsel %vm915, %v375, %v637
      %v927 = vsel %vm915, %v376, %v639
      %v929 = vsel %vm915, %v377, %v641
      %v931 = vsel %vm915, %v378, %v643
      %v933 = vsel %vm915, %v379, %v645
      %v935 = vsel %vm915, %v380, %v647
      %v937 = vsel %vm915, %v381, %v649
      %v939 = vsel %vm915, %v382, %v651
      %v941 = vsel %vm915, %v383, %v653
      %v943 = vsel %vm915, %v384, %v655
      %v945 = vsel %vm915, %v385, %v657
      %v947 = vsel %vm915, %v386, %v659
      %vm948 = vcmask 523264
      %v950 = vsel %vm948, %v917, %v710
      %v952 = vsel %vm948, %v919, %v712
      %v954 = vsel %vm948, %v921, %v714
      %v956 = vsel %vm948, %v923, %v716
      %v958 = vsel %vm948, %v925, %v718
      %v960 = vsel %vm948, %v927, %v720
      %v962 = vsel %vm948, %v929, %v722
      %v964 = vsel %vm948, %v931, %v724
      %v966 = vsel %vm948, %v933, %v726
      %v968 = vsel %vm948, %v935, %v728
      %v970 = vsel %vm948, %v937, %v730
      %v972 = vsel %vm948, %v939, %v732
      %v974 = vsel %vm948, %v941, %v734
      %v976 = vsel %vm948, %v943, %v736
      %v978 = vsel %vm948, %v945, %v738
      %v980 = vsel %vm948, %v947, %v740
      %vm981 = vcmask 785408
      %v983 = vsel %vm981, %v950, %v747
      %v986 = vsel %vm981, %v952, %v749
      %v989 = vsel %vm981, %v954, %v751
      %v992 = vsel %vm981, %v956, %v753
      %v995 = vsel %vm981, %v958, %v755
      %v998 = vsel %vm981, %v960, %v757
      %v1001 = vsel %vm981, %v962, %v759
      %v1004 = vsel %vm981, %v964, %v761
      %v1007 = vsel %vm981, %v966, %v763
      %v1010 = vsel %vm981, %v968, %v765
      %v1013 = vsel %vm981, %v970, %v767
      %v1016 = vsel %vm981, %v972, %v769
      %v1019 = vsel %vm981, %v974, %v771
      %v1022 = vsel %vm981, %v976, %v773
      %v1025 = vsel %vm981, %v978, %v775
      %v1028 = vsel %vm981, %v980, %v777
      %v1032 = vsel %vm915, %v459, %v797
      %v1035 = vsel %vm915, %v471, %v799
      %v1038 = vsel %vm915, %v483, %v801
      %v1041 = vsel %vm915, %v495, %v803
      %v1044 = vsel %vm915, %v507, %v805
      %v1047 = vsel %vm915, %v519, %v807
      %v1050 = vsel %vm915, %v531, %v809
      %v1053 = vsel %vm915, %v543, %v811
      %v1056 = vsel %vm915, %v555, %v813
      %v1059 = vsel %vm915, %v567, %v815
      %v1062 = vsel %vm915, %v579, %v817
      %v1065 = vsel %vm915, %v591, %v819
      %v1068 = vsel %vm915, %v603, %v821
      %v1071 = vsel %vm915, %v615, %v823
      %v1074 = vsel %vm915, %v627, %v825
      %v1077 = vsel %vm915, %v792, %v827
      %v1079 = vsel %vm948, %v1032, %v834
      %v1081 = vsel %vm948, %v1035, %v836
      %v1083 = vsel %vm948, %v1038, %v838
      %v1085 = vsel %vm948, %v1041, %v840
      %v1087 = vsel %vm948, %v1044, %v842
      %v1089 = vsel %vm948, %v1047, %v844
      %v1091 = vsel %vm948, %v1050, %v846
      %v1093 = vsel %vm948, %v1053, %v848
      %v1095 = vsel %vm948, %v1056, %v850
      %v1097 = vsel %vm948, %v1059, %v852
      %v1099 = vsel %vm948, %v1062, %v854
      %v1101 = vsel %vm948, %v1065, %v856
      %v1103 = vsel %vm948, %v1068, %v858
      %v1105 = vsel %vm948, %v1071, %v860
      %v1107 = vsel %vm948, %v1074, %v862
      %v1109 = vsel %vm948, %v1077, %v864
      %v1111 = vsel %vm981, %v1079, %v881
      %v1114 = vsel %vm981, %v1081, %v883
      %v1117 = vsel %vm981, %v1083, %v885
      %v1120 = vsel %vm981, %v1085, %v887
      %v1123 = vsel %vm981, %v1087, %v889
      %v1126 = vsel %vm981, %v1089, %v891
      %v1129 = vsel %vm981, %v1091, %v893
      %v1132 = vsel %vm981, %v1093, %v895
      %v1135 = vsel %vm981, %v1095, %v897
      %v1138 = vsel %vm981, %v1097, %v899
      %v1141 = vsel %vm981, %v1099, %v901
      %v1144 = vsel %vm981, %v1101, %v903
      %v1147 = vsel %vm981, %v1103, %v905
      %v1150 = vsel %vm981, %v1105, %v907
      %v1153 = vsel %vm981, %v1107, %v909
      %v1156 = vsel %vm981, %v1109, %v911
      %v1158 = vld [vmem:[%s1] sm:$0xf]
      %v1159 = vld [vmem:[%s1 + $0x4] sm:$0xf]
      %v1160 = vld [vmem:[%s1 + $0x8] sm:$0xf]
      %v1161 = vld [vmem:[%s1 + $0xc] sm:$0xf]
      %v1162 = vld [vmem:[%s1 + $0x10] sm:$0xf]
      %v1163 = vld [vmem:[%s1 + $0x14] sm:$0xf]
      %v1164 = vld [vmem:[%s1 + $0x18] sm:$0xf]
      %v1165 = vld [vmem:[%s1 + $0x1c] sm:$0xf]
      %v1166 = vld [vmem:[%s1 + $0x20] sm:$0xf]
      %v1167 = vld [vmem:[%s1 + $0x24] sm:$0xf]
      %v1168 = vld [vmem:[%s1 + $0x28] sm:$0xf]
      %v1169 = vld [vmem:[%s1 + $0x2c] sm:$0xf]
      %v1170 = vld [vmem:[%s1 + $0x30] sm:$0xf]
      %v1171 = vld [vmem:[%s1 + $0x34] sm:$0xf]
      %v1172 = vld [vmem:[%s1 + $0x38] sm:$0xf]
      %v1173 = vld [vmem:[%s1 + $0x3c] sm:$0xf]
      %v1174 = vld [vmem:[%s1 + $0x40] sm:$0xf]
      %v1175 = vld [vmem:[%s1 + $0x44] sm:$0xf]
      %v1176 = vld [vmem:[%s1 + $0x48] sm:$0xf]
      %v1177 = vld [vmem:[%s1 + $0x4c] sm:$0xf]
      %v1178 = vld [vmem:[%s1 + $0x50] sm:$0xf]
      %v1179 = vld [vmem:[%s1 + $0x54] sm:$0xf]
      %v1180 = vld [vmem:[%s1 + $0x58] sm:$0xf]
      %v1181 = vld [vmem:[%s1 + $0x5c] sm:$0xf]
      %v1182 = vld [vmem:[%s1 + $0x60] sm:$0xf]
      %v1183 = vld [vmem:[%s1 + $0x64] sm:$0xf]
      %v1184 = vld [vmem:[%s1 + $0x68] sm:$0xf]
      %v1185 = vld [vmem:[%s1 + $0x6c] sm:$0xf]
      %v1186 = vld [vmem:[%s1 + $0x70] sm:$0xf]
      %v1187 = vld [vmem:[%s1 + $0x74] sm:$0xf]
      %v1188 = vld [vmem:[%s1 + $0x78] sm:$0xf]
      %v1189 = vld [vmem:[%s1 + $0x7c] sm:$0xf]
      %v1190 = vld [vmem:[%s1 + $0x80] sm:$0xf]
      %v1191 = vld [vmem:[%s1 + $0x84] sm:$0xf]
      %v1192 = vld [vmem:[%s1 + $0x88] sm:$0xf]
      %v1193 = vld [vmem:[%s1 + $0x8c] sm:$0xf]
      %v1230 = vunpack.c.l.b16 %v1158
      %v1231 = vunpack.c.l.b16 %v1159
      %v1232 = vunpack.c.l.b16 %v1160
      %v1233 = vunpack.c.l.b16 %v1161
      %v1234 = vunpack.c.l.b16 %v1162
      %v1235 = vunpack.c.l.b16 %v1163
      %v1236 = vunpack.c.l.b16 %v1164
      %v1237 = vunpack.c.l.b16 %v1165
      %v1238 = vunpack.c.l.b16 %v1166
      %v1239 = vunpack.c.l.b16 %v1167
      %v1240 = vunpack.c.l.b16 %v1168
      %v1241 = vunpack.c.l.b16 %v1169
      %v1242 = vunpack.c.l.b16 %v1170
      %v1243 = vunpack.c.l.b16 %v1171
      %v1244 = vunpack.c.l.b16 %v1172
      %v1245 = vunpack.c.l.b16 %v1173
      %v1246 = vunpack.c.l.b16 %v1174
      %v1247 = vunpack.c.l.b16 %v1175
      %v1248 = vunpack.c.l.b16 %v1176
      %v1249 = vunpack.c.l.b16 %v1177
      %v1250 = vunpack.c.l.b16 %v1178
      %v1251 = vunpack.c.l.b16 %v1179
      %v1252 = vunpack.c.l.b16 %v1180
      %v1253 = vunpack.c.l.b16 %v1181
      %v1254 = vunpack.c.l.b16 %v1182
      %v1255 = vunpack.c.l.b16 %v1183
      %v1256 = vunpack.c.l.b16 %v1184
      %v1257 = vunpack.c.l.b16 %v1185
      %v1258 = vunpack.c.l.b16 %v1186
      %v1259 = vunpack.c.l.b16 %v1187
      %v1260 = vunpack.c.l.b16 %v1188
      %v1261 = vunpack.c.l.b16 %v1189
      %v1262 = vunpack.c.l.b16 %v1190
      %v1263 = vunpack.c.l.b16 %v1191
      %v1264 = vunpack.c.l.b16 %v1192
      %v1265 = vunpack.c.l.b16 %v1193
      %v1266 = vpack.c.b16 %v1231, %v1230
      %v1267 = vpack.c.b16 %v1233, %v1232
      %v1268 = vpack.c.b16 %v1235, %v1234
      %v1269 = vpack.c.b16 %v1237, %v1236
      %v1270 = vpack.c.b16 %v1239, %v1238
      %v1271 = vpack.c.b16 %v1241, %v1240
      %v1272 = vpack.c.b16 %v1243, %v1242
      %v1273 = vpack.c.b16 %v1245, %v1244
      %v1274 = vpack.c.b16 %v1247, %v1246
      %v1275 = vpack.c.b16 %v1249, %v1248
      %v1276 = vpack.c.b16 %v1251, %v1250
      %v1277 = vpack.c.b16 %v1253, %v1252
      %v1278 = vpack.c.b16 %v1255, %v1254
      %v1279 = vpack.c.b16 %v1257, %v1256
      %v1280 = vpack.c.b16 %v1259, %v1258
      %v1281 = vpack.c.b16 %v1261, %v1260
      %v1282 = vpack.c.b16 %v1263, %v1262
      %v1283 = vpack.c.b16 %v1265, %v1264
      %v1303 = vsel %vm915, %v669, 0
      %v1306 = vsel %vm915, %v672, 0
      %v1309 = vsel %vm915, %v675, 0
      %v1312 = vsel %vm915, %v678, 0
      %v1315 = vsel %vm915, %v681, 0
      %v1318 = vsel %vm915, %v684, 0
      %v1321 = vsel %vm915, %v687, 0
      %v1324 = vsel %vm915, %v690, 0
      %v1327 = vsel %vm915, %v693, 0
      %v1330 = vsel %vm915, %v696, 0
      %v1333 = vsel %vm915, %v699, 0
      %v1336 = vsel %vm915, %v702, 0
      %v1339 = vsel %vm915, %v705, 0
      %v1342 = vsel %vm915, %v708, 0
      %v1345 = vsel %vm915, %v795, 0
      %v1348 = vsel %vm915, %v914, 0
      %1350 = vmatprep.subr.bf16.mxu0 0
      %1351 = vmatpush1.bf16.msra.mxu0 %v1266
      %1352 = vmatprep.subr.bf16.mxu0 0
      %1353 = vmatpush1.bf16.msra.mxu0 %v1267
      %1354 = vmatprep.subr.bf16.mxu0 0
      %1355 = vmatpush1.bf16.msra.mxu0 %v1268
      %1356 = vmatprep.subr.bf16.mxu0 0
      %1357 = vmatpush1.bf16.msra.mxu0 %v1269
      %1358 = vmatprep.subr.bf16.mxu0 0
      %1359 = vmatpush1.bf16.msra.mxu0 %v1270
      %1360 = vmatprep.subr.bf16.mxu0 0
      %1361 = vmatpush1.bf16.msra.mxu0 %v1271
      %1362 = vmatprep.subr.bf16.mxu0 0
      %1363 = vmatpush1.bf16.msra.mxu0 %v1272
      %1364 = vmatprep.subr.bf16.mxu0 0
      %1365 = vmatpush1.bf16.msra.mxu0 %v1273
      %1366 = vmatprep.subr.bf16.mxu0 0
      %1367 = vmatpush1.bf16.msra.mxu0 %v1274
      %1368 = vmatprep.subr.bf16.mxu0 0
      %1369 = vmatpush1.bf16.msra.mxu0 %v1275
      %1370 = vmatprep.subr.bf16.mxu0 0
      %1371 = vmatpush1.bf16.msra.mxu0 %v1276
      %1372 = vmatprep.subr.bf16.mxu0 0
      %1373 = vmatpush1.bf16.msra.mxu0 %v1277
      %1374 = vmatprep.subr.bf16.mxu0 0
      %1375 = vmatpush1.bf16.msra.mxu0 %v1278
      %1376 = vmatprep.subr.bf16.mxu0 0
      %1377 = vmatpush1.bf16.msra.mxu0 %v1279
      %1378 = vmatprep.subr.bf16.mxu0 0
      %1379 = vmatpush1.bf16.msra.mxu0 %v1280
      %1380 = vmatprep.subr.bf16.mxu0 0
      %1381 = vmatpush1.bf16.msra.mxu0 %v1281
      %1382 = vmatprep.mubr.bf16.mxu0 %v1111
      %1383 = vmatmul.mubr.bf16.gmra.mrb[0].mxu0 %v983
      %v1384 = vpop.f32.mrb[0].mxu0
      %v1385 = vadd.f32 0.0, %v1384
      %v1386 = vpop.f32.mrb[0].mxu0
      %v1387 = vpop.f32.mrb[0].mxu0
      %v1388 = vadd.f32 0.0, %v1387
      %v1389 = vpop.f32.mrb[0].mxu0
      %1390 = vmatprep.mubr.bf16.mxu0 %v1114
      %1391 = vmatmul.mubr.bf16.gmra.mrb[0].mxu0 %v986
      %v1392 = vpop.f32.mrb[0].mxu0
      %v1393 = vadd.f32 0.0, %v1392
      %v1394 = vpop.f32.mrb[0].mxu0
      %v1395 = vpop.f32.mrb[0].mxu0
      %v1396 = vadd.f32 0.0, %v1395
      %v1397 = vpop.f32.mrb[0].mxu0
      %1398 = vmatprep.mubr.bf16.mxu0 %v1117
      %1399 = vmatmul.mubr.bf16.gmra.mrb[0].mxu0 %v989
      %v1400 = vpop.f32.mrb[0].mxu0
      %v1401 = vadd.f32 0.0, %v1400
      %v1402 = vpop.f32.mrb[0].mxu0
      %v1403 = vpop.f32.mrb[0].mxu0
      %v1404 = vadd.f32 0.0, %v1403
      %v1405 = vpop.f32.mrb[0].mxu0
      %1406 = vmatprep.mubr.bf16.mxu0 %v1120
      %1407 = vmatmul.mubr.bf16.gmra.mrb[0].mxu0 %v992
      %v1408 = vpop.f32.mrb[0].mxu0
      %v1409 = vadd.f32 0.0, %v1408
      %v1410 = vpop.f32.mrb[0].mxu0
      %v1411 = vpop.f32.mrb[0].mxu0
      %v1412 = vadd.f32 0.0, %v1411
      %v1413 = vpop.f32.mrb[0].mxu0
      %1414 = vmatprep.mubr.bf16.mxu0 %v1123
      %1415 = vmatmul.mubr.bf16.gmra.mrb[0].mxu0 %v995
      %v1416 = vpop.f32.mrb[0].mxu0
      %v1417 = vadd.f32 0.0, %v1416
      %v1418 = vpop.f32.mrb[0].mxu0
      %v1419 = vpop.f32.mrb[0].mxu0
      %v1420 = vadd.f32 0.0, %v1419
      %v1421 = vpop.f32.mrb[0].mxu0
      %1422 = vmatprep.mubr.bf16.mxu0 %v1126
      %1423 = vmatmul.mubr.bf16.gmra.mrb[0].mxu0 %v998
      %v1424 = vpop.f32.mrb[0].mxu0
      %v1425 = vadd.f32 0.0, %v1424
      %v1426 = vpop.f32.mrb[0].mxu0
      %v1427 = vpop.f32.mrb[0].mxu0
      %v1428 = vadd.f32 0.0, %v1427
      %v1429 = vpop.f32.mrb[0].mxu0
      %1430 = vmatprep.mubr.bf16.mxu0 %v1129
      %1431 = vmatmul.mubr.bf16.gmra.mrb[0].mxu0 %v1001
      %v1432 = vpop.f32.mrb[0].mxu0
      %v1433 = vadd.f32 0.0, %v1432
      %v1434 = vpop.f32.mrb[0].mxu0
      %v1435 = vpop.f32.mrb[0].mxu0
      %v1436 = vadd.f32 0.0, %v1435
      %v1437 = vpop.f32.mrb[0].mxu0
      %1438 = vmatprep.mubr.bf16.mxu0 %v1132
      %1439 = vmatmul.mubr.bf16.gmra.mrb[0].mxu0 %v1004
      %v1440 = vpop.f32.mrb[0].mxu0
      %v1441 = vadd.f32 0.0, %v1440
      %v1442 = vpop.f32.mrb[0].mxu0
      %v1443 = vpop.f32.mrb[0].mxu0
      %v1444 = vadd.f32 0.0, %v1443
      %v1445 = vpop.f32.mrb[0].mxu0
      %1446 = vmatprep.mubr.bf16.mxu0 %v1135
      %1447 = vmatmul.mubr.bf16.gmra.mrb[0].mxu0 %v1007
      %v1448 = vpop.f32.mrb[0].mxu0
      %v1449 = vadd.f32 0.0, %v1448
      %v1450 = vpop.f32.mrb[0].mxu0
      %v1451 = vpop.f32.mrb[0].mxu0
      %v1452 = vadd.f32 0.0, %v1451
      %v1453 = vpop.f32.mrb[0].mxu0
      %1454 = vmatprep.mubr.bf16.mxu0 %v1138
      %1455 = vmatmul.mubr.bf16.gmra.mrb[0].mxu0 %v1010
      %v1456 = vpop.f32.mrb[0].mxu0
      %v1457 = vadd.f32 0.0, %v1456
      %v1458 = vpop.f32.mrb[0].mxu0
      %v1459 = vpop.f32.mrb[0].mxu0
      %v1460 = vadd.f32 0.0, %v1459
      %v1461 = vpop.f32.mrb[0].mxu0
      %1462 = vmatprep.mubr.bf16.mxu0 %v1141
      %1463 = vmatmul.mubr.bf16.gmra.mrb[0].mxu0 %v1013
      %v1464 = vpop.f32.mrb[0].mxu0
      %v1465 = vadd.f32 0.0, %v1464
      %v1466 = vpop.f32.mrb[0].mxu0
      %v1467 = vpop.f32.mrb[0].mxu0
      %v1468 = vadd.f32 0.0, %v1467
      %v1469 = vpop.f32.mrb[0].mxu0
      %1470 = vmatprep.mubr.bf16.mxu0 %v1144
      %1471 = vmatmul.mubr.bf16.gmra.mrb[0].mxu0 %v1016
      %v1472 = vpop.f32.mrb[0].mxu0
      %v1473 = vadd.f32 0.0, %v1472
      %v1474 = vpop.f32.mrb[0].mxu0
      %v1475 = vpop.f32.mrb[0].mxu0
      %v1476 = vadd.f32 0.0, %v1475
      %v1477 = vpop.f32.mrb[0].mxu0
      %1478 = vmatprep.mubr.bf16.mxu0 %v1147
      %1479 = vmatmul.mubr.bf16.gmra.mrb[0].mxu0 %v1019
      %v1480 = vpop.f32.mrb[0].mxu0
      %v1481 = vadd.f32 0.0, %v1480
      %v1482 = vpop.f32.mrb[0].mxu0
      %v1483 = vpop.f32.mrb[0].mxu0
      %v1484 = vadd.f32 0.0, %v1483
      %v1485 = vpop.f32.mrb[0].mxu0
      %1486 = vmatprep.mubr.bf16.mxu0 %v1150
      %1487 = vmatmul.mubr.bf16.gmra.mrb[0].mxu0 %v1022
      %v1488 = vpop.f32.mrb[0].mxu0
      %v1489 = vadd.f32 0.0, %v1488
      %v1490 = vpop.f32.mrb[0].mxu0
      %v1491 = vpop.f32.mrb[0].mxu0
      %v1492 = vadd.f32 0.0, %v1491
      %v1493 = vpop.f32.mrb[0].mxu0
      %1494 = vmatprep.mubr.bf16.mxu0 %v1153
      %1495 = vmatmul.mubr.bf16.gmra.mrb[0].mxu0 %v1025
      %v1496 = vpop.f32.mrb[0].mxu0
      %v1497 = vadd.f32 0.0, %v1496
      %v1498 = vpop.f32.mrb[0].mxu0
      %v1499 = vpop.f32.mrb[0].mxu0
      %v1500 = vadd.f32 0.0, %v1499
      %v1501 = vpop.f32.mrb[0].mxu0
      %1502 = vmatprep.mubr.bf16.mxu0 %v1156
      %1503 = vmatmul.mubr.bf16.gmra.mrb[0].mxu0 %v1028
      %v1504 = vpop.f32.mrb[0].mxu0
      %v1505 = vadd.f32 0.0, %v1504
      %v1506 = vpop.f32.mrb[0].mxu0
      %v1507 = vpop.f32.mrb[0].mxu0
      %v1508 = vadd.f32 0.0, %v1507
      %v1509 = vpop.f32.mrb[0].mxu0
      %1510 = vdwg.mxu0
      %1511 = vmatprep.subr.bf16.mxu0 0
      %1512 = vmatpush1.bf16.msra.mxu0 %v1282
      %1513 = vmatprep.subr.bf16.mxu0 0
      %1514 = vmatpush1.bf16.msra.mxu0 %v1283
      %1515 = vmatprep.subr.bf16.mxu0 0
      %1516 = vmatpush1.bf16.msra.mxu0 0
      %1517 = vmatprep.subr.bf16.mxu0 0
      %1518 = vmatpush1.bf16.msra.mxu0 0
      %1519 = vmatprep.subr.bf16.mxu0 0
      %1520 = vmatpush1.bf16.msra.mxu0 0
      %1521 = vmatprep.subr.bf16.mxu0 0
      %1522 = vmatpush1.bf16.msra.mxu0 0
      %1523 = vmatprep.subr.bf16.mxu0 0
      %1524 = vmatpush1.bf16.msra.mxu0 0
      %1525 = vmatprep.subr.bf16.mxu0 0
      %1526 = vmatpush1.bf16.msra.mxu0 0
      %1527 = vmatprep.subr.bf16.mxu0 0
      %1528 = vmatpush1.bf16.msra.mxu0 0
      %1529 = vmatprep.subr.bf16.mxu0 0
      %1530 = vmatpush1.bf16.msra.mxu0 0
      %1531 = vmatprep.subr.bf16.mxu0 0
      %1532 = vmatpush1.bf16.msra.mxu0 0
      %1533 = vmatprep.subr.bf16.mxu0 0
      %1534 = vmatpush1.bf16.msra.mxu0 0
      %1535 = vmatprep.subr.bf16.mxu0 0
      %1536 = vmatpush1.bf16.msra.mxu0 0
      %1537 = vmatprep.subr.bf16.mxu0 0
      %1538 = vmatpush1.bf16.msra.mxu0 0
      %1539 = vmatprep.subr.bf16.mxu0 0
      %1540 = vmatpush1.bf16.msra.mxu0 0
      %1541 = vmatprep.subr.bf16.mxu0 0
      %1542 = vmatpush1.bf16.msra.mxu0 0
      %1543 = vmatprep.mubr.bf16.mxu0 0
      %1544 = vmatmul.mubr.bf16.gmra.mrb[0].mxu0 %v1303
      %v1545 = vpop.f32.mrb[0].mxu0
      %v1546 = vadd.f32 %v1385, %v1545
      %v1547 = vpop.f32.mrb[0].mxu0
      %v1548 = vpop.f32.mrb[0].mxu0
      %v1549 = vadd.f32 %v1388, %v1548
      %v1550 = vpop.f32.mrb[0].mxu0
      %1551 = vmatprep.mubr.bf16.mxu0 0
      %1552 = vmatmul.mubr.bf16.gmra.mrb[0].mxu0 %v1306
      %v1553 = vpop.f32.mrb[0].mxu0
      %v1554 = vadd.f32 %v1393, %v1553
      %v1555 = vpop.f32.mrb[0].mxu0
      %v1556 = vpop.f32.mrb[0].mxu0
      %v1557 = vadd.f32 %v1396, %v1556
      %v1558 = vpop.f32.mrb[0].mxu0
      %1559 = vmatprep.mubr.bf16.mxu0 0
      %1560 = vmatmul.mubr.bf16.gmra.mrb[0].mxu0 %v1309
      %v1561 = vpop.f32.mrb[0].mxu0
      %v1562 = vadd.f32 %v1401, %v1561
      %v1563 = vpop.f32.mrb[0].mxu0
      %v1564 = vpop.f32.mrb[0].mxu0
      %v1565 = vadd.f32 %v1404, %v1564
      %v1566 = vpop.f32.mrb[0].mxu0
      %1567 = vmatprep.mubr.bf16.mxu0 0
      %1568 = vmatmul.mubr.bf16.gmra.mrb[0].mxu0 %v1312
      %v1569 = vpop.f32.mrb[0].mxu0
      %v1570 = vadd.f32 %v1409, %v1569
      %v1571 = vpop.f32.mrb[0].mxu0
      %v1572 = vpop.f32.mrb[0].mxu0
      %v1573 = vadd.f32 %v1412, %v1572
      %v1574 = vpop.f32.mrb[0].mxu0
      %1575 = vmatprep.mubr.bf16.mxu0 0
      %1576 = vmatmul.mubr.bf16.gmra.mrb[0].mxu0 %v1315
      %v1577 = vpop.f32.mrb[0].mxu0
      %v1578 = vadd.f32 %v1417, %v1577
      %v1579 = vpop.f32.mrb[0].mxu0
      %v1580 = vpop.f32.mrb[0].mxu0
      %v1581 = vadd.f32 %v1420, %v1580
      %v1582 = vpop.f32.mrb[0].mxu0
      %1583 = vmatprep.mubr.bf16.mxu0 0
      %1584 = vmatmul.mubr.bf16.gmra.mrb[0].mxu0 %v1318
      %v1585 = vpop.f32.mrb[0].mxu0
      %v1586 = vadd.f32 %v1425, %v1585
      %v1587 = vpop.f32.mrb[0].mxu0
      %v1588 = vpop.f32.mrb[0].mxu0
      %v1589 = vadd.f32 %v1428, %v1588
      %v1590 = vpop.f32.mrb[0].mxu0
      %1591 = vmatprep.mubr.bf16.mxu0 0
      %1592 = vmatmul.mubr.bf16.gmra.mrb[0].mxu0 %v1321
      %v1593 = vpop.f32.mrb[0].mxu0
      %v1594 = vadd.f32 %v1433, %v1593
      %v1595 = vpop.f32.mrb[0].mxu0
      %v1596 = vpop.f32.mrb[0].mxu0
      %v1597 = vadd.f32 %v1436, %v1596
      %v1598 = vpop.f32.mrb[0].mxu0
      %1599 = vmatprep.mubr.bf16.mxu0 0
      %1600 = vmatmul.mubr.bf16.gmra.mrb[0].mxu0 %v1324
      %v1601 = vpop.f32.mrb[0].mxu0
      %v1602 = vadd.f32 %v1441, %v1601
      %v1603 = vpop.f32.mrb[0].mxu0
      %v1604 = vpop.f32.mrb[0].mxu0
      %v1605 = vadd.f32 %v1444, %v1604
      %v1606 = vpop.f32.mrb[0].mxu0
      %1607 = vmatprep.mubr.bf16.mxu0 0
      %1608 = vmatmul.mubr.bf16.gmra.mrb[0].mxu0 %v1327
      %v1609 = vpop.f32.mrb[0].mxu0
      %v1610 = vadd.f32 %v1449, %v1609
      %v1611 = vpop.f32.mrb[0].mxu0
      %v1612 = vpop.f32.mrb[0].mxu0
      %v1613 = vadd.f32 %v1452, %v1612
      %v1614 = vpop.f32.mrb[0].mxu0
      %1615 = vmatprep.mubr.bf16.mxu0 0
      %1616 = vmatmul.mubr.bf16.gmra.mrb[0].mxu0 %v1330
      %v1617 = vpop.f32.mrb[0].mxu0
      %v1618 = vadd.f32 %v1457, %v1617
      %v1619 = vpop.f32.mrb[0].mxu0
      %v1620 = vpop.f32.mrb[0].mxu0
      %v1621 = vadd.f32 %v1460, %v1620
      %v1622 = vpop.f32.mrb[0].mxu0
      %1623 = vmatprep.mubr.bf16.mxu0 0
      %1624 = vmatmul.mubr.bf16.gmra.mrb[0].mxu0 %v1333
      %v1625 = vpop.f32.mrb[0].mxu0
      %v1626 = vadd.f32 %v1465, %v1625
      %v1627 = vpop.f32.mrb[0].mxu0
      %v1628 = vpop.f32.mrb[0].mxu0
      %v1629 = vadd.f32 %v1468, %v1628
      %v1630 = vpop.f32.mrb[0].mxu0
      %1631 = vmatprep.mubr.bf16.mxu0 0
      %1632 = vmatmul.mubr.bf16.gmra.mrb[0].mxu0 %v1336
      %v1633 = vpop.f32.mrb[0].mxu0
      %v1634 = vadd.f32 %v1473, %v1633
      %v1635 = vpop.f32.mrb[0].mxu0
      %v1636 = vpop.f32.mrb[0].mxu0
      %v1637 = vadd.f32 %v1476, %v1636
      %v1638 = vpop.f32.mrb[0].mxu0
      %1639 = vmatprep.mubr.bf16.mxu0 0
      %1640 = vmatmul.mubr.bf16.gmra.mrb[0].mxu0 %v1339
      %v1641 = vpop.f32.mrb[0].mxu0
      %v1642 = vadd.f32 %v1481, %v1641
      %v1643 = vpop.f32.mrb[0].mxu0
      %v1644 = vpop.f32.mrb[0].mxu0
      %v1645 = vadd.f32 %v1484, %v1644
      %v1646 = vpop.f32.mrb[0].mxu0
      %1647 = vmatprep.mubr.bf16.mxu0 0
      %1648 = vmatmul.mubr.bf16.gmra.mrb[0].mxu0 %v1342
      %v1649 = vpop.f32.mrb[0].mxu0
      %v1650 = vadd.f32 %v1489, %v1649
      %v1651 = vpop.f32.mrb[0].mxu0
      %v1652 = vpop.f32.mrb[0].mxu0
      %v1653 = vadd.f32 %v1492, %v1652
      %v1654 = vpop.f32.mrb[0].mxu0
      %1655 = vmatprep.mubr.bf16.mxu0 0
      %1656 = vmatmul.mubr.bf16.gmra.mrb[0].mxu0 %v1345
      %v1657 = vpop.f32.mrb[0].mxu0
      %v1658 = vadd.f32 %v1497, %v1657
      %v1659 = vpop.f32.mrb[0].mxu0
      %v1660 = vpop.f32.mrb[0].mxu0
      %v1661 = vadd.f32 %v1500, %v1660
      %v1662 = vpop.f32.mrb[0].mxu0
      %1663 = vmatprep.mubr.bf16.mxu0 0
      %1664 = vmatmul.mubr.bf16.gmra.mrb[0].mxu0 %v1348
      %v1665 = vpop.f32.mrb[0].mxu0
      %v1666 = vadd.f32 %v1505, %v1665
      %v1667 = vpop.f32.mrb[0].mxu0
      %v1668 = vpop.f32.mrb[0].mxu0
      %v1669 = vadd.f32 %v1508, %v1668
      %v1670 = vpop.f32.mrb[0].mxu0
      %1671 = vdwg.mxu0
      %v1672 = vld [vmem:[%s2] sm:$0x1]
      %v1674 = vlaneseq
      %v1675 = vshrl.u32 %v1674, 7
      %v1676 = vsub.s32 0, %v1675
      %v1677 = vrot.slane %v1672, %v1676
      %v1679 = vmul.f32 %v1546, %v1677
      %v1680 = vmul.f32 %v1549, %v1677
      %v1681 = vmul.f32 %v1554, %v1677
      %v1682 = vmul.f32 %v1557, %v1677
      %v1683 = vmul.f32 %v1562, %v1677
      %v1684 = vmul.f32 %v1565, %v1677
      %v1685 = vmul.f32 %v1570, %v1677
      %v1686 = vmul.f32 %v1573, %v1677
      %v1687 = vmul.f32 %v1578, %v1677
      %v1688 = vmul.f32 %v1581, %v1677
      %v1689 = vmul.f32 %v1586, %v1677
      %v1690 = vmul.f32 %v1589, %v1677
      %v1691 = vmul.f32 %v1594, %v1677
      %v1692 = vmul.f32 %v1597, %v1677
      %v1693 = vmul.f32 %v1602, %v1677
      %v1694 = vmul.f32 %v1605, %v1677
      %v1695 = vmul.f32 %v1610, %v1677
      %v1696 = vmul.f32 %v1613, %v1677
      %v1697 = vmul.f32 %v1618, %v1677
      %v1698 = vmul.f32 %v1621, %v1677
      %v1699 = vmul.f32 %v1626, %v1677
      %v1700 = vmul.f32 %v1629, %v1677
      %v1701 = vmul.f32 %v1634, %v1677
      %v1702 = vmul.f32 %v1637, %v1677
      %v1703 = vmul.f32 %v1642, %v1677
      %v1704 = vmul.f32 %v1645, %v1677
      %v1705 = vmul.f32 %v1650, %v1677
      %v1706 = vmul.f32 %v1653, %v1677
      %v1707 = vmul.f32 %v1658, %v1677
      %v1708 = vmul.f32 %v1661, %v1677
      %v1709 = vmul.f32 %v1666, %v1677
      %v1710 = vmul.f32 %v1669, %v1677
      %v1711 = vld [vmem:[%s3] sm:$0x1]
      %v1713 = vlaneseq
      %v1714 = vshrl.u32 %v1713, 7
      %v1715 = vsub.s32 0, %v1714
      %v1716 = vrot.slane %v1711, %v1715
      %v1718 = vadd.f32 %v1679, %v1716
      %v1719 = vadd.f32 %v1680, %v1716
      %v1720 = vadd.f32 %v1681, %v1716
      %v1721 = vadd.f32 %v1682, %v1716
      %v1722 = vadd.f32 %v1683, %v1716
      %v1723 = vadd.f32 %v1684, %v1716
      %v1724 = vadd.f32 %v1685, %v1716
      %v1725 = vadd.f32 %v1686, %v1716
      %v1726 = vadd.f32 %v1687, %v1716
      %v1727 = vadd.f32 %v1688, %v1716
      %v1728 = vadd.f32 %v1689, %v1716
      %v1729 = vadd.f32 %v1690, %v1716
      %v1730 = vadd.f32 %v1691, %v1716
      %v1731 = vadd.f32 %v1692, %v1716
      %v1732 = vadd.f32 %v1693, %v1716
      %v1733 = vadd.f32 %v1694, %v1716
      %v1734 = vadd.f32 %v1695, %v1716
      %v1735 = vadd.f32 %v1696, %v1716
      %v1736 = vadd.f32 %v1697, %v1716
      %v1737 = vadd.f32 %v1698, %v1716
      %v1738 = vadd.f32 %v1699, %v1716
      %v1739 = vadd.f32 %v1700, %v1716
      %v1740 = vadd.f32 %v1701, %v1716
      %v1741 = vadd.f32 %v1702, %v1716
      %v1742 = vadd.f32 %v1703, %v1716
      %v1743 = vadd.f32 %v1704, %v1716
      %v1744 = vadd.f32 %v1705, %v1716
      %v1745 = vadd.f32 %v1706, %v1716
      %v1746 = vadd.f32 %v1707, %v1716
      %v1747 = vadd.f32 %v1708, %v1716
      %v1748 = vadd.f32 %v1709, %v1716
      %v1749 = vadd.f32 %v1710, %v1716
      %v1750 = vmax.f32 %v1718, 0.0
      %v1751 = vmax.f32 %v1719, 0.0
      %v1752 = vmax.f32 %v1720, 0.0
      %v1753 = vmax.f32 %v1721, 0.0
      %v1754 = vmax.f32 %v1722, 0.0
      %v1755 = vmax.f32 %v1723, 0.0
      %v1756 = vmax.f32 %v1724, 0.0
      %v1757 = vmax.f32 %v1725, 0.0
      %v1758 = vmax.f32 %v1726, 0.0
      %v1759 = vmax.f32 %v1727, 0.0
      %v1760 = vmax.f32 %v1728, 0.0
      %v1761 = vmax.f32 %v1729, 0.0
      %v1762 = vmax.f32 %v1730, 0.0
      %v1763 = vmax.f32 %v1731, 0.0
      %v1764 = vmax.f32 %v1732, 0.0
      %v1765 = vmax.f32 %v1733, 0.0
      %v1766 = vmax.f32 %v1734, 0.0
      %v1767 = vmax.f32 %v1735, 0.0
      %v1768 = vmax.f32 %v1736, 0.0
      %v1769 = vmax.f32 %v1737, 0.0
      %v1770 = vmax.f32 %v1738, 0.0
      %v1771 = vmax.f32 %v1739, 0.0
      %v1772 = vmax.f32 %v1740, 0.0
      %v1773 = vmax.f32 %v1741, 0.0
      %v1774 = vmax.f32 %v1742, 0.0
      %v1775 = vmax.f32 %v1743, 0.0
      %v1776 = vmax.f32 %v1744, 0.0
      %v1777 = vmax.f32 %v1745, 0.0
      %v1778 = vmax.f32 %v1746, 0.0
      %v1779 = vmax.f32 %v1747, 0.0
      %v1780 = vmax.f32 %v1748, 0.0
      %v1781 = vmax.f32 %v1749, 0.0
      %v1782 = vld [vmem:[%s4] sm:$0xff]
      %v1783 = vld [vmem:[%s4 + $0x8] sm:$0xff]
      %v1784 = vld [vmem:[%s4 + $0x10] sm:$0xff]
      %v1785 = vld [vmem:[%s4 + $0x18] sm:$0xff]
      %v1786 = vld [vmem:[%s5] sm:$0x1]
      %v1788 = vlaneseq
      %v1789 = vshrl.u32 %v1788, 7
      %v1790 = vsub.s32 0, %v1789
      %v1791 = vrot.slane %v1786, %v1790
      %v1794 = vsel %vm915, %v1750, 0
      %v1797 = vsel %vm915, %v1751, 0
      %v1800 = vsel %vm915, %v1752, 0
      %v1803 = vsel %vm915, %v1753, 0
      %v1806 = vsel %vm915, %v1754, 0
      %v1809 = vsel %vm915, %v1755, 0
      %v1812 = vsel %vm915, %v1756, 0
      %v1815 = vsel %vm915, %v1757, 0
      %v1818 = vsel %vm915, %v1758, 0
      %v1821 = vsel %vm915, %v1759, 0
      %v1824 = vsel %vm915, %v1760, 0
      %v1827 = vsel %vm915, %v1761, 0
      %v1830 = vsel %vm915, %v1762, 0
      %v1833 = vsel %vm915, %v1763, 0
      %v1836 = vsel %vm915, %v1764, 0
      %v1839 = vsel %vm915, %v1765, 0
      %v1842 = vsel %vm915, %v1766, 0
      %v1845 = vsel %vm915, %v1767, 0
      %v1848 = vsel %vm915, %v1768, 0
      %v1851 = vsel %vm915, %v1769, 0
      %v1854 = vsel %vm915, %v1770, 0
      %v1857 = vsel %vm915, %v1771, 0
      %v1860 = vsel %vm915, %v1772, 0
      %v1863 = vsel %vm915, %v1773, 0
      %v1866 = vsel %vm915, %v1774, 0
      %v1869 = vsel %vm915, %v1775, 0
      %v1872 = vsel %vm915, %v1776, 0
      %v1875 = vsel %vm915, %v1777, 0
      %v1878 = vsel %vm915, %v1778, 0
      %v1881 = vsel %vm915, %v1779, 0
      %v1884 = vsel %vm915, %v1780, 0
      %v1887 = vsel %vm915, %v1781, 0
      %1889 = vmatprep.subr.mxu0 0.0
      %1890 = vmatpush1.msra.mxu0 %v1782
      %1891 = vmatprep.subr.mxu0 0.0
      %1892 = vmatpush1.msra.mxu0 %v1783
      %1893 = vmatprep.subr.mxu0 0.0
      %1894 = vmatpush1.msra.mxu0 %v1784
      %1895 = vmatprep.subr.mxu0 0.0
      %1896 = vmatpush1.msra.mxu0 %v1785
      %1897 = vmatprep.subr.mxu0 0.0
      %1898 = vmatpush1.msra.mxu0 0.0
      %1899 = vmatprep.subr.mxu0 0.0
      %1900 = vmatpush1.msra.mxu0 0.0
      %1901 = vmatprep.subr.mxu0 0.0
      %1902 = vmatpush1.msra.mxu0 0.0
      %1903 = vmatprep.subr.mxu0 0.0
      %1904 = vmatpush1.msra.mxu0 0.0
      %1905 = vmatprep.subr.mxu0 0.0
      %1906 = vmatpush1.msra.mxu0 0.0
      %1907 = vmatprep.subr.mxu0 0.0
      %1908 = vmatpush1.msra.mxu0 0.0
      %1909 = vmatprep.subr.mxu0 0.0
      %1910 = vmatpush1.msra.mxu0 0.0
      %1911 = vmatprep.subr.mxu0 0.0
      %1912 = vmatpush1.msra.mxu0 0.0
      %1913 = vmatprep.subr.mxu0 0.0
      %1914 = vmatpush1.msra.mxu0 0.0
      %1915 = vmatprep.subr.mxu0 0.0
      %1916 = vmatpush1.msra.mxu0 0.0
      %1917 = vmatprep.subr.mxu0 0.0
      %1918 = vmatpush1.msra.mxu0 0.0
      %1919 = vmatprep.subr.mxu0 0.0
      %1920 = vmatpush1.msra.mxu0 0.0
      %1921 = vmatprep.subr.mxu0 0.0
      %1922 = vmatpush1.msra.mxu0 0.0
      %1923 = vmatprep.subr.mxu0 0.0
      %1924 = vmatpush1.msra.mxu0 0.0
      %1925 = vmatprep.subr.mxu0 0.0
      %1926 = vmatpush1.msra.mxu0 0.0
      %1927 = vmatprep.subr.mxu0 0.0
      %1928 = vmatpush1.msra.mxu0 0.0
      %1929 = vmatprep.subr.mxu0 0.0
      %1930 = vmatpush1.msra.mxu0 0.0
      %1931 = vmatprep.subr.mxu0 0.0
      %1932 = vmatpush1.msra.mxu0 0.0
      %1933 = vmatprep.subr.mxu0 0.0
      %1934 = vmatpush1.msra.mxu0 0.0
      %1935 = vmatprep.subr.mxu0 0.0
      %1936 = vmatpush1.msra.mxu0 0.0
      %1937 = vmatprep.subr.mxu0 0.0
      %1938 = vmatpush1.msra.mxu0 0.0
      %1939 = vmatprep.subr.mxu0 0.0
      %1940 = vmatpush1.msra.mxu0 0.0
      %1941 = vmatprep.subr.mxu0 0.0
      %1942 = vmatpush1.msra.mxu0 0.0
      %1943 = vmatprep.subr.mxu0 0.0
      %1944 = vmatpush1.msra.mxu0 0.0
      %1945 = vmatprep.subr.mxu0 0.0
      %1946 = vmatpush1.msra.mxu0 0.0
      %1947 = vmatprep.subr.mxu0 0.0
      %1948 = vmatpush1.msra.mxu0 0.0
      %1949 = vmatprep.subr.mxu0 0.0
      %1950 = vmatpush1.msra.mxu0 0.0
      %1951 = vmatprep.subr.mxu0 0.0
      %1952 = vmatpush1.msra.mxu0 0.0
      %1953 = vmatprep.mubr.f32.mxu0 0.0
      %1954 = vmatmul.mubr.f32.gmra.mrb[0].mxu0 %v1794
      %v1955 = vpop.f32.mrb[0].mxu0
      %v1956 = vadd.f32 %v1791, %v1955
      %v1957 = vpop.f32.mrb[0].mxu0
      %1958 = vmatprep.mubr.f32.mxu0 0.0
      %1959 = vmatmul.mubr.f32.gmra.mrb[0].mxu0 %v1797
      %v1960 = vpop.f32.mrb[0].mxu0
      %v1961 = vadd.f32 %v1791, %v1960
      %v1962 = vpop.f32.mrb[0].mxu0
      %1963 = vmatprep.mubr.f32.mxu0 0.0
      %1964 = vmatmul.mubr.f32.gmra.mrb[0].mxu0 %v1800
      %v1965 = vpop.f32.mrb[0].mxu0
      %v1966 = vadd.f32 %v1791, %v1965
      %v1967 = vpop.f32.mrb[0].mxu0
      %1968 = vmatprep.mubr.f32.mxu0 0.0
      %1969 = vmatmul.mubr.f32.gmra.mrb[0].mxu0 %v1803
      %v1970 = vpop.f32.mrb[0].mxu0
      %v1971 = vadd.f32 %v1791, %v1970
      %v1972 = vpop.f32.mrb[0].mxu0
      %1973 = vmatprep.mubr.f32.mxu0 0.0
      %1974 = vmatmul.mubr.f32.gmra.mrb[0].mxu0 %v1806
      %v1975 = vpop.f32.mrb[0].mxu0
      %v1976 = vadd.f32 %v1791, %v1975
      %v1977 = vpop.f32.mrb[0].mxu0
      %1978 = vmatprep.mubr.f32.mxu0 0.0
      %1979 = vmatmul.mubr.f32.gmra.mrb[0].mxu0 %v1809
      %v1980 = vpop.f32.mrb[0].mxu0
      %v1981 = vadd.f32 %v1791, %v1980
      %v1982 = vpop.f32.mrb[0].mxu0
      %1983 = vmatprep.mubr.f32.mxu0 0.0
      %1984 = vmatmul.mubr.f32.gmra.mrb[0].mxu0 %v1812
      %v1985 = vpop.f32.mrb[0].mxu0
      %v1986 = vadd.f32 %v1791, %v1985
      %v1987 = vpop.f32.mrb[0].mxu0
      %1988 = vmatprep.mubr.f32.mxu0 0.0
      %1989 = vmatmul.mubr.f32.gmra.mrb[0].mxu0 %v1815
      %v1990 = vpop.f32.mrb[0].mxu0
      %v1991 = vadd.f32 %v1791, %v1990
      %v1992 = vpop.f32.mrb[0].mxu0
      %1993 = vmatprep.mubr.f32.mxu0 0.0
      %1994 = vmatmul.mubr.f32.gmra.mrb[0].mxu0 %v1818
      %v1995 = vpop.f32.mrb[0].mxu0
      %v1996 = vadd.f32 %v1791, %v1995
      %v1997 = vpop.f32.mrb[0].mxu0
      %1998 = vmatprep.mubr.f32.mxu0 0.0
      %1999 = vmatmul.mubr.f32.gmra.mrb[0].mxu0 %v1821
      %v2000 = vpop.f32.mrb[0].mxu0
      %v2001 = vadd.f32 %v1791, %v2000
      %v2002 = vpop.f32.mrb[0].mxu0
      %2003 = vmatprep.mubr.f32.mxu0 0.0
      %2004 = vmatmul.mubr.f32.gmra.mrb[0].mxu0 %v1824
      %v2005 = vpop.f32.mrb[0].mxu0
      %v2006 = vadd.f32 %v1791, %v2005
      %v2007 = vpop.f32.mrb[0].mxu0
      %2008 = vmatprep.mubr.f32.mxu0 0.0
      %2009 = vmatmul.mubr.f32.gmra.mrb[0].mxu0 %v1827
      %v2010 = vpop.f32.mrb[0].mxu0
      %v2011 = vadd.f32 %v1791, %v2010
      %v2012 = vpop.f32.mrb[0].mxu0
      %2013 = vmatprep.mubr.f32.mxu0 0.0
      %2014 = vmatmul.mubr.f32.gmra.mrb[0].mxu0 %v1830
      %v2015 = vpop.f32.mrb[0].mxu0
      %v2016 = vadd.f32 %v1791, %v2015
      %v2017 = vpop.f32.mrb[0].mxu0
      %2018 = vmatprep.mubr.f32.mxu0 0.0
      %2019 = vmatmul.mubr.f32.gmra.mrb[0].mxu0 %v1833
      %v2020 = vpop.f32.mrb[0].mxu0
      %v2021 = vadd.f32 %v1791, %v2020
      %v2022 = vpop.f32.mrb[0].mxu0
      %2023 = vmatprep.mubr.f32.mxu0 0.0
      %2024 = vmatmul.mubr.f32.gmra.mrb[0].mxu0 %v1836
      %v2025 = vpop.f32.mrb[0].mxu0
      %v2026 = vadd.f32 %v1791, %v2025
      %v2027 = vpop.f32.mrb[0].mxu0
      %2028 = vmatprep.mubr.f32.mxu0 0.0
      %2029 = vmatmul.mubr.f32.gmra.mrb[0].mxu0 %v1839
      %v2030 = vpop.f32.mrb[0].mxu0
      %v2031 = vadd.f32 %v1791, %v2030
      %v2032 = vpop.f32.mrb[0].mxu0
      %2033 = vmatprep.mubr.f32.mxu0 0.0
      %2034 = vmatmul.mubr.f32.gmra.mrb[0].mxu0 %v1842
      %v2035 = vpop.f32.mrb[0].mxu0
      %v2036 = vadd.f32 %v1791, %v2035
      %v2037 = vpop.f32.mrb[0].mxu0
      %2038 = vmatprep.mubr.f32.mxu0 0.0
      %2039 = vmatmul.mubr.f32.gmra.mrb[0].mxu0 %v1845
      %v2040 = vpop.f32.mrb[0].mxu0
      %v2041 = vadd.f32 %v1791, %v2040
      %v2042 = vpop.f32.mrb[0].mxu0
      %2043 = vmatprep.mubr.f32.mxu0 0.0
      %2044 = vmatmul.mubr.f32.gmra.mrb[0].mxu0 %v1848
      %v2045 = vpop.f32.mrb[0].mxu0
      %v2046 = vadd.f32 %v1791, %v2045
      %v2047 = vpop.f32.mrb[0].mxu0
      %2048 = vmatprep.mubr.f32.mxu0 0.0
      %2049 = vmatmul.mubr.f32.gmra.mrb[0].mxu0 %v1851
      %v2050 = vpop.f32.mrb[0].mxu0
      %v2051 = vadd.f32 %v1791, %v2050
      %v2052 = vpop.f32.mrb[0].mxu0
      %2053 = vmatprep.mubr.f32.mxu0 0.0
      %2054 = vmatmul.mubr.f32.gmra.mrb[0].mxu0 %v1854
      %v2055 = vpop.f32.mrb[0].mxu0
      %v2056 = vadd.f32 %v1791, %v2055
      %v2057 = vpop.f32.mrb[0].mxu0
      %2058 = vmatprep.mubr.f32.mxu0 0.0
      %2059 = vmatmul.mubr.f32.gmra.mrb[0].mxu0 %v1857
      %v2060 = vpop.f32.mrb[0].mxu0
      %v2061 = vadd.f32 %v1791, %v2060
      %v2062 = vpop.f32.mrb[0].mxu0
      %2063 = vmatprep.mubr.f32.mxu0 0.0
      %2064 = vmatmul.mubr.f32.gmra.mrb[0].mxu0 %v1860
      %v2065 = vpop.f32.mrb[0].mxu0
      %v2066 = vadd.f32 %v1791, %v2065
      %v2067 = vpop.f32.mrb[0].mxu0
      %2068 = vmatprep.mubr.f32.mxu0 0.0
      %2069 = vmatmul.mubr.f32.gmra.mrb[0].mxu0 %v1863
      %v2070 = vpop.f32.mrb[0].mxu0
      %v2071 = vadd.f32 %v1791, %v2070
      %v2072 = vpop.f32.mrb[0].mxu0
      %2073 = vmatprep.mubr.f32.mxu0 0.0
      %2074 = vmatmul.mubr.f32.gmra.mrb[0].mxu0 %v1866
      %v2075 = vpop.f32.mrb[0].mxu0
      %v2076 = vadd.f32 %v1791, %v2075
      %v2077 = vpop.f32.mrb[0].mxu0
      %2078 = vmatprep.mubr.f32.mxu0 0.0
      %2079 = vmatmul.mubr.f32.gmra.mrb[0].mxu0 %v1869
      %v2080 = vpop.f32.mrb[0].mxu0
      %v2081 = vadd.f32 %v1791, %v2080
      %v2082 = vpop.f32.mrb[0].mxu0
      %2083 = vmatprep.mubr.f32.mxu0 0.0
      %2084 = vmatmul.mubr.f32.gmra.mrb[0].mxu0 %v1872
      %v2085 = vpop.f32.mrb[0].mxu0
      %v2086 = vadd.f32 %v1791, %v2085
      %v2087 = vpop.f32.mrb[0].mxu0
      %2088 = vmatprep.mubr.f32.mxu0 0.0
      %2089 = vmatmul.mubr.f32.gmra.mrb[0].mxu0 %v1875
      %v2090 = vpop.f32.mrb[0].mxu0
      %v2091 = vadd.f32 %v1791, %v2090
      %v2092 = vpop.f32.mrb[0].mxu0
      %2093 = vmatprep.mubr.f32.mxu0 0.0
      %2094 = vmatmul.mubr.f32.gmra.mrb[0].mxu0 %v1878
      %v2095 = vpop.f32.mrb[0].mxu0
      %v2096 = vadd.f32 %v1791, %v2095
      %v2097 = vpop.f32.mrb[0].mxu0
      %2098 = vmatprep.mubr.f32.mxu0 0.0
      %2099 = vmatmul.mubr.f32.gmra.mrb[0].mxu0 %v1881
      %v2100 = vpop.f32.mrb[0].mxu0
      %v2101 = vadd.f32 %v1791, %v2100
      %v2102 = vpop.f32.mrb[0].mxu0
      %2103 = vmatprep.mubr.f32.mxu0 0.0
      %2104 = vmatmul.mubr.f32.gmra.mrb[0].mxu0 %v1884
      %v2105 = vpop.f32.mrb[0].mxu0
      %v2106 = vadd.f32 %v1791, %v2105
      %v2107 = vpop.f32.mrb[0].mxu0
      %2108 = vmatprep.mubr.f32.mxu0 0.0
      %2109 = vmatmul.mubr.f32.gmra.mrb[0].mxu0 %v1887
      %v2110 = vpop.f32.mrb[0].mxu0
      %v2111 = vadd.f32 %v1791, %v2110
      %v2112 = vpop.f32.mrb[0].mxu0
      %2113 = vdwg.mxu0
      %vm2114 = vcmask 23552
      %2115 = vst.msk [vmem:[%s251] sm:$0xff] %vm2114, %v1956
      %2116 = vst.msk [vmem:[%s251 + $0x8] sm:$0xff] %vm2114, %v1961
      %2117 = vst.msk [vmem:[%s251 + $0x10] sm:$0xff] %vm2114, %v1966
      %2118 = vst.msk [vmem:[%s251 + $0x18] sm:$0xff] %vm2114, %v1971
      %2119 = vst.msk [vmem:[%s251 + $0x20] sm:$0xff] %vm2114, %v1976
      %2120 = vst.msk [vmem:[%s251 + $0x28] sm:$0xff] %vm2114, %v1981
      %2121 = vst.msk [vmem:[%s251 + $0x30] sm:$0xff] %vm2114, %v1986
      %2122 = vst.msk [vmem:[%s251 + $0x38] sm:$0xff] %vm2114, %v1991
      %2123 = vst.msk [vmem:[%s251 + $0x40] sm:$0xff] %vm2114, %v1996
      %2124 = vst.msk [vmem:[%s251 + $0x48] sm:$0xff] %vm2114, %v2001
      %2125 = vst.msk [vmem:[%s251 + $0x50] sm:$0xff] %vm2114, %v2006
      %2126 = vst.msk [vmem:[%s251 + $0x58] sm:$0xff] %vm2114, %v2011
      %2127 = vst.msk [vmem:[%s251 + $0x60] sm:$0xff] %vm2114, %v2016
      %2128 = vst.msk [vmem:[%s251 + $0x68] sm:$0xff] %vm2114, %v2021
      %2129 = vst.msk [vmem:[%s251 + $0x70] sm:$0xff] %vm2114, %v2026
      %2130 = vst.msk [vmem:[%s251 + $0x78] sm:$0xff] %vm2114, %v2031
      %2131 = vst.msk [vmem:[%s251 + $0x80] sm:$0xff] %vm2114, %v2036
      %2132 = vst.msk [vmem:[%s251 + $0x88] sm:$0xff] %vm2114, %v2041
      %2133 = vst.msk [vmem:[%s251 + $0x90] sm:$0xff] %vm2114, %v2046
      %2134 = vst.msk [vmem:[%s251 + $0x98] sm:$0xff] %vm2114, %v2051
      %2135 = vst.msk [vmem:[%s251 + $0xa0] sm:$0xff] %vm2114, %v2056
      %2136 = vst.msk [vmem:[%s251 + $0xa8] sm:$0xff] %vm2114, %v2061
      %2137 = vst.msk [vmem:[%s251 + $0xb0] sm:$0xff] %vm2114, %v2066
      %2138 = vst.msk [vmem:[%s251 + $0xb8] sm:$0xff] %vm2114, %v2071
      %2139 = vst.msk [vmem:[%s251 + $0xc0] sm:$0xff] %vm2114, %v2076
      %2140 = vst.msk [vmem:[%s251 + $0xc8] sm:$0xff] %vm2114, %v2081
      %2141 = vst.msk [vmem:[%s251 + $0xd0] sm:$0xff] %vm2114, %v2086
      %2142 = vst.msk [vmem:[%s251 + $0xd8] sm:$0xff] %vm2114, %v2091
      %2143 = vst.msk [vmem:[%s251 + $0xe0] sm:$0xff] %vm2114, %v2096
      %2144 = vst.msk [vmem:[%s251 + $0xe8] sm:$0xff] %vm2114, %v2101
      %2145 = vst.msk [vmem:[%s251 + $0xf0] sm:$0xff] %vm2114, %v2106
      %2146 = vst.msk [vmem:[%s251 + $0xf8] sm:$0xff] %vm2114, %v2111
      %p2147 = scmp.lt.s32.totalorder %s17, 1
      %s2148 = scalar_select %p2147, %s17, 1
      %s2149 = smul.addr %s2148, 32
      %s2150 = smul.addr %s2149, 8
      %s2151 = scalar_lea.vmem %s6, %s2150
      // Predicated region
      $region45: #{fcnn2_forward.7} parent=43 // pred_check
        %p2152 = pneg %p166
      $region46: #{fcnn2_forward.7} parent=43 // pred_check_branch
        %2154 = sbr.rel (%p2152) target = $region48
      $region47: #{fcnn2_forward.7} parent=43 // pred_region
        _
      $region48: #{fcnn2_forward.7} parent=43 // pred_fallthru
        _
    $region44: #{fcnn2_forward.7} parent=5 // pred_fallthru
      _
    %p2155 = scmp.le.s32.totalorder 2, %s12
    // Predicated region
    $region49: #{fcnn2_forward.7} parent=5 // pred_check
      %p2156 = pneg %p2155
    $region50: #{fcnn2_forward.7} parent=5 // pred_check_branch
      %2158 = sbr.rel (%p2156) target = $region52
    $region51: #{fcnn2_forward.7} parent=5 // pred_region
      %s2159 = ssub.s32 %s12, 2
      // Predicated region
      $region53: #{fcnn2_forward.7} parent=51 // pred_check
        %p2160 = pneg %p172
      $region54: #{fcnn2_forward.7} parent=51 // pred_check_branch
        %2162 = sbr.rel (%p2160) target = $region56
      $region55: #{fcnn2_forward.7} parent=51 // pred_region
        %p2163 = scmp.lt.s32.totalorder %s18, 1
        %s2164 = scalar_select %p2163, %s18, 1
        %s2165 = smul.addr %s2164, 32
        %s2166 = smul.addr %s2165, 8
        %s2167 = scalar_lea.vmem %s6, %s2166
      $region56: #{fcnn2_forward.7} parent=51 // pred_fallthru
        _
    $region52: #{fcnn2_forward.7} parent=5 // pred_fallthru
      _
  $region6: #{fcnn2_forward.7} parent=0 // loop_footer
    %s16 = sadd.s32 1, %s12
  $region7: #{fcnn2_forward.7} parent=0 // loop_footer_branch
    %11 = sbr.rel target = $region3
  $region8: #{fcnn2_forward.7} parent=0 // loop_exit
    _

</llo_original>
